<compile_context>
chip_gen: v6e
topology: v6e:2x2x1
jax: 0.10.0
libtpu: 0.0.40
codegen_flags: <defaults>
</compile_context>

<pallas_src>
import functools

import jax
import jax.numpy as jnp
from jax.experimental import pallas as pl
from jax.experimental.pallas import tpu as pltpu

F32 = jnp.float32
NEG_INF = -1e9


# ----------------------------------------------------------------------------- in-kernel helpers
def _ln(y, g, b, eps):
    mu = jnp.mean(y, axis=-1, keepdims=True)
    var = jnp.mean(jnp.square(y - mu), axis=-1, keepdims=True)
    return (y - mu) * jax.lax.rsqrt(var + eps) * g + b


def _softmax_rows(s):
    # approx reciprocal runs on the EUP slot (co-issues with VPU); ~1e-4 rel. error,
    # acceptable for inference.
    m = jnp.max(s, axis=-1, keepdims=True)
    p = jnp.exp(s - m)
    return p * pl.reciprocal(jnp.sum(p, axis=-1, keepdims=True), approx=True)


# ----------------------------------------------------------------------------- fully fused Tr_Dec forward kernel
def _tr_dec_kernel(t_ref, v_ref, tbias_ref, vbias_ref, poolw_ref,
                   tgt_w_ref, tgt_b_ref, mem_w_ref, mem_b_ref,
                   sa_wqkv_ref, sa_bqkv_ref, sa_wo_ref, sa_bo_ref,
                   ca_wq_ref, ca_bq_ref, ca_wkv_ref, ca_bkv_ref, ca_wo_ref, ca_bo_ref,
                   ff_w1_ref, ff_b1_ref, ff_w2_ref, ff_b2_ref,
                   ln1_g_ref, ln1_b_ref, ln2_g_ref, ln2_b_ref, ln3_g_ref, ln3_b_ref,
                   decn_g_ref, decn_b_ref,
                   o_ref, *, num_layers, num_heads, eps):
    T = t_ref.shape[1]
    S = v_ref.shape[1]
    H = tgt_w_ref.shape[1]
    dh = H // num_heads
    scale = 1.0 / float(dh) ** 0.5

    # ---- input mappers (fused; t_h never touches HBM, v_h mapped once per batch elem)
    x = jnp.dot(t_ref[0], tgt_w_ref[...], preferred_element_type=F32) + tgt_b_ref[...]    # (T,H)
    mem = jnp.dot(v_ref[0], mem_w_ref[...], preferred_element_type=F32) + mem_b_ref[...]  # (S,H)

    # ---- key-padding additive biases, broadcast ONCE (hoisted out of the head loops)
    tbias = jnp.broadcast_to(tbias_ref[0], (T, T))   # (T, T)
    vbias = jnp.broadcast_to(vbias_ref[0], (T, S))   # (T, S)

    def mha(q_all, kv, bias, wo, bo):
        """q_all: (T,H) all-head queries; kv: (Skv, 2H) = [K | V]; one fused out-proj."""
        heads = []
        for h in range(num_heads):                   # tiny head count -> unrolled
            lo = h * dh
            q = q_all[:, lo:lo + dh]
            k = kv[:, lo:lo + dh]
            vh = kv[:, H + lo:H + lo + dh]
            s = jax.lax.dot_general(q, k, (((1,), (1,)), ((), ())),
                                    preferred_element_type=F32) * scale + bias
            p = _softmax_rows(s)
            heads.append(jnp.dot(p, vh, preferred_element_type=F32))    # (T, dh)
        ctx = jnp.concatenate(heads, axis=-1)                           # (T, H), single lane concat
        return jnp.dot(ctx, wo, preferred_element_type=F32) + bo        # ONE full-K out-proj

    # ---- decoder stack (post-LN layers), all weights resident in VMEM
    for l in range(num_layers):
        # self-attention block
        qkv = jnp.dot(x, sa_wqkv_ref[l], preferred_element_type=F32) + sa_bqkv_ref[l]     # (T, 3H)
        y = mha(qkv[:, :H], qkv[:, H:], tbias, sa_wo_ref[l], sa_bo_ref[l]) + x
        x = _ln(y, ln1_g_ref[l], ln1_b_ref[l], eps)
        # cross-attention block over mapped memory
        q_all = jnp.dot(x, ca_wq_ref[l], preferred_element_type=F32) + ca_bq_ref[l]       # (T, H)
        kv = jnp.dot(mem, ca_wkv_ref[l], preferred_element_type=F32) + ca_bkv_ref[l]      # (S, 2H)
        y = mha(q_all, kv, vbias, ca_wo_ref[l], ca_bo_ref[l]) + x
        x = _ln(y, ln2_g_ref[l], ln2_b_ref[l], eps)
        # feed-forward block (dropout = identity at inference)
        h1 = jnp.maximum(jnp.dot(x, ff_w1_ref[l], preferred_element_type=F32) + ff_b1_ref[l], 0.0)
        y = jnp.dot(h1, ff_w2_ref[l], preferred_element_type=F32) + ff_b2_ref[l] + x
        x = _ln(y, ln3_g_ref[l], ln3_b_ref[l], eps)

    # ---- final decoder LayerNorm
    x = _ln(x, decn_g_ref[...], decn_b_ref[...], eps)

    # ---- masked mean-pool of mapped memory (1/v_len pre-folded into poolw) + concat,
    #      written with ONE full-width lane-dense store
    pooled = jnp.dot(poolw_ref[0], mem, preferred_element_type=F32)     # (1, H)
    o_ref[0] = jnp.concatenate([jnp.broadcast_to(pooled, (T, H)), x], axis=-1)


def fused_tr_dec(p, t, v, t_bias, v_bias, pool_w, *, num_heads, eps=1e-5):
    B, T, DT = t.shape
    S, DV = v.shape[1], v.shape[2]
    H = p["tgt_w"].shape[1]
    F = p["ff_w1"].shape[2]
    L = p["sa_wqkv"].shape[0]
    assert H % num_heads == 0

    def full(shape):        # whole-array block, constant index -> loaded once, VMEM-resident
        n = len(shape)
        return pl.BlockSpec(shape, lambda b, _n=n: (0,) * _n)

    def per_batch(shape):
        return pl.BlockSpec(shape, lambda b: (b, 0, 0))

    in_specs = [
        per_batch((1, T, DT)),            # t
        per_batch((1, S, DV)),            # v
        per_batch((1, 1, T)),             # t_bias
        per_batch((1, 1, S)),             # v_bias
        per_batch((1, 1, S)),             # pool_w (valid/v_len)
        full((DT, H)), full((1, H)),      # tgt mapper
        full((DV, H)), full((1, H)),      # memory mapper
        full((L, H, 3 * H)), full((L, 1, 3 * H)),   # self-attn fused QKV
        full((L, H, H)), full((L, 1, H)),           # self-attn out-proj
        full((L, H, H)), full((L, 1, H)),           # cross-attn Q
        full((L, H, 2 * H)), full((L, 1, 2 * H)),   # cross-attn fused KV
        full((L, H, H)), full((L, 1, H)),           # cross-attn out-proj
        full((L, H, F)), full((L, 1, F)),           # FFN 1
        full((L, F, H)), full((L, 1, H)),           # FFN 2
        full((L, 1, H)), full((L, 1, H)),           # ln1
        full((L, 1, H)), full((L, 1, H)),           # ln2
        full((L, 1, H)), full((L, 1, H)),           # ln3
        full((1, H)), full((1, H)),                 # final decoder norm
    ]
    return pl.pallas_call(
        functools.partial(_tr_dec_kernel, num_layers=L, num_heads=num_heads, eps=eps),
        out_shape=jax.ShapeDtypeStruct((B, T, 2 * H), F32),
        grid=(B,),
        in_specs=in_specs,
        out_specs=pl.BlockSpec((1, T, 2 * H), lambda b: (b, 0, 0)),
        compiler_params=pltpu.CompilerParams(dimension_semantics=("parallel",)),
    )(t, v, t_bias, v_bias, pool_w,
      p["tgt_w"], p["tgt_b"], p["mem_w"], p["mem_b"],
      p["sa_wqkv"], p["sa_bqkv"], p["sa_wo"], p["sa_bo"],
      p["ca_wq"], p["ca_bq"], p["ca_wkv"], p["ca_bkv"], p["ca_wo"], p["ca_bo"],
      p["ff_w1"], p["ff_b1"], p["ff_w2"], p["ff_b2"],
      p["ln1_g"], p["ln1_b"], p["ln2_g"], p["ln2_b"], p["ln3_g"], p["ln3_b"],
      p["dec_norm_g"], p["dec_norm_b"])


# ----------------------------------------------------------------------------- Pool_Concat arch (no decoder)
def _pool_concat_kernel(t_ref, v_ref, poolw_ref, o_ref):
    T = t_ref.shape[1]
    hv = v_ref.shape[2]
    pooled = jnp.dot(poolw_ref[0], v_ref[0], preferred_element_type=F32)   # (1, DV)
    o_ref[0] = jnp.concatenate([jnp.broadcast_to(pooled, (T, hv)), t_ref[0]], axis=-1)


def pool_concat(t, v, pool_w):
    B, T, DT = t.shape
    S, DV = v.shape[1], v.shape[2]
    return pl.pallas_call(
        _pool_concat_kernel,
        out_shape=jax.ShapeDtypeStruct((B, T, DV + DT), F32),
        grid=(B,),
        in_specs=[pl.BlockSpec((1, T, DT), lambda b: (b, 0, 0)),
                  pl.BlockSpec((1, S, DV), lambda b: (b, 0, 0)),
                  pl.BlockSpec((1, 1, S), lambda b: (b, 0, 0))],
        out_specs=pl.BlockSpec((1, T, DV + DT), lambda b: (b, 0, 0)),
        compiler_params=pltpu.CompilerParams(dimension_semantics=("parallel",)),
    )(t, v, pool_w)


# ----------------------------------------------------------------------------- parameters (deterministic synthetic init)
def init_params(key, *, tgt_dim, memory_dim, hidden_dim, dim_ffm, num_layer):
    H, F, L = hidden_dim, dim_ffm, num_layer

    def w(k, shape, scale=0.05):
        return (scale * jax.random.normal(k, shape)).astype(F32)

    ks = jax.random.split(key, 9)
    return {
        "tgt_w": w(ks[0], (tgt_dim, H)), "tgt_b": jnp.zeros((1, H), F32),
        "mem_w": w(ks[1], (memory_dim, H)), "mem_b": jnp.zeros((1, H), F32),
        # per-layer weights stacked on a leading layer axis (VMEM-resident in the kernel)
        "sa_wqkv": w(ks[2], (L, H, 3 * H)), "sa_bqkv": jnp.zeros((L, 1, 3 * H), F32),
        "sa_wo": w(ks[3], (L, H, H)), "sa_bo": jnp.zeros((L, 1, H), F32),
        "ca_wq": w(ks[4], (L, H, H)), "ca_bq": jnp.zeros((L, 1, H), F32),
        "ca_wkv": w(ks[5], (L, H, 2 * H)), "ca_bkv": jnp.zeros((L, 1, 2 * H), F32),
        "ca_wo": w(ks[6], (L, H, H)), "ca_bo": jnp.zeros((L, 1, H), F32),
        "ff_w1": w(ks[7], (L, H, F)), "ff_b1": jnp.zeros((L, 1, F), F32),
        "ff_w2": w(ks[8], (L, F, H)), "ff_b2": jnp.zeros((L, 1, H), F32),
        "ln1_g": jnp.ones((L, 1, H), F32), "ln1_b": jnp.zeros((L, 1, H), F32),
        "ln2_g": jnp.ones((L, 1, H), F32), "ln2_b": jnp.zeros((L, 1, H), F32),
        "ln3_g": jnp.ones((L, 1, H), F32), "ln3_b": jnp.zeros((L, 1, H), F32),
        "dec_norm_g": jnp.ones((1, H), F32), "dec_norm_b": jnp.zeros((1, H), F32),
    }


# ----------------------------------------------------------------------------- Modal_Fuser forward
def modal_fuser_forward(params, v, t, v_mask, t_mask, v_len, *,
                        arch="Tr_Dec", num_heads=4):
    """arch=None -> t ; 'Pool_Concat' -> cat([pooled v, t]) ; 'Tr_Dec' -> full decoder fusion."""
    if arch is None:
        return t

    # masked-mean pooling weights with 1/v_len folded in (host-side, tiny)
    pool_w = ((~v_mask).astype(F32) / v_len.astype(F32)[:, None])[:, None, :]    # (B, 1, S)

    if arch == "Pool_Concat":
        return pool_concat(t, v, pool_w)

    # key-padding masks -> additive biases (True = padded -> -1e9)
    t_bias = jnp.where(t_mask, NEG_INF, 0.0).astype(F32)[:, None, :]    # (B, 1, T)
    v_bias = jnp.where(v_mask, NEG_INF, 0.0).astype(F32)[:, None, :]    # (B, 1, S)

    # whole forward (mappers + decoder stack + final LN + pool + concat) in ONE kernel
    return fused_tr_dec(params, t, v, t_bias, v_bias, pool_w, num_heads=num_heads)
    # TODO(synk): return_attn=True path (per-layer attention-weight outputs) not implemented.


# ----------------------------------------------------------------------------- demo
if __name__ == "__main__":
    B, S, T = 2, 12, 8                 # batch, video seq len, text seq len
    TGT_DIM, MEM_DIM = 24, 40          # cfg.tgt_dim, cfg.memory_dim
    HIDDEN, HEADS, FFM, LAYERS = 32, 4, 64, 2

    root = jax.random.PRNGKey(0)
    k_v, k_t, k_p = jax.random.split(root, 3)

    v = jax.random.normal(k_v, (B, S, MEM_DIM), F32)   # video features
    t = jax.random.normal(k_t, (B, T, TGT_DIM), F32)   # text features

    # padding masks: True = padded (ignore), at least one valid position per row
    v_lengths = jnp.array([10, 7], jnp.int32)
    t_lengths = jnp.array([8, 6], jnp.int32)
    v_mask = jnp.arange(S)[None, :] >= v_lengths[:, None]      # (B, S) bool
    t_mask = jnp.arange(T)[None, :] >= t_lengths[:, None]      # (B, T) bool
    v_len = v_lengths.astype(F32)                              # per-batch divisor

    params = init_params(k_p, tgt_dim=TGT_DIM, memory_dim=MEM_DIM,
                         hidden_dim=HIDDEN, dim_ffm=FFM, num_layer=LAYERS)

    fwd = jax.jit(functools.partial(modal_fuser_forward, arch="Tr_Dec", num_heads=HEADS))
    out = jax.block_until_ready(fwd(params, v, t, v_mask, t_mask, v_len))

    assert out.shape == (B, T, 2 * HIDDEN), out.shape
    assert bool(jnp.all(jnp.isfinite(out)))
    print("KERNEL_OK")
</pallas_src>

<mosaic_0001>
module attributes {stable_mosaic.version = 11 : i64} {
  func.func @_tr_dec_kernel(%arg0: i32, %arg1: memref<1x8x24xf32, #tpu.memory_space<vmem>>, %arg2: memref<1x12x40xf32, #tpu.memory_space<vmem>>, %arg3: memref<1x1x8xf32, #tpu.memory_space<vmem>>, %arg4: memref<1x1x12xf32, #tpu.memory_space<vmem>>, %arg5: memref<1x1x12xf32, #tpu.memory_space<vmem>>, %arg6: memref<24x32xf32, #tpu.memory_space<vmem>>, %arg7: memref<1x32xf32, #tpu.memory_space<vmem>>, %arg8: memref<40x32xf32, #tpu.memory_space<vmem>>, %arg9: memref<1x32xf32, #tpu.memory_space<vmem>>, %arg10: memref<2x32x96xf32, #tpu.memory_space<vmem>>, %arg11: memref<2x1x96xf32, #tpu.memory_space<vmem>>, %arg12: memref<2x32x32xf32, #tpu.memory_space<vmem>>, %arg13: memref<2x1x32xf32, #tpu.memory_space<vmem>>, %arg14: memref<2x32x32xf32, #tpu.memory_space<vmem>>, %arg15: memref<2x1x32xf32, #tpu.memory_space<vmem>>, %arg16: memref<2x32x64xf32, #tpu.memory_space<vmem>>, %arg17: memref<2x1x64xf32, #tpu.memory_space<vmem>>, %arg18: memref<2x32x32xf32, #tpu.memory_space<vmem>>, %arg19: memref<2x1x32xf32, #tpu.memory_space<vmem>>, %arg20: memref<2x32x64xf32, #tpu.memory_space<vmem>>, %arg21: memref<2x1x64xf32, #tpu.memory_space<vmem>>, %arg22: memref<2x64x32xf32, #tpu.memory_space<vmem>>, %arg23: memref<2x1x32xf32, #tpu.memory_space<vmem>>, %arg24: memref<2x1x32xf32, #tpu.memory_space<vmem>>, %arg25: memref<2x1x32xf32, #tpu.memory_space<vmem>>, %arg26: memref<2x1x32xf32, #tpu.memory_space<vmem>>, %arg27: memref<2x1x32xf32, #tpu.memory_space<vmem>>, %arg28: memref<2x1x32xf32, #tpu.memory_space<vmem>>, %arg29: memref<2x1x32xf32, #tpu.memory_space<vmem>>, %arg30: memref<1x32xf32, #tpu.memory_space<vmem>>, %arg31: memref<1x32xf32, #tpu.memory_space<vmem>>, %arg32: memref<1x8x64xf32, #tpu.memory_space<vmem>>) attributes {dimension_semantics = [#tpu.dimension_semantics<parallel>], iteration_bounds = array<i64: 2>, scalar_prefetch = 0 : i64, scratch_operands = 0 : i64, tpu.core_type = #tpu.core_type<tc>, window_params = [{transform_indices = @transform_0, window_bounds = array<i64: 1, 8, 24>}, {transform_indices = @transform_1, window_bounds = array<i64: 1, 12, 40>}, {transform_indices = @transform_2, window_bounds = array<i64: 1, 1, 8>}, {transform_indices = @transform_3, window_bounds = array<i64: 1, 1, 12>}, {transform_indices = @transform_4, window_bounds = array<i64: 1, 1, 12>}, {pipeline_mode = #tpu.pipeline_mode<synchronous>, transform_indices = @transform_5, window_bounds = array<i64: 24, 32>}, {pipeline_mode = #tpu.pipeline_mode<synchronous>, transform_indices = @transform_6, window_bounds = array<i64: 1, 32>}, {pipeline_mode = #tpu.pipeline_mode<synchronous>, transform_indices = @transform_7, window_bounds = array<i64: 40, 32>}, {pipeline_mode = #tpu.pipeline_mode<synchronous>, transform_indices = @transform_8, window_bounds = array<i64: 1, 32>}, {pipeline_mode = #tpu.pipeline_mode<synchronous>, transform_indices = @transform_9, window_bounds = array<i64: 2, 32, 96>}, {pipeline_mode = #tpu.pipeline_mode<synchronous>, transform_indices = @transform_10, window_bounds = array<i64: 2, 1, 96>}, {pipeline_mode = #tpu.pipeline_mode<synchronous>, transform_indices = @transform_11, window_bounds = array<i64: 2, 32, 32>}, {pipeline_mode = #tpu.pipeline_mode<synchronous>, transform_indices = @transform_12, window_bounds = array<i64: 2, 1, 32>}, {pipeline_mode = #tpu.pipeline_mode<synchronous>, transform_indices = @transform_13, window_bounds = array<i64: 2, 32, 32>}, {pipeline_mode = #tpu.pipeline_mode<synchronous>, transform_indices = @transform_14, window_bounds = array<i64: 2, 1, 32>}, {pipeline_mode = #tpu.pipeline_mode<synchronous>, transform_indices = @transform_15, window_bounds = array<i64: 2, 32, 64>}, {pipeline_mode = #tpu.pipeline_mode<synchronous>, transform_indices = @transform_16, window_bounds = array<i64: 2, 1, 64>}, {pipeline_mode = #tpu.pipeline_mode<synchronous>, transform_indices = @transform_17, window_bounds = array<i64: 2, 32, 32>}, {pipeline_mode = #tpu.pipeline_mode<synchronous>, transform_indices = @transform_18, window_bounds = array<i64: 2, 1, 32>}, {pipeline_mode = #tpu.pipeline_mode<synchronous>, transform_indices = @transform_19, window_bounds = array<i64: 2, 32, 64>}, {pipeline_mode = #tpu.pipeline_mode<synchronous>, transform_indices = @transform_20, window_bounds = array<i64: 2, 1, 64>}, {pipeline_mode = #tpu.pipeline_mode<synchronous>, transform_indices = @transform_21, window_bounds = array<i64: 2, 64, 32>}, {pipeline_mode = #tpu.pipeline_mode<synchronous>, transform_indices = @transform_22, window_bounds = array<i64: 2, 1, 32>}, {pipeline_mode = #tpu.pipeline_mode<synchronous>, transform_indices = @transform_23, window_bounds = array<i64: 2, 1, 32>}, {pipeline_mode = #tpu.pipeline_mode<synchronous>, transform_indices = @transform_24, window_bounds = array<i64: 2, 1, 32>}, {pipeline_mode = #tpu.pipeline_mode<synchronous>, transform_indices = @transform_25, window_bounds = array<i64: 2, 1, 32>}, {pipeline_mode = #tpu.pipeline_mode<synchronous>, transform_indices = @transform_26, window_bounds = array<i64: 2, 1, 32>}, {pipeline_mode = #tpu.pipeline_mode<synchronous>, transform_indices = @transform_27, window_bounds = array<i64: 2, 1, 32>}, {pipeline_mode = #tpu.pipeline_mode<synchronous>, transform_indices = @transform_28, window_bounds = array<i64: 2, 1, 32>}, {pipeline_mode = #tpu.pipeline_mode<synchronous>, transform_indices = @transform_29, window_bounds = array<i64: 1, 32>}, {pipeline_mode = #tpu.pipeline_mode<synchronous>, transform_indices = @transform_30, window_bounds = array<i64: 1, 32>}, {transform_indices = @transform_31, window_bounds = array<i64: 1, 8, 64>}]} {
    %c0 = arith.constant 0 : index
    %c0_0 = arith.constant 0 : index
    %c0_1 = arith.constant 0 : index
    %0 = vector.load %arg1[%c0, %c0_0, %c0_1] : memref<1x8x24xf32, #tpu.memory_space<vmem>>, vector<1x8x24xf32>
    %1 = vector.shape_cast %0 : vector<1x8x24xf32> to vector<8x24xf32>
    %c0_2 = arith.constant 0 : index
    %c0_3 = arith.constant 0 : index
    %2 = vector.load %arg6[%c0_2, %c0_3] : memref<24x32xf32, #tpu.memory_space<vmem>>, vector<24x32xf32>
    %cst = arith.constant dense<0.000000e+00> : vector<8x32xf32>
    %3 = tpu.matmul %1, %2, %cst {dimension_numbers = #tpu.dot_dimension_numbers<[1], [0], [0], [1], [0, 0, 1, 1], [], []>} : vector<8x24xf32>, vector<24x32xf32>, vector<8x32xf32> -> vector<8x32xf32>
    %c0_4 = arith.constant 0 : index
    %c0_5 = arith.constant 0 : index
    %4 = vector.load %arg7[%c0_4, %c0_5] : memref<1x32xf32, #tpu.memory_space<vmem>>, vector<1x32xf32>
    %5 = vector.broadcast %4 : vector<1x32xf32> to vector<8x32xf32>
    %6 = arith.addf %3, %5 : vector<8x32xf32>
    %c0_6 = arith.constant 0 : index
    %c0_7 = arith.constant 0 : index
    %c0_8 = arith.constant 0 : index
    %7 = vector.load %arg2[%c0_6, %c0_7, %c0_8] : memref<1x12x40xf32, #tpu.memory_space<vmem>>, vector<1x12x40xf32>
    %8 = vector.shape_cast %7 : vector<1x12x40xf32> to vector<12x40xf32>
    %c0_9 = arith.constant 0 : index
    %c0_10 = arith.constant 0 : index
    %9 = vector.load %arg8[%c0_9, %c0_10] : memref<40x32xf32, #tpu.memory_space<vmem>>, vector<40x32xf32>
    %cst_11 = arith.constant dense<0.000000e+00> : vector<12x32xf32>
    %10 = tpu.matmul %8, %9, %cst_11 {dimension_numbers = #tpu.dot_dimension_numbers<[1], [0], [0], [1], [0, 0, 1, 1], [], []>} : vector<12x40xf32>, vector<40x32xf32>, vector<12x32xf32> -> vector<12x32xf32>
    %c0_12 = arith.constant 0 : index
    %c0_13 = arith.constant 0 : index
    %11 = vector.load %arg9[%c0_12, %c0_13] : memref<1x32xf32, #tpu.memory_space<vmem>>, vector<1x32xf32>
    %12 = vector.broadcast %11 : vector<1x32xf32> to vector<12x32xf32>
    %13 = arith.addf %10, %12 : vector<12x32xf32>
    %c0_14 = arith.constant 0 : index
    %c0_15 = arith.constant 0 : index
    %c0_16 = arith.constant 0 : index
    %14 = vector.load %arg3[%c0_14, %c0_15, %c0_16] : memref<1x1x8xf32, #tpu.memory_space<vmem>>, vector<1x1x8xf32>
    %15 = vector.shape_cast %14 : vector<1x1x8xf32> to vector<1x8xf32>
    %16 = vector.shape_cast %15 : vector<1x8xf32> to vector<1x8xf32>
    %17 = vector.broadcast %16 : vector<1x8xf32> to vector<8x8xf32>
    %c0_17 = arith.constant 0 : index
    %c0_18 = arith.constant 0 : index
    %c0_19 = arith.constant 0 : index
    %18 = vector.load %arg4[%c0_17, %c0_18, %c0_19] : memref<1x1x12xf32, #tpu.memory_space<vmem>>, vector<1x1x12xf32>
    %19 = vector.shape_cast %18 : vector<1x1x12xf32> to vector<1x12xf32>
    %20 = vector.shape_cast %19 : vector<1x12xf32> to vector<1x12xf32>
    %21 = vector.broadcast %20 : vector<1x12xf32> to vector<8x12xf32>
    %c0_20 = arith.constant 0 : index
    %c0_21 = arith.constant 0 : index
    %c0_22 = arith.constant 0 : index
    %22 = vector.load %arg10[%c0_20, %c0_21, %c0_22] : memref<2x32x96xf32, #tpu.memory_space<vmem>>, vector<1x32x96xf32>
    %23 = vector.shape_cast %22 : vector<1x32x96xf32> to vector<32x96xf32>
    %cst_23 = arith.constant dense<0.000000e+00> : vector<8x96xf32>
    %24 = tpu.matmul %6, %23, %cst_23 {dimension_numbers = #tpu.dot_dimension_numbers<[1], [0], [0], [1], [0, 0, 1, 1], [], []>} : vector<8x32xf32>, vector<32x96xf32>, vector<8x96xf32> -> vector<8x96xf32>
    %c0_24 = arith.constant 0 : index
    %c0_25 = arith.constant 0 : index
    %c0_26 = arith.constant 0 : index
    %25 = vector.load %arg11[%c0_24, %c0_25, %c0_26] : memref<2x1x96xf32, #tpu.memory_space<vmem>>, vector<1x1x96xf32>
    %26 = vector.shape_cast %25 : vector<1x1x96xf32> to vector<1x96xf32>
    %27 = vector.broadcast %26 : vector<1x96xf32> to vector<8x96xf32>
    %28 = arith.addf %24, %27 : vector<8x96xf32>
    %29 = vector.extract_strided_slice %28 {offsets = [0, 0], sizes = [8, 32], strides = [1, 1]} : vector<8x96xf32> to vector<8x32xf32>
    %30 = vector.extract_strided_slice %28 {offsets = [0, 32], sizes = [8, 64], strides = [1, 1]} : vector<8x96xf32> to vector<8x64xf32>
    %c0_27 = arith.constant 0 : index
    %c0_28 = arith.constant 0 : index
    %c0_29 = arith.constant 0 : index
    %31 = vector.load %arg12[%c0_27, %c0_28, %c0_29] : memref<2x32x32xf32, #tpu.memory_space<vmem>>, vector<1x32x32xf32>
    %32 = vector.shape_cast %31 : vector<1x32x32xf32> to vector<32x32xf32>
    %c0_30 = arith.constant 0 : index
    %c0_31 = arith.constant 0 : index
    %c0_32 = arith.constant 0 : index
    %33 = vector.load %arg13[%c0_30, %c0_31, %c0_32] : memref<2x1x32xf32, #tpu.memory_space<vmem>>, vector<1x1x32xf32>
    %34 = vector.shape_cast %33 : vector<1x1x32xf32> to vector<1x32xf32>
    %35 = vector.extract_strided_slice %29 {offsets = [0, 0], sizes = [8, 8], strides = [1, 1]} : vector<8x32xf32> to vector<8x8xf32>
    %36 = vector.extract_strided_slice %30 {offsets = [0, 0], sizes = [8, 8], strides = [1, 1]} : vector<8x64xf32> to vector<8x8xf32>
    %37 = vector.extract_strided_slice %30 {offsets = [0, 32], sizes = [8, 8], strides = [1, 1]} : vector<8x64xf32> to vector<8x8xf32>
    %cst_33 = arith.constant dense<0.000000e+00> : vector<8x8xf32>
    %38 = tpu.matmul %35, %36, %cst_33 {dimension_numbers = #tpu.dot_dimension_numbers<[1], [1], [0], [0], [0, 0, 1, 0], [], []>} : vector<8x8xf32>, vector<8x8xf32>, vector<8x8xf32> -> vector<8x8xf32>
    %cst_34 = arith.constant 0.353553385 : f32
    %39 = vector.broadcast %cst_34 : f32 to vector<8x8xf32>
    %40 = arith.mulf %38, %39 : vector<8x8xf32>
    %41 = arith.addf %40, %17 : vector<8x8xf32>
    %cst_35 = arith.constant dense<0xFF800000> : vector<8xf32>
    %42 = vector.multi_reduction <maximumf>, %41, %cst_35 [1] : vector<8x8xf32> to vector<8xf32>
    %43 = vector.shape_cast %42 : vector<8xf32> to vector<8x1xf32>
    %44 = vector.broadcast %43 : vector<8x1xf32> to vector<8x8xf32>
    %45 = arith.subf %41, %44 : vector<8x8xf32>
    %46 = math.exp %45 : vector<8x8xf32>
    %cst_36 = arith.constant dense<0.000000e+00> : vector<8xf32>
    %47 = vector.multi_reduction <add>, %46, %cst_36 [1] : vector<8x8xf32> to vector<8xf32>
    %48 = vector.shape_cast %47 : vector<8xf32> to vector<8x1xf32>
    %49 = tpu.reciprocal %48 {approx = true} : vector<8x1xf32> -> vector<8x1xf32>
    %50 = vector.broadcast %49 : vector<8x1xf32> to vector<8x8xf32>
    %51 = arith.mulf %46, %50 : vector<8x8xf32>
    %cst_37 = arith.constant dense<0.000000e+00> : vector<8x8xf32>
    %52 = tpu.matmul %51, %37, %cst_37 {dimension_numbers = #tpu.dot_dimension_numbers<[1], [0], [0], [1], [0, 0, 1, 1], [], []>} : vector<8x8xf32>, vector<8x8xf32>, vector<8x8xf32> -> vector<8x8xf32>
    %53 = vector.extract_strided_slice %29 {offsets = [0, 8], sizes = [8, 8], strides = [1, 1]} : vector<8x32xf32> to vector<8x8xf32>
    %54 = vector.extract_strided_slice %30 {offsets = [0, 8], sizes = [8, 8], strides = [1, 1]} : vector<8x64xf32> to vector<8x8xf32>
    %55 = vector.extract_strided_slice %30 {offsets = [0, 40], sizes = [8, 8], strides = [1, 1]} : vector<8x64xf32> to vector<8x8xf32>
    %cst_38 = arith.constant dense<0.000000e+00> : vector<8x8xf32>
    %56 = tpu.matmul %53, %54, %cst_38 {dimension_numbers = #tpu.dot_dimension_numbers<[1], [1], [0], [0], [0, 0, 1, 0], [], []>} : vector<8x8xf32>, vector<8x8xf32>, vector<8x8xf32> -> vector<8x8xf32>
    %cst_39 = arith.constant 0.353553385 : f32
    %57 = vector.broadcast %cst_39 : f32 to vector<8x8xf32>
    %58 = arith.mulf %56, %57 : vector<8x8xf32>
    %59 = arith.addf %58, %17 : vector<8x8xf32>
    %cst_40 = arith.constant dense<0xFF800000> : vector<8xf32>
    %60 = vector.multi_reduction <maximumf>, %59, %cst_40 [1] : vector<8x8xf32> to vector<8xf32>
    %61 = vector.shape_cast %60 : vector<8xf32> to vector<8x1xf32>
    %62 = vector.broadcast %61 : vector<8x1xf32> to vector<8x8xf32>
    %63 = arith.subf %59, %62 : vector<8x8xf32>
    %64 = math.exp %63 : vector<8x8xf32>
    %cst_41 = arith.constant dense<0.000000e+00> : vector<8xf32>
    %65 = vector.multi_reduction <add>, %64, %cst_41 [1] : vector<8x8xf32> to vector<8xf32>
    %66 = vector.shape_cast %65 : vector<8xf32> to vector<8x1xf32>
    %67 = tpu.reciprocal %66 {approx = true} : vector<8x1xf32> -> vector<8x1xf32>
    %68 = vector.broadcast %67 : vector<8x1xf32> to vector<8x8xf32>
    %69 = arith.mulf %64, %68 : vector<8x8xf32>
    %cst_42 = arith.constant dense<0.000000e+00> : vector<8x8xf32>
    %70 = tpu.matmul %69, %55, %cst_42 {dimension_numbers = #tpu.dot_dimension_numbers<[1], [0], [0], [1], [0, 0, 1, 1], [], []>} : vector<8x8xf32>, vector<8x8xf32>, vector<8x8xf32> -> vector<8x8xf32>
    %71 = vector.extract_strided_slice %29 {offsets = [0, 16], sizes = [8, 8], strides = [1, 1]} : vector<8x32xf32> to vector<8x8xf32>
    %72 = vector.extract_strided_slice %30 {offsets = [0, 16], sizes = [8, 8], strides = [1, 1]} : vector<8x64xf32> to vector<8x8xf32>
    %73 = vector.extract_strided_slice %30 {offsets = [0, 48], sizes = [8, 8], strides = [1, 1]} : vector<8x64xf32> to vector<8x8xf32>
    %cst_43 = arith.constant dense<0.000000e+00> : vector<8x8xf32>
    %74 = tpu.matmul %71, %72, %cst_43 {dimension_numbers = #tpu.dot_dimension_numbers<[1], [1], [0], [0], [0, 0, 1, 0], [], []>} : vector<8x8xf32>, vector<8x8xf32>, vector<8x8xf32> -> vector<8x8xf32>
    %cst_44 = arith.constant 0.353553385 : f32
    %75 = vector.broadcast %cst_44 : f32 to vector<8x8xf32>
    %76 = arith.mulf %74, %75 : vector<8x8xf32>
    %77 = arith.addf %76, %17 : vector<8x8xf32>
    %cst_45 = arith.constant dense<0xFF800000> : vector<8xf32>
    %78 = vector.multi_reduction <maximumf>, %77, %cst_45 [1] : vector<8x8xf32> to vector<8xf32>
    %79 = vector.shape_cast %78 : vector<8xf32> to vector<8x1xf32>
    %80 = vector.broadcast %79 : vector<8x1xf32> to vector<8x8xf32>
    %81 = arith.subf %77, %80 : vector<8x8xf32>
    %82 = math.exp %81 : vector<8x8xf32>
    %cst_46 = arith.constant dense<0.000000e+00> : vector<8xf32>
    %83 = vector.multi_reduction <add>, %82, %cst_46 [1] : vector<8x8xf32> to vector<8xf32>
    %84 = vector.shape_cast %83 : vector<8xf32> to vector<8x1xf32>
    %85 = tpu.reciprocal %84 {approx = true} : vector<8x1xf32> -> vector<8x1xf32>
    %86 = vector.broadcast %85 : vector<8x1xf32> to vector<8x8xf32>
    %87 = arith.mulf %82, %86 : vector<8x8xf32>
    %cst_47 = arith.constant dense<0.000000e+00> : vector<8x8xf32>
    %88 = tpu.matmul %87, %73, %cst_47 {dimension_numbers = #tpu.dot_dimension_numbers<[1], [0], [0], [1], [0, 0, 1, 1], [], []>} : vector<8x8xf32>, vector<8x8xf32>, vector<8x8xf32> -> vector<8x8xf32>
    %89 = vector.extract_strided_slice %29 {offsets = [0, 24], sizes = [8, 8], strides = [1, 1]} : vector<8x32xf32> to vector<8x8xf32>
    %90 = vector.extract_strided_slice %30 {offsets = [0, 24], sizes = [8, 8], strides = [1, 1]} : vector<8x64xf32> to vector<8x8xf32>
    %91 = vector.extract_strided_slice %30 {offsets = [0, 56], sizes = [8, 8], strides = [1, 1]} : vector<8x64xf32> to vector<8x8xf32>
    %cst_48 = arith.constant dense<0.000000e+00> : vector<8x8xf32>
    %92 = tpu.matmul %89, %90, %cst_48 {dimension_numbers = #tpu.dot_dimension_numbers<[1], [1], [0], [0], [0, 0, 1, 0], [], []>} : vector<8x8xf32>, vector<8x8xf32>, vector<8x8xf32> -> vector<8x8xf32>
    %cst_49 = arith.constant 0.353553385 : f32
    %93 = vector.broadcast %cst_49 : f32 to vector<8x8xf32>
    %94 = arith.mulf %92, %93 : vector<8x8xf32>
    %95 = arith.addf %94, %17 : vector<8x8xf32>
    %cst_50 = arith.constant dense<0xFF800000> : vector<8xf32>
    %96 = vector.multi_reduction <maximumf>, %95, %cst_50 [1] : vector<8x8xf32> to vector<8xf32>
    %97 = vector.shape_cast %96 : vector<8xf32> to vector<8x1xf32>
    %98 = vector.broadcast %97 : vector<8x1xf32> to vector<8x8xf32>
    %99 = arith.subf %95, %98 : vector<8x8xf32>
    %100 = math.exp %99 : vector<8x8xf32>
    %cst_51 = arith.constant dense<0.000000e+00> : vector<8xf32>
    %101 = vector.multi_reduction <add>, %100, %cst_51 [1] : vector<8x8xf32> to vector<8xf32>
    %102 = vector.shape_cast %101 : vector<8xf32> to vector<8x1xf32>
    %103 = tpu.reciprocal %102 {approx = true} : vector<8x1xf32> -> vector<8x1xf32>
    %104 = vector.broadcast %103 : vector<8x1xf32> to vector<8x8xf32>
    %105 = arith.mulf %100, %104 : vector<8x8xf32>
    %cst_52 = arith.constant dense<0.000000e+00> : vector<8x8xf32>
    %106 = tpu.matmul %105, %91, %cst_52 {dimension_numbers = #tpu.dot_dimension_numbers<[1], [0], [0], [1], [0, 0, 1, 1], [], []>} : vector<8x8xf32>, vector<8x8xf32>, vector<8x8xf32> -> vector<8x8xf32>
    %107 = tpu.concatenate %52, %70, %88, %106 in 1 : vector<8x8xf32>, vector<8x8xf32>, vector<8x8xf32>, vector<8x8xf32> -> vector<8x32xf32>
    %cst_53 = arith.constant dense<0.000000e+00> : vector<8x32xf32>
    %108 = tpu.matmul %107, %32, %cst_53 {dimension_numbers = #tpu.dot_dimension_numbers<[1], [0], [0], [1], [0, 0, 1, 1], [], []>} : vector<8x32xf32>, vector<32x32xf32>, vector<8x32xf32> -> vector<8x32xf32>
    %109 = vector.broadcast %34 : vector<1x32xf32> to vector<8x32xf32>
    %110 = arith.addf %108, %109 : vector<8x32xf32>
    %111 = arith.addf %110, %6 : vector<8x32xf32>
    %c0_54 = arith.constant 0 : index
    %c0_55 = arith.constant 0 : index
    %c0_56 = arith.constant 0 : index
    %112 = vector.load %arg24[%c0_54, %c0_55, %c0_56] : memref<2x1x32xf32, #tpu.memory_space<vmem>>, vector<1x1x32xf32>
    %113 = vector.shape_cast %112 : vector<1x1x32xf32> to vector<1x32xf32>
    %c0_57 = arith.constant 0 : index
    %c0_58 = arith.constant 0 : index
    %c0_59 = arith.constant 0 : index
    %114 = vector.load %arg25[%c0_57, %c0_58, %c0_59] : memref<2x1x32xf32, #tpu.memory_space<vmem>>, vector<1x1x32xf32>
    %115 = vector.shape_cast %114 : vector<1x1x32xf32> to vector<1x32xf32>
    %cst_60 = arith.constant dense<0.000000e+00> : vector<8xf32>
    %116 = vector.multi_reduction <add>, %111, %cst_60 [1] : vector<8x32xf32> to vector<8xf32>
    %117 = vector.shape_cast %116 : vector<8xf32> to vector<8x1xf32>
    %cst_61 = arith.constant 3.200000e+01 : f32
    %118 = vector.broadcast %cst_61 : f32 to vector<8x1xf32>
    %119 = arith.divf %117, %118 : vector<8x1xf32>
    %120 = vector.broadcast %119 : vector<8x1xf32> to vector<8x32xf32>
    %121 = arith.subf %111, %120 : vector<8x32xf32>
    %122 = arith.mulf %121, %121 : vector<8x32xf32>
    %cst_62 = arith.constant dense<0.000000e+00> : vector<8xf32>
    %123 = vector.multi_reduction <add>, %122, %cst_62 [1] : vector<8x32xf32> to vector<8xf32>
    %124 = vector.shape_cast %123 : vector<8xf32> to vector<8x1xf32>
    %cst_63 = arith.constant 3.200000e+01 : f32
    %125 = vector.broadcast %cst_63 : f32 to vector<8x1xf32>
    %126 = arith.divf %124, %125 : vector<8x1xf32>
    %127 = vector.broadcast %119 : vector<8x1xf32> to vector<8x32xf32>
    %128 = arith.subf %111, %127 : vector<8x32xf32>
    %cst_64 = arith.constant 9.99999974E-6 : f32
    %129 = vector.broadcast %cst_64 : f32 to vector<8x1xf32>
    %130 = arith.addf %126, %129 : vector<8x1xf32>
    %131 = math.rsqrt %130 : vector<8x1xf32>
    %132 = vector.broadcast %131 : vector<8x1xf32> to vector<8x32xf32>
    %133 = arith.mulf %128, %132 : vector<8x32xf32>
    %134 = vector.broadcast %113 : vector<1x32xf32> to vector<8x32xf32>
    %135 = arith.mulf %133, %134 : vector<8x32xf32>
    %136 = vector.broadcast %115 : vector<1x32xf32> to vector<8x32xf32>
    %137 = arith.addf %135, %136 : vector<8x32xf32>
    %c0_65 = arith.constant 0 : index
    %c0_66 = arith.constant 0 : index
    %c0_67 = arith.constant 0 : index
    %138 = vector.load %arg14[%c0_65, %c0_66, %c0_67] : memref<2x32x32xf32, #tpu.memory_space<vmem>>, vector<1x32x32xf32>
    %139 = vector.shape_cast %138 : vector<1x32x32xf32> to vector<32x32xf32>
    %cst_68 = arith.constant dense<0.000000e+00> : vector<8x32xf32>
    %140 = tpu.matmul %137, %139, %cst_68 {dimension_numbers = #tpu.dot_dimension_numbers<[1], [0], [0], [1], [0, 0, 1, 1], [], []>} : vector<8x32xf32>, vector<32x32xf32>, vector<8x32xf32> -> vector<8x32xf32>
    %c0_69 = arith.constant 0 : index
    %c0_70 = arith.constant 0 : index
    %c0_71 = arith.constant 0 : index
    %141 = vector.load %arg15[%c0_69, %c0_70, %c0_71] : memref<2x1x32xf32, #tpu.memory_space<vmem>>, vector<1x1x32xf32>
    %142 = vector.shape_cast %141 : vector<1x1x32xf32> to vector<1x32xf32>
    %143 = vector.broadcast %142 : vector<1x32xf32> to vector<8x32xf32>
    %144 = arith.addf %140, %143 : vector<8x32xf32>
    %c0_72 = arith.constant 0 : index
    %c0_73 = arith.constant 0 : index
    %c0_74 = arith.constant 0 : index
    %145 = vector.load %arg16[%c0_72, %c0_73, %c0_74] : memref<2x32x64xf32, #tpu.memory_space<vmem>>, vector<1x32x64xf32>
    %146 = vector.shape_cast %145 : vector<1x32x64xf32> to vector<32x64xf32>
    %cst_75 = arith.constant dense<0.000000e+00> : vector<12x64xf32>
    %147 = tpu.matmul %13, %146, %cst_75 {dimension_numbers = #tpu.dot_dimension_numbers<[1], [0], [0], [1], [0, 0, 1, 1], [], []>} : vector<12x32xf32>, vector<32x64xf32>, vector<12x64xf32> -> vector<12x64xf32>
    %c0_76 = arith.constant 0 : index
    %c0_77 = arith.constant 0 : index
    %c0_78 = arith.constant 0 : index
    %148 = vector.load %arg17[%c0_76, %c0_77, %c0_78] : memref<2x1x64xf32, #tpu.memory_space<vmem>>, vector<1x1x64xf32>
    %149 = vector.shape_cast %148 : vector<1x1x64xf32> to vector<1x64xf32>
    %150 = vector.broadcast %149 : vector<1x64xf32> to vector<12x64xf32>
    %151 = arith.addf %147, %150 : vector<12x64xf32>
    %c0_79 = arith.constant 0 : index
    %c0_80 = arith.constant 0 : index
    %c0_81 = arith.constant 0 : index
    %152 = vector.load %arg18[%c0_79, %c0_80, %c0_81] : memref<2x32x32xf32, #tpu.memory_space<vmem>>, vector<1x32x32xf32>
    %153 = vector.shape_cast %152 : vector<1x32x32xf32> to vector<32x32xf32>
    %c0_82 = arith.constant 0 : index
    %c0_83 = arith.constant 0 : index
    %c0_84 = arith.constant 0 : index
    %154 = vector.load %arg19[%c0_82, %c0_83, %c0_84] : memref<2x1x32xf32, #tpu.memory_space<vmem>>, vector<1x1x32xf32>
    %155 = vector.shape_cast %154 : vector<1x1x32xf32> to vector<1x32xf32>
    %156 = vector.extract_strided_slice %144 {offsets = [0, 0], sizes = [8, 8], strides = [1, 1]} : vector<8x32xf32> to vector<8x8xf32>
    %157 = vector.extract_strided_slice %151 {offsets = [0, 0], sizes = [12, 8], strides = [1, 1]} : vector<12x64xf32> to vector<12x8xf32>
    %158 = vector.extract_strided_slice %151 {offsets = [0, 32], sizes = [12, 8], strides = [1, 1]} : vector<12x64xf32> to vector<12x8xf32>
    %cst_85 = arith.constant dense<0.000000e+00> : vector<8x12xf32>
    %159 = tpu.matmul %156, %157, %cst_85 {dimension_numbers = #tpu.dot_dimension_numbers<[1], [1], [0], [0], [0, 0, 1, 0], [], []>} : vector<8x8xf32>, vector<12x8xf32>, vector<8x12xf32> -> vector<8x12xf32>
    %cst_86 = arith.constant 0.353553385 : f32
    %160 = vector.broadcast %cst_86 : f32 to vector<8x12xf32>
    %161 = arith.mulf %159, %160 : vector<8x12xf32>
    %162 = arith.addf %161, %21 : vector<8x12xf32>
    %cst_87 = arith.constant dense<0xFF800000> : vector<8xf32>
    %163 = vector.multi_reduction <maximumf>, %162, %cst_87 [1] : vector<8x12xf32> to vector<8xf32>
    %164 = vector.shape_cast %163 : vector<8xf32> to vector<8x1xf32>
    %165 = vector.broadcast %164 : vector<8x1xf32> to vector<8x12xf32>
    %166 = arith.subf %162, %165 : vector<8x12xf32>
    %167 = math.exp %166 : vector<8x12xf32>
    %cst_88 = arith.constant dense<0.000000e+00> : vector<8xf32>
    %168 = vector.multi_reduction <add>, %167, %cst_88 [1] : vector<8x12xf32> to vector<8xf32>
    %169 = vector.shape_cast %168 : vector<8xf32> to vector<8x1xf32>
    %170 = tpu.reciprocal %169 {approx = true} : vector<8x1xf32> -> vector<8x1xf32>
    %171 = vector.broadcast %170 : vector<8x1xf32> to vector<8x12xf32>
    %172 = arith.mulf %167, %171 : vector<8x12xf32>
    %cst_89 = arith.constant dense<0.000000e+00> : vector<8x8xf32>
    %173 = tpu.matmul %172, %158, %cst_89 {dimension_numbers = #tpu.dot_dimension_numbers<[1], [0], [0], [1], [0, 0, 1, 1], [], []>} : vector<8x12xf32>, vector<12x8xf32>, vector<8x8xf32> -> vector<8x8xf32>
    %174 = vector.extract_strided_slice %144 {offsets = [0, 8], sizes = [8, 8], strides = [1, 1]} : vector<8x32xf32> to vector<8x8xf32>
    %175 = vector.extract_strided_slice %151 {offsets = [0, 8], sizes = [12, 8], strides = [1, 1]} : vector<12x64xf32> to vector<12x8xf32>
    %176 = vector.extract_strided_slice %151 {offsets = [0, 40], sizes = [12, 8], strides = [1, 1]} : vector<12x64xf32> to vector<12x8xf32>
    %cst_90 = arith.constant dense<0.000000e+00> : vector<8x12xf32>
    %177 = tpu.matmul %174, %175, %cst_90 {dimension_numbers = #tpu.dot_dimension_numbers<[1], [1], [0], [0], [0, 0, 1, 0], [], []>} : vector<8x8xf32>, vector<12x8xf32>, vector<8x12xf32> -> vector<8x12xf32>
    %cst_91 = arith.constant 0.353553385 : f32
    %178 = vector.broadcast %cst_91 : f32 to vector<8x12xf32>
    %179 = arith.mulf %177, %178 : vector<8x12xf32>
    %180 = arith.addf %179, %21 : vector<8x12xf32>
    %cst_92 = arith.constant dense<0xFF800000> : vector<8xf32>
    %181 = vector.multi_reduction <maximumf>, %180, %cst_92 [1] : vector<8x12xf32> to vector<8xf32>
    %182 = vector.shape_cast %181 : vector<8xf32> to vector<8x1xf32>
    %183 = vector.broadcast %182 : vector<8x1xf32> to vector<8x12xf32>
    %184 = arith.subf %180, %183 : vector<8x12xf32>
    %185 = math.exp %184 : vector<8x12xf32>
    %cst_93 = arith.constant dense<0.000000e+00> : vector<8xf32>
    %186 = vector.multi_reduction <add>, %185, %cst_93 [1] : vector<8x12xf32> to vector<8xf32>
    %187 = vector.shape_cast %186 : vector<8xf32> to vector<8x1xf32>
    %188 = tpu.reciprocal %187 {approx = true} : vector<8x1xf32> -> vector<8x1xf32>
    %189 = vector.broadcast %188 : vector<8x1xf32> to vector<8x12xf32>
    %190 = arith.mulf %185, %189 : vector<8x12xf32>
    %cst_94 = arith.constant dense<0.000000e+00> : vector<8x8xf32>
    %191 = tpu.matmul %190, %176, %cst_94 {dimension_numbers = #tpu.dot_dimension_numbers<[1], [0], [0], [1], [0, 0, 1, 1], [], []>} : vector<8x12xf32>, vector<12x8xf32>, vector<8x8xf32> -> vector<8x8xf32>
    %192 = vector.extract_strided_slice %144 {offsets = [0, 16], sizes = [8, 8], strides = [1, 1]} : vector<8x32xf32> to vector<8x8xf32>
    %193 = vector.extract_strided_slice %151 {offsets = [0, 16], sizes = [12, 8], strides = [1, 1]} : vector<12x64xf32> to vector<12x8xf32>
    %194 = vector.extract_strided_slice %151 {offsets = [0, 48], sizes = [12, 8], strides = [1, 1]} : vector<12x64xf32> to vector<12x8xf32>
    %cst_95 = arith.constant dense<0.000000e+00> : vector<8x12xf32>
    %195 = tpu.matmul %192, %193, %cst_95 {dimension_numbers = #tpu.dot_dimension_numbers<[1], [1], [0], [0], [0, 0, 1, 0], [], []>} : vector<8x8xf32>, vector<12x8xf32>, vector<8x12xf32> -> vector<8x12xf32>
    %cst_96 = arith.constant 0.353553385 : f32
    %196 = vector.broadcast %cst_96 : f32 to vector<8x12xf32>
    %197 = arith.mulf %195, %196 : vector<8x12xf32>
    %198 = arith.addf %197, %21 : vector<8x12xf32>
    %cst_97 = arith.constant dense<0xFF800000> : vector<8xf32>
    %199 = vector.multi_reduction <maximumf>, %198, %cst_97 [1] : vector<8x12xf32> to vector<8xf32>
    %200 = vector.shape_cast %199 : vector<8xf32> to vector<8x1xf32>
    %201 = vector.broadcast %200 : vector<8x1xf32> to vector<8x12xf32>
    %202 = arith.subf %198, %201 : vector<8x12xf32>
    %203 = math.exp %202 : vector<8x12xf32>
    %cst_98 = arith.constant dense<0.000000e+00> : vector<8xf32>
    %204 = vector.multi_reduction <add>, %203, %cst_98 [1] : vector<8x12xf32> to vector<8xf32>
    %205 = vector.shape_cast %204 : vector<8xf32> to vector<8x1xf32>
    %206 = tpu.reciprocal %205 {approx = true} : vector<8x1xf32> -> vector<8x1xf32>
    %207 = vector.broadcast %206 : vector<8x1xf32> to vector<8x12xf32>
    %208 = arith.mulf %203, %207 : vector<8x12xf32>
    %cst_99 = arith.constant dense<0.000000e+00> : vector<8x8xf32>
    %209 = tpu.matmul %208, %194, %cst_99 {dimension_numbers = #tpu.dot_dimension_numbers<[1], [0], [0], [1], [0, 0, 1, 1], [], []>} : vector<8x12xf32>, vector<12x8xf32>, vector<8x8xf32> -> vector<8x8xf32>
    %210 = vector.extract_strided_slice %144 {offsets = [0, 24], sizes = [8, 8], strides = [1, 1]} : vector<8x32xf32> to vector<8x8xf32>
    %211 = vector.extract_strided_slice %151 {offsets = [0, 24], sizes = [12, 8], strides = [1, 1]} : vector<12x64xf32> to vector<12x8xf32>
    %212 = vector.extract_strided_slice %151 {offsets = [0, 56], sizes = [12, 8], strides = [1, 1]} : vector<12x64xf32> to vector<12x8xf32>
    %cst_100 = arith.constant dense<0.000000e+00> : vector<8x12xf32>
    %213 = tpu.matmul %210, %211, %cst_100 {dimension_numbers = #tpu.dot_dimension_numbers<[1], [1], [0], [0], [0, 0, 1, 0], [], []>} : vector<8x8xf32>, vector<12x8xf32>, vector<8x12xf32> -> vector<8x12xf32>
    %cst_101 = arith.constant 0.353553385 : f32
    %214 = vector.broadcast %cst_101 : f32 to vector<8x12xf32>
    %215 = arith.mulf %213, %214 : vector<8x12xf32>
    %216 = arith.addf %215, %21 : vector<8x12xf32>
    %cst_102 = arith.constant dense<0xFF800000> : vector<8xf32>
    %217 = vector.multi_reduction <maximumf>, %216, %cst_102 [1] : vector<8x12xf32> to vector<8xf32>
    %218 = vector.shape_cast %217 : vector<8xf32> to vector<8x1xf32>
    %219 = vector.broadcast %218 : vector<8x1xf32> to vector<8x12xf32>
    %220 = arith.subf %216, %219 : vector<8x12xf32>
    %221 = math.exp %220 : vector<8x12xf32>
    %cst_103 = arith.constant dense<0.000000e+00> : vector<8xf32>
    %222 = vector.multi_reduction <add>, %221, %cst_103 [1] : vector<8x12xf32> to vector<8xf32>
    %223 = vector.shape_cast %222 : vector<8xf32> to vector<8x1xf32>
    %224 = tpu.reciprocal %223 {approx = true} : vector<8x1xf32> -> vector<8x1xf32>
    %225 = vector.broadcast %224 : vector<8x1xf32> to vector<8x12xf32>
    %226 = arith.mulf %221, %225 : vector<8x12xf32>
    %cst_104 = arith.constant dense<0.000000e+00> : vector<8x8xf32>
    %227 = tpu.matmul %226, %212, %cst_104 {dimension_numbers = #tpu.dot_dimension_numbers<[1], [0], [0], [1], [0, 0, 1, 1], [], []>} : vector<8x12xf32>, vector<12x8xf32>, vector<8x8xf32> -> vector<8x8xf32>
    %228 = tpu.concatenate %173, %191, %209, %227 in 1 : vector<8x8xf32>, vector<8x8xf32>, vector<8x8xf32>, vector<8x8xf32> -> vector<8x32xf32>
    %cst_105 = arith.constant dense<0.000000e+00> : vector<8x32xf32>
    %229 = tpu.matmul %228, %153, %cst_105 {dimension_numbers = #tpu.dot_dimension_numbers<[1], [0], [0], [1], [0, 0, 1, 1], [], []>} : vector<8x32xf32>, vector<32x32xf32>, vector<8x32xf32> -> vector<8x32xf32>
    %230 = vector.broadcast %155 : vector<1x32xf32> to vector<8x32xf32>
    %231 = arith.addf %229, %230 : vector<8x32xf32>
    %232 = arith.addf %231, %137 : vector<8x32xf32>
    %c0_106 = arith.constant 0 : index
    %c0_107 = arith.constant 0 : index
    %c0_108 = arith.constant 0 : index
    %233 = vector.load %arg26[%c0_106, %c0_107, %c0_108] : memref<2x1x32xf32, #tpu.memory_space<vmem>>, vector<1x1x32xf32>
    %234 = vector.shape_cast %233 : vector<1x1x32xf32> to vector<1x32xf32>
    %c0_109 = arith.constant 0 : index
    %c0_110 = arith.constant 0 : index
    %c0_111 = arith.constant 0 : index
    %235 = vector.load %arg27[%c0_109, %c0_110, %c0_111] : memref<2x1x32xf32, #tpu.memory_space<vmem>>, vector<1x1x32xf32>
    %236 = vector.shape_cast %235 : vector<1x1x32xf32> to vector<1x32xf32>
    %cst_112 = arith.constant dense<0.000000e+00> : vector<8xf32>
    %237 = vector.multi_reduction <add>, %232, %cst_112 [1] : vector<8x32xf32> to vector<8xf32>
    %238 = vector.shape_cast %237 : vector<8xf32> to vector<8x1xf32>
    %cst_113 = arith.constant 3.200000e+01 : f32
    %239 = vector.broadcast %cst_113 : f32 to vector<8x1xf32>
    %240 = arith.divf %238, %239 : vector<8x1xf32>
    %241 = vector.broadcast %240 : vector<8x1xf32> to vector<8x32xf32>
    %242 = arith.subf %232, %241 : vector<8x32xf32>
    %243 = arith.mulf %242, %242 : vector<8x32xf32>
    %cst_114 = arith.constant dense<0.000000e+00> : vector<8xf32>
    %244 = vector.multi_reduction <add>, %243, %cst_114 [1] : vector<8x32xf32> to vector<8xf32>
    %245 = vector.shape_cast %244 : vector<8xf32> to vector<8x1xf32>
    %cst_115 = arith.constant 3.200000e+01 : f32
    %246 = vector.broadcast %cst_115 : f32 to vector<8x1xf32>
    %247 = arith.divf %245, %246 : vector<8x1xf32>
    %248 = vector.broadcast %240 : vector<8x1xf32> to vector<8x32xf32>
    %249 = arith.subf %232, %248 : vector<8x32xf32>
    %cst_116 = arith.constant 9.99999974E-6 : f32
    %250 = vector.broadcast %cst_116 : f32 to vector<8x1xf32>
    %251 = arith.addf %247, %250 : vector<8x1xf32>
    %252 = math.rsqrt %251 : vector<8x1xf32>
    %253 = vector.broadcast %252 : vector<8x1xf32> to vector<8x32xf32>
    %254 = arith.mulf %249, %253 : vector<8x32xf32>
    %255 = vector.broadcast %234 : vector<1x32xf32> to vector<8x32xf32>
    %256 = arith.mulf %254, %255 : vector<8x32xf32>
    %257 = vector.broadcast %236 : vector<1x32xf32> to vector<8x32xf32>
    %258 = arith.addf %256, %257 : vector<8x32xf32>
    %c0_117 = arith.constant 0 : index
    %c0_118 = arith.constant 0 : index
    %c0_119 = arith.constant 0 : index
    %259 = vector.load %arg20[%c0_117, %c0_118, %c0_119] : memref<2x32x64xf32, #tpu.memory_space<vmem>>, vector<1x32x64xf32>
    %260 = vector.shape_cast %259 : vector<1x32x64xf32> to vector<32x64xf32>
    %cst_120 = arith.constant dense<0.000000e+00> : vector<8x64xf32>
    %261 = tpu.matmul %258, %260, %cst_120 {dimension_numbers = #tpu.dot_dimension_numbers<[1], [0], [0], [1], [0, 0, 1, 1], [], []>} : vector<8x32xf32>, vector<32x64xf32>, vector<8x64xf32> -> vector<8x64xf32>
    %c0_121 = arith.constant 0 : index
    %c0_122 = arith.constant 0 : index
    %c0_123 = arith.constant 0 : index
    %262 = vector.load %arg21[%c0_121, %c0_122, %c0_123] : memref<2x1x64xf32, #tpu.memory_space<vmem>>, vector<1x1x64xf32>
    %263 = vector.shape_cast %262 : vector<1x1x64xf32> to vector<1x64xf32>
    %264 = vector.broadcast %263 : vector<1x64xf32> to vector<8x64xf32>
    %265 = arith.addf %261, %264 : vector<8x64xf32>
    %cst_124 = arith.constant 0.000000e+00 : f32
    %266 = vector.broadcast %cst_124 : f32 to vector<8x64xf32>
    %267 = arith.maximumf %265, %266 : vector<8x64xf32>
    %c0_125 = arith.constant 0 : index
    %c0_126 = arith.constant 0 : index
    %c0_127 = arith.constant 0 : index
    %268 = vector.load %arg22[%c0_125, %c0_126, %c0_127] : memref<2x64x32xf32, #tpu.memory_space<vmem>>, vector<1x64x32xf32>
    %269 = vector.shape_cast %268 : vector<1x64x32xf32> to vector<64x32xf32>
    %cst_128 = arith.constant dense<0.000000e+00> : vector<8x32xf32>
    %270 = tpu.matmul %267, %269, %cst_128 {dimension_numbers = #tpu.dot_dimension_numbers<[1], [0], [0], [1], [0, 0, 1, 1], [], []>} : vector<8x64xf32>, vector<64x32xf32>, vector<8x32xf32> -> vector<8x32xf32>
    %c0_129 = arith.constant 0 : index
    %c0_130 = arith.constant 0 : index
    %c0_131 = arith.constant 0 : index
    %271 = vector.load %arg23[%c0_129, %c0_130, %c0_131] : memref<2x1x32xf32, #tpu.memory_space<vmem>>, vector<1x1x32xf32>
    %272 = vector.shape_cast %271 : vector<1x1x32xf32> to vector<1x32xf32>
    %273 = vector.broadcast %272 : vector<1x32xf32> to vector<8x32xf32>
    %274 = arith.addf %270, %273 : vector<8x32xf32>
    %275 = arith.addf %274, %258 : vector<8x32xf32>
    %c0_132 = arith.constant 0 : index
    %c0_133 = arith.constant 0 : index
    %c0_134 = arith.constant 0 : index
    %276 = vector.load %arg28[%c0_132, %c0_133, %c0_134] : memref<2x1x32xf32, #tpu.memory_space<vmem>>, vector<1x1x32xf32>
    %277 = vector.shape_cast %276 : vector<1x1x32xf32> to vector<1x32xf32>
    %c0_135 = arith.constant 0 : index
    %c0_136 = arith.constant 0 : index
    %c0_137 = arith.constant 0 : index
    %278 = vector.load %arg29[%c0_135, %c0_136, %c0_137] : memref<2x1x32xf32, #tpu.memory_space<vmem>>, vector<1x1x32xf32>
    %279 = vector.shape_cast %278 : vector<1x1x32xf32> to vector<1x32xf32>
    %cst_138 = arith.constant dense<0.000000e+00> : vector<8xf32>
    %280 = vector.multi_reduction <add>, %275, %cst_138 [1] : vector<8x32xf32> to vector<8xf32>
    %281 = vector.shape_cast %280 : vector<8xf32> to vector<8x1xf32>
    %cst_139 = arith.constant 3.200000e+01 : f32
    %282 = vector.broadcast %cst_139 : f32 to vector<8x1xf32>
    %283 = arith.divf %281, %282 : vector<8x1xf32>
    %284 = vector.broadcast %283 : vector<8x1xf32> to vector<8x32xf32>
    %285 = arith.subf %275, %284 : vector<8x32xf32>
    %286 = arith.mulf %285, %285 : vector<8x32xf32>
    %cst_140 = arith.constant dense<0.000000e+00> : vector<8xf32>
    %287 = vector.multi_reduction <add>, %286, %cst_140 [1] : vector<8x32xf32> to vector<8xf32>
    %288 = vector.shape_cast %287 : vector<8xf32> to vector<8x1xf32>
    %cst_141 = arith.constant 3.200000e+01 : f32
    %289 = vector.broadcast %cst_141 : f32 to vector<8x1xf32>
    %290 = arith.divf %288, %289 : vector<8x1xf32>
    %291 = vector.broadcast %283 : vector<8x1xf32> to vector<8x32xf32>
    %292 = arith.subf %275, %291 : vector<8x32xf32>
    %cst_142 = arith.constant 9.99999974E-6 : f32
    %293 = vector.broadcast %cst_142 : f32 to vector<8x1xf32>
    %294 = arith.addf %290, %293 : vector<8x1xf32>
    %295 = math.rsqrt %294 : vector<8x1xf32>
    %296 = vector.broadcast %295 : vector<8x1xf32> to vector<8x32xf32>
    %297 = arith.mulf %292, %296 : vector<8x32xf32>
    %298 = vector.broadcast %277 : vector<1x32xf32> to vector<8x32xf32>
    %299 = arith.mulf %297, %298 : vector<8x32xf32>
    %300 = vector.broadcast %279 : vector<1x32xf32> to vector<8x32xf32>
    %301 = arith.addf %299, %300 : vector<8x32xf32>
    %c1 = arith.constant 1 : index
    %c0_143 = arith.constant 0 : index
    %c0_144 = arith.constant 0 : index
    %302 = vector.load %arg10[%c1, %c0_143, %c0_144] : memref<2x32x96xf32, #tpu.memory_space<vmem>>, vector<1x32x96xf32>
    %303 = vector.shape_cast %302 : vector<1x32x96xf32> to vector<32x96xf32>
    %cst_145 = arith.constant dense<0.000000e+00> : vector<8x96xf32>
    %304 = tpu.matmul %301, %303, %cst_145 {dimension_numbers = #tpu.dot_dimension_numbers<[1], [0], [0], [1], [0, 0, 1, 1], [], []>} : vector<8x32xf32>, vector<32x96xf32>, vector<8x96xf32> -> vector<8x96xf32>
    %c1_146 = arith.constant 1 : index
    %c0_147 = arith.constant 0 : index
    %c0_148 = arith.constant 0 : index
    %305 = vector.load %arg11[%c1_146, %c0_147, %c0_148] : memref<2x1x96xf32, #tpu.memory_space<vmem>>, vector<1x1x96xf32>
    %306 = vector.shape_cast %305 : vector<1x1x96xf32> to vector<1x96xf32>
    %307 = vector.broadcast %306 : vector<1x96xf32> to vector<8x96xf32>
    %308 = arith.addf %304, %307 : vector<8x96xf32>
    %309 = vector.extract_strided_slice %308 {offsets = [0, 0], sizes = [8, 32], strides = [1, 1]} : vector<8x96xf32> to vector<8x32xf32>
    %310 = vector.extract_strided_slice %308 {offsets = [0, 32], sizes = [8, 64], strides = [1, 1]} : vector<8x96xf32> to vector<8x64xf32>
    %c1_149 = arith.constant 1 : index
    %c0_150 = arith.constant 0 : index
    %c0_151 = arith.constant 0 : index
    %311 = vector.load %arg12[%c1_149, %c0_150, %c0_151] : memref<2x32x32xf32, #tpu.memory_space<vmem>>, vector<1x32x32xf32>
    %312 = vector.shape_cast %311 : vector<1x32x32xf32> to vector<32x32xf32>
    %c1_152 = arith.constant 1 : index
    %c0_153 = arith.constant 0 : index
    %c0_154 = arith.constant 0 : index
    %313 = vector.load %arg13[%c1_152, %c0_153, %c0_154] : memref<2x1x32xf32, #tpu.memory_space<vmem>>, vector<1x1x32xf32>
    %314 = vector.shape_cast %313 : vector<1x1x32xf32> to vector<1x32xf32>
    %315 = vector.extract_strided_slice %309 {offsets = [0, 0], sizes = [8, 8], strides = [1, 1]} : vector<8x32xf32> to vector<8x8xf32>
    %316 = vector.extract_strided_slice %310 {offsets = [0, 0], sizes = [8, 8], strides = [1, 1]} : vector<8x64xf32> to vector<8x8xf32>
    %317 = vector.extract_strided_slice %310 {offsets = [0, 32], sizes = [8, 8], strides = [1, 1]} : vector<8x64xf32> to vector<8x8xf32>
    %cst_155 = arith.constant dense<0.000000e+00> : vector<8x8xf32>
    %318 = tpu.matmul %315, %316, %cst_155 {dimension_numbers = #tpu.dot_dimension_numbers<[1], [1], [0], [0], [0, 0, 1, 0], [], []>} : vector<8x8xf32>, vector<8x8xf32>, vector<8x8xf32> -> vector<8x8xf32>
    %cst_156 = arith.constant 0.353553385 : f32
    %319 = vector.broadcast %cst_156 : f32 to vector<8x8xf32>
    %320 = arith.mulf %318, %319 : vector<8x8xf32>
    %321 = arith.addf %320, %17 : vector<8x8xf32>
    %cst_157 = arith.constant dense<0xFF800000> : vector<8xf32>
    %322 = vector.multi_reduction <maximumf>, %321, %cst_157 [1] : vector<8x8xf32> to vector<8xf32>
    %323 = vector.shape_cast %322 : vector<8xf32> to vector<8x1xf32>
    %324 = vector.broadcast %323 : vector<8x1xf32> to vector<8x8xf32>
    %325 = arith.subf %321, %324 : vector<8x8xf32>
    %326 = math.exp %325 : vector<8x8xf32>
    %cst_158 = arith.constant dense<0.000000e+00> : vector<8xf32>
    %327 = vector.multi_reduction <add>, %326, %cst_158 [1] : vector<8x8xf32> to vector<8xf32>
    %328 = vector.shape_cast %327 : vector<8xf32> to vector<8x1xf32>
    %329 = tpu.reciprocal %328 {approx = true} : vector<8x1xf32> -> vector<8x1xf32>
    %330 = vector.broadcast %329 : vector<8x1xf32> to vector<8x8xf32>
    %331 = arith.mulf %326, %330 : vector<8x8xf32>
    %cst_159 = arith.constant dense<0.000000e+00> : vector<8x8xf32>
    %332 = tpu.matmul %331, %317, %cst_159 {dimension_numbers = #tpu.dot_dimension_numbers<[1], [0], [0], [1], [0, 0, 1, 1], [], []>} : vector<8x8xf32>, vector<8x8xf32>, vector<8x8xf32> -> vector<8x8xf32>
    %333 = vector.extract_strided_slice %309 {offsets = [0, 8], sizes = [8, 8], strides = [1, 1]} : vector<8x32xf32> to vector<8x8xf32>
    %334 = vector.extract_strided_slice %310 {offsets = [0, 8], sizes = [8, 8], strides = [1, 1]} : vector<8x64xf32> to vector<8x8xf32>
    %335 = vector.extract_strided_slice %310 {offsets = [0, 40], sizes = [8, 8], strides = [1, 1]} : vector<8x64xf32> to vector<8x8xf32>
    %cst_160 = arith.constant dense<0.000000e+00> : vector<8x8xf32>
    %336 = tpu.matmul %333, %334, %cst_160 {dimension_numbers = #tpu.dot_dimension_numbers<[1], [1], [0], [0], [0, 0, 1, 0], [], []>} : vector<8x8xf32>, vector<8x8xf32>, vector<8x8xf32> -> vector<8x8xf32>
    %cst_161 = arith.constant 0.353553385 : f32
    %337 = vector.broadcast %cst_161 : f32 to vector<8x8xf32>
    %338 = arith.mulf %336, %337 : vector<8x8xf32>
    %339 = arith.addf %338, %17 : vector<8x8xf32>
    %cst_162 = arith.constant dense<0xFF800000> : vector<8xf32>
    %340 = vector.multi_reduction <maximumf>, %339, %cst_162 [1] : vector<8x8xf32> to vector<8xf32>
    %341 = vector.shape_cast %340 : vector<8xf32> to vector<8x1xf32>
    %342 = vector.broadcast %341 : vector<8x1xf32> to vector<8x8xf32>
    %343 = arith.subf %339, %342 : vector<8x8xf32>
    %344 = math.exp %343 : vector<8x8xf32>
    %cst_163 = arith.constant dense<0.000000e+00> : vector<8xf32>
    %345 = vector.multi_reduction <add>, %344, %cst_163 [1] : vector<8x8xf32> to vector<8xf32>
    %346 = vector.shape_cast %345 : vector<8xf32> to vector<8x1xf32>
    %347 = tpu.reciprocal %346 {approx = true} : vector<8x1xf32> -> vector<8x1xf32>
    %348 = vector.broadcast %347 : vector<8x1xf32> to vector<8x8xf32>
    %349 = arith.mulf %344, %348 : vector<8x8xf32>
    %cst_164 = arith.constant dense<0.000000e+00> : vector<8x8xf32>
    %350 = tpu.matmul %349, %335, %cst_164 {dimension_numbers = #tpu.dot_dimension_numbers<[1], [0], [0], [1], [0, 0, 1, 1], [], []>} : vector<8x8xf32>, vector<8x8xf32>, vector<8x8xf32> -> vector<8x8xf32>
    %351 = vector.extract_strided_slice %309 {offsets = [0, 16], sizes = [8, 8], strides = [1, 1]} : vector<8x32xf32> to vector<8x8xf32>
    %352 = vector.extract_strided_slice %310 {offsets = [0, 16], sizes = [8, 8], strides = [1, 1]} : vector<8x64xf32> to vector<8x8xf32>
    %353 = vector.extract_strided_slice %310 {offsets = [0, 48], sizes = [8, 8], strides = [1, 1]} : vector<8x64xf32> to vector<8x8xf32>
    %cst_165 = arith.constant dense<0.000000e+00> : vector<8x8xf32>
    %354 = tpu.matmul %351, %352, %cst_165 {dimension_numbers = #tpu.dot_dimension_numbers<[1], [1], [0], [0], [0, 0, 1, 0], [], []>} : vector<8x8xf32>, vector<8x8xf32>, vector<8x8xf32> -> vector<8x8xf32>
    %cst_166 = arith.constant 0.353553385 : f32
    %355 = vector.broadcast %cst_166 : f32 to vector<8x8xf32>
    %356 = arith.mulf %354, %355 : vector<8x8xf32>
    %357 = arith.addf %356, %17 : vector<8x8xf32>
    %cst_167 = arith.constant dense<0xFF800000> : vector<8xf32>
    %358 = vector.multi_reduction <maximumf>, %357, %cst_167 [1] : vector<8x8xf32> to vector<8xf32>
    %359 = vector.shape_cast %358 : vector<8xf32> to vector<8x1xf32>
    %360 = vector.broadcast %359 : vector<8x1xf32> to vector<8x8xf32>
    %361 = arith.subf %357, %360 : vector<8x8xf32>
    %362 = math.exp %361 : vector<8x8xf32>
    %cst_168 = arith.constant dense<0.000000e+00> : vector<8xf32>
    %363 = vector.multi_reduction <add>, %362, %cst_168 [1] : vector<8x8xf32> to vector<8xf32>
    %364 = vector.shape_cast %363 : vector<8xf32> to vector<8x1xf32>
    %365 = tpu.reciprocal %364 {approx = true} : vector<8x1xf32> -> vector<8x1xf32>
    %366 = vector.broadcast %365 : vector<8x1xf32> to vector<8x8xf32>
    %367 = arith.mulf %362, %366 : vector<8x8xf32>
    %cst_169 = arith.constant dense<0.000000e+00> : vector<8x8xf32>
    %368 = tpu.matmul %367, %353, %cst_169 {dimension_numbers = #tpu.dot_dimension_numbers<[1], [0], [0], [1], [0, 0, 1, 1], [], []>} : vector<8x8xf32>, vector<8x8xf32>, vector<8x8xf32> -> vector<8x8xf32>
    %369 = vector.extract_strided_slice %309 {offsets = [0, 24], sizes = [8, 8], strides = [1, 1]} : vector<8x32xf32> to vector<8x8xf32>
    %370 = vector.extract_strided_slice %310 {offsets = [0, 24], sizes = [8, 8], strides = [1, 1]} : vector<8x64xf32> to vector<8x8xf32>
    %371 = vector.extract_strided_slice %310 {offsets = [0, 56], sizes = [8, 8], strides = [1, 1]} : vector<8x64xf32> to vector<8x8xf32>
    %cst_170 = arith.constant dense<0.000000e+00> : vector<8x8xf32>
    %372 = tpu.matmul %369, %370, %cst_170 {dimension_numbers = #tpu.dot_dimension_numbers<[1], [1], [0], [0], [0, 0, 1, 0], [], []>} : vector<8x8xf32>, vector<8x8xf32>, vector<8x8xf32> -> vector<8x8xf32>
    %cst_171 = arith.constant 0.353553385 : f32
    %373 = vector.broadcast %cst_171 : f32 to vector<8x8xf32>
    %374 = arith.mulf %372, %373 : vector<8x8xf32>
    %375 = arith.addf %374, %17 : vector<8x8xf32>
    %cst_172 = arith.constant dense<0xFF800000> : vector<8xf32>
    %376 = vector.multi_reduction <maximumf>, %375, %cst_172 [1] : vector<8x8xf32> to vector<8xf32>
    %377 = vector.shape_cast %376 : vector<8xf32> to vector<8x1xf32>
    %378 = vector.broadcast %377 : vector<8x1xf32> to vector<8x8xf32>
    %379 = arith.subf %375, %378 : vector<8x8xf32>
    %380 = math.exp %379 : vector<8x8xf32>
    %cst_173 = arith.constant dense<0.000000e+00> : vector<8xf32>
    %381 = vector.multi_reduction <add>, %380, %cst_173 [1] : vector<8x8xf32> to vector<8xf32>
    %382 = vector.shape_cast %381 : vector<8xf32> to vector<8x1xf32>
    %383 = tpu.reciprocal %382 {approx = true} : vector<8x1xf32> -> vector<8x1xf32>
    %384 = vector.broadcast %383 : vector<8x1xf32> to vector<8x8xf32>
    %385 = arith.mulf %380, %384 : vector<8x8xf32>
    %cst_174 = arith.constant dense<0.000000e+00> : vector<8x8xf32>
    %386 = tpu.matmul %385, %371, %cst_174 {dimension_numbers = #tpu.dot_dimension_numbers<[1], [0], [0], [1], [0, 0, 1, 1], [], []>} : vector<8x8xf32>, vector<8x8xf32>, vector<8x8xf32> -> vector<8x8xf32>
    %387 = tpu.concatenate %332, %350, %368, %386 in 1 : vector<8x8xf32>, vector<8x8xf32>, vector<8x8xf32>, vector<8x8xf32> -> vector<8x32xf32>
    %cst_175 = arith.constant dense<0.000000e+00> : vector<8x32xf32>
    %388 = tpu.matmul %387, %312, %cst_175 {dimension_numbers = #tpu.dot_dimension_numbers<[1], [0], [0], [1], [0, 0, 1, 1], [], []>} : vector<8x32xf32>, vector<32x32xf32>, vector<8x32xf32> -> vector<8x32xf32>
    %389 = vector.broadcast %314 : vector<1x32xf32> to vector<8x32xf32>
    %390 = arith.addf %388, %389 : vector<8x32xf32>
    %391 = arith.addf %390, %301 : vector<8x32xf32>
    %c1_176 = arith.constant 1 : index
    %c0_177 = arith.constant 0 : index
    %c0_178 = arith.constant 0 : index
    %392 = vector.load %arg24[%c1_176, %c0_177, %c0_178] : memref<2x1x32xf32, #tpu.memory_space<vmem>>, vector<1x1x32xf32>
    %393 = vector.shape_cast %392 : vector<1x1x32xf32> to vector<1x32xf32>
    %c1_179 = arith.constant 1 : index
    %c0_180 = arith.constant 0 : index
    %c0_181 = arith.constant 0 : index
    %394 = vector.load %arg25[%c1_179, %c0_180, %c0_181] : memref<2x1x32xf32, #tpu.memory_space<vmem>>, vector<1x1x32xf32>
    %395 = vector.shape_cast %394 : vector<1x1x32xf32> to vector<1x32xf32>
    %cst_182 = arith.constant dense<0.000000e+00> : vector<8xf32>
    %396 = vector.multi_reduction <add>, %391, %cst_182 [1] : vector<8x32xf32> to vector<8xf32>
    %397 = vector.shape_cast %396 : vector<8xf32> to vector<8x1xf32>
    %cst_183 = arith.constant 3.200000e+01 : f32
    %398 = vector.broadcast %cst_183 : f32 to vector<8x1xf32>
    %399 = arith.divf %397, %398 : vector<8x1xf32>
    %400 = vector.broadcast %399 : vector<8x1xf32> to vector<8x32xf32>
    %401 = arith.subf %391, %400 : vector<8x32xf32>
    %402 = arith.mulf %401, %401 : vector<8x32xf32>
    %cst_184 = arith.constant dense<0.000000e+00> : vector<8xf32>
    %403 = vector.multi_reduction <add>, %402, %cst_184 [1] : vector<8x32xf32> to vector<8xf32>
    %404 = vector.shape_cast %403 : vector<8xf32> to vector<8x1xf32>
    %cst_185 = arith.constant 3.200000e+01 : f32
    %405 = vector.broadcast %cst_185 : f32 to vector<8x1xf32>
    %406 = arith.divf %404, %405 : vector<8x1xf32>
    %407 = vector.broadcast %399 : vector<8x1xf32> to vector<8x32xf32>
    %408 = arith.subf %391, %407 : vector<8x32xf32>
    %cst_186 = arith.constant 9.99999974E-6 : f32
    %409 = vector.broadcast %cst_186 : f32 to vector<8x1xf32>
    %410 = arith.addf %406, %409 : vector<8x1xf32>
    %411 = math.rsqrt %410 : vector<8x1xf32>
    %412 = vector.broadcast %411 : vector<8x1xf32> to vector<8x32xf32>
    %413 = arith.mulf %408, %412 : vector<8x32xf32>
    %414 = vector.broadcast %393 : vector<1x32xf32> to vector<8x32xf32>
    %415 = arith.mulf %413, %414 : vector<8x32xf32>
    %416 = vector.broadcast %395 : vector<1x32xf32> to vector<8x32xf32>
    %417 = arith.addf %415, %416 : vector<8x32xf32>
    %c1_187 = arith.constant 1 : index
    %c0_188 = arith.constant 0 : index
    %c0_189 = arith.constant 0 : index
    %418 = vector.load %arg14[%c1_187, %c0_188, %c0_189] : memref<2x32x32xf32, #tpu.memory_space<vmem>>, vector<1x32x32xf32>
    %419 = vector.shape_cast %418 : vector<1x32x32xf32> to vector<32x32xf32>
    %cst_190 = arith.constant dense<0.000000e+00> : vector<8x32xf32>
    %420 = tpu.matmul %417, %419, %cst_190 {dimension_numbers = #tpu.dot_dimension_numbers<[1], [0], [0], [1], [0, 0, 1, 1], [], []>} : vector<8x32xf32>, vector<32x32xf32>, vector<8x32xf32> -> vector<8x32xf32>
    %c1_191 = arith.constant 1 : index
    %c0_192 = arith.constant 0 : index
    %c0_193 = arith.constant 0 : index
    %421 = vector.load %arg15[%c1_191, %c0_192, %c0_193] : memref<2x1x32xf32, #tpu.memory_space<vmem>>, vector<1x1x32xf32>
    %422 = vector.shape_cast %421 : vector<1x1x32xf32> to vector<1x32xf32>
    %423 = vector.broadcast %422 : vector<1x32xf32> to vector<8x32xf32>
    %424 = arith.addf %420, %423 : vector<8x32xf32>
    %c1_194 = arith.constant 1 : index
    %c0_195 = arith.constant 0 : index
    %c0_196 = arith.constant 0 : index
    %425 = vector.load %arg16[%c1_194, %c0_195, %c0_196] : memref<2x32x64xf32, #tpu.memory_space<vmem>>, vector<1x32x64xf32>
    %426 = vector.shape_cast %425 : vector<1x32x64xf32> to vector<32x64xf32>
    %cst_197 = arith.constant dense<0.000000e+00> : vector<12x64xf32>
    %427 = tpu.matmul %13, %426, %cst_197 {dimension_numbers = #tpu.dot_dimension_numbers<[1], [0], [0], [1], [0, 0, 1, 1], [], []>} : vector<12x32xf32>, vector<32x64xf32>, vector<12x64xf32> -> vector<12x64xf32>
    %c1_198 = arith.constant 1 : index
    %c0_199 = arith.constant 0 : index
    %c0_200 = arith.constant 0 : index
    %428 = vector.load %arg17[%c1_198, %c0_199, %c0_200] : memref<2x1x64xf32, #tpu.memory_space<vmem>>, vector<1x1x64xf32>
    %429 = vector.shape_cast %428 : vector<1x1x64xf32> to vector<1x64xf32>
    %430 = vector.broadcast %429 : vector<1x64xf32> to vector<12x64xf32>
    %431 = arith.addf %427, %430 : vector<12x64xf32>
    %c1_201 = arith.constant 1 : index
    %c0_202 = arith.constant 0 : index
    %c0_203 = arith.constant 0 : index
    %432 = vector.load %arg18[%c1_201, %c0_202, %c0_203] : memref<2x32x32xf32, #tpu.memory_space<vmem>>, vector<1x32x32xf32>
    %433 = vector.shape_cast %432 : vector<1x32x32xf32> to vector<32x32xf32>
    %c1_204 = arith.constant 1 : index
    %c0_205 = arith.constant 0 : index
    %c0_206 = arith.constant 0 : index
    %434 = vector.load %arg19[%c1_204, %c0_205, %c0_206] : memref<2x1x32xf32, #tpu.memory_space<vmem>>, vector<1x1x32xf32>
    %435 = vector.shape_cast %434 : vector<1x1x32xf32> to vector<1x32xf32>
    %436 = vector.extract_strided_slice %424 {offsets = [0, 0], sizes = [8, 8], strides = [1, 1]} : vector<8x32xf32> to vector<8x8xf32>
    %437 = vector.extract_strided_slice %431 {offsets = [0, 0], sizes = [12, 8], strides = [1, 1]} : vector<12x64xf32> to vector<12x8xf32>
    %438 = vector.extract_strided_slice %431 {offsets = [0, 32], sizes = [12, 8], strides = [1, 1]} : vector<12x64xf32> to vector<12x8xf32>
    %cst_207 = arith.constant dense<0.000000e+00> : vector<8x12xf32>
    %439 = tpu.matmul %436, %437, %cst_207 {dimension_numbers = #tpu.dot_dimension_numbers<[1], [1], [0], [0], [0, 0, 1, 0], [], []>} : vector<8x8xf32>, vector<12x8xf32>, vector<8x12xf32> -> vector<8x12xf32>
    %cst_208 = arith.constant 0.353553385 : f32
    %440 = vector.broadcast %cst_208 : f32 to vector<8x12xf32>
    %441 = arith.mulf %439, %440 : vector<8x12xf32>
    %442 = arith.addf %441, %21 : vector<8x12xf32>
    %cst_209 = arith.constant dense<0xFF800000> : vector<8xf32>
    %443 = vector.multi_reduction <maximumf>, %442, %cst_209 [1] : vector<8x12xf32> to vector<8xf32>
    %444 = vector.shape_cast %443 : vector<8xf32> to vector<8x1xf32>
    %445 = vector.broadcast %444 : vector<8x1xf32> to vector<8x12xf32>
    %446 = arith.subf %442, %445 : vector<8x12xf32>
    %447 = math.exp %446 : vector<8x12xf32>
    %cst_210 = arith.constant dense<0.000000e+00> : vector<8xf32>
    %448 = vector.multi_reduction <add>, %447, %cst_210 [1] : vector<8x12xf32> to vector<8xf32>
    %449 = vector.shape_cast %448 : vector<8xf32> to vector<8x1xf32>
    %450 = tpu.reciprocal %449 {approx = true} : vector<8x1xf32> -> vector<8x1xf32>
    %451 = vector.broadcast %450 : vector<8x1xf32> to vector<8x12xf32>
    %452 = arith.mulf %447, %451 : vector<8x12xf32>
    %cst_211 = arith.constant dense<0.000000e+00> : vector<8x8xf32>
    %453 = tpu.matmul %452, %438, %cst_211 {dimension_numbers = #tpu.dot_dimension_numbers<[1], [0], [0], [1], [0, 0, 1, 1], [], []>} : vector<8x12xf32>, vector<12x8xf32>, vector<8x8xf32> -> vector<8x8xf32>
    %454 = vector.extract_strided_slice %424 {offsets = [0, 8], sizes = [8, 8], strides = [1, 1]} : vector<8x32xf32> to vector<8x8xf32>
    %455 = vector.extract_strided_slice %431 {offsets = [0, 8], sizes = [12, 8], strides = [1, 1]} : vector<12x64xf32> to vector<12x8xf32>
    %456 = vector.extract_strided_slice %431 {offsets = [0, 40], sizes = [12, 8], strides = [1, 1]} : vector<12x64xf32> to vector<12x8xf32>
    %cst_212 = arith.constant dense<0.000000e+00> : vector<8x12xf32>
    %457 = tpu.matmul %454, %455, %cst_212 {dimension_numbers = #tpu.dot_dimension_numbers<[1], [1], [0], [0], [0, 0, 1, 0], [], []>} : vector<8x8xf32>, vector<12x8xf32>, vector<8x12xf32> -> vector<8x12xf32>
    %cst_213 = arith.constant 0.353553385 : f32
    %458 = vector.broadcast %cst_213 : f32 to vector<8x12xf32>
    %459 = arith.mulf %457, %458 : vector<8x12xf32>
    %460 = arith.addf %459, %21 : vector<8x12xf32>
    %cst_214 = arith.constant dense<0xFF800000> : vector<8xf32>
    %461 = vector.multi_reduction <maximumf>, %460, %cst_214 [1] : vector<8x12xf32> to vector<8xf32>
    %462 = vector.shape_cast %461 : vector<8xf32> to vector<8x1xf32>
    %463 = vector.broadcast %462 : vector<8x1xf32> to vector<8x12xf32>
    %464 = arith.subf %460, %463 : vector<8x12xf32>
    %465 = math.exp %464 : vector<8x12xf32>
    %cst_215 = arith.constant dense<0.000000e+00> : vector<8xf32>
    %466 = vector.multi_reduction <add>, %465, %cst_215 [1] : vector<8x12xf32> to vector<8xf32>
    %467 = vector.shape_cast %466 : vector<8xf32> to vector<8x1xf32>
    %468 = tpu.reciprocal %467 {approx = true} : vector<8x1xf32> -> vector<8x1xf32>
    %469 = vector.broadcast %468 : vector<8x1xf32> to vector<8x12xf32>
    %470 = arith.mulf %465, %469 : vector<8x12xf32>
    %cst_216 = arith.constant dense<0.000000e+00> : vector<8x8xf32>
    %471 = tpu.matmul %470, %456, %cst_216 {dimension_numbers = #tpu.dot_dimension_numbers<[1], [0], [0], [1], [0, 0, 1, 1], [], []>} : vector<8x12xf32>, vector<12x8xf32>, vector<8x8xf32> -> vector<8x8xf32>
    %472 = vector.extract_strided_slice %424 {offsets = [0, 16], sizes = [8, 8], strides = [1, 1]} : vector<8x32xf32> to vector<8x8xf32>
    %473 = vector.extract_strided_slice %431 {offsets = [0, 16], sizes = [12, 8], strides = [1, 1]} : vector<12x64xf32> to vector<12x8xf32>
    %474 = vector.extract_strided_slice %431 {offsets = [0, 48], sizes = [12, 8], strides = [1, 1]} : vector<12x64xf32> to vector<12x8xf32>
    %cst_217 = arith.constant dense<0.000000e+00> : vector<8x12xf32>
    %475 = tpu.matmul %472, %473, %cst_217 {dimension_numbers = #tpu.dot_dimension_numbers<[1], [1], [0], [0], [0, 0, 1, 0], [], []>} : vector<8x8xf32>, vector<12x8xf32>, vector<8x12xf32> -> vector<8x12xf32>
    %cst_218 = arith.constant 0.353553385 : f32
    %476 = vector.broadcast %cst_218 : f32 to vector<8x12xf32>
    %477 = arith.mulf %475, %476 : vector<8x12xf32>
    %478 = arith.addf %477, %21 : vector<8x12xf32>
    %cst_219 = arith.constant dense<0xFF800000> : vector<8xf32>
    %479 = vector.multi_reduction <maximumf>, %478, %cst_219 [1] : vector<8x12xf32> to vector<8xf32>
    %480 = vector.shape_cast %479 : vector<8xf32> to vector<8x1xf32>
    %481 = vector.broadcast %480 : vector<8x1xf32> to vector<8x12xf32>
    %482 = arith.subf %478, %481 : vector<8x12xf32>
    %483 = math.exp %482 : vector<8x12xf32>
    %cst_220 = arith.constant dense<0.000000e+00> : vector<8xf32>
    %484 = vector.multi_reduction <add>, %483, %cst_220 [1] : vector<8x12xf32> to vector<8xf32>
    %485 = vector.shape_cast %484 : vector<8xf32> to vector<8x1xf32>
    %486 = tpu.reciprocal %485 {approx = true} : vector<8x1xf32> -> vector<8x1xf32>
    %487 = vector.broadcast %486 : vector<8x1xf32> to vector<8x12xf32>
    %488 = arith.mulf %483, %487 : vector<8x12xf32>
    %cst_221 = arith.constant dense<0.000000e+00> : vector<8x8xf32>
    %489 = tpu.matmul %488, %474, %cst_221 {dimension_numbers = #tpu.dot_dimension_numbers<[1], [0], [0], [1], [0, 0, 1, 1], [], []>} : vector<8x12xf32>, vector<12x8xf32>, vector<8x8xf32> -> vector<8x8xf32>
    %490 = vector.extract_strided_slice %424 {offsets = [0, 24], sizes = [8, 8], strides = [1, 1]} : vector<8x32xf32> to vector<8x8xf32>
    %491 = vector.extract_strided_slice %431 {offsets = [0, 24], sizes = [12, 8], strides = [1, 1]} : vector<12x64xf32> to vector<12x8xf32>
    %492 = vector.extract_strided_slice %431 {offsets = [0, 56], sizes = [12, 8], strides = [1, 1]} : vector<12x64xf32> to vector<12x8xf32>
    %cst_222 = arith.constant dense<0.000000e+00> : vector<8x12xf32>
    %493 = tpu.matmul %490, %491, %cst_222 {dimension_numbers = #tpu.dot_dimension_numbers<[1], [1], [0], [0], [0, 0, 1, 0], [], []>} : vector<8x8xf32>, vector<12x8xf32>, vector<8x12xf32> -> vector<8x12xf32>
    %cst_223 = arith.constant 0.353553385 : f32
    %494 = vector.broadcast %cst_223 : f32 to vector<8x12xf32>
    %495 = arith.mulf %493, %494 : vector<8x12xf32>
    %496 = arith.addf %495, %21 : vector<8x12xf32>
    %cst_224 = arith.constant dense<0xFF800000> : vector<8xf32>
    %497 = vector.multi_reduction <maximumf>, %496, %cst_224 [1] : vector<8x12xf32> to vector<8xf32>
    %498 = vector.shape_cast %497 : vector<8xf32> to vector<8x1xf32>
    %499 = vector.broadcast %498 : vector<8x1xf32> to vector<8x12xf32>
    %500 = arith.subf %496, %499 : vector<8x12xf32>
    %501 = math.exp %500 : vector<8x12xf32>
    %cst_225 = arith.constant dense<0.000000e+00> : vector<8xf32>
    %502 = vector.multi_reduction <add>, %501, %cst_225 [1] : vector<8x12xf32> to vector<8xf32>
    %503 = vector.shape_cast %502 : vector<8xf32> to vector<8x1xf32>
    %504 = tpu.reciprocal %503 {approx = true} : vector<8x1xf32> -> vector<8x1xf32>
    %505 = vector.broadcast %504 : vector<8x1xf32> to vector<8x12xf32>
    %506 = arith.mulf %501, %505 : vector<8x12xf32>
    %cst_226 = arith.constant dense<0.000000e+00> : vector<8x8xf32>
    %507 = tpu.matmul %506, %492, %cst_226 {dimension_numbers = #tpu.dot_dimension_numbers<[1], [0], [0], [1], [0, 0, 1, 1], [], []>} : vector<8x12xf32>, vector<12x8xf32>, vector<8x8xf32> -> vector<8x8xf32>
    %508 = tpu.concatenate %453, %471, %489, %507 in 1 : vector<8x8xf32>, vector<8x8xf32>, vector<8x8xf32>, vector<8x8xf32> -> vector<8x32xf32>
    %cst_227 = arith.constant dense<0.000000e+00> : vector<8x32xf32>
    %509 = tpu.matmul %508, %433, %cst_227 {dimension_numbers = #tpu.dot_dimension_numbers<[1], [0], [0], [1], [0, 0, 1, 1], [], []>} : vector<8x32xf32>, vector<32x32xf32>, vector<8x32xf32> -> vector<8x32xf32>
    %510 = vector.broadcast %435 : vector<1x32xf32> to vector<8x32xf32>
    %511 = arith.addf %509, %510 : vector<8x32xf32>
    %512 = arith.addf %511, %417 : vector<8x32xf32>
    %c1_228 = arith.constant 1 : index
    %c0_229 = arith.constant 0 : index
    %c0_230 = arith.constant 0 : index
    %513 = vector.load %arg26[%c1_228, %c0_229, %c0_230] : memref<2x1x32xf32, #tpu.memory_space<vmem>>, vector<1x1x32xf32>
    %514 = vector.shape_cast %513 : vector<1x1x32xf32> to vector<1x32xf32>
    %c1_231 = arith.constant 1 : index
    %c0_232 = arith.constant 0 : index
    %c0_233 = arith.constant 0 : index
    %515 = vector.load %arg27[%c1_231, %c0_232, %c0_233] : memref<2x1x32xf32, #tpu.memory_space<vmem>>, vector<1x1x32xf32>
    %516 = vector.shape_cast %515 : vector<1x1x32xf32> to vector<1x32xf32>
    %cst_234 = arith.constant dense<0.000000e+00> : vector<8xf32>
    %517 = vector.multi_reduction <add>, %512, %cst_234 [1] : vector<8x32xf32> to vector<8xf32>
    %518 = vector.shape_cast %517 : vector<8xf32> to vector<8x1xf32>
    %cst_235 = arith.constant 3.200000e+01 : f32
    %519 = vector.broadcast %cst_235 : f32 to vector<8x1xf32>
    %520 = arith.divf %518, %519 : vector<8x1xf32>
    %521 = vector.broadcast %520 : vector<8x1xf32> to vector<8x32xf32>
    %522 = arith.subf %512, %521 : vector<8x32xf32>
    %523 = arith.mulf %522, %522 : vector<8x32xf32>
    %cst_236 = arith.constant dense<0.000000e+00> : vector<8xf32>
    %524 = vector.multi_reduction <add>, %523, %cst_236 [1] : vector<8x32xf32> to vector<8xf32>
    %525 = vector.shape_cast %524 : vector<8xf32> to vector<8x1xf32>
    %cst_237 = arith.constant 3.200000e+01 : f32
    %526 = vector.broadcast %cst_237 : f32 to vector<8x1xf32>
    %527 = arith.divf %525, %526 : vector<8x1xf32>
    %528 = vector.broadcast %520 : vector<8x1xf32> to vector<8x32xf32>
    %529 = arith.subf %512, %528 : vector<8x32xf32>
    %cst_238 = arith.constant 9.99999974E-6 : f32
    %530 = vector.broadcast %cst_238 : f32 to vector<8x1xf32>
    %531 = arith.addf %527, %530 : vector<8x1xf32>
    %532 = math.rsqrt %531 : vector<8x1xf32>
    %533 = vector.broadcast %532 : vector<8x1xf32> to vector<8x32xf32>
    %534 = arith.mulf %529, %533 : vector<8x32xf32>
    %535 = vector.broadcast %514 : vector<1x32xf32> to vector<8x32xf32>
    %536 = arith.mulf %534, %535 : vector<8x32xf32>
    %537 = vector.broadcast %516 : vector<1x32xf32> to vector<8x32xf32>
    %538 = arith.addf %536, %537 : vector<8x32xf32>
    %c1_239 = arith.constant 1 : index
    %c0_240 = arith.constant 0 : index
    %c0_241 = arith.constant 0 : index
    %539 = vector.load %arg20[%c1_239, %c0_240, %c0_241] : memref<2x32x64xf32, #tpu.memory_space<vmem>>, vector<1x32x64xf32>
    %540 = vector.shape_cast %539 : vector<1x32x64xf32> to vector<32x64xf32>
    %cst_242 = arith.constant dense<0.000000e+00> : vector<8x64xf32>
    %541 = tpu.matmul %538, %540, %cst_242 {dimension_numbers = #tpu.dot_dimension_numbers<[1], [0], [0], [1], [0, 0, 1, 1], [], []>} : vector<8x32xf32>, vector<32x64xf32>, vector<8x64xf32> -> vector<8x64xf32>
    %c1_243 = arith.constant 1 : index
    %c0_244 = arith.constant 0 : index
    %c0_245 = arith.constant 0 : index
    %542 = vector.load %arg21[%c1_243, %c0_244, %c0_245] : memref<2x1x64xf32, #tpu.memory_space<vmem>>, vector<1x1x64xf32>
    %543 = vector.shape_cast %542 : vector<1x1x64xf32> to vector<1x64xf32>
    %544 = vector.broadcast %543 : vector<1x64xf32> to vector<8x64xf32>
    %545 = arith.addf %541, %544 : vector<8x64xf32>
    %cst_246 = arith.constant 0.000000e+00 : f32
    %546 = vector.broadcast %cst_246 : f32 to vector<8x64xf32>
    %547 = arith.maximumf %545, %546 : vector<8x64xf32>
    %c1_247 = arith.constant 1 : index
    %c0_248 = arith.constant 0 : index
    %c0_249 = arith.constant 0 : index
    %548 = vector.load %arg22[%c1_247, %c0_248, %c0_249] : memref<2x64x32xf32, #tpu.memory_space<vmem>>, vector<1x64x32xf32>
    %549 = vector.shape_cast %548 : vector<1x64x32xf32> to vector<64x32xf32>
    %cst_250 = arith.constant dense<0.000000e+00> : vector<8x32xf32>
    %550 = tpu.matmul %547, %549, %cst_250 {dimension_numbers = #tpu.dot_dimension_numbers<[1], [0], [0], [1], [0, 0, 1, 1], [], []>} : vector<8x64xf32>, vector<64x32xf32>, vector<8x32xf32> -> vector<8x32xf32>
    %c1_251 = arith.constant 1 : index
    %c0_252 = arith.constant 0 : index
    %c0_253 = arith.constant 0 : index
    %551 = vector.load %arg23[%c1_251, %c0_252, %c0_253] : memref<2x1x32xf32, #tpu.memory_space<vmem>>, vector<1x1x32xf32>
    %552 = vector.shape_cast %551 : vector<1x1x32xf32> to vector<1x32xf32>
    %553 = vector.broadcast %552 : vector<1x32xf32> to vector<8x32xf32>
    %554 = arith.addf %550, %553 : vector<8x32xf32>
    %555 = arith.addf %554, %538 : vector<8x32xf32>
    %c1_254 = arith.constant 1 : index
    %c0_255 = arith.constant 0 : index
    %c0_256 = arith.constant 0 : index
    %556 = vector.load %arg28[%c1_254, %c0_255, %c0_256] : memref<2x1x32xf32, #tpu.memory_space<vmem>>, vector<1x1x32xf32>
    %557 = vector.shape_cast %556 : vector<1x1x32xf32> to vector<1x32xf32>
    %c1_257 = arith.constant 1 : index
    %c0_258 = arith.constant 0 : index
    %c0_259 = arith.constant 0 : index
    %558 = vector.load %arg29[%c1_257, %c0_258, %c0_259] : memref<2x1x32xf32, #tpu.memory_space<vmem>>, vector<1x1x32xf32>
    %559 = vector.shape_cast %558 : vector<1x1x32xf32> to vector<1x32xf32>
    %cst_260 = arith.constant dense<0.000000e+00> : vector<8xf32>
    %560 = vector.multi_reduction <add>, %555, %cst_260 [1] : vector<8x32xf32> to vector<8xf32>
    %561 = vector.shape_cast %560 : vector<8xf32> to vector<8x1xf32>
    %cst_261 = arith.constant 3.200000e+01 : f32
    %562 = vector.broadcast %cst_261 : f32 to vector<8x1xf32>
    %563 = arith.divf %561, %562 : vector<8x1xf32>
    %564 = vector.broadcast %563 : vector<8x1xf32> to vector<8x32xf32>
    %565 = arith.subf %555, %564 : vector<8x32xf32>
    %566 = arith.mulf %565, %565 : vector<8x32xf32>
    %cst_262 = arith.constant dense<0.000000e+00> : vector<8xf32>
    %567 = vector.multi_reduction <add>, %566, %cst_262 [1] : vector<8x32xf32> to vector<8xf32>
    %568 = vector.shape_cast %567 : vector<8xf32> to vector<8x1xf32>
    %cst_263 = arith.constant 3.200000e+01 : f32
    %569 = vector.broadcast %cst_263 : f32 to vector<8x1xf32>
    %570 = arith.divf %568, %569 : vector<8x1xf32>
    %571 = vector.broadcast %563 : vector<8x1xf32> to vector<8x32xf32>
    %572 = arith.subf %555, %571 : vector<8x32xf32>
    %cst_264 = arith.constant 9.99999974E-6 : f32
    %573 = vector.broadcast %cst_264 : f32 to vector<8x1xf32>
    %574 = arith.addf %570, %573 : vector<8x1xf32>
    %575 = math.rsqrt %574 : vector<8x1xf32>
    %576 = vector.broadcast %575 : vector<8x1xf32> to vector<8x32xf32>
    %577 = arith.mulf %572, %576 : vector<8x32xf32>
    %578 = vector.broadcast %557 : vector<1x32xf32> to vector<8x32xf32>
    %579 = arith.mulf %577, %578 : vector<8x32xf32>
    %580 = vector.broadcast %559 : vector<1x32xf32> to vector<8x32xf32>
    %581 = arith.addf %579, %580 : vector<8x32xf32>
    %c0_265 = arith.constant 0 : index
    %c0_266 = arith.constant 0 : index
    %582 = vector.load %arg30[%c0_265, %c0_266] : memref<1x32xf32, #tpu.memory_space<vmem>>, vector<1x32xf32>
    %c0_267 = arith.constant 0 : index
    %c0_268 = arith.constant 0 : index
    %583 = vector.load %arg31[%c0_267, %c0_268] : memref<1x32xf32, #tpu.memory_space<vmem>>, vector<1x32xf32>
    %cst_269 = arith.constant dense<0.000000e+00> : vector<8xf32>
    %584 = vector.multi_reduction <add>, %581, %cst_269 [1] : vector<8x32xf32> to vector<8xf32>
    %585 = vector.shape_cast %584 : vector<8xf32> to vector<8x1xf32>
    %cst_270 = arith.constant 3.200000e+01 : f32
    %586 = vector.broadcast %cst_270 : f32 to vector<8x1xf32>
    %587 = arith.divf %585, %586 : vector<8x1xf32>
    %588 = vector.broadcast %587 : vector<8x1xf32> to vector<8x32xf32>
    %589 = arith.subf %581, %588 : vector<8x32xf32>
    %590 = arith.mulf %589, %589 : vector<8x32xf32>
    %cst_271 = arith.constant dense<0.000000e+00> : vector<8xf32>
    %591 = vector.multi_reduction <add>, %590, %cst_271 [1] : vector<8x32xf32> to vector<8xf32>
    %592 = vector.shape_cast %591 : vector<8xf32> to vector<8x1xf32>
    %cst_272 = arith.constant 3.200000e+01 : f32
    %593 = vector.broadcast %cst_272 : f32 to vector<8x1xf32>
    %594 = arith.divf %592, %593 : vector<8x1xf32>
    %595 = vector.broadcast %587 : vector<8x1xf32> to vector<8x32xf32>
    %596 = arith.subf %581, %595 : vector<8x32xf32>
    %cst_273 = arith.constant 9.99999974E-6 : f32
    %597 = vector.broadcast %cst_273 : f32 to vector<8x1xf32>
    %598 = arith.addf %594, %597 : vector<8x1xf32>
    %599 = math.rsqrt %598 : vector<8x1xf32>
    %600 = vector.broadcast %599 : vector<8x1xf32> to vector<8x32xf32>
    %601 = arith.mulf %596, %600 : vector<8x32xf32>
    %602 = vector.broadcast %582 : vector<1x32xf32> to vector<8x32xf32>
    %603 = arith.mulf %601, %602 : vector<8x32xf32>
    %604 = vector.broadcast %583 : vector<1x32xf32> to vector<8x32xf32>
    %605 = arith.addf %603, %604 : vector<8x32xf32>
    %c0_274 = arith.constant 0 : index
    %c0_275 = arith.constant 0 : index
    %c0_276 = arith.constant 0 : index
    %606 = vector.load %arg5[%c0_274, %c0_275, %c0_276] : memref<1x1x12xf32, #tpu.memory_space<vmem>>, vector<1x1x12xf32>
    %607 = vector.shape_cast %606 : vector<1x1x12xf32> to vector<1x12xf32>
    %cst_277 = arith.constant dense<0.000000e+00> : vector<1x32xf32>
    %608 = tpu.matmul %607, %13, %cst_277 {dimension_numbers = #tpu.dot_dimension_numbers<[1], [0], [0], [1], [0, 0, 1, 1], [], []>} : vector<1x12xf32>, vector<12x32xf32>, vector<1x32xf32> -> vector<1x32xf32>
    %609 = vector.shape_cast %608 : vector<1x32xf32> to vector<1x32xf32>
    %610 = vector.broadcast %609 : vector<1x32xf32> to vector<8x32xf32>
    %611 = tpu.concatenate %610, %605 in 1 : vector<8x32xf32>, vector<8x32xf32> -> vector<8x64xf32>
    %c0_278 = arith.constant 0 : index
    %c0_279 = arith.constant 0 : index
    %c0_280 = arith.constant 0 : index
    %612 = vector.load %arg32[%c0_278, %c0_279, %c0_280] : memref<1x8x64xf32, #tpu.memory_space<vmem>>, vector<1x8x64xf32>
    %613 = vector.shape_cast %612 : vector<1x8x64xf32> to vector<8x64xf32>
    %614 = vector.shape_cast %611 : vector<8x64xf32> to vector<1x8x64xf32>
    tpu.vector_store %arg32[%c0_278, %c0_279, %c0_280], %614 {strides = array<i32>} : memref<1x8x64xf32, #tpu.memory_space<vmem>>, vector<1x8x64xf32>,
    return
  }
  func.func @transform_0(%arg0: i32) -> (i32, i32, i32) {
    %c0_i32 = arith.constant 0 : i32
    %c0_i32_0 = arith.constant 0 : i32
    %c0_i32_1 = arith.constant 0 : i32
    return %arg0, %c0_i32, %c0_i32_0 : i32, i32, i32
  }
  func.func @transform_1(%arg0: i32) -> (i32, i32, i32) {
    %c0_i32 = arith.constant 0 : i32
    %c0_i32_0 = arith.constant 0 : i32
    %c0_i32_1 = arith.constant 0 : i32
    return %arg0, %c0_i32, %c0_i32_0 : i32, i32, i32
  }
  func.func @transform_2(%arg0: i32) -> (i32, i32, i32) {
    %c0_i32 = arith.constant 0 : i32
    %c0_i32_0 = arith.constant 0 : i32
    %c0_i32_1 = arith.constant 0 : i32
    return %arg0, %c0_i32, %c0_i32_0 : i32, i32, i32
  }
  func.func @transform_3(%arg0: i32) -> (i32, i32, i32) {
    %c0_i32 = arith.constant 0 : i32
    %c0_i32_0 = arith.constant 0 : i32
    %c0_i32_1 = arith.constant 0 : i32
    return %arg0, %c0_i32, %c0_i32_0 : i32, i32, i32
  }
  func.func @transform_4(%arg0: i32) -> (i32, i32, i32) {
    %c0_i32 = arith.constant 0 : i32
    %c0_i32_0 = arith.constant 0 : i32
    %c0_i32_1 = arith.constant 0 : i32
    return %arg0, %c0_i32, %c0_i32_0 : i32, i32, i32
  }
  func.func @transform_5(%arg0: i32) -> (i32, i32) {
    %c0_i32 = arith.constant 0 : i32
    %c0_i32_0 = arith.constant 0 : i32
    %c0_i32_1 = arith.constant 0 : i32
    return %c0_i32, %c0_i32_0 : i32, i32
  }
  func.func @transform_6(%arg0: i32) -> (i32, i32) {
    %c0_i32 = arith.constant 0 : i32
    %c0_i32_0 = arith.constant 0 : i32
    %c0_i32_1 = arith.constant 0 : i32
    return %c0_i32, %c0_i32_0 : i32, i32
  }
  func.func @transform_7(%arg0: i32) -> (i32, i32) {
    %c0_i32 = arith.constant 0 : i32
    %c0_i32_0 = arith.constant 0 : i32
    %c0_i32_1 = arith.constant 0 : i32
    return %c0_i32, %c0_i32_0 : i32, i32
  }
  func.func @transform_8(%arg0: i32) -> (i32, i32) {
    %c0_i32 = arith.constant 0 : i32
    %c0_i32_0 = arith.constant 0 : i32
    %c0_i32_1 = arith.constant 0 : i32
    return %c0_i32, %c0_i32_0 : i32, i32
  }
  func.func @transform_9(%arg0: i32) -> (i32, i32, i32) {
    %c0_i32 = arith.constant 0 : i32
    %c0_i32_0 = arith.constant 0 : i32
    %c0_i32_1 = arith.constant 0 : i32
    %c0_i32_2 = arith.constant 0 : i32
    return %c0_i32, %c0_i32_0, %c0_i32_1 : i32, i32, i32
  }
  func.func @transform_10(%arg0: i32) -> (i32, i32, i32) {
    %c0_i32 = arith.constant 0 : i32
    %c0_i32_0 = arith.constant 0 : i32
    %c0_i32_1 = arith.constant 0 : i32
    %c0_i32_2 = arith.constant 0 : i32
    return %c0_i32, %c0_i32_0, %c0_i32_1 : i32, i32, i32
  }
  func.func @transform_11(%arg0: i32) -> (i32, i32, i32) {
    %c0_i32 = arith.constant 0 : i32
    %c0_i32_0 = arith.constant 0 : i32
    %c0_i32_1 = arith.constant 0 : i32
    %c0_i32_2 = arith.constant 0 : i32
    return %c0_i32, %c0_i32_0, %c0_i32_1 : i32, i32, i32
  }
  func.func @transform_12(%arg0: i32) -> (i32, i32, i32) {
    %c0_i32 = arith.constant 0 : i32
    %c0_i32_0 = arith.constant 0 : i32
    %c0_i32_1 = arith.constant 0 : i32
    %c0_i32_2 = arith.constant 0 : i32
    return %c0_i32, %c0_i32_0, %c0_i32_1 : i32, i32, i32
  }
  func.func @transform_13(%arg0: i32) -> (i32, i32, i32) {
    %c0_i32 = arith.constant 0 : i32
    %c0_i32_0 = arith.constant 0 : i32
    %c0_i32_1 = arith.constant 0 : i32
    %c0_i32_2 = arith.constant 0 : i32
    return %c0_i32, %c0_i32_0, %c0_i32_1 : i32, i32, i32
  }
  func.func @transform_14(%arg0: i32) -> (i32, i32, i32) {
    %c0_i32 = arith.constant 0 : i32
    %c0_i32_0 = arith.constant 0 : i32
    %c0_i32_1 = arith.constant 0 : i32
    %c0_i32_2 = arith.constant 0 : i32
    return %c0_i32, %c0_i32_0, %c0_i32_1 : i32, i32, i32
  }
  func.func @transform_15(%arg0: i32) -> (i32, i32, i32) {
    %c0_i32 = arith.constant 0 : i32
    %c0_i32_0 = arith.constant 0 : i32
    %c0_i32_1 = arith.constant 0 : i32
    %c0_i32_2 = arith.constant 0 : i32
    return %c0_i32, %c0_i32_0, %c0_i32_1 : i32, i32, i32
  }
  func.func @transform_16(%arg0: i32) -> (i32, i32, i32) {
    %c0_i32 = arith.constant 0 : i32
    %c0_i32_0 = arith.constant 0 : i32
    %c0_i32_1 = arith.constant 0 : i32
    %c0_i32_2 = arith.constant 0 : i32
    return %c0_i32, %c0_i32_0, %c0_i32_1 : i32, i32, i32
  }
  func.func @transform_17(%arg0: i32) -> (i32, i32, i32) {
    %c0_i32 = arith.constant 0 : i32
    %c0_i32_0 = arith.constant 0 : i32
    %c0_i32_1 = arith.constant 0 : i32
    %c0_i32_2 = arith.constant 0 : i32
    return %c0_i32, %c0_i32_0, %c0_i32_1 : i32, i32, i32
  }
  func.func @transform_18(%arg0: i32) -> (i32, i32, i32) {
    %c0_i32 = arith.constant 0 : i32
    %c0_i32_0 = arith.constant 0 : i32
    %c0_i32_1 = arith.constant 0 : i32
    %c0_i32_2 = arith.constant 0 : i32
    return %c0_i32, %c0_i32_0, %c0_i32_1 : i32, i32, i32
  }
  func.func @transform_19(%arg0: i32) -> (i32, i32, i32) {
    %c0_i32 = arith.constant 0 : i32
    %c0_i32_0 = arith.constant 0 : i32
    %c0_i32_1 = arith.constant 0 : i32
    %c0_i32_2 = arith.constant 0 : i32
    return %c0_i32, %c0_i32_0, %c0_i32_1 : i32, i32, i32
  }
  func.func @transform_20(%arg0: i32) -> (i32, i32, i32) {
    %c0_i32 = arith.constant 0 : i32
    %c0_i32_0 = arith.constant 0 : i32
    %c0_i32_1 = arith.constant 0 : i32
    %c0_i32_2 = arith.constant 0 : i32
    return %c0_i32, %c0_i32_0, %c0_i32_1 : i32, i32, i32
  }
  func.func @transform_21(%arg0: i32) -> (i32, i32, i32) {
    %c0_i32 = arith.constant 0 : i32
    %c0_i32_0 = arith.constant 0 : i32
    %c0_i32_1 = arith.constant 0 : i32
    %c0_i32_2 = arith.constant 0 : i32
    return %c0_i32, %c0_i32_0, %c0_i32_1 : i32, i32, i32
  }
  func.func @transform_22(%arg0: i32) -> (i32, i32, i32) {
    %c0_i32 = arith.constant 0 : i32
    %c0_i32_0 = arith.constant 0 : i32
    %c0_i32_1 = arith.constant 0 : i32
    %c0_i32_2 = arith.constant 0 : i32
    return %c0_i32, %c0_i32_0, %c0_i32_1 : i32, i32, i32
  }
  func.func @transform_23(%arg0: i32) -> (i32, i32, i32) {
    %c0_i32 = arith.constant 0 : i32
    %c0_i32_0 = arith.constant 0 : i32
    %c0_i32_1 = arith.constant 0 : i32
    %c0_i32_2 = arith.constant 0 : i32
    return %c0_i32, %c0_i32_0, %c0_i32_1 : i32, i32, i32
  }
  func.func @transform_24(%arg0: i32) -> (i32, i32, i32) {
    %c0_i32 = arith.constant 0 : i32
    %c0_i32_0 = arith.constant 0 : i32
    %c0_i32_1 = arith.constant 0 : i32
    %c0_i32_2 = arith.constant 0 : i32
    return %c0_i32, %c0_i32_0, %c0_i32_1 : i32, i32, i32
  }
  func.func @transform_25(%arg0: i32) -> (i32, i32, i32) {
    %c0_i32 = arith.constant 0 : i32
    %c0_i32_0 = arith.constant 0 : i32
    %c0_i32_1 = arith.constant 0 : i32
    %c0_i32_2 = arith.constant 0 : i32
    return %c0_i32, %c0_i32_0, %c0_i32_1 : i32, i32, i32
  }
  func.func @transform_26(%arg0: i32) -> (i32, i32, i32) {
    %c0_i32 = arith.constant 0 : i32
    %c0_i32_0 = arith.constant 0 : i32
    %c0_i32_1 = arith.constant 0 : i32
    %c0_i32_2 = arith.constant 0 : i32
    return %c0_i32, %c0_i32_0, %c0_i32_1 : i32, i32, i32
  }
  func.func @transform_27(%arg0: i32) -> (i32, i32, i32) {
    %c0_i32 = arith.constant 0 : i32
    %c0_i32_0 = arith.constant 0 : i32
    %c0_i32_1 = arith.constant 0 : i32
    %c0_i32_2 = arith.constant 0 : i32
    return %c0_i32, %c0_i32_0, %c0_i32_1 : i32, i32, i32
  }
  func.func @transform_28(%arg0: i32) -> (i32, i32, i32) {
    %c0_i32 = arith.constant 0 : i32
    %c0_i32_0 = arith.constant 0 : i32
    %c0_i32_1 = arith.constant 0 : i32
    %c0_i32_2 = arith.constant 0 : i32
    return %c0_i32, %c0_i32_0, %c0_i32_1 : i32, i32, i32
  }
  func.func @transform_29(%arg0: i32) -> (i32, i32) {
    %c0_i32 = arith.constant 0 : i32
    %c0_i32_0 = arith.constant 0 : i32
    %c0_i32_1 = arith.constant 0 : i32
    return %c0_i32, %c0_i32_0 : i32, i32
  }
  func.func @transform_30(%arg0: i32) -> (i32, i32) {
    %c0_i32 = arith.constant 0 : i32
    %c0_i32_0 = arith.constant 0 : i32
    %c0_i32_1 = arith.constant 0 : i32
    return %c0_i32, %c0_i32_0 : i32, i32
  }
  func.func @transform_31(%arg0: i32) -> (i32, i32, i32) {
    %c0_i32 = arith.constant 0 : i32
    %c0_i32_0 = arith.constant 0 : i32
    %c0_i32_1 = arith.constant 0 : i32
    return %arg0, %c0_i32, %c0_i32_0 : i32, i32, i32
  }
}

</mosaic_0001>

<llo_original>
// kernel: modal_fuser_forward.1
$region0: #{modal_fuser_forward.1}
  #allocation0 [shape = 'u32[]', space=smem, size = 0x4, offset = 0x4, fixed_abs, tag = 'smem constant byte address 0x4 - core index']
  #allocation1 [shape = 'u32[144,128]{1,0:T(1,128)}', space=vmem, size = 0x12000, scoped, tag = 'internal scratch']
  %s0 = inlined_call_operand.smem [shape: u32[32], index: -1, kind: input, shape index: {}]
  %s1 = sld [smem:[%s0]]
  %s2 = scalar_lea.smem %s0, 1
  %s3 = sld [smem:[%s2]]
  %s4 = scalar_lea.smem %s0, 2
  %s5 = sld [smem:[%s4]]
  %s6 = scalar_lea.smem %s0, 3
  %s7 = sld [smem:[%s6]]
  %s8 = scalar_lea.smem %s0, 4
  %s9 = sld [smem:[%s8]]
  %s10 = scalar_lea.smem %s0, 5
  %s11 = sld [smem:[%s10]]
  %s12 = scalar_lea.smem %s0, 6
  %s13 = sld [smem:[%s12]]
  %s14 = scalar_lea.smem %s0, 7
  %s15 = sld [smem:[%s14]]
  %s16 = scalar_lea.smem %s0, 8
  %s17 = sld [smem:[%s16]]
  %s18 = scalar_lea.smem %s0, 9
  %s19 = sld [smem:[%s18]]
  %s20 = scalar_lea.smem %s0, 10
  %s21 = sld [smem:[%s20]]
  %s22 = scalar_lea.smem %s0, 11
  %s23 = sld [smem:[%s22]]
  %s24 = scalar_lea.smem %s0, 12
  %s25 = sld [smem:[%s24]]
  %s26 = scalar_lea.smem %s0, 13
  %s27 = sld [smem:[%s26]]
  %s28 = scalar_lea.smem %s0, 14
  %s29 = sld [smem:[%s28]]
  %s30 = scalar_lea.smem %s0, 15
  %s31 = sld [smem:[%s30]]
  %s32 = scalar_lea.smem %s0, 16
  %s33 = sld [smem:[%s32]]
  %s34 = scalar_lea.smem %s0, 17
  %s35 = sld [smem:[%s34]]
  %s36 = scalar_lea.smem %s0, 18
  %s37 = sld [smem:[%s36]]
  %s38 = scalar_lea.smem %s0, 19
  %s39 = sld [smem:[%s38]]
  %s40 = scalar_lea.smem %s0, 20
  %s41 = sld [smem:[%s40]]
  %s42 = scalar_lea.smem %s0, 21
  %s43 = sld [smem:[%s42]]
  %s44 = scalar_lea.smem %s0, 22
  %s45 = sld [smem:[%s44]]
  %s46 = scalar_lea.smem %s0, 23
  %s47 = sld [smem:[%s46]]
  %s48 = scalar_lea.smem %s0, 24
  %s49 = sld [smem:[%s48]]
  %s50 = scalar_lea.smem %s0, 25
  %s51 = sld [smem:[%s50]]
  %s52 = scalar_lea.smem %s0, 26
  %s53 = sld [smem:[%s52]]
  %s54 = scalar_lea.smem %s0, 27
  %s55 = sld [smem:[%s54]]
  %s56 = scalar_lea.smem %s0, 28
  %s57 = sld [smem:[%s56]]
  %s58 = scalar_lea.smem %s0, 29
  %s59 = sld [smem:[%s58]]
  %s60 = scalar_lea.smem %s0, 30
  %s61 = sld [smem:[%s60]]
  %s62 = scalar_lea.smem %s0, 31
  %s63 = sld [smem:[%s62]]
  %s64 = sld [smem:[#allocation0]]
  $region237: #{modal_fuser_forward.1} parent=0
    _
  %s66 = ssub.s32 1, %s64
  %s67 = scalar_select 0, %s66, %s64
  $region1: #{modal_fuser_forward.1} parent=0
    #allocation2 [shape = 'u8[8192]{0}', space=vmem, size = 0x2000, scoped, tag = 'input window, operand 0']
    #allocation3 [shape = 's32[2]{0}', space=sflag, size = 0x8, scoped, tag = 'scoped memory for modal_fuser_forward.1']
    #allocation4 [shape = 's32[2]{0}', space=sflag, size = 0x8, scoped, tag = 'scoped memory for modal_fuser_forward.1']
    #allocation5 [shape = 'u8[12288]{0}', space=vmem, size = 0x3000, scoped, tag = 'input window, operand 5, single buffered']
    #allocation6 [shape = 's32[1]{0}', space=sflag, size = 0x4, scoped, tag = 'scoped memory for modal_fuser_forward.1']
    #allocation7 [shape = 'u8[512]{0}', space=vmem, size = 0x400, scoped, tag = 'input window, operand 8, single buffered']
    #allocation8 [shape = 'u8[1024]{0}', space=vmem, size = 0x400, scoped, tag = 'input window, operand 10, single buffered']
    #allocation9 [shape = 's32[1]{0}', space=sflag, size = 0x4, scoped, tag = 'scoped memory for modal_fuser_forward.1']
    #allocation10 [shape = 'u8[1024]{0}', space=vmem, size = 0x400, scoped, tag = 'input window, operand 12, single buffered']
    #allocation11 [shape = 'u8[1024]{0}', space=vmem, size = 0x400, scoped, tag = 'input window, operand 14, single buffered']
    #allocation12 [shape = 's32[1]{0}', space=sflag, size = 0x4, scoped, tag = 'scoped memory for modal_fuser_forward.1']
    #allocation13 [shape = 'u8[1024]{0}', space=vmem, size = 0x400, scoped, tag = 'input window, operand 16, single buffered']
    #allocation14 [shape = 'u8[32768]{0}', space=vmem, size = 0x8000, scoped, tag = 'input window, operand 17, single buffered']
    #allocation15 [shape = 's32[1]{0}', space=sflag, size = 0x4, scoped, tag = 'scoped memory for modal_fuser_forward.1']
    #allocation16 [shape = 'u8[1024]{0}', space=vmem, size = 0x400, scoped, tag = 'input window, operand 18, single buffered']
    #allocation17 [shape = 'u8[32768]{0}', space=vmem, size = 0x8000, scoped, tag = 'input window, operand 19, single buffered']
    #allocation18 [shape = 's32[1]{0}', space=sflag, size = 0x4, scoped, tag = 'scoped memory for modal_fuser_forward.1']
    #allocation19 [shape = 'u8[1024]{0}', space=vmem, size = 0x400, scoped, tag = 'input window, operand 20, single buffered']
    #allocation20 [shape = 'u8[1024]{0}', space=vmem, size = 0x400, scoped, tag = 'input window, operand 22, single buffered']
    #allocation21 [shape = 's32[1]{0}', space=sflag, size = 0x4, scoped, tag = 'scoped memory for modal_fuser_forward.1']
    #allocation22 [shape = 'u8[1024]{0}', space=vmem, size = 0x400, scoped, tag = 'input window, operand 23, single buffered']
    #allocation23 [shape = 'u8[1024]{0}', space=vmem, size = 0x400, scoped, tag = 'input window, operand 24, single buffered']
    #allocation24 [shape = 's32[1]{0}', space=sflag, size = 0x4, scoped, tag = 'scoped memory for modal_fuser_forward.1']
    #allocation25 [shape = 'u8[1024]{0}', space=vmem, size = 0x400, scoped, tag = 'input window, operand 25, single buffered']
    #allocation26 [shape = 'u8[1024]{0}', space=vmem, size = 0x400, scoped, tag = 'input window, operand 26, single buffered']
    #allocation27 [shape = 's32[1]{0}', space=sflag, size = 0x4, scoped, tag = 'scoped memory for modal_fuser_forward.1']
    #allocation28 [shape = 'u8[1024]{0}', space=vmem, size = 0x400, scoped, tag = 'input window, operand 27, single buffered']
    #allocation29 [shape = 'u8[1024]{0}', space=vmem, size = 0x400, scoped, tag = 'input window, operand 28, single buffered']
    #allocation30 [shape = 's32[1]{0}', space=sflag, size = 0x4, scoped, tag = 'scoped memory for modal_fuser_forward.1']
    #allocation31 [shape = 'u8[512]{0}', space=vmem, size = 0x400, scoped, tag = 'input window, operand 29, single buffered']
    #allocation32 [shape = 'u8[512]{0}', space=vmem, size = 0x400, scoped, tag = 'input window, operand 30, single buffered']
    #allocation33 [shape = 's32[1]{0}', space=sflag, size = 0x4, scoped, tag = 'scoped memory for modal_fuser_forward.1']
    #allocation34 [shape = 'u8[8192]{0}', space=vmem, size = 0x2000, scoped, tag = 'output window, operand 0']
    %68 = vsyncpa [#allocation3], 0
    %s69 = scalar_lea.sflag [#allocation3], 1
    %70 = vsyncpa %s69, 0
    %71 = vsyncpa [#allocation6], 0
    %72 = vsyncpa [#allocation9], 0
    %73 = vsyncpa [#allocation12], 0
    %74 = vsyncpa [#allocation15], 0
    %75 = vsyncpa [#allocation18], 0
    %76 = vsyncpa [#allocation21], 0
    %77 = vsyncpa [#allocation24], 0
    %78 = vsyncpa [#allocation27], 0
    %79 = vsyncpa [#allocation30], 0
    %80 = vsyncpa [#allocation33], 0
    %81 = vsyncpa [#allocation4], 0
    %s82 = scalar_lea.sflag [#allocation4], 1
    %83 = vsyncpa %s82, 0
    loop: start=0, step=1, limit=4
    $region2: #{modal_fuser_forward.1} parent=1 // loop_pre_header
      _
    $region3: #{modal_fuser_forward.1} parent=1 // loop_header
      %s85 = sphi 0, %s89
      %p86 = scmp.ge.s32.totalorder %s85, 4
      %s95 = sphi 0, %s97
      %s98 = sphi 0, %s95
      %s99 = sphi 0, %s98
      %s115 = sphi 0, %s99
      %s121 = sphi 0, %s123
      %s124 = sphi 0, %s121
      %s125 = sphi 0, %s124
      %s141 = sphi 0, %s125
      %s147 = sphi 0, %s149
      %s150 = sphi 0, %s147
      %s151 = sphi 0, %s150
      %s167 = sphi 0, %s151
      %s173 = sphi 0, %s175
      %s176 = sphi 0, %s173
      %s177 = sphi 0, %s176
      %s193 = sphi 0, %s177
      %s199 = sphi 0, %s201
      %s202 = sphi 0, %s199
      %s203 = sphi 0, %s202
      %s219 = sphi 0, %s203
      %s223 = sphi 0, %s223
      %s225 = sphi 0, %s223
      %s226 = sphi 0, %s225
      %s240 = sphi 0, %s226
      %s244 = sphi 0, %s244
      %s246 = sphi 0, %s244
      %s247 = sphi 0, %s246
      %s261 = sphi 0, %s247
      %s265 = sphi 0, %s265
      %s267 = sphi 0, %s265
      %s268 = sphi 0, %s267
      %s282 = sphi 0, %s268
      %s286 = sphi 0, %s286
      %s288 = sphi 0, %s286
      %s289 = sphi 0, %s288
      %s303 = sphi 0, %s289
      %s307 = sphi 0, %s307
      %s309 = sphi 0, %s307
      %s310 = sphi 0, %s309
      %s324 = sphi 0, %s310
      %s328 = sphi 0, %s328
      %s330 = sphi 0, %s328
      %s331 = sphi 0, %s330
      %s345 = sphi 0, %s331
      %s349 = sphi 0, %s349
      %s351 = sphi 0, %s349
      %s352 = sphi 0, %s351
      %s366 = sphi 0, %s352
      %s370 = sphi 0, %s370
      %s372 = sphi 0, %s370
      %s373 = sphi 0, %s372
      %s387 = sphi 0, %s373
      %s391 = sphi 0, %s391
      %s393 = sphi 0, %s391
      %s394 = sphi 0, %s393
      %s408 = sphi 0, %s394
      %s412 = sphi 0, %s412
      %s414 = sphi 0, %s412
      %s415 = sphi 0, %s414
      %s429 = sphi 0, %s415
      %s433 = sphi 0, %s433
      %s435 = sphi 0, %s433
      %s436 = sphi 0, %s435
      %s450 = sphi 0, %s436
      %s454 = sphi 0, %s454
      %s456 = sphi 0, %s454
      %s457 = sphi 0, %s456
      %s471 = sphi 0, %s457
      %s475 = sphi 0, %s475
      %s477 = sphi 0, %s475
      %s478 = sphi 0, %s477
      %s492 = sphi 0, %s478
      %s496 = sphi 0, %s496
      %s498 = sphi 0, %s496
      %s499 = sphi 0, %s498
      %s513 = sphi 0, %s499
      %s517 = sphi 0, %s517
      %s519 = sphi 0, %s517
      %s520 = sphi 0, %s519
      %s534 = sphi 0, %s520
      %s538 = sphi 0, %s538
      %s540 = sphi 0, %s538
      %s541 = sphi 0, %s540
      %s555 = sphi 0, %s541
      %s559 = sphi 0, %s559
      %s561 = sphi 0, %s559
      %s562 = sphi 0, %s561
      %s576 = sphi 0, %s562
      %s580 = sphi 0, %s580
      %s582 = sphi 0, %s580
      %s583 = sphi 0, %s582
      %s597 = sphi 0, %s583
      %s601 = sphi 0, %s601
      %s603 = sphi 0, %s601
      %s604 = sphi 0, %s603
      %s618 = sphi 0, %s604
      %s622 = sphi 0, %s622
      %s624 = sphi 0, %s622
      %s625 = sphi 0, %s624
      %s639 = sphi 0, %s625
      %s643 = sphi 0, %s643
      %s645 = sphi 0, %s643
      %s646 = sphi 0, %s645
      %s660 = sphi 0, %s646
      %s664 = sphi 0, %s664
      %s666 = sphi 0, %s664
      %s667 = sphi 0, %s666
      %s681 = sphi 0, %s667
      %s685 = sphi 0, %s685
      %s687 = sphi 0, %s685
      %s688 = sphi 0, %s687
      %s702 = sphi 0, %s688
      %s706 = sphi 0, %s706
      %s708 = sphi 0, %s706
      %s709 = sphi 0, %s708
      %s723 = sphi 0, %s709
      %s727 = sphi 0, %s727
      %s729 = sphi 0, %s727
      %s730 = sphi 0, %s729
      %s744 = sphi 0, %s730
      %s748 = sphi 0, %s748
      %s750 = sphi 0, %s748
      %s751 = sphi 0, %s750
      %s765 = sphi 0, %s751
      %s771 = sphi 0, %s773
      %s774 = sphi 0, %s771
      %s775 = sphi 0, %s774
      %s791 = sphi 0, %s775
    $region4: #{modal_fuser_forward.1} parent=1 // loop_header_branch
      %88 = sbr.rel (%p86) target = $region8
    $region5: #{modal_fuser_forward.1} parent=1 // loop_body
      %s90 = ssub.s32 %s85, 1
      %s91 = ssub.s32 %s85, 2
      %s92 = sadd.s32 %s85, 1
      %s93 = ssub.s32 %s85, %s92
      %p94 = scmp.eq.s32.totalorder %s93, 0
      %s96 = sadd.s32 %s95, 1
      %s97 = scalar_select %p94, %s95, %s96
      %p100 = pneg %p94
      %p101 = scmp.eq.s32.totalorder %s85, 1
      %p102 = por %p100, %p101
      %p103 = scmp.ne.s32.totalorder %s95, %s98
      %p104 = scmp.eq.s32.totalorder %s85, 0
      %p105 = por %p103, %p104
      %p106 = scmp.ne.s32.totalorder %s95, %s98
      %p107 = scmp.eq.s32.totalorder %s90, 1
      %p108 = por %p106, %p107
      %p109 = scmp.ne.s32.totalorder %s98, %s99
      %p110 = scmp.eq.s32.totalorder %s90, 0
      %p111 = por %p109, %p110
      %p112 = scmp.ne.s32.totalorder %s98, %s99
      %p113 = scmp.eq.s32.totalorder %s91, 1
      %p114 = por %p112, %p113
      %p116 = scmp.ne.s32.totalorder %s99, %s115
      %p117 = scmp.eq.s32.totalorder %s91, 0
      %p118 = por %p116, %p117
      %s119 = ssub.s32 %s85, %s92
      %p120 = scmp.eq.s32.totalorder %s119, 0
      %s122 = sadd.s32 %s121, 1
      %s123 = scalar_select %p120, %s121, %s122
      %p126 = pneg %p120
      %p127 = scmp.eq.s32.totalorder %s85, 1
      %p128 = por %p126, %p127
      %p129 = scmp.ne.s32.totalorder %s121, %s124
      %p130 = scmp.eq.s32.totalorder %s85, 0
      %p131 = por %p129, %p130
      %p132 = scmp.ne.s32.totalorder %s121, %s124
      %p133 = scmp.eq.s32.totalorder %s90, 1
      %p134 = por %p132, %p133
      %p135 = scmp.ne.s32.totalorder %s124, %s125
      %p136 = scmp.eq.s32.totalorder %s90, 0
      %p137 = por %p135, %p136
      %p138 = scmp.ne.s32.totalorder %s124, %s125
      %p139 = scmp.eq.s32.totalorder %s91, 1
      %p140 = por %p138, %p139
      %p142 = scmp.ne.s32.totalorder %s125, %s141
      %p143 = scmp.eq.s32.totalorder %s91, 0
      %p144 = por %p142, %p143
      %s145 = ssub.s32 %s85, %s92
      %p146 = scmp.eq.s32.totalorder %s145, 0
      %s148 = sadd.s32 %s147, 1
      %s149 = scalar_select %p146, %s147, %s148
      %p152 = pneg %p146
      %p153 = scmp.eq.s32.totalorder %s85, 1
      %p154 = por %p152, %p153
      %p155 = scmp.ne.s32.totalorder %s147, %s150
      %p156 = scmp.eq.s32.totalorder %s85, 0
      %p157 = por %p155, %p156
      %p158 = scmp.ne.s32.totalorder %s147, %s150
      %p159 = scmp.eq.s32.totalorder %s90, 1
      %p160 = por %p158, %p159
      %p161 = scmp.ne.s32.totalorder %s150, %s151
      %p162 = scmp.eq.s32.totalorder %s90, 0
      %p163 = por %p161, %p162
      %p164 = scmp.ne.s32.totalorder %s150, %s151
      %p165 = scmp.eq.s32.totalorder %s91, 1
      %p166 = por %p164, %p165
      %p168 = scmp.ne.s32.totalorder %s151, %s167
      %p169 = scmp.eq.s32.totalorder %s91, 0
      %p170 = por %p168, %p169
      %s171 = ssub.s32 %s85, %s92
      %p172 = scmp.eq.s32.totalorder %s171, 0
      %s174 = sadd.s32 %s173, 1
      %s175 = scalar_select %p172, %s173, %s174
      %p178 = pneg %p172
      %p179 = scmp.eq.s32.totalorder %s85, 1
      %p180 = por %p178, %p179
      %p181 = scmp.ne.s32.totalorder %s173, %s176
      %p182 = scmp.eq.s32.totalorder %s85, 0
      %p183 = por %p181, %p182
      %p184 = scmp.ne.s32.totalorder %s173, %s176
      %p185 = scmp.eq.s32.totalorder %s90, 1
      %p186 = por %p184, %p185
      %p187 = scmp.ne.s32.totalorder %s176, %s177
      %p188 = scmp.eq.s32.totalorder %s90, 0
      %p189 = por %p187, %p188
      %p190 = scmp.ne.s32.totalorder %s176, %s177
      %p191 = scmp.eq.s32.totalorder %s91, 1
      %p192 = por %p190, %p191
      %p194 = scmp.ne.s32.totalorder %s177, %s193
      %p195 = scmp.eq.s32.totalorder %s91, 0
      %p196 = por %p194, %p195
      %s197 = ssub.s32 %s85, %s92
      %p198 = scmp.eq.s32.totalorder %s197, 0
      %s200 = sadd.s32 %s199, 1
      %s201 = scalar_select %p198, %s199, %s200
      %p204 = pneg %p198
      %p205 = scmp.eq.s32.totalorder %s85, 1
      %p206 = por %p204, %p205
      %p207 = scmp.ne.s32.totalorder %s199, %s202
      %p208 = scmp.eq.s32.totalorder %s85, 0
      %p209 = por %p207, %p208
      %p210 = scmp.ne.s32.totalorder %s199, %s202
      %p211 = scmp.eq.s32.totalorder %s90, 1
      %p212 = por %p210, %p211
      %p213 = scmp.ne.s32.totalorder %s202, %s203
      %p214 = scmp.eq.s32.totalorder %s90, 0
      %p215 = por %p213, %p214
      %p216 = scmp.ne.s32.totalorder %s202, %s203
      %p217 = scmp.eq.s32.totalorder %s91, 1
      %p218 = por %p216, %p217
      %p220 = scmp.ne.s32.totalorder %s203, %s219
      %p221 = scmp.eq.s32.totalorder %s91, 0
      %p222 = por %p220, %p221
      %s224 = sadd.s32 %s223, 1
      %p227 = scmp.eq.s32.totalorder %s85, 1
      %p228 = scmp.ne.s32.totalorder %s223, %s225
      %p229 = scmp.eq.s32.totalorder %s85, 0
      %p230 = por %p228, %p229
      %p231 = scmp.ne.s32.totalorder %s223, %s225
      %p232 = scmp.eq.s32.totalorder %s90, 1
      %p233 = por %p231, %p232
      %p234 = scmp.ne.s32.totalorder %s225, %s226
      %p235 = scmp.eq.s32.totalorder %s90, 0
      %p236 = por %p234, %p235
      %p237 = scmp.ne.s32.totalorder %s225, %s226
      %p238 = scmp.eq.s32.totalorder %s91, 1
      %p239 = por %p237, %p238
      %p241 = scmp.ne.s32.totalorder %s226, %s240
      %p242 = scmp.eq.s32.totalorder %s91, 0
      %p243 = por %p241, %p242
      %s245 = sadd.s32 %s244, 1
      %p248 = scmp.eq.s32.totalorder %s85, 1
      %p249 = scmp.ne.s32.totalorder %s244, %s246
      %p250 = scmp.eq.s32.totalorder %s85, 0
      %p251 = por %p249, %p250
      %p252 = scmp.ne.s32.totalorder %s244, %s246
      %p253 = scmp.eq.s32.totalorder %s90, 1
      %p254 = por %p252, %p253
      %p255 = scmp.ne.s32.totalorder %s246, %s247
      %p256 = scmp.eq.s32.totalorder %s90, 0
      %p257 = por %p255, %p256
      %p258 = scmp.ne.s32.totalorder %s246, %s247
      %p259 = scmp.eq.s32.totalorder %s91, 1
      %p260 = por %p258, %p259
      %p262 = scmp.ne.s32.totalorder %s247, %s261
      %p263 = scmp.eq.s32.totalorder %s91, 0
      %p264 = por %p262, %p263
      %s266 = sadd.s32 %s265, 1
      %p269 = scmp.eq.s32.totalorder %s85, 1
      %p270 = scmp.ne.s32.totalorder %s265, %s267
      %p271 = scmp.eq.s32.totalorder %s85, 0
      %p272 = por %p270, %p271
      %p273 = scmp.ne.s32.totalorder %s265, %s267
      %p274 = scmp.eq.s32.totalorder %s90, 1
      %p275 = por %p273, %p274
      %p276 = scmp.ne.s32.totalorder %s267, %s268
      %p277 = scmp.eq.s32.totalorder %s90, 0
      %p278 = por %p276, %p277
      %p279 = scmp.ne.s32.totalorder %s267, %s268
      %p280 = scmp.eq.s32.totalorder %s91, 1
      %p281 = por %p279, %p280
      %p283 = scmp.ne.s32.totalorder %s268, %s282
      %p284 = scmp.eq.s32.totalorder %s91, 0
      %p285 = por %p283, %p284
      %s287 = sadd.s32 %s286, 1
      %p290 = scmp.eq.s32.totalorder %s85, 1
      %p291 = scmp.ne.s32.totalorder %s286, %s288
      %p292 = scmp.eq.s32.totalorder %s85, 0
      %p293 = por %p291, %p292
      %p294 = scmp.ne.s32.totalorder %s286, %s288
      %p295 = scmp.eq.s32.totalorder %s90, 1
      %p296 = por %p294, %p295
      %p297 = scmp.ne.s32.totalorder %s288, %s289
      %p298 = scmp.eq.s32.totalorder %s90, 0
      %p299 = por %p297, %p298
      %p300 = scmp.ne.s32.totalorder %s288, %s289
      %p301 = scmp.eq.s32.totalorder %s91, 1
      %p302 = por %p300, %p301
      %p304 = scmp.ne.s32.totalorder %s289, %s303
      %p305 = scmp.eq.s32.totalorder %s91, 0
      %p306 = por %p304, %p305
      %s308 = sadd.s32 %s307, 1
      %p311 = scmp.eq.s32.totalorder %s85, 1
      %p312 = scmp.ne.s32.totalorder %s307, %s309
      %p313 = scmp.eq.s32.totalorder %s85, 0
      %p314 = por %p312, %p313
      %p315 = scmp.ne.s32.totalorder %s307, %s309
      %p316 = scmp.eq.s32.totalorder %s90, 1
      %p317 = por %p315, %p316
      %p318 = scmp.ne.s32.totalorder %s309, %s310
      %p319 = scmp.eq.s32.totalorder %s90, 0
      %p320 = por %p318, %p319
      %p321 = scmp.ne.s32.totalorder %s309, %s310
      %p322 = scmp.eq.s32.totalorder %s91, 1
      %p323 = por %p321, %p322
      %p325 = scmp.ne.s32.totalorder %s310, %s324
      %p326 = scmp.eq.s32.totalorder %s91, 0
      %p327 = por %p325, %p326
      %s329 = sadd.s32 %s328, 1
      %p332 = scmp.eq.s32.totalorder %s85, 1
      %p333 = scmp.ne.s32.totalorder %s328, %s330
      %p334 = scmp.eq.s32.totalorder %s85, 0
      %p335 = por %p333, %p334
      %p336 = scmp.ne.s32.totalorder %s328, %s330
      %p337 = scmp.eq.s32.totalorder %s90, 1
      %p338 = por %p336, %p337
      %p339 = scmp.ne.s32.totalorder %s330, %s331
      %p340 = scmp.eq.s32.totalorder %s90, 0
      %p341 = por %p339, %p340
      %p342 = scmp.ne.s32.totalorder %s330, %s331
      %p343 = scmp.eq.s32.totalorder %s91, 1
      %p344 = por %p342, %p343
      %p346 = scmp.ne.s32.totalorder %s331, %s345
      %p347 = scmp.eq.s32.totalorder %s91, 0
      %p348 = por %p346, %p347
      %s350 = sadd.s32 %s349, 1
      %p353 = scmp.eq.s32.totalorder %s85, 1
      %p354 = scmp.ne.s32.totalorder %s349, %s351
      %p355 = scmp.eq.s32.totalorder %s85, 0
      %p356 = por %p354, %p355
      %p357 = scmp.ne.s32.totalorder %s349, %s351
      %p358 = scmp.eq.s32.totalorder %s90, 1
      %p359 = por %p357, %p358
      %p360 = scmp.ne.s32.totalorder %s351, %s352
      %p361 = scmp.eq.s32.totalorder %s90, 0
      %p362 = por %p360, %p361
      %p363 = scmp.ne.s32.totalorder %s351, %s352
      %p364 = scmp.eq.s32.totalorder %s91, 1
      %p365 = por %p363, %p364
      %p367 = scmp.ne.s32.totalorder %s352, %s366
      %p368 = scmp.eq.s32.totalorder %s91, 0
      %p369 = por %p367, %p368
      %s371 = sadd.s32 %s370, 1
      %p374 = scmp.eq.s32.totalorder %s85, 1
      %p375 = scmp.ne.s32.totalorder %s370, %s372
      %p376 = scmp.eq.s32.totalorder %s85, 0
      %p377 = por %p375, %p376
      %p378 = scmp.ne.s32.totalorder %s370, %s372
      %p379 = scmp.eq.s32.totalorder %s90, 1
      %p380 = por %p378, %p379
      %p381 = scmp.ne.s32.totalorder %s372, %s373
      %p382 = scmp.eq.s32.totalorder %s90, 0
      %p383 = por %p381, %p382
      %p384 = scmp.ne.s32.totalorder %s372, %s373
      %p385 = scmp.eq.s32.totalorder %s91, 1
      %p386 = por %p384, %p385
      %p388 = scmp.ne.s32.totalorder %s373, %s387
      %p389 = scmp.eq.s32.totalorder %s91, 0
      %p390 = por %p388, %p389
      %s392 = sadd.s32 %s391, 1
      %p395 = scmp.eq.s32.totalorder %s85, 1
      %p396 = scmp.ne.s32.totalorder %s391, %s393
      %p397 = scmp.eq.s32.totalorder %s85, 0
      %p398 = por %p396, %p397
      %p399 = scmp.ne.s32.totalorder %s391, %s393
      %p400 = scmp.eq.s32.totalorder %s90, 1
      %p401 = por %p399, %p400
      %p402 = scmp.ne.s32.totalorder %s393, %s394
      %p403 = scmp.eq.s32.totalorder %s90, 0
      %p404 = por %p402, %p403
      %p405 = scmp.ne.s32.totalorder %s393, %s394
      %p406 = scmp.eq.s32.totalorder %s91, 1
      %p407 = por %p405, %p406
      %p409 = scmp.ne.s32.totalorder %s394, %s408
      %p410 = scmp.eq.s32.totalorder %s91, 0
      %p411 = por %p409, %p410
      %s413 = sadd.s32 %s412, 1
      %p416 = scmp.eq.s32.totalorder %s85, 1
      %p417 = scmp.ne.s32.totalorder %s412, %s414
      %p418 = scmp.eq.s32.totalorder %s85, 0
      %p419 = por %p417, %p418
      %p420 = scmp.ne.s32.totalorder %s412, %s414
      %p421 = scmp.eq.s32.totalorder %s90, 1
      %p422 = por %p420, %p421
      %p423 = scmp.ne.s32.totalorder %s414, %s415
      %p424 = scmp.eq.s32.totalorder %s90, 0
      %p425 = por %p423, %p424
      %p426 = scmp.ne.s32.totalorder %s414, %s415
      %p427 = scmp.eq.s32.totalorder %s91, 1
      %p428 = por %p426, %p427
      %p430 = scmp.ne.s32.totalorder %s415, %s429
      %p431 = scmp.eq.s32.totalorder %s91, 0
      %p432 = por %p430, %p431
      %s434 = sadd.s32 %s433, 1
      %p437 = scmp.eq.s32.totalorder %s85, 1
      %p438 = scmp.ne.s32.totalorder %s433, %s435
      %p439 = scmp.eq.s32.totalorder %s85, 0
      %p440 = por %p438, %p439
      %p441 = scmp.ne.s32.totalorder %s433, %s435
      %p442 = scmp.eq.s32.totalorder %s90, 1
      %p443 = por %p441, %p442
      %p444 = scmp.ne.s32.totalorder %s435, %s436
      %p445 = scmp.eq.s32.totalorder %s90, 0
      %p446 = por %p444, %p445
      %p447 = scmp.ne.s32.totalorder %s435, %s436
      %p448 = scmp.eq.s32.totalorder %s91, 1
      %p449 = por %p447, %p448
      %p451 = scmp.ne.s32.totalorder %s436, %s450
      %p452 = scmp.eq.s32.totalorder %s91, 0
      %p453 = por %p451, %p452
      %s455 = sadd.s32 %s454, 1
      %p458 = scmp.eq.s32.totalorder %s85, 1
      %p459 = scmp.ne.s32.totalorder %s454, %s456
      %p460 = scmp.eq.s32.totalorder %s85, 0
      %p461 = por %p459, %p460
      %p462 = scmp.ne.s32.totalorder %s454, %s456
      %p463 = scmp.eq.s32.totalorder %s90, 1
      %p464 = por %p462, %p463
      %p465 = scmp.ne.s32.totalorder %s456, %s457
      %p466 = scmp.eq.s32.totalorder %s90, 0
      %p467 = por %p465, %p466
      %p468 = scmp.ne.s32.totalorder %s456, %s457
      %p469 = scmp.eq.s32.totalorder %s91, 1
      %p470 = por %p468, %p469
      %p472 = scmp.ne.s32.totalorder %s457, %s471
      %p473 = scmp.eq.s32.totalorder %s91, 0
      %p474 = por %p472, %p473
      %s476 = sadd.s32 %s475, 1
      %p479 = scmp.eq.s32.totalorder %s85, 1
      %p480 = scmp.ne.s32.totalorder %s475, %s477
      %p481 = scmp.eq.s32.totalorder %s85, 0
      %p482 = por %p480, %p481
      %p483 = scmp.ne.s32.totalorder %s475, %s477
      %p484 = scmp.eq.s32.totalorder %s90, 1
      %p485 = por %p483, %p484
      %p486 = scmp.ne.s32.totalorder %s477, %s478
      %p487 = scmp.eq.s32.totalorder %s90, 0
      %p488 = por %p486, %p487
      %p489 = scmp.ne.s32.totalorder %s477, %s478
      %p490 = scmp.eq.s32.totalorder %s91, 1
      %p491 = por %p489, %p490
      %p493 = scmp.ne.s32.totalorder %s478, %s492
      %p494 = scmp.eq.s32.totalorder %s91, 0
      %p495 = por %p493, %p494
      %s497 = sadd.s32 %s496, 1
      %p500 = scmp.eq.s32.totalorder %s85, 1
      %p501 = scmp.ne.s32.totalorder %s496, %s498
      %p502 = scmp.eq.s32.totalorder %s85, 0
      %p503 = por %p501, %p502
      %p504 = scmp.ne.s32.totalorder %s496, %s498
      %p505 = scmp.eq.s32.totalorder %s90, 1
      %p506 = por %p504, %p505
      %p507 = scmp.ne.s32.totalorder %s498, %s499
      %p508 = scmp.eq.s32.totalorder %s90, 0
      %p509 = por %p507, %p508
      %p510 = scmp.ne.s32.totalorder %s498, %s499
      %p511 = scmp.eq.s32.totalorder %s91, 1
      %p512 = por %p510, %p511
      %p514 = scmp.ne.s32.totalorder %s499, %s513
      %p515 = scmp.eq.s32.totalorder %s91, 0
      %p516 = por %p514, %p515
      %s518 = sadd.s32 %s517, 1
      %p521 = scmp.eq.s32.totalorder %s85, 1
      %p522 = scmp.ne.s32.totalorder %s517, %s519
      %p523 = scmp.eq.s32.totalorder %s85, 0
      %p524 = por %p522, %p523
      %p525 = scmp.ne.s32.totalorder %s517, %s519
      %p526 = scmp.eq.s32.totalorder %s90, 1
      %p527 = por %p525, %p526
      %p528 = scmp.ne.s32.totalorder %s519, %s520
      %p529 = scmp.eq.s32.totalorder %s90, 0
      %p530 = por %p528, %p529
      %p531 = scmp.ne.s32.totalorder %s519, %s520
      %p532 = scmp.eq.s32.totalorder %s91, 1
      %p533 = por %p531, %p532
      %p535 = scmp.ne.s32.totalorder %s520, %s534
      %p536 = scmp.eq.s32.totalorder %s91, 0
      %p537 = por %p535, %p536
      %s539 = sadd.s32 %s538, 1
      %p542 = scmp.eq.s32.totalorder %s85, 1
      %p543 = scmp.ne.s32.totalorder %s538, %s540
      %p544 = scmp.eq.s32.totalorder %s85, 0
      %p545 = por %p543, %p544
      %p546 = scmp.ne.s32.totalorder %s538, %s540
      %p547 = scmp.eq.s32.totalorder %s90, 1
      %p548 = por %p546, %p547
      %p549 = scmp.ne.s32.totalorder %s540, %s541
      %p550 = scmp.eq.s32.totalorder %s90, 0
      %p551 = por %p549, %p550
      %p552 = scmp.ne.s32.totalorder %s540, %s541
      %p553 = scmp.eq.s32.totalorder %s91, 1
      %p554 = por %p552, %p553
      %p556 = scmp.ne.s32.totalorder %s541, %s555
      %p557 = scmp.eq.s32.totalorder %s91, 0
      %p558 = por %p556, %p557
      %s560 = sadd.s32 %s559, 1
      %p563 = scmp.eq.s32.totalorder %s85, 1
      %p564 = scmp.ne.s32.totalorder %s559, %s561
      %p565 = scmp.eq.s32.totalorder %s85, 0
      %p566 = por %p564, %p565
      %p567 = scmp.ne.s32.totalorder %s559, %s561
      %p568 = scmp.eq.s32.totalorder %s90, 1
      %p569 = por %p567, %p568
      %p570 = scmp.ne.s32.totalorder %s561, %s562
      %p571 = scmp.eq.s32.totalorder %s90, 0
      %p572 = por %p570, %p571
      %p573 = scmp.ne.s32.totalorder %s561, %s562
      %p574 = scmp.eq.s32.totalorder %s91, 1
      %p575 = por %p573, %p574
      %p577 = scmp.ne.s32.totalorder %s562, %s576
      %p578 = scmp.eq.s32.totalorder %s91, 0
      %p579 = por %p577, %p578
      %s581 = sadd.s32 %s580, 1
      %p584 = scmp.eq.s32.totalorder %s85, 1
      %p585 = scmp.ne.s32.totalorder %s580, %s582
      %p586 = scmp.eq.s32.totalorder %s85, 0
      %p587 = por %p585, %p586
      %p588 = scmp.ne.s32.totalorder %s580, %s582
      %p589 = scmp.eq.s32.totalorder %s90, 1
      %p590 = por %p588, %p589
      %p591 = scmp.ne.s32.totalorder %s582, %s583
      %p592 = scmp.eq.s32.totalorder %s90, 0
      %p593 = por %p591, %p592
      %p594 = scmp.ne.s32.totalorder %s582, %s583
      %p595 = scmp.eq.s32.totalorder %s91, 1
      %p596 = por %p594, %p595
      %p598 = scmp.ne.s32.totalorder %s583, %s597
      %p599 = scmp.eq.s32.totalorder %s91, 0
      %p600 = por %p598, %p599
      %s602 = sadd.s32 %s601, 1
      %p605 = scmp.eq.s32.totalorder %s85, 1
      %p606 = scmp.ne.s32.totalorder %s601, %s603
      %p607 = scmp.eq.s32.totalorder %s85, 0
      %p608 = por %p606, %p607
      %p609 = scmp.ne.s32.totalorder %s601, %s603
      %p610 = scmp.eq.s32.totalorder %s90, 1
      %p611 = por %p609, %p610
      %p612 = scmp.ne.s32.totalorder %s603, %s604
      %p613 = scmp.eq.s32.totalorder %s90, 0
      %p614 = por %p612, %p613
      %p615 = scmp.ne.s32.totalorder %s603, %s604
      %p616 = scmp.eq.s32.totalorder %s91, 1
      %p617 = por %p615, %p616
      %p619 = scmp.ne.s32.totalorder %s604, %s618
      %p620 = scmp.eq.s32.totalorder %s91, 0
      %p621 = por %p619, %p620
      %s623 = sadd.s32 %s622, 1
      %p626 = scmp.eq.s32.totalorder %s85, 1
      %p627 = scmp.ne.s32.totalorder %s622, %s624
      %p628 = scmp.eq.s32.totalorder %s85, 0
      %p629 = por %p627, %p628
      %p630 = scmp.ne.s32.totalorder %s622, %s624
      %p631 = scmp.eq.s32.totalorder %s90, 1
      %p632 = por %p630, %p631
      %p633 = scmp.ne.s32.totalorder %s624, %s625
      %p634 = scmp.eq.s32.totalorder %s90, 0
      %p635 = por %p633, %p634
      %p636 = scmp.ne.s32.totalorder %s624, %s625
      %p637 = scmp.eq.s32.totalorder %s91, 1
      %p638 = por %p636, %p637
      %p640 = scmp.ne.s32.totalorder %s625, %s639
      %p641 = scmp.eq.s32.totalorder %s91, 0
      %p642 = por %p640, %p641
      %s644 = sadd.s32 %s643, 1
      %p647 = scmp.eq.s32.totalorder %s85, 1
      %p648 = scmp.ne.s32.totalorder %s643, %s645
      %p649 = scmp.eq.s32.totalorder %s85, 0
      %p650 = por %p648, %p649
      %p651 = scmp.ne.s32.totalorder %s643, %s645
      %p652 = scmp.eq.s32.totalorder %s90, 1
      %p653 = por %p651, %p652
      %p654 = scmp.ne.s32.totalorder %s645, %s646
      %p655 = scmp.eq.s32.totalorder %s90, 0
      %p656 = por %p654, %p655
      %p657 = scmp.ne.s32.totalorder %s645, %s646
      %p658 = scmp.eq.s32.totalorder %s91, 1
      %p659 = por %p657, %p658
      %p661 = scmp.ne.s32.totalorder %s646, %s660
      %p662 = scmp.eq.s32.totalorder %s91, 0
      %p663 = por %p661, %p662
      %s665 = sadd.s32 %s664, 1
      %p668 = scmp.eq.s32.totalorder %s85, 1
      %p669 = scmp.ne.s32.totalorder %s664, %s666
      %p670 = scmp.eq.s32.totalorder %s85, 0
      %p671 = por %p669, %p670
      %p672 = scmp.ne.s32.totalorder %s664, %s666
      %p673 = scmp.eq.s32.totalorder %s90, 1
      %p674 = por %p672, %p673
      %p675 = scmp.ne.s32.totalorder %s666, %s667
      %p676 = scmp.eq.s32.totalorder %s90, 0
      %p677 = por %p675, %p676
      %p678 = scmp.ne.s32.totalorder %s666, %s667
      %p679 = scmp.eq.s32.totalorder %s91, 1
      %p680 = por %p678, %p679
      %p682 = scmp.ne.s32.totalorder %s667, %s681
      %p683 = scmp.eq.s32.totalorder %s91, 0
      %p684 = por %p682, %p683
      %s686 = sadd.s32 %s685, 1
      %p689 = scmp.eq.s32.totalorder %s85, 1
      %p690 = scmp.ne.s32.totalorder %s685, %s687
      %p691 = scmp.eq.s32.totalorder %s85, 0
      %p692 = por %p690, %p691
      %p693 = scmp.ne.s32.totalorder %s685, %s687
      %p694 = scmp.eq.s32.totalorder %s90, 1
      %p695 = por %p693, %p694
      %p696 = scmp.ne.s32.totalorder %s687, %s688
      %p697 = scmp.eq.s32.totalorder %s90, 0
      %p698 = por %p696, %p697
      %p699 = scmp.ne.s32.totalorder %s687, %s688
      %p700 = scmp.eq.s32.totalorder %s91, 1
      %p701 = por %p699, %p700
      %p703 = scmp.ne.s32.totalorder %s688, %s702
      %p704 = scmp.eq.s32.totalorder %s91, 0
      %p705 = por %p703, %p704
      %s707 = sadd.s32 %s706, 1
      %p710 = scmp.eq.s32.totalorder %s85, 1
      %p711 = scmp.ne.s32.totalorder %s706, %s708
      %p712 = scmp.eq.s32.totalorder %s85, 0
      %p713 = por %p711, %p712
      %p714 = scmp.ne.s32.totalorder %s706, %s708
      %p715 = scmp.eq.s32.totalorder %s90, 1
      %p716 = por %p714, %p715
      %p717 = scmp.ne.s32.totalorder %s708, %s709
      %p718 = scmp.eq.s32.totalorder %s90, 0
      %p719 = por %p717, %p718
      %p720 = scmp.ne.s32.totalorder %s708, %s709
      %p721 = scmp.eq.s32.totalorder %s91, 1
      %p722 = por %p720, %p721
      %p724 = scmp.ne.s32.totalorder %s709, %s723
      %p725 = scmp.eq.s32.totalorder %s91, 0
      %p726 = por %p724, %p725
      %s728 = sadd.s32 %s727, 1
      %p731 = scmp.eq.s32.totalorder %s85, 1
      %p732 = scmp.ne.s32.totalorder %s727, %s729
      %p733 = scmp.eq.s32.totalorder %s85, 0
      %p734 = por %p732, %p733
      %p735 = scmp.ne.s32.totalorder %s727, %s729
      %p736 = scmp.eq.s32.totalorder %s90, 1
      %p737 = por %p735, %p736
      %p738 = scmp.ne.s32.totalorder %s729, %s730
      %p739 = scmp.eq.s32.totalorder %s90, 0
      %p740 = por %p738, %p739
      %p741 = scmp.ne.s32.totalorder %s729, %s730
      %p742 = scmp.eq.s32.totalorder %s91, 1
      %p743 = por %p741, %p742
      %p745 = scmp.ne.s32.totalorder %s730, %s744
      %p746 = scmp.eq.s32.totalorder %s91, 0
      %p747 = por %p745, %p746
      %s749 = sadd.s32 %s748, 1
      %p752 = scmp.eq.s32.totalorder %s85, 1
      %p753 = scmp.ne.s32.totalorder %s748, %s750
      %p754 = scmp.eq.s32.totalorder %s85, 0
      %p755 = por %p753, %p754
      %p756 = scmp.ne.s32.totalorder %s748, %s750
      %p757 = scmp.eq.s32.totalorder %s90, 1
      %p758 = por %p756, %p757
      %p759 = scmp.ne.s32.totalorder %s750, %s751
      %p760 = scmp.eq.s32.totalorder %s90, 0
      %p761 = por %p759, %p760
      %p762 = scmp.ne.s32.totalorder %s750, %s751
      %p763 = scmp.eq.s32.totalorder %s91, 1
      %p764 = por %p762, %p763
      %p766 = scmp.ne.s32.totalorder %s751, %s765
      %p767 = scmp.eq.s32.totalorder %s91, 0
      %p768 = por %p766, %p767
      %s769 = ssub.s32 %s85, %s92
      %p770 = scmp.eq.s32.totalorder %s769, 0
      %s772 = sadd.s32 %s771, 1
      %s773 = scalar_select %p770, %s771, %s772
      %p776 = pneg %p770
      %p777 = scmp.eq.s32.totalorder %s85, 1
      %p778 = por %p776, %p777
      %p779 = scmp.ne.s32.totalorder %s771, %s774
      %p780 = scmp.eq.s32.totalorder %s85, 0
      %p781 = por %p779, %p780
      %p782 = scmp.ne.s32.totalorder %s771, %s774
      %p783 = scmp.eq.s32.totalorder %s90, 1
      %p784 = por %p782, %p783
      %p785 = scmp.ne.s32.totalorder %s774, %s775
      %p786 = scmp.eq.s32.totalorder %s90, 0
      %p787 = por %p785, %p786
      %p788 = scmp.ne.s32.totalorder %s774, %s775
      %p789 = scmp.eq.s32.totalorder %s91, 1
      %p790 = por %p788, %p789
      %p792 = scmp.ne.s32.totalorder %s775, %s791
      %p793 = scmp.eq.s32.totalorder %s91, 0
      %p794 = por %p792, %p793
      %p795 = scmp.le.s32.totalorder 1, %s85
      %p796 = scmp.lt.s32.totalorder %s85, 3
      %p797 = pnand %p795, %p796
      %p798 = pneg %p797
      // Predicated region
      $region9: #{modal_fuser_forward.1} parent=5 // pred_check
        _
      $region10: #{modal_fuser_forward.1} parent=5 // pred_check_branch
        %800 = sbr.rel (%p797) target = $region12
      $region11: #{modal_fuser_forward.1} parent=5 // pred_region
        %s801 = ssub.s32 %s85, 1
        // Predicated region
        $region13: #{modal_fuser_forward.1} parent=11 // pred_check
          %p802 = pneg %p236
        $region14: #{modal_fuser_forward.1} parent=11 // pred_check_branch
          %804 = sbr.rel (%p802) target = $region16
        $region15: #{modal_fuser_forward.1} parent=11 // pred_region
          %s806 = ssub.s32 384, 384
          %807 = vsyncadd [#allocation6], %s806
          %s808 = sshll.u32 [#allocation5], 4
          %s809 = int_to_ptr.vmem [resolvable:$true] %s808
          %814 = dma.hbm_to_vmem [thread:$0]  %s11, 384, %s809, [#allocation6], 128, 128, 8
        $region16: #{modal_fuser_forward.1} parent=11 // pred_fallthru
          _
        // Predicated region
        $region17: #{modal_fuser_forward.1} parent=11 // pred_check
          %p815 = pneg %p257
        $region18: #{modal_fuser_forward.1} parent=11 // pred_check_branch
          %817 = sbr.rel (%p815) target = $region20
        $region19: #{modal_fuser_forward.1} parent=11 // pred_region
          _
        $region20: #{modal_fuser_forward.1} parent=11 // pred_fallthru
          _
        // Predicated region
        $region21: #{modal_fuser_forward.1} parent=11 // pred_check
          %p818 = pneg %p278
        $region22: #{modal_fuser_forward.1} parent=11 // pred_check_branch
          %820 = sbr.rel (%p818) target = $region24
        $region23: #{modal_fuser_forward.1} parent=11 // pred_region
          _
        $region24: #{modal_fuser_forward.1} parent=11 // pred_fallthru
          _
        // Predicated region
        $region25: #{modal_fuser_forward.1} parent=11 // pred_check
          %p821 = pneg %p299
        $region26: #{modal_fuser_forward.1} parent=11 // pred_check_branch
          %823 = sbr.rel (%p821) target = $region28
        $region27: #{modal_fuser_forward.1} parent=11 // pred_region
          %s825 = ssub.s32 16, 16
          %826 = vsyncadd [#allocation6], %s825
          %s828 = sshll.u32 [#allocation7], 4
          %s829 = int_to_ptr.vmem [resolvable:$true] %s828
          %831 = dma.hbm_to_vmem [thread:$0]  %s17, 16, %s829, [#allocation6]
        $region28: #{modal_fuser_forward.1} parent=11 // pred_fallthru
          _
        // Predicated region
        $region29: #{modal_fuser_forward.1} parent=11 // pred_check
          %p832 = pneg %p320
        $region30: #{modal_fuser_forward.1} parent=11 // pred_check_branch
          %834 = sbr.rel (%p832) target = $region32
        $region31: #{modal_fuser_forward.1} parent=11 // pred_region
          _
        $region32: #{modal_fuser_forward.1} parent=11 // pred_fallthru
          _
        // Predicated region
        $region33: #{modal_fuser_forward.1} parent=11 // pred_check
          %p835 = pneg %p341
        $region34: #{modal_fuser_forward.1} parent=11 // pred_check_branch
          %837 = sbr.rel (%p835) target = $region36
        $region35: #{modal_fuser_forward.1} parent=11 // pred_region
          %s839 = ssub.s32 32, 32
          %840 = vsyncadd [#allocation9], %s839
          %s841 = sshll.u32 [#allocation8], 4
          %s842 = int_to_ptr.vmem [resolvable:$true] %s841
          %847 = dma.hbm_to_vmem [thread:$0]  %s21, 32, %s842, [#allocation9], 16, 16, 1
        $region36: #{modal_fuser_forward.1} parent=11 // pred_fallthru
          _
        // Predicated region
        $region37: #{modal_fuser_forward.1} parent=11 // pred_check
          %p848 = pneg %p362
        $region38: #{modal_fuser_forward.1} parent=11 // pred_check_branch
          %850 = sbr.rel (%p848) target = $region40
        $region39: #{modal_fuser_forward.1} parent=11 // pred_region
          _
        $region40: #{modal_fuser_forward.1} parent=11 // pred_fallthru
          _
        // Predicated region
        $region41: #{modal_fuser_forward.1} parent=11 // pred_check
          %p851 = pneg %p383
        $region42: #{modal_fuser_forward.1} parent=11 // pred_check_branch
          %853 = sbr.rel (%p851) target = $region44
        $region43: #{modal_fuser_forward.1} parent=11 // pred_region
          %s855 = ssub.s32 32, 32
          %856 = vsyncadd [#allocation9], %s855
          %s857 = sshll.u32 [#allocation10], 4
          %s858 = int_to_ptr.vmem [resolvable:$true] %s857
          %863 = dma.hbm_to_vmem [thread:$0]  %s25, 32, %s858, [#allocation9], 16, 16, 1
        $region44: #{modal_fuser_forward.1} parent=11 // pred_fallthru
          _
        // Predicated region
        $region45: #{modal_fuser_forward.1} parent=11 // pred_check
          %p864 = pneg %p404
        $region46: #{modal_fuser_forward.1} parent=11 // pred_check_branch
          %866 = sbr.rel (%p864) target = $region48
        $region47: #{modal_fuser_forward.1} parent=11 // pred_region
          _
        $region48: #{modal_fuser_forward.1} parent=11 // pred_fallthru
          _
        // Predicated region
        $region49: #{modal_fuser_forward.1} parent=11 // pred_check
          %p867 = pneg %p425
        $region50: #{modal_fuser_forward.1} parent=11 // pred_check_branch
          %869 = sbr.rel (%p867) target = $region52
        $region51: #{modal_fuser_forward.1} parent=11 // pred_region
          %s871 = ssub.s32 32, 32
          %872 = vsyncadd [#allocation12], %s871
          %s873 = sshll.u32 [#allocation11], 4
          %s874 = int_to_ptr.vmem [resolvable:$true] %s873
          %879 = dma.hbm_to_vmem [thread:$0]  %s29, 32, %s874, [#allocation12], 16, 16, 1
        $region52: #{modal_fuser_forward.1} parent=11 // pred_fallthru
          _
        // Predicated region
        $region53: #{modal_fuser_forward.1} parent=11 // pred_check
          %p880 = pneg %p446
        $region54: #{modal_fuser_forward.1} parent=11 // pred_check_branch
          %882 = sbr.rel (%p880) target = $region56
        $region55: #{modal_fuser_forward.1} parent=11 // pred_region
          _
        $region56: #{modal_fuser_forward.1} parent=11 // pred_fallthru
          _
        // Predicated region
        $region57: #{modal_fuser_forward.1} parent=11 // pred_check
          %p883 = pneg %p467
        $region58: #{modal_fuser_forward.1} parent=11 // pred_check_branch
          %885 = sbr.rel (%p883) target = $region60
        $region59: #{modal_fuser_forward.1} parent=11 // pred_region
          %s887 = ssub.s32 32, 32
          %888 = vsyncadd [#allocation12], %s887
          %s889 = sshll.u32 [#allocation13], 4
          %s890 = int_to_ptr.vmem [resolvable:$true] %s889
          %895 = dma.hbm_to_vmem [thread:$0]  %s33, 32, %s890, [#allocation12], 16, 16, 1
        $region60: #{modal_fuser_forward.1} parent=11 // pred_fallthru
          _
        // Predicated region
        $region61: #{modal_fuser_forward.1} parent=11 // pred_check
          %p896 = pneg %p488
        $region62: #{modal_fuser_forward.1} parent=11 // pred_check_branch
          %898 = sbr.rel (%p896) target = $region64
        $region63: #{modal_fuser_forward.1} parent=11 // pred_region
          %s900 = ssub.s32 1024, 1024
          %901 = vsyncadd [#allocation15], %s900
          %s902 = sshll.u32 [#allocation14], 4
          %s903 = int_to_ptr.vmem [resolvable:$true] %s902
          %908 = dma.hbm_to_vmem [thread:$0]  %s35, 1024, %s903, [#allocation15], 128, 128, 8
        $region64: #{modal_fuser_forward.1} parent=11 // pred_fallthru
          _
        // Predicated region
        $region65: #{modal_fuser_forward.1} parent=11 // pred_check
          %p909 = pneg %p509
        $region66: #{modal_fuser_forward.1} parent=11 // pred_check_branch
          %911 = sbr.rel (%p909) target = $region68
        $region67: #{modal_fuser_forward.1} parent=11 // pred_region
          %s913 = ssub.s32 32, 32
          %914 = vsyncadd [#allocation15], %s913
          %s915 = sshll.u32 [#allocation16], 4
          %s916 = int_to_ptr.vmem [resolvable:$true] %s915
          %921 = dma.hbm_to_vmem [thread:$0]  %s37, 32, %s916, [#allocation15], 16, 16, 1
        $region68: #{modal_fuser_forward.1} parent=11 // pred_fallthru
          _
        // Predicated region
        $region69: #{modal_fuser_forward.1} parent=11 // pred_check
          %p922 = pneg %p530
        $region70: #{modal_fuser_forward.1} parent=11 // pred_check_branch
          %924 = sbr.rel (%p922) target = $region72
        $region71: #{modal_fuser_forward.1} parent=11 // pred_region
          %s926 = ssub.s32 1024, 1024
          %927 = vsyncadd [#allocation18], %s926
          %s928 = sshll.u32 [#allocation17], 4
          %s929 = int_to_ptr.vmem [resolvable:$true] %s928
          %934 = dma.hbm_to_vmem [thread:$0]  %s39, 1024, %s929, [#allocation18], 128, 128, 8
        $region72: #{modal_fuser_forward.1} parent=11 // pred_fallthru
          _
        // Predicated region
        $region73: #{modal_fuser_forward.1} parent=11 // pred_check
          %p935 = pneg %p551
        $region74: #{modal_fuser_forward.1} parent=11 // pred_check_branch
          %937 = sbr.rel (%p935) target = $region76
        $region75: #{modal_fuser_forward.1} parent=11 // pred_region
          %s939 = ssub.s32 32, 32
          %940 = vsyncadd [#allocation18], %s939
          %s941 = sshll.u32 [#allocation19], 4
          %s942 = int_to_ptr.vmem [resolvable:$true] %s941
          %947 = dma.hbm_to_vmem [thread:$0]  %s41, 32, %s942, [#allocation18], 16, 16, 1
        $region76: #{modal_fuser_forward.1} parent=11 // pred_fallthru
          _
        // Predicated region
        $region77: #{modal_fuser_forward.1} parent=11 // pred_check
          %p948 = pneg %p572
        $region78: #{modal_fuser_forward.1} parent=11 // pred_check_branch
          %950 = sbr.rel (%p948) target = $region80
        $region79: #{modal_fuser_forward.1} parent=11 // pred_region
          _
        $region80: #{modal_fuser_forward.1} parent=11 // pred_fallthru
          _
        // Predicated region
        $region81: #{modal_fuser_forward.1} parent=11 // pred_check
          %p951 = pneg %p593
        $region82: #{modal_fuser_forward.1} parent=11 // pred_check_branch
          %953 = sbr.rel (%p951) target = $region84
        $region83: #{modal_fuser_forward.1} parent=11 // pred_region
          %s955 = ssub.s32 32, 32
          %956 = vsyncadd [#allocation21], %s955
          %s957 = sshll.u32 [#allocation20], 4
          %s958 = int_to_ptr.vmem [resolvable:$true] %s957
          %963 = dma.hbm_to_vmem [thread:$0]  %s45, 32, %s958, [#allocation21], 16, 16, 1
        $region84: #{modal_fuser_forward.1} parent=11 // pred_fallthru
          _
        // Predicated region
        $region85: #{modal_fuser_forward.1} parent=11 // pred_check
          %p964 = pneg %p614
        $region86: #{modal_fuser_forward.1} parent=11 // pred_check_branch
          %966 = sbr.rel (%p964) target = $region88
        $region87: #{modal_fuser_forward.1} parent=11 // pred_region
          %s968 = ssub.s32 32, 32
          %969 = vsyncadd [#allocation21], %s968
          %s970 = sshll.u32 [#allocation22], 4
          %s971 = int_to_ptr.vmem [resolvable:$true] %s970
          %976 = dma.hbm_to_vmem [thread:$0]  %s47, 32, %s971, [#allocation21], 16, 16, 1
        $region88: #{modal_fuser_forward.1} parent=11 // pred_fallthru
          _
        // Predicated region
        $region89: #{modal_fuser_forward.1} parent=11 // pred_check
          %p977 = pneg %p635
        $region90: #{modal_fuser_forward.1} parent=11 // pred_check_branch
          %979 = sbr.rel (%p977) target = $region92
        $region91: #{modal_fuser_forward.1} parent=11 // pred_region
          %s981 = ssub.s32 32, 32
          %982 = vsyncadd [#allocation24], %s981
          %s983 = sshll.u32 [#allocation23], 4
          %s984 = int_to_ptr.vmem [resolvable:$true] %s983
          %989 = dma.hbm_to_vmem [thread:$0]  %s49, 32, %s984, [#allocation24], 16, 16, 1
        $region92: #{modal_fuser_forward.1} parent=11 // pred_fallthru
          _
        // Predicated region
        $region93: #{modal_fuser_forward.1} parent=11 // pred_check
          %p990 = pneg %p656
        $region94: #{modal_fuser_forward.1} parent=11 // pred_check_branch
          %992 = sbr.rel (%p990) target = $region96
        $region95: #{modal_fuser_forward.1} parent=11 // pred_region
          %s994 = ssub.s32 32, 32
          %995 = vsyncadd [#allocation24], %s994
          %s996 = sshll.u32 [#allocation25], 4
          %s997 = int_to_ptr.vmem [resolvable:$true] %s996
          %1002 = dma.hbm_to_vmem [thread:$0]  %s51, 32, %s997, [#allocation24], 16, 16, 1
        $region96: #{modal_fuser_forward.1} parent=11 // pred_fallthru
          _
        // Predicated region
        $region97: #{modal_fuser_forward.1} parent=11 // pred_check
          %p1003 = pneg %p677
        $region98: #{modal_fuser_forward.1} parent=11 // pred_check_branch
          %1005 = sbr.rel (%p1003) target = $region100
        $region99: #{modal_fuser_forward.1} parent=11 // pred_region
          %s1007 = ssub.s32 32, 32
          %1008 = vsyncadd [#allocation27], %s1007
          %s1009 = sshll.u32 [#allocation26], 4
          %s1010 = int_to_ptr.vmem [resolvable:$true] %s1009
          %1015 = dma.hbm_to_vmem [thread:$0]  %s53, 32, %s1010, [#allocation27], 16, 16, 1
        $region100: #{modal_fuser_forward.1} parent=11 // pred_fallthru
          _
        // Predicated region
        $region101: #{modal_fuser_forward.1} parent=11 // pred_check
          %p1016 = pneg %p698
        $region102: #{modal_fuser_forward.1} parent=11 // pred_check_branch
          %1018 = sbr.rel (%p1016) target = $region104
        $region103: #{modal_fuser_forward.1} parent=11 // pred_region
          %s1020 = ssub.s32 32, 32
          %1021 = vsyncadd [#allocation27], %s1020
          %s1022 = sshll.u32 [#allocation28], 4
          %s1023 = int_to_ptr.vmem [resolvable:$true] %s1022
          %1028 = dma.hbm_to_vmem [thread:$0]  %s55, 32, %s1023, [#allocation27], 16, 16, 1
        $region104: #{modal_fuser_forward.1} parent=11 // pred_fallthru
          _
        // Predicated region
        $region105: #{modal_fuser_forward.1} parent=11 // pred_check
          %p1029 = pneg %p719
        $region106: #{modal_fuser_forward.1} parent=11 // pred_check_branch
          %1031 = sbr.rel (%p1029) target = $region108
        $region107: #{modal_fuser_forward.1} parent=11 // pred_region
          %s1033 = ssub.s32 32, 32
          %1034 = vsyncadd [#allocation30], %s1033
          %s1035 = sshll.u32 [#allocation29], 4
          %s1036 = int_to_ptr.vmem [resolvable:$true] %s1035
          %1041 = dma.hbm_to_vmem [thread:$0]  %s57, 32, %s1036, [#allocation30], 16, 16, 1
        $region108: #{modal_fuser_forward.1} parent=11 // pred_fallthru
          _
        // Predicated region
        $region109: #{modal_fuser_forward.1} parent=11 // pred_check
          %p1042 = pneg %p740
        $region110: #{modal_fuser_forward.1} parent=11 // pred_check_branch
          %1044 = sbr.rel (%p1042) target = $region112
        $region111: #{modal_fuser_forward.1} parent=11 // pred_region
          %s1046 = ssub.s32 16, 16
          %1047 = vsyncadd [#allocation30], %s1046
          %s1049 = sshll.u32 [#allocation31], 4
          %s1050 = int_to_ptr.vmem [resolvable:$true] %s1049
          %1052 = dma.hbm_to_vmem [thread:$0]  %s59, 16, %s1050, [#allocation30]
        $region112: #{modal_fuser_forward.1} parent=11 // pred_fallthru
          _
        // Predicated region
        $region113: #{modal_fuser_forward.1} parent=11 // pred_check
          %p1053 = pneg %p761
        $region114: #{modal_fuser_forward.1} parent=11 // pred_check_branch
          %1055 = sbr.rel (%p1053) target = $region116
        $region115: #{modal_fuser_forward.1} parent=11 // pred_region
          %s1057 = ssub.s32 16, 16
          %1058 = vsyncadd [#allocation33], %s1057
          %s1060 = sshll.u32 [#allocation32], 4
          %s1061 = int_to_ptr.vmem [resolvable:$true] %s1060
          %1063 = dma.hbm_to_vmem [thread:$0]  %s61, 16, %s1061, [#allocation33]
        $region116: #{modal_fuser_forward.1} parent=11 // pred_fallthru
          _
      $region12: #{modal_fuser_forward.1} parent=5 // pred_fallthru
        _
      %p1064 = scmp.lt.s32.totalorder %s85, 2
      // Predicated region
      $region117: #{modal_fuser_forward.1} parent=5 // pred_check
        %p1065 = pneg %p1064
      $region118: #{modal_fuser_forward.1} parent=5 // pred_check_branch
        %1067 = sbr.rel (%p1065) target = $region120
      $region119: #{modal_fuser_forward.1} parent=5 // pred_region
        // Predicated region
        $region121: #{modal_fuser_forward.1} parent=119 // pred_check
          %p1068 = pneg %p105
        $region122: #{modal_fuser_forward.1} parent=119 // pred_check_branch
          %1070 = sbr.rel (%p1068) target = $region124
        $region123: #{modal_fuser_forward.1} parent=119 // pred_region
          %s1071 = sand.u32 %s95, 1
          %s1072 = scalar_lea.sflag [#allocation3], %s1071
          %s1073 = sand.u32 %s95, 1
          %s1074 = smul.addr %s1073, 8
          %s1075 = scalar_lea.vmem [#allocation2], %s1074
          %s1077 = ssub.s32 128, 128
          %1078 = vsyncadd %s1072, %s1077
          %s1079 = smul.addr %s85, 128
          %s1080 = scalar_lea.hbm %s1, %s1079
          %s1082 = sshll.u32 %s1075, 4
          %s1083 = int_to_ptr.vmem [resolvable:$true] %s1082
          %1085 = dma.hbm_to_vmem [thread:$0]  %s1080, 128, %s1083, %s1072
        $region124: #{modal_fuser_forward.1} parent=119 // pred_fallthru
          _
        // Predicated region
        $region125: #{modal_fuser_forward.1} parent=119 // pred_check
          %p1086 = pneg %p131
        $region126: #{modal_fuser_forward.1} parent=119 // pred_check_branch
          %1088 = sbr.rel (%p1086) target = $region128
        $region127: #{modal_fuser_forward.1} parent=119 // pred_region
          %p1089 = scmp.lt.s32.totalorder %s85, 1
          %s1090 = scalar_select %p1089, %s85, 1
          %s1091 = smul.addr %s1090, 2
          %s1092 = smul.addr %s1091, 8
          %s1093 = scalar_lea.vmem %s3, %s1092
        $region128: #{modal_fuser_forward.1} parent=119 // pred_fallthru
          _
        // Predicated region
        $region129: #{modal_fuser_forward.1} parent=119 // pred_check
          %p1094 = pneg %p157
        $region130: #{modal_fuser_forward.1} parent=119 // pred_check_branch
          %1096 = sbr.rel (%p1094) target = $region132
        $region131: #{modal_fuser_forward.1} parent=119 // pred_region
          %p1097 = scmp.lt.s32.totalorder %s85, 1
          %s1098 = scalar_select %p1097, %s85, 1
          %s1099 = scalar_lea.vmem %s5, %s1098
        $region132: #{modal_fuser_forward.1} parent=119 // pred_fallthru
          _
        // Predicated region
        $region133: #{modal_fuser_forward.1} parent=119 // pred_check
          %p1100 = pneg %p183
        $region134: #{modal_fuser_forward.1} parent=119 // pred_check_branch
          %1102 = sbr.rel (%p1100) target = $region136
        $region135: #{modal_fuser_forward.1} parent=119 // pred_region
          %p1103 = scmp.lt.s32.totalorder %s85, 1
          %s1104 = scalar_select %p1103, %s85, 1
          %s1105 = scalar_lea.vmem %s7, %s1104
        $region136: #{modal_fuser_forward.1} parent=119 // pred_fallthru
          _
        // Predicated region
        $region137: #{modal_fuser_forward.1} parent=119 // pred_check
          %p1106 = pneg %p209
        $region138: #{modal_fuser_forward.1} parent=119 // pred_check_branch
          %1108 = sbr.rel (%p1106) target = $region140
        $region139: #{modal_fuser_forward.1} parent=119 // pred_region
          %p1109 = scmp.lt.s32.totalorder %s85, 1
          %s1110 = scalar_select %p1109, %s85, 1
          %s1111 = scalar_lea.vmem %s9, %s1110
        $region140: #{modal_fuser_forward.1} parent=119 // pred_fallthru
          _
      $region120: #{modal_fuser_forward.1} parent=5 // pred_fallthru
        _
      %p1112 = scmp.le.s32.totalorder 1, %s85
      %p1113 = scmp.lt.s32.totalorder %s85, 3
      %p1114 = pnand %p1112, %p1113
      %p1115 = pneg %p1114
      // Predicated region
      $region141: #{modal_fuser_forward.1} parent=5 // pred_check
        _
      $region142: #{modal_fuser_forward.1} parent=5 // pred_check_branch
        %1117 = sbr.rel (%p1114) target = $region144
      $region143: #{modal_fuser_forward.1} parent=5 // pred_region
        %s1118 = ssub.s32 %s85, 1
        %s1119 = sand.u32 %s98, 1
        %s1120 = scalar_lea.sflag [#allocation3], %s1119
        %s1121 = sand.u32 %s98, 1
        %s1122 = smul.addr %s1121, 8
        %s1123 = scalar_lea.vmem [#allocation2], %s1122
        // Predicated region
        $region145: #{modal_fuser_forward.1} parent=143 // pred_check
          %p1124 = pneg %p111
        $region146: #{modal_fuser_forward.1} parent=143 // pred_check_branch
          %1126 = sbr.rel (%p1124) target = $region148
        $region147: #{modal_fuser_forward.1} parent=143 // pred_region
          %1127 = dma.done %s1120, 128
        $region148: #{modal_fuser_forward.1} parent=143 // pred_fallthru
          _
        // Predicated region
        $region149: #{modal_fuser_forward.1} parent=143 // pred_check
          %p1128 = pneg %p236
        $region150: #{modal_fuser_forward.1} parent=143 // pred_check_branch
          %1130 = sbr.rel (%p1128) target = $region152
        $region151: #{modal_fuser_forward.1} parent=143 // pred_region
          %1131 = dma.done [#allocation6], 384
        $region152: #{modal_fuser_forward.1} parent=143 // pred_fallthru
          _
        // Predicated region
        $region153: #{modal_fuser_forward.1} parent=143 // pred_check
          %p1132 = pneg %p299
        $region154: #{modal_fuser_forward.1} parent=143 // pred_check_branch
          %1134 = sbr.rel (%p1132) target = $region156
        $region155: #{modal_fuser_forward.1} parent=143 // pred_region
          %1135 = dma.done [#allocation6], 16
        $region156: #{modal_fuser_forward.1} parent=143 // pred_fallthru
          _
        // Predicated region
        $region157: #{modal_fuser_forward.1} parent=143 // pred_check
          %p1136 = pneg %p341
        $region158: #{modal_fuser_forward.1} parent=143 // pred_check_branch
          %1138 = sbr.rel (%p1136) target = $region160
        $region159: #{modal_fuser_forward.1} parent=143 // pred_region
          %1139 = dma.done [#allocation9], 32
        $region160: #{modal_fuser_forward.1} parent=143 // pred_fallthru
          _
        // Predicated region
        $region161: #{modal_fuser_forward.1} parent=143 // pred_check
          %p1140 = pneg %p383
        $region162: #{modal_fuser_forward.1} parent=143 // pred_check_branch
          %1142 = sbr.rel (%p1140) target = $region164
        $region163: #{modal_fuser_forward.1} parent=143 // pred_region
          %1143 = dma.done [#allocation9], 32
        $region164: #{modal_fuser_forward.1} parent=143 // pred_fallthru
          _
        // Predicated region
        $region165: #{modal_fuser_forward.1} parent=143 // pred_check
          %p1144 = pneg %p425
        $region166: #{modal_fuser_forward.1} parent=143 // pred_check_branch
          %1146 = sbr.rel (%p1144) target = $region168
        $region167: #{modal_fuser_forward.1} parent=143 // pred_region
          %1147 = dma.done [#allocation12], 32
        $region168: #{modal_fuser_forward.1} parent=143 // pred_fallthru
          _
        // Predicated region
        $region169: #{modal_fuser_forward.1} parent=143 // pred_check
          %p1148 = pneg %p467
        $region170: #{modal_fuser_forward.1} parent=143 // pred_check_branch
          %1150 = sbr.rel (%p1148) target = $region172
        $region171: #{modal_fuser_forward.1} parent=143 // pred_region
          %1151 = dma.done [#allocation12], 32
        $region172: #{modal_fuser_forward.1} parent=143 // pred_fallthru
          _
        // Predicated region
        $region173: #{modal_fuser_forward.1} parent=143 // pred_check
          %p1152 = pneg %p488
        $region174: #{modal_fuser_forward.1} parent=143 // pred_check_branch
          %1154 = sbr.rel (%p1152) target = $region176
        $region175: #{modal_fuser_forward.1} parent=143 // pred_region
          %1155 = dma.done [#allocation15], 1024
        $region176: #{modal_fuser_forward.1} parent=143 // pred_fallthru
          _
        // Predicated region
        $region177: #{modal_fuser_forward.1} parent=143 // pred_check
          %p1156 = pneg %p509
        $region178: #{modal_fuser_forward.1} parent=143 // pred_check_branch
          %1158 = sbr.rel (%p1156) target = $region180
        $region179: #{modal_fuser_forward.1} parent=143 // pred_region
          %1159 = dma.done [#allocation15], 32
        $region180: #{modal_fuser_forward.1} parent=143 // pred_fallthru
          _
        // Predicated region
        $region181: #{modal_fuser_forward.1} parent=143 // pred_check
          %p1160 = pneg %p530
        $region182: #{modal_fuser_forward.1} parent=143 // pred_check_branch
          %1162 = sbr.rel (%p1160) target = $region184
        $region183: #{modal_fuser_forward.1} parent=143 // pred_region
          %1163 = dma.done [#allocation18], 1024
        $region184: #{modal_fuser_forward.1} parent=143 // pred_fallthru
          _
        // Predicated region
        $region185: #{modal_fuser_forward.1} parent=143 // pred_check
          %p1164 = pneg %p551
        $region186: #{modal_fuser_forward.1} parent=143 // pred_check_branch
          %1166 = sbr.rel (%p1164) target = $region188
        $region187: #{modal_fuser_forward.1} parent=143 // pred_region
          %1167 = dma.done [#allocation18], 32
        $region188: #{modal_fuser_forward.1} parent=143 // pred_fallthru
          _
        // Predicated region
        $region189: #{modal_fuser_forward.1} parent=143 // pred_check
          %p1168 = pneg %p593
        $region190: #{modal_fuser_forward.1} parent=143 // pred_check_branch
          %1170 = sbr.rel (%p1168) target = $region192
        $region191: #{modal_fuser_forward.1} parent=143 // pred_region
          %1171 = dma.done [#allocation21], 32
        $region192: #{modal_fuser_forward.1} parent=143 // pred_fallthru
          _
        // Predicated region
        $region193: #{modal_fuser_forward.1} parent=143 // pred_check
          %p1172 = pneg %p614
        $region194: #{modal_fuser_forward.1} parent=143 // pred_check_branch
          %1174 = sbr.rel (%p1172) target = $region196
        $region195: #{modal_fuser_forward.1} parent=143 // pred_region
          %1175 = dma.done [#allocation21], 32
        $region196: #{modal_fuser_forward.1} parent=143 // pred_fallthru
          _
        // Predicated region
        $region197: #{modal_fuser_forward.1} parent=143 // pred_check
          %p1176 = pneg %p635
        $region198: #{modal_fuser_forward.1} parent=143 // pred_check_branch
          %1178 = sbr.rel (%p1176) target = $region200
        $region199: #{modal_fuser_forward.1} parent=143 // pred_region
          %1179 = dma.done [#allocation24], 32
        $region200: #{modal_fuser_forward.1} parent=143 // pred_fallthru
          _
        // Predicated region
        $region201: #{modal_fuser_forward.1} parent=143 // pred_check
          %p1180 = pneg %p656
        $region202: #{modal_fuser_forward.1} parent=143 // pred_check_branch
          %1182 = sbr.rel (%p1180) target = $region204
        $region203: #{modal_fuser_forward.1} parent=143 // pred_region
          %1183 = dma.done [#allocation24], 32
        $region204: #{modal_fuser_forward.1} parent=143 // pred_fallthru
          _
        // Predicated region
        $region205: #{modal_fuser_forward.1} parent=143 // pred_check
          %p1184 = pneg %p677
        $region206: #{modal_fuser_forward.1} parent=143 // pred_check_branch
          %1186 = sbr.rel (%p1184) target = $region208
        $region207: #{modal_fuser_forward.1} parent=143 // pred_region
          %1187 = dma.done [#allocation27], 32
        $region208: #{modal_fuser_forward.1} parent=143 // pred_fallthru
          _
        // Predicated region
        $region209: #{modal_fuser_forward.1} parent=143 // pred_check
          %p1188 = pneg %p698
        $region210: #{modal_fuser_forward.1} parent=143 // pred_check_branch
          %1190 = sbr.rel (%p1188) target = $region212
        $region211: #{modal_fuser_forward.1} parent=143 // pred_region
          %1191 = dma.done [#allocation27], 32
        $region212: #{modal_fuser_forward.1} parent=143 // pred_fallthru
          _
        // Predicated region
        $region213: #{modal_fuser_forward.1} parent=143 // pred_check
          %p1192 = pneg %p719
        $region214: #{modal_fuser_forward.1} parent=143 // pred_check_branch
          %1194 = sbr.rel (%p1192) target = $region216
        $region215: #{modal_fuser_forward.1} parent=143 // pred_region
          %1195 = dma.done [#allocation30], 32
        $region216: #{modal_fuser_forward.1} parent=143 // pred_fallthru
          _
        // Predicated region
        $region217: #{modal_fuser_forward.1} parent=143 // pred_check
          %p1196 = pneg %p740
        $region218: #{modal_fuser_forward.1} parent=143 // pred_check_branch
          %1198 = sbr.rel (%p1196) target = $region220
        $region219: #{modal_fuser_forward.1} parent=143 // pred_region
          %1199 = dma.done [#allocation30], 16
        $region220: #{modal_fuser_forward.1} parent=143 // pred_fallthru
          _
        // Predicated region
        $region221: #{modal_fuser_forward.1} parent=143 // pred_check
          %p1200 = pneg %p761
        $region222: #{modal_fuser_forward.1} parent=143 // pred_check_branch
          %1202 = sbr.rel (%p1200) target = $region224
        $region223: #{modal_fuser_forward.1} parent=143 // pred_region
          %1203 = dma.done [#allocation33], 16
        $region224: #{modal_fuser_forward.1} parent=143 // pred_fallthru
          _
        %s1204 = sand.u32 %s98, 1
        %s1205 = scalar_lea.sflag [#allocation3], %s1204
        %s1206 = sand.u32 %s98, 1
        %s1207 = smul.addr %s1206, 8
        %s1208 = scalar_lea.vmem [#allocation2], %s1207
        %p1209 = pneg %p111
        %p1210 = pneg %p108
        %p1211 = scmp.lt.s32.totalorder %s90, 1
        %s1212 = scalar_select %p1211, %s90, 1
        %s1213 = smul.addr %s1212, 2
        %s1214 = smul.addr %s1213, 8
        %s1215 = scalar_lea.vmem %s3, %s1214
        %p1216 = pneg %p137
        %p1217 = pneg %p134
        %p1218 = scmp.lt.s32.totalorder %s90, 1
        %s1219 = scalar_select %p1218, %s90, 1
        %s1220 = scalar_lea.vmem %s5, %s1219
        %p1221 = pneg %p163
        %p1222 = pneg %p160
        %p1223 = scmp.lt.s32.totalorder %s90, 1
        %s1224 = scalar_select %p1223, %s90, 1
        %s1225 = scalar_lea.vmem %s7, %s1224
        %p1226 = pneg %p189
        %p1227 = pneg %p186
        %p1228 = scmp.lt.s32.totalorder %s90, 1
        %s1229 = scalar_select %p1228, %s90, 1
        %s1230 = scalar_lea.vmem %s9, %s1229
        %p1231 = pneg %p215
        %p1232 = pneg %p212
        %p1233 = pneg %p236
        %p1234 = pneg %p233
        %p1235 = pneg %p257
        %p1236 = pneg %p254
        %p1237 = pneg %p278
        %p1238 = pneg %p275
        %p1239 = pneg %p299
        %p1240 = pneg %p296
        %p1241 = pneg %p320
        %p1242 = pneg %p317
        %p1243 = pneg %p341
        %p1244 = pneg %p338
        %p1245 = pneg %p362
        %p1246 = pneg %p359
        %p1247 = pneg %p383
        %p1248 = pneg %p380
        %p1249 = pneg %p404
        %p1250 = pneg %p401
        %p1251 = pneg %p425
        %p1252 = pneg %p422
        %p1253 = pneg %p446
        %p1254 = pneg %p443
        %p1255 = pneg %p467
        %p1256 = pneg %p464
        %p1257 = pneg %p488
        %p1258 = pneg %p485
        %p1259 = pneg %p509
        %p1260 = pneg %p506
        %p1261 = pneg %p530
        %p1262 = pneg %p527
        %p1263 = pneg %p551
        %p1264 = pneg %p548
        %p1265 = pneg %p572
        %p1266 = pneg %p569
        %p1267 = pneg %p593
        %p1268 = pneg %p590
        %p1269 = pneg %p614
        %p1270 = pneg %p611
        %p1271 = pneg %p635
        %p1272 = pneg %p632
        %p1273 = pneg %p656
        %p1274 = pneg %p653
        %p1275 = pneg %p677
        %p1276 = pneg %p674
        %p1277 = pneg %p698
        %p1278 = pneg %p695
        %p1279 = pneg %p719
        %p1280 = pneg %p716
        %p1281 = pneg %p740
        %p1282 = pneg %p737
        %p1283 = pneg %p761
        %p1284 = pneg %p758
        %p1285 = pneg %p787
        %p1286 = pneg %p784
        %s1287 = sand.u32 %s774, 1
        %s1288 = scalar_lea.sflag [#allocation4], %s1287
        %s1289 = sand.u32 %s774, 1
        %s1290 = smul.addr %s1289, 8
        %s1291 = scalar_lea.vmem [#allocation34], %s1290
        %p1292 = scmp.lt.s32.totalorder %s90, 1
        %s1293 = scalar_select %p1292, %s90, 1
        %s1294 = smul.addr %s1293, 2
        %s1295 = smul.addr %s1294, 8
        %s1296 = scalar_lea.vmem %s3, %s1295
        %p1297 = scmp.lt.s32.totalorder %s90, 1
        %s1298 = scalar_select %p1297, %s90, 1
        %s1299 = scalar_lea.vmem %s5, %s1298
        %p1300 = scmp.lt.s32.totalorder %s90, 1
        %s1301 = scalar_select %p1300, %s90, 1
        %s1302 = scalar_lea.vmem %s7, %s1301
        %p1303 = scmp.lt.s32.totalorder %s90, 1
        %s1304 = scalar_select %p1303, %s90, 1
        %s1305 = scalar_lea.vmem %s9, %s1304
        %v1306 = vld [vmem:[%s1123] sm:$0xff]
        %v1307 = vld [vmem:[#allocation5] sm:$0xff]
        %v1308 = vld [vmem:[#allocation5 + $0x8] sm:$0xff]
        %v1309 = vld [vmem:[#allocation5 + $0x10] sm:$0xff]
        %v1310 = vld [vmem:[%s13] sm:$0x1]
        %v1312 = vlaneseq
        %v1313 = vshrl.u32 %v1312, 7
        %v1314 = vsub.s32 0, %v1313
        %v1315 = vrot.slane %v1310, %v1314
        %vm1317 = vcmask 195584
        %v1319 = vsel %vm1317, %v1306, 0
        %1321 = vmatprep.subr.mxu0 0.0
        %1322 = vmatpush1.msra.mxu0 0.0
        %1323 = vmatprep.subr.mxu0 0.0
        %1324 = vmatpush1.msra.mxu0 0.0
        %1325 = vmatprep.subr.mxu0 0.0
        %1326 = vmatpush1.msra.mxu0 0.0
        %1327 = vmatprep.subr.mxu0 0.0
        %1328 = vmatpush1.msra.mxu0 0.0
        %1329 = vmatprep.subr.mxu0 0.0
        %1330 = vmatpush1.msra.mxu0 0.0
        %1331 = vmatprep.subr.mxu0 0.0
        %1332 = vmatpush1.msra.mxu0 0.0
        %1333 = vmatprep.subr.mxu0 0.0
        %1334 = vmatpush1.msra.mxu0 0.0
        %1335 = vmatprep.subr.mxu0 0.0
        %1336 = vmatpush1.msra.mxu0 0.0
        %1337 = vmatprep.subr.mxu0 0.0
        %1338 = vmatpush1.msra.mxu0 0.0
        %1339 = vmatprep.subr.mxu0 0.0
        %1340 = vmatpush1.msra.mxu0 0.0
        %1341 = vmatprep.subr.mxu0 0.0
        %1342 = vmatpush1.msra.mxu0 0.0
        %1343 = vmatprep.subr.mxu0 0.0
        %1344 = vmatpush1.msra.mxu0 0.0
        %1345 = vmatprep.subr.mxu0 0.0
        %1346 = vmatpush1.msra.mxu0 0.0
        %1347 = vmatprep.subr.mxu0 0.0
        %1348 = vmatpush1.msra.mxu0 %v1309
        %1349 = vmatprep.subr.mxu0 0.0
        %1350 = vmatpush1.msra.mxu0 %v1308
        %1351 = vmatprep.subr.mxu0 0.0
        %1352 = vmatpush1.msra.mxu0 %v1307
        %1353 = vmatprep.subr.mxu0 0.0
        %1354 = vmatpush2.msra.mxu0 0.0
        %1355 = vmatprep.subr.mxu0 0.0
        %1356 = vmatpush2.msra.mxu0 0.0
        %1357 = vmatprep.subr.mxu0 0.0
        %1358 = vmatpush2.msra.mxu0 0.0
        %1359 = vmatprep.subr.mxu0 0.0
        %1360 = vmatpush2.msra.mxu0 0.0
        %1361 = vmatprep.subr.mxu0 0.0
        %1362 = vmatpush2.msra.mxu0 0.0
        %1363 = vmatprep.subr.mxu0 0.0
        %1364 = vmatpush2.msra.mxu0 0.0
        %1365 = vmatprep.subr.mxu0 0.0
        %1366 = vmatpush2.msra.mxu0 0.0
        %1367 = vmatprep.subr.mxu0 0.0
        %1368 = vmatpush2.msra.mxu0 0.0
        %1369 = vmatprep.subr.mxu0 0.0
        %1370 = vmatpush2.msra.mxu0 0.0
        %1371 = vmatprep.subr.mxu0 0.0
        %1372 = vmatpush2.msra.mxu0 0.0
        %1373 = vmatprep.subr.mxu0 0.0
        %1374 = vmatpush2.msra.mxu0 0.0
        %1375 = vmatprep.subr.mxu0 0.0
        %1376 = vmatpush2.msra.mxu0 0.0
        %1377 = vmatprep.subr.mxu0 0.0
        %1378 = vmatpush2.msra.mxu0 0.0
        %1379 = vmatprep.subr.mxu0 0.0
        %1380 = vmatpush2.msra.mxu0 0.0
        %1381 = vmatprep.subr.mxu0 0.0
        %1382 = vmatpush2.msra.mxu0 0.0
        %1383 = vmatprep.subr.mxu0 0.0
        %1384 = vmatpush2.msra.mxu0 0.0
        %1385 = vmatprep.mubr.f32.mxu0 0.0
        %1386 = vmatmul.mubr.f32.gmra.mxu0 %v1319
        %v1387 = vpop.f32.mrf.mxu0
        %v1388 = vadd.f32 %v1315, %v1387
        %v1389 = vpop.f32.mrf.mxu0
        %1390 = vdwg.mxu0
        %v1391 = vld [vmem:[%s1296] sm:$0xff]
        %v1392 = vld [vmem:[%s1296 + $0x8] sm:$0xf]
        %v1393 = vld [vmem:[%s15] sm:$0xff]
        %v1394 = vld [vmem:[%s15 + $0x8] sm:$0xff]
        %v1395 = vld [vmem:[%s15 + $0x10] sm:$0xff]
        %v1396 = vld [vmem:[%s15 + $0x18] sm:$0xff]
        %v1397 = vld [vmem:[%s15 + $0x20] sm:$0xff]
        %v1398 = vld [vmem:[#allocation7] sm:$0x1]
        %v1400 = vlaneseq
        %v1401 = vshrl.u32 %v1400, 7
        %v1402 = vsub.s32 0, %v1401
        %v1403 = vrot.slane %v1398, %v1402
        %vm1405 = vcmask 326656
        %v1407 = vsel %vm1405, %v1391, 0
        %v1410 = vsel %vm1405, %v1392, 0
        %1412 = vmatprep.subr.mxu0 0.0
        %1413 = vmatpush1.msra.mxu0 0.0
        %1414 = vmatprep.subr.mxu0 0.0
        %1415 = vmatpush1.msra.mxu0 0.0
        %1416 = vmatprep.subr.mxu0 0.0
        %1417 = vmatpush1.msra.mxu0 0.0
        %1418 = vmatprep.subr.mxu0 0.0
        %1419 = vmatpush1.msra.mxu0 0.0
        %1420 = vmatprep.subr.mxu0 0.0
        %1421 = vmatpush1.msra.mxu0 0.0
        %1422 = vmatprep.subr.mxu0 0.0
        %1423 = vmatpush1.msra.mxu0 0.0
        %1424 = vmatprep.subr.mxu0 0.0
        %1425 = vmatpush1.msra.mxu0 0.0
        %1426 = vmatprep.subr.mxu0 0.0
        %1427 = vmatpush1.msra.mxu0 0.0
        %1428 = vmatprep.subr.mxu0 0.0
        %1429 = vmatpush1.msra.mxu0 0.0
        %1430 = vmatprep.subr.mxu0 0.0
        %1431 = vmatpush1.msra.mxu0 0.0
        %1432 = vmatprep.subr.mxu0 0.0
        %1433 = vmatpush1.msra.mxu0 0.0
        %1434 = vmatprep.subr.mxu0 0.0
        %1435 = vmatpush1.msra.mxu0 %v1397
        %1436 = vmatprep.subr.mxu0 0.0
        %1437 = vmatpush1.msra.mxu0 %v1396
        %1438 = vmatprep.subr.mxu0 0.0
        %1439 = vmatpush1.msra.mxu0 %v1395
        %1440 = vmatprep.subr.mxu0 0.0
        %1441 = vmatpush1.msra.mxu0 %v1394
        %1442 = vmatprep.subr.mxu0 0.0
        %1443 = vmatpush1.msra.mxu0 %v1393
        %1444 = vmatprep.subr.mxu0 0.0
        %1445 = vmatpush2.msra.mxu0 0.0
        %1446 = vmatprep.subr.mxu0 0.0
        %1447 = vmatpush2.msra.mxu0 0.0
        %1448 = vmatprep.subr.mxu0 0.0
        %1449 = vmatpush2.msra.mxu0 0.0
        %1450 = vmatprep.subr.mxu0 0.0
        %1451 = vmatpush2.msra.mxu0 0.0
        %1452 = vmatprep.subr.mxu0 0.0
        %1453 = vmatpush2.msra.mxu0 0.0
        %1454 = vmatprep.subr.mxu0 0.0
        %1455 = vmatpush2.msra.mxu0 0.0
        %1456 = vmatprep.subr.mxu0 0.0
        %1457 = vmatpush2.msra.mxu0 0.0
        %1458 = vmatprep.subr.mxu0 0.0
        %1459 = vmatpush2.msra.mxu0 0.0
        %1460 = vmatprep.subr.mxu0 0.0
        %1461 = vmatpush2.msra.mxu0 0.0
        %1462 = vmatprep.subr.mxu0 0.0
        %1463 = vmatpush2.msra.mxu0 0.0
        %1464 = vmatprep.subr.mxu0 0.0
        %1465 = vmatpush2.msra.mxu0 0.0
        %1466 = vmatprep.subr.mxu0 0.0
        %1467 = vmatpush2.msra.mxu0 0.0
        %1468 = vmatprep.subr.mxu0 0.0
        %1469 = vmatpush2.msra.mxu0 0.0
        %1470 = vmatprep.subr.mxu0 0.0
        %1471 = vmatpush2.msra.mxu0 0.0
        %1472 = vmatprep.subr.mxu0 0.0
        %1473 = vmatpush2.msra.mxu0 0.0
        %1474 = vmatprep.subr.mxu0 0.0
        %1475 = vmatpush2.msra.mxu0 0.0
        %1476 = vmatprep.mubr.f32.mxu0 0.0
        %1477 = vmatmul.mubr.f32.gmra.mxu0 %v1407
        %v1478 = vpop.f32.mrf.mxu0
        %v1479 = vadd.f32 %v1403, %v1478
        %v1480 = vpop.f32.mrf.mxu0
        %1481 = vmatprep.mubr.f32.mxu0 0.0
        %1482 = vmatmul.mubr.f32.gmra.mxu0 %v1410
        %v1483 = vpop.f32.mrf.mxu0
        %v1484 = vadd.f32 %v1403, %v1483
        %v1485 = vpop.f32.mrf.mxu0
        %1486 = vdwg.mxu0
        %v1487 = vld [vmem:[%s1299] sm:$0x1]
        %v1489 = vlaneseq
        %v1490 = vshrl.u32 %v1489, 7
        %v1491 = vsub.s32 0, %v1490
        %v1492 = vrot.slane %v1487, %v1491
        %v1494 = vld [vmem:[%s1302] sm:$0x1]
        %v1496 = vlaneseq
        %v1497 = vshrl.u32 %v1496, 7
        %v1498 = vsub.s32 0, %v1497
        %v1499 = vrot.slane %v1494, %v1498
        %v1501 = vld [vmem:[%s19] sm:$0xff]
        %v1502 = vld [vmem:[%s19 + $0x8] sm:$0xff]
        %v1503 = vld [vmem:[%s19 + $0x10] sm:$0xff]
        %v1504 = vld [vmem:[%s19 + $0x18] sm:$0xff]
        %v1505 = vld [vmem:[#allocation8] sm:$0x1]
        %v1507 = vlaneseq
        %v1508 = vshrl.u32 %v1507, 7
        %v1509 = vsub.s32 0, %v1508
        %v1510 = vrot.slane %v1505, %v1509
        %vm1512 = vcmask 261120
        %v1514 = vsel %vm1512, %v1388, 0
        %1516 = vmatprep.subr.mxu0 0.0
        %1517 = vmatpush1.msra.mxu0 0.0
        %1518 = vmatprep.subr.mxu0 0.0
        %1519 = vmatpush1.msra.mxu0 0.0
        %1520 = vmatprep.subr.mxu0 0.0
        %1521 = vmatpush1.msra.mxu0 0.0
        %1522 = vmatprep.subr.mxu0 0.0
        %1523 = vmatpush1.msra.mxu0 0.0
        %1524 = vmatprep.subr.mxu0 0.0
        %1525 = vmatpush1.msra.mxu0 0.0
        %1526 = vmatprep.subr.mxu0 0.0
        %1527 = vmatpush1.msra.mxu0 0.0
        %1528 = vmatprep.subr.mxu0 0.0
        %1529 = vmatpush1.msra.mxu0 0.0
        %1530 = vmatprep.subr.mxu0 0.0
        %1531 = vmatpush1.msra.mxu0 0.0
        %1532 = vmatprep.subr.mxu0 0.0
        %1533 = vmatpush1.msra.mxu0 0.0
        %1534 = vmatprep.subr.mxu0 0.0
        %1535 = vmatpush1.msra.mxu0 0.0
        %1536 = vmatprep.subr.mxu0 0.0
        %1537 = vmatpush1.msra.mxu0 0.0
        %1538 = vmatprep.subr.mxu0 0.0
        %1539 = vmatpush1.msra.mxu0 0.0
        %1540 = vmatprep.subr.mxu0 0.0
        %1541 = vmatpush1.msra.mxu0 %v1504
        %1542 = vmatprep.subr.mxu0 0.0
        %1543 = vmatpush1.msra.mxu0 %v1503
        %1544 = vmatprep.subr.mxu0 0.0
        %1545 = vmatpush1.msra.mxu0 %v1502
        %1546 = vmatprep.subr.mxu0 0.0
        %1547 = vmatpush1.msra.mxu0 %v1501
        %1548 = vmatprep.subr.mxu0 0.0
        %1549 = vmatpush2.msra.mxu0 0.0
        %1550 = vmatprep.subr.mxu0 0.0
        %1551 = vmatpush2.msra.mxu0 0.0
        %1552 = vmatprep.subr.mxu0 0.0
        %1553 = vmatpush2.msra.mxu0 0.0
        %1554 = vmatprep.subr.mxu0 0.0
        %1555 = vmatpush2.msra.mxu0 0.0
        %1556 = vmatprep.subr.mxu0 0.0
        %1557 = vmatpush2.msra.mxu0 0.0
        %1558 = vmatprep.subr.mxu0 0.0
        %1559 = vmatpush2.msra.mxu0 0.0
        %1560 = vmatprep.subr.mxu0 0.0
        %1561 = vmatpush2.msra.mxu0 0.0
        %1562 = vmatprep.subr.mxu0 0.0
        %1563 = vmatpush2.msra.mxu0 0.0
        %1564 = vmatprep.subr.mxu0 0.0
        %1565 = vmatpush2.msra.mxu0 0.0
        %1566 = vmatprep.subr.mxu0 0.0
        %1567 = vmatpush2.msra.mxu0 0.0
        %1568 = vmatprep.subr.mxu0 0.0
        %1569 = vmatpush2.msra.mxu0 0.0
        %1570 = vmatprep.subr.mxu0 0.0
        %1571 = vmatpush2.msra.mxu0 0.0
        %1572 = vmatprep.subr.mxu0 0.0
        %1573 = vmatpush2.msra.mxu0 0.0
        %1574 = vmatprep.subr.mxu0 0.0
        %1575 = vmatpush2.msra.mxu0 0.0
        %1576 = vmatprep.subr.mxu0 0.0
        %1577 = vmatpush2.msra.mxu0 0.0
        %1578 = vmatprep.subr.mxu0 0.0
        %1579 = vmatpush2.msra.mxu0 0.0
        %1580 = vmatprep.mubr.f32.mxu0 0.0
        %1581 = vmatmul.mubr.f32.gmra.mxu0 %v1514
        %v1582 = vpop.f32.mrf.mxu0
        %v1583 = vadd.f32 %v1510, %v1582
        %v1584 = vpop.f32.mrf.mxu0
        %1585 = vdwg.mxu0
        %v1586 = vld [vmem:[%s23] sm:$0xff]
        %v1587 = vld [vmem:[%s23 + $0x8] sm:$0xff]
        %v1588 = vld [vmem:[%s23 + $0x10] sm:$0xff]
        %v1589 = vld [vmem:[%s23 + $0x18] sm:$0xff]
        %v1590 = vld [vmem:[#allocation10] sm:$0x1]
        %1592 = vrot.lane.b32.xlu0 %v1583, 96
        %v1593 = vpop.permute.xlu0 %1592
        %vm1594 = vcmask 64512
        %v1595 = vsel %vm1594, %v1583, 0
        %v1597 = vsel %vm1594, %v1593, 0
        %1599 = vmatprep.subr.mxu0 0.0
        %1600 = vmatpush1.xpose.msra.mxu0 0.0
        %1601 = vmatprep.subr.mxu0 0.0
        %1602 = vmatpush1.xpose.msra.mxu0 0.0
        %1603 = vmatprep.subr.mxu0 0.0
        %1604 = vmatpush1.xpose.msra.mxu0 0.0
        %1605 = vmatprep.subr.mxu0 0.0
        %1606 = vmatpush1.xpose.msra.mxu0 0.0
        %1607 = vmatprep.subr.mxu0 0.0
        %1608 = vmatpush1.xpose.msra.mxu0 0.0
        %1609 = vmatprep.subr.mxu0 0.0
        %1610 = vmatpush1.xpose.msra.mxu0 0.0
        %1611 = vmatprep.subr.mxu0 0.0
        %1612 = vmatpush1.xpose.msra.mxu0 0.0
        %1613 = vmatprep.subr.mxu0 0.0
        %1614 = vmatpush1.xpose.msra.mxu0 0.0
        %1615 = vmatprep.subr.mxu0 0.0
        %1616 = vmatpush1.xpose.msra.mxu0 0.0
        %1617 = vmatprep.subr.mxu0 0.0
        %1618 = vmatpush1.xpose.msra.mxu0 0.0
        %1619 = vmatprep.subr.mxu0 0.0
        %1620 = vmatpush1.xpose.msra.mxu0 0.0
        %1621 = vmatprep.subr.mxu0 0.0
        %1622 = vmatpush1.xpose.msra.mxu0 0.0
        %1623 = vmatprep.subr.mxu0 0.0
        %1624 = vmatpush1.xpose.msra.mxu0 0.0
        %1625 = vmatprep.subr.mxu0 0.0
        %1626 = vmatpush1.xpose.msra.mxu0 0.0
        %1627 = vmatprep.subr.mxu0 0.0
        %1628 = vmatpush1.xpose.msra.mxu0 0.0
        %1629 = vmatprep.subr.mxu0 0.0
        %1630 = vmatpush1.xpose.msra.mxu0 %v1597
        %1631 = vmatprep.subr.mxu0 0.0
        %1632 = vmatpush2.xpose.msra.mxu0 0.0
        %1633 = vmatprep.subr.mxu0 0.0
        %1634 = vmatpush2.xpose.msra.mxu0 0.0
        %1635 = vmatprep.subr.mxu0 0.0
        %1636 = vmatpush2.xpose.msra.mxu0 0.0
        %1637 = vmatprep.subr.mxu0 0.0
        %1638 = vmatpush2.xpose.msra.mxu0 0.0
        %1639 = vmatprep.subr.mxu0 0.0
        %1640 = vmatpush2.xpose.msra.mxu0 0.0
        %1641 = vmatprep.subr.mxu0 0.0
        %1642 = vmatpush2.xpose.msra.mxu0 0.0
        %1643 = vmatprep.subr.mxu0 0.0
        %1644 = vmatpush2.xpose.msra.mxu0 0.0
        %1645 = vmatprep.subr.mxu0 0.0
        %1646 = vmatpush2.xpose.msra.mxu0 0.0
        %1647 = vmatprep.subr.mxu0 0.0
        %1648 = vmatpush2.xpose.msra.mxu0 0.0
        %1649 = vmatprep.subr.mxu0 0.0
        %1650 = vmatpush2.xpose.msra.mxu0 0.0
        %1651 = vmatprep.subr.mxu0 0.0
        %1652 = vmatpush2.xpose.msra.mxu0 0.0
        %1653 = vmatprep.subr.mxu0 0.0
        %1654 = vmatpush2.xpose.msra.mxu0 0.0
        %1655 = vmatprep.subr.mxu0 0.0
        %1656 = vmatpush2.xpose.msra.mxu0 0.0
        %1657 = vmatprep.subr.mxu0 0.0
        %1658 = vmatpush2.xpose.msra.mxu0 0.0
        %1659 = vmatprep.subr.mxu0 0.0
        %1660 = vmatpush2.xpose.msra.mxu0 0.0
        %1661 = vmatprep.subr.mxu0 0.0
        %1662 = vmatpush2.xpose.msra.mxu0 0.0
        %1663 = vmatprep.mubr.f32.mxu0 0.0
        %1664 = vmatmul.mubr.f32.gmra.mxu0 %v1595
        %v1665 = vpop.f32.mrf.mxu0
        %v1666 = vadd.f32 0.0, %v1665
        %v1667 = vpop.f32.mrf.mxu0
        %1668 = vdwg.mxu0
        %v1669 = vmul.f32 %v1666, 0.35355338
        %v1670 = vadd.f32 %v1669, %v1492
        %v1671 = vsel %vm1594, %v1670, -inf
        %1672 = vmax.xlane.f32.xlu0 %v1671
        %v1673 = vpop.xlane.xlu0 %1672
        %v1674 = vsub.f32 %v1670, %v1673
        %v1675 = vmul.f32 %v1674, 1.442695
        %v1676 = vpow.pop %v1675
        %v1677 = vsel %vm1594, %v1676, 0.0
        %1678 = vadd.xlane.f32.xlu0 %v1677
        %v1679 = vpop.xlane.xlu0 %1678
        %v1680 = vrcp.pop %v1679
        %v1681 = vmul.f32 %v1676, %v1680
        %1682 = vrot.lane.b32.xlu0 %v1583, 64
        %v1683 = vpop.permute.xlu0 %1682
        %v1686 = vsel %vm1594, %v1681, 0
        %1688 = vmatprep.subr.mxu0 0.0
        %1689 = vmatpush1.msra.mxu0 0.0
        %1690 = vmatprep.subr.mxu0 0.0
        %1691 = vmatpush1.msra.mxu0 0.0
        %1692 = vmatprep.subr.mxu0 0.0
        %1693 = vmatpush1.msra.mxu0 0.0
        %1694 = vmatprep.subr.mxu0 0.0
        %1695 = vmatpush1.msra.mxu0 0.0
        %1696 = vmatprep.subr.mxu0 0.0
        %1697 = vmatpush1.msra.mxu0 0.0
        %1698 = vmatprep.subr.mxu0 0.0
        %1699 = vmatpush1.msra.mxu0 0.0
        %1700 = vmatprep.subr.mxu0 0.0
        %1701 = vmatpush1.msra.mxu0 0.0
        %1702 = vmatprep.subr.mxu0 0.0
        %1703 = vmatpush1.msra.mxu0 0.0
        %1704 = vmatprep.subr.mxu0 0.0
        %1705 = vmatpush1.msra.mxu0 0.0
        %1706 = vmatprep.subr.mxu0 0.0
        %1707 = vmatpush1.msra.mxu0 0.0
        %1708 = vmatprep.subr.mxu0 0.0
        %1709 = vmatpush1.msra.mxu0 0.0
        %1710 = vmatprep.subr.mxu0 0.0
        %1711 = vmatpush1.msra.mxu0 0.0
        %1712 = vmatprep.subr.mxu0 0.0
        %1713 = vmatpush1.msra.mxu0 0.0
        %1714 = vmatprep.subr.mxu0 0.0
        %1715 = vmatpush1.msra.mxu0 0.0
        %1716 = vmatprep.subr.mxu0 0.0
        %1717 = vmatpush1.msra.mxu0 0.0
        %1718 = vmatprep.subr.mxu0 0.0
        %1719 = vmatpush1.msra.mxu0 %v1683
        %1720 = vmatprep.subr.mxu0 0.0
        %1721 = vmatpush2.msra.mxu0 0.0
        %1722 = vmatprep.subr.mxu0 0.0
        %1723 = vmatpush2.msra.mxu0 0.0
        %1724 = vmatprep.subr.mxu0 0.0
        %1725 = vmatpush2.msra.mxu0 0.0
        %1726 = vmatprep.subr.mxu0 0.0
        %1727 = vmatpush2.msra.mxu0 0.0
        %1728 = vmatprep.subr.mxu0 0.0
        %1729 = vmatpush2.msra.mxu0 0.0
        %1730 = vmatprep.subr.mxu0 0.0
        %1731 = vmatpush2.msra.mxu0 0.0
        %1732 = vmatprep.subr.mxu0 0.0
        %1733 = vmatpush2.msra.mxu0 0.0
        %1734 = vmatprep.subr.mxu0 0.0
        %1735 = vmatpush2.msra.mxu0 0.0
        %1736 = vmatprep.subr.mxu0 0.0
        %1737 = vmatpush2.msra.mxu0 0.0
        %1738 = vmatprep.subr.mxu0 0.0
        %1739 = vmatpush2.msra.mxu0 0.0
        %1740 = vmatprep.subr.mxu0 0.0
        %1741 = vmatpush2.msra.mxu0 0.0
        %1742 = vmatprep.subr.mxu0 0.0
        %1743 = vmatpush2.msra.mxu0 0.0
        %1744 = vmatprep.subr.mxu0 0.0
        %1745 = vmatpush2.msra.mxu0 0.0
        %1746 = vmatprep.subr.mxu0 0.0
        %1747 = vmatpush2.msra.mxu0 0.0
        %1748 = vmatprep.subr.mxu0 0.0
        %1749 = vmatpush2.msra.mxu0 0.0
        %1750 = vmatprep.subr.mxu0 0.0
        %1751 = vmatpush2.msra.mxu0 0.0
        %1752 = vmatprep.mubr.f32.mxu0 0.0
        %1753 = vmatmul.mubr.f32.gmra.mxu0 %v1686
        %v1754 = vpop.f32.mrf.mxu0
        %v1755 = vadd.f32 0.0, %v1754
        %v1756 = vpop.f32.mrf.mxu0
        %1757 = vdwg.mxu0
        %1758 = vrot.lane.b32.xlu0 %v1583, 120
        %v1759 = vpop.permute.xlu0 %1758
        %1760 = vrot.lane.b32.xlu0 %v1583, 88
        %v1761 = vpop.permute.xlu0 %1760
        %v1762 = vsel %vm1594, %v1759, 0
        %v1764 = vsel %vm1594, %v1761, 0
        %1766 = vmatprep.subr.mxu0 0.0
        %1767 = vmatpush1.xpose.msra.mxu0 0.0
        %1768 = vmatprep.subr.mxu0 0.0
        %1769 = vmatpush1.xpose.msra.mxu0 0.0
        %1770 = vmatprep.subr.mxu0 0.0
        %1771 = vmatpush1.xpose.msra.mxu0 0.0
        %1772 = vmatprep.subr.mxu0 0.0
        %1773 = vmatpush1.xpose.msra.mxu0 0.0
        %1774 = vmatprep.subr.mxu0 0.0
        %1775 = vmatpush1.xpose.msra.mxu0 0.0
        %1776 = vmatprep.subr.mxu0 0.0
        %1777 = vmatpush1.xpose.msra.mxu0 0.0
        %1778 = vmatprep.subr.mxu0 0.0
        %1779 = vmatpush1.xpose.msra.mxu0 0.0
        %1780 = vmatprep.subr.mxu0 0.0
        %1781 = vmatpush1.xpose.msra.mxu0 0.0
        %1782 = vmatprep.subr.mxu0 0.0
        %1783 = vmatpush1.xpose.msra.mxu0 0.0
        %1784 = vmatprep.subr.mxu0 0.0
        %1785 = vmatpush1.xpose.msra.mxu0 0.0
        %1786 = vmatprep.subr.mxu0 0.0
        %1787 = vmatpush1.xpose.msra.mxu0 0.0
        %1788 = vmatprep.subr.mxu0 0.0
        %1789 = vmatpush1.xpose.msra.mxu0 0.0
        %1790 = vmatprep.subr.mxu0 0.0
        %1791 = vmatpush1.xpose.msra.mxu0 0.0
        %1792 = vmatprep.subr.mxu0 0.0
        %1793 = vmatpush1.xpose.msra.mxu0 0.0
        %1794 = vmatprep.subr.mxu0 0.0
        %1795 = vmatpush1.xpose.msra.mxu0 0.0
        %1796 = vmatprep.subr.mxu0 0.0
        %1797 = vmatpush1.xpose.msra.mxu0 %v1764
        %1798 = vmatprep.subr.mxu0 0.0
        %1799 = vmatpush2.xpose.msra.mxu0 0.0
        %1800 = vmatprep.subr.mxu0 0.0
        %1801 = vmatpush2.xpose.msra.mxu0 0.0
        %1802 = vmatprep.subr.mxu0 0.0
        %1803 = vmatpush2.xpose.msra.mxu0 0.0
        %1804 = vmatprep.subr.mxu0 0.0
        %1805 = vmatpush2.xpose.msra.mxu0 0.0
        %1806 = vmatprep.subr.mxu0 0.0
        %1807 = vmatpush2.xpose.msra.mxu0 0.0
        %1808 = vmatprep.subr.mxu0 0.0
        %1809 = vmatpush2.xpose.msra.mxu0 0.0
        %1810 = vmatprep.subr.mxu0 0.0
        %1811 = vmatpush2.xpose.msra.mxu0 0.0
        %1812 = vmatprep.subr.mxu0 0.0
        %1813 = vmatpush2.xpose.msra.mxu0 0.0
        %1814 = vmatprep.subr.mxu0 0.0
        %1815 = vmatpush2.xpose.msra.mxu0 0.0
        %1816 = vmatprep.subr.mxu0 0.0
        %1817 = vmatpush2.xpose.msra.mxu0 0.0
        %1818 = vmatprep.subr.mxu0 0.0
        %1819 = vmatpush2.xpose.msra.mxu0 0.0
        %1820 = vmatprep.subr.mxu0 0.0
        %1821 = vmatpush2.xpose.msra.mxu0 0.0
        %1822 = vmatprep.subr.mxu0 0.0
        %1823 = vmatpush2.xpose.msra.mxu0 0.0
        %1824 = vmatprep.subr.mxu0 0.0
        %1825 = vmatpush2.xpose.msra.mxu0 0.0
        %1826 = vmatprep.subr.mxu0 0.0
        %1827 = vmatpush2.xpose.msra.mxu0 0.0
        %1828 = vmatprep.subr.mxu0 0.0
        %1829 = vmatpush2.xpose.msra.mxu0 0.0
        %1830 = vmatprep.mubr.f32.mxu0 0.0
        %1831 = vmatmul.mubr.f32.gmra.mxu0 %v1762
        %v1832 = vpop.f32.mrf.mxu0
        %v1833 = vadd.f32 0.0, %v1832
        %v1834 = vpop.f32.mrf.mxu0
        %1835 = vdwg.mxu0
        %v1836 = vmul.f32 %v1833, 0.35355338
        %v1837 = vadd.f32 %v1836, %v1492
        %v1838 = vsel %vm1594, %v1837, -inf
        %1839 = vmax.xlane.f32.xlu0 %v1838
        %v1840 = vpop.xlane.xlu0 %1839
        %v1841 = vsub.f32 %v1837, %v1840
        %v1842 = vmul.f32 %v1841, 1.442695
        %v1843 = vpow.pop %v1842
        %v1844 = vsel %vm1594, %v1843, 0.0
        %1845 = vadd.xlane.f32.xlu0 %v1844
        %v1846 = vpop.xlane.xlu0 %1845
        %v1847 = vrcp.pop %v1846
        %v1848 = vmul.f32 %v1843, %v1847
        %1849 = vrot.lane.b32.xlu0 %v1583, 56
        %v1850 = vpop.permute.xlu0 %1849
        %v1853 = vsel %vm1594, %v1848, 0
        %1855 = vmatprep.subr.mxu0 0.0
        %1856 = vmatpush1.msra.mxu0 0.0
        %1857 = vmatprep.subr.mxu0 0.0
        %1858 = vmatpush1.msra.mxu0 0.0
        %1859 = vmatprep.subr.mxu0 0.0
        %1860 = vmatpush1.msra.mxu0 0.0
        %1861 = vmatprep.subr.mxu0 0.0
        %1862 = vmatpush1.msra.mxu0 0.0
        %1863 = vmatprep.subr.mxu0 0.0
        %1864 = vmatpush1.msra.mxu0 0.0
        %1865 = vmatprep.subr.mxu0 0.0
        %1866 = vmatpush1.msra.mxu0 0.0
        %1867 = vmatprep.subr.mxu0 0.0
        %1868 = vmatpush1.msra.mxu0 0.0
        %1869 = vmatprep.subr.mxu0 0.0
        %1870 = vmatpush1.msra.mxu0 0.0
        %1871 = vmatprep.subr.mxu0 0.0
        %1872 = vmatpush1.msra.mxu0 0.0
        %1873 = vmatprep.subr.mxu0 0.0
        %1874 = vmatpush1.msra.mxu0 0.0
        %1875 = vmatprep.subr.mxu0 0.0
        %1876 = vmatpush1.msra.mxu0 0.0
        %1877 = vmatprep.subr.mxu0 0.0
        %1878 = vmatpush1.msra.mxu0 0.0
        %1879 = vmatprep.subr.mxu0 0.0
        %1880 = vmatpush1.msra.mxu0 0.0
        %1881 = vmatprep.subr.mxu0 0.0
        %1882 = vmatpush1.msra.mxu0 0.0
        %1883 = vmatprep.subr.mxu0 0.0
        %1884 = vmatpush1.msra.mxu0 0.0
        %1885 = vmatprep.subr.mxu0 0.0
        %1886 = vmatpush1.msra.mxu0 %v1850
        %1887 = vmatprep.subr.mxu0 0.0
        %1888 = vmatpush2.msra.mxu0 0.0
        %1889 = vmatprep.subr.mxu0 0.0
        %1890 = vmatpush2.msra.mxu0 0.0
        %1891 = vmatprep.subr.mxu0 0.0
        %1892 = vmatpush2.msra.mxu0 0.0
        %1893 = vmatprep.subr.mxu0 0.0
        %1894 = vmatpush2.msra.mxu0 0.0
        %1895 = vmatprep.subr.mxu0 0.0
        %1896 = vmatpush2.msra.mxu0 0.0
        %1897 = vmatprep.subr.mxu0 0.0
        %1898 = vmatpush2.msra.mxu0 0.0
        %1899 = vmatprep.subr.mxu0 0.0
        %1900 = vmatpush2.msra.mxu0 0.0
        %1901 = vmatprep.subr.mxu0 0.0
        %1902 = vmatpush2.msra.mxu0 0.0
        %1903 = vmatprep.subr.mxu0 0.0
        %1904 = vmatpush2.msra.mxu0 0.0
        %1905 = vmatprep.subr.mxu0 0.0
        %1906 = vmatpush2.msra.mxu0 0.0
        %1907 = vmatprep.subr.mxu0 0.0
        %1908 = vmatpush2.msra.mxu0 0.0
        %1909 = vmatprep.subr.mxu0 0.0
        %1910 = vmatpush2.msra.mxu0 0.0
        %1911 = vmatprep.subr.mxu0 0.0
        %1912 = vmatpush2.msra.mxu0 0.0
        %1913 = vmatprep.subr.mxu0 0.0
        %1914 = vmatpush2.msra.mxu0 0.0
        %1915 = vmatprep.subr.mxu0 0.0
        %1916 = vmatpush2.msra.mxu0 0.0
        %1917 = vmatprep.subr.mxu0 0.0
        %1918 = vmatpush2.msra.mxu0 0.0
        %1919 = vmatprep.mubr.f32.mxu0 0.0
        %1920 = vmatmul.mubr.f32.gmra.mxu0 %v1853
        %v1921 = vpop.f32.mrf.mxu0
        %v1922 = vadd.f32 0.0, %v1921
        %v1923 = vpop.f32.mrf.mxu0
        %1924 = vdwg.mxu0
        %1925 = vrot.lane.b32.xlu0 %v1583, 112
        %v1926 = vpop.permute.xlu0 %1925
        %1927 = vrot.lane.b32.xlu0 %v1583, 80
        %v1928 = vpop.permute.xlu0 %1927
        %v1929 = vsel %vm1594, %v1926, 0
        %v1931 = vsel %vm1594, %v1928, 0
        %1933 = vmatprep.subr.mxu0 0.0
        %1934 = vmatpush1.xpose.msra.mxu0 0.0
        %1935 = vmatprep.subr.mxu0 0.0
        %1936 = vmatpush1.xpose.msra.mxu0 0.0
        %1937 = vmatprep.subr.mxu0 0.0
        %1938 = vmatpush1.xpose.msra.mxu0 0.0
        %1939 = vmatprep.subr.mxu0 0.0
        %1940 = vmatpush1.xpose.msra.mxu0 0.0
        %1941 = vmatprep.subr.mxu0 0.0
        %1942 = vmatpush1.xpose.msra.mxu0 0.0
        %1943 = vmatprep.subr.mxu0 0.0
        %1944 = vmatpush1.xpose.msra.mxu0 0.0
        %1945 = vmatprep.subr.mxu0 0.0
        %1946 = vmatpush1.xpose.msra.mxu0 0.0
        %1947 = vmatprep.subr.mxu0 0.0
        %1948 = vmatpush1.xpose.msra.mxu0 0.0
        %1949 = vmatprep.subr.mxu0 0.0
        %1950 = vmatpush1.xpose.msra.mxu0 0.0
        %1951 = vmatprep.subr.mxu0 0.0
        %1952 = vmatpush1.xpose.msra.mxu0 0.0
        %1953 = vmatprep.subr.mxu0 0.0
        %1954 = vmatpush1.xpose.msra.mxu0 0.0
        %1955 = vmatprep.subr.mxu0 0.0
        %1956 = vmatpush1.xpose.msra.mxu0 0.0
        %1957 = vmatprep.subr.mxu0 0.0
        %1958 = vmatpush1.xpose.msra.mxu0 0.0
        %1959 = vmatprep.subr.mxu0 0.0
        %1960 = vmatpush1.xpose.msra.mxu0 0.0
        %1961 = vmatprep.subr.mxu0 0.0
        %1962 = vmatpush1.xpose.msra.mxu0 0.0
        %1963 = vmatprep.subr.mxu0 0.0
        %1964 = vmatpush1.xpose.msra.mxu0 %v1931
        %1965 = vmatprep.subr.mxu0 0.0
        %1966 = vmatpush2.xpose.msra.mxu0 0.0
        %1967 = vmatprep.subr.mxu0 0.0
        %1968 = vmatpush2.xpose.msra.mxu0 0.0
        %1969 = vmatprep.subr.mxu0 0.0
        %1970 = vmatpush2.xpose.msra.mxu0 0.0
        %1971 = vmatprep.subr.mxu0 0.0
        %1972 = vmatpush2.xpose.msra.mxu0 0.0
        %1973 = vmatprep.subr.mxu0 0.0
        %1974 = vmatpush2.xpose.msra.mxu0 0.0
        %1975 = vmatprep.subr.mxu0 0.0
        %1976 = vmatpush2.xpose.msra.mxu0 0.0
        %1977 = vmatprep.subr.mxu0 0.0
        %1978 = vmatpush2.xpose.msra.mxu0 0.0
        %1979 = vmatprep.subr.mxu0 0.0
        %1980 = vmatpush2.xpose.msra.mxu0 0.0
        %1981 = vmatprep.subr.mxu0 0.0
        %1982 = vmatpush2.xpose.msra.mxu0 0.0
        %1983 = vmatprep.subr.mxu0 0.0
        %1984 = vmatpush2.xpose.msra.mxu0 0.0
        %1985 = vmatprep.subr.mxu0 0.0
        %1986 = vmatpush2.xpose.msra.mxu0 0.0
        %1987 = vmatprep.subr.mxu0 0.0
        %1988 = vmatpush2.xpose.msra.mxu0 0.0
        %1989 = vmatprep.subr.mxu0 0.0
        %1990 = vmatpush2.xpose.msra.mxu0 0.0
        %1991 = vmatprep.subr.mxu0 0.0
        %1992 = vmatpush2.xpose.msra.mxu0 0.0
        %1993 = vmatprep.subr.mxu0 0.0
        %1994 = vmatpush2.xpose.msra.mxu0 0.0
        %1995 = vmatprep.subr.mxu0 0.0
        %1996 = vmatpush2.xpose.msra.mxu0 0.0
        %1997 = vmatprep.mubr.f32.mxu0 0.0
        %1998 = vmatmul.mubr.f32.gmra.mxu0 %v1929
        %v1999 = vpop.f32.mrf.mxu0
        %v2000 = vadd.f32 0.0, %v1999
        %v2001 = vpop.f32.mrf.mxu0
        %2002 = vdwg.mxu0
        %v2003 = vmul.f32 %v2000, 0.35355338
        %v2004 = vadd.f32 %v2003, %v1492
        %v2005 = vsel %vm1594, %v2004, -inf
        %2006 = vmax.xlane.f32.xlu0 %v2005
        %v2007 = vpop.xlane.xlu0 %2006
        %v2008 = vsub.f32 %v2004, %v2007
        %v2009 = vmul.f32 %v2008, 1.442695
        %v2010 = vpow.pop %v2009
        %v2011 = vsel %vm1594, %v2010, 0.0
        %2012 = vadd.xlane.f32.xlu0 %v2011
        %v2013 = vpop.xlane.xlu0 %2012
        %v2014 = vrcp.pop %v2013
        %v2015 = vmul.f32 %v2010, %v2014
        %2016 = vrot.lane.b32.xlu0 %v1583, 48
        %v2017 = vpop.permute.xlu0 %2016
        %v2020 = vsel %vm1594, %v2015, 0
        %2022 = vmatprep.subr.mxu0 0.0
        %2023 = vmatpush1.msra.mxu0 0.0
        %2024 = vmatprep.subr.mxu0 0.0
        %2025 = vmatpush1.msra.mxu0 0.0
        %2026 = vmatprep.subr.mxu0 0.0
        %2027 = vmatpush1.msra.mxu0 0.0
        %2028 = vmatprep.subr.mxu0 0.0
        %2029 = vmatpush1.msra.mxu0 0.0
        %2030 = vmatprep.subr.mxu0 0.0
        %2031 = vmatpush1.msra.mxu0 0.0
        %2032 = vmatprep.subr.mxu0 0.0
        %2033 = vmatpush1.msra.mxu0 0.0
        %2034 = vmatprep.subr.mxu0 0.0
        %2035 = vmatpush1.msra.mxu0 0.0
        %2036 = vmatprep.subr.mxu0 0.0
        %2037 = vmatpush1.msra.mxu0 0.0
        %2038 = vmatprep.subr.mxu0 0.0
        %2039 = vmatpush1.msra.mxu0 0.0
        %2040 = vmatprep.subr.mxu0 0.0
        %2041 = vmatpush1.msra.mxu0 0.0
        %2042 = vmatprep.subr.mxu0 0.0
        %2043 = vmatpush1.msra.mxu0 0.0
        %2044 = vmatprep.subr.mxu0 0.0
        %2045 = vmatpush1.msra.mxu0 0.0
        %2046 = vmatprep.subr.mxu0 0.0
        %2047 = vmatpush1.msra.mxu0 0.0
        %2048 = vmatprep.subr.mxu0 0.0
        %2049 = vmatpush1.msra.mxu0 0.0
        %2050 = vmatprep.subr.mxu0 0.0
        %2051 = vmatpush1.msra.mxu0 0.0
        %2052 = vmatprep.subr.mxu0 0.0
        %2053 = vmatpush1.msra.mxu0 %v2017
        %2054 = vmatprep.subr.mxu0 0.0
        %2055 = vmatpush2.msra.mxu0 0.0
        %2056 = vmatprep.subr.mxu0 0.0
        %2057 = vmatpush2.msra.mxu0 0.0
        %2058 = vmatprep.subr.mxu0 0.0
        %2059 = vmatpush2.msra.mxu0 0.0
        %2060 = vmatprep.subr.mxu0 0.0
        %2061 = vmatpush2.msra.mxu0 0.0
        %2062 = vmatprep.subr.mxu0 0.0
        %2063 = vmatpush2.msra.mxu0 0.0
        %2064 = vmatprep.subr.mxu0 0.0
        %2065 = vmatpush2.msra.mxu0 0.0
        %2066 = vmatprep.subr.mxu0 0.0
        %2067 = vmatpush2.msra.mxu0 0.0
        %2068 = vmatprep.subr.mxu0 0.0
        %2069 = vmatpush2.msra.mxu0 0.0
        %2070 = vmatprep.subr.mxu0 0.0
        %2071 = vmatpush2.msra.mxu0 0.0
        %2072 = vmatprep.subr.mxu0 0.0
        %2073 = vmatpush2.msra.mxu0 0.0
        %2074 = vmatprep.subr.mxu0 0.0
        %2075 = vmatpush2.msra.mxu0 0.0
        %2076 = vmatprep.subr.mxu0 0.0
        %2077 = vmatpush2.msra.mxu0 0.0
        %2078 = vmatprep.subr.mxu0 0.0
        %2079 = vmatpush2.msra.mxu0 0.0
        %2080 = vmatprep.subr.mxu0 0.0
        %2081 = vmatpush2.msra.mxu0 0.0
        %2082 = vmatprep.subr.mxu0 0.0
        %2083 = vmatpush2.msra.mxu0 0.0
        %2084 = vmatprep.subr.mxu0 0.0
        %2085 = vmatpush2.msra.mxu0 0.0
        %2086 = vmatprep.mubr.f32.mxu0 0.0
        %2087 = vmatmul.mubr.f32.gmra.mxu0 %v2020
        %v2088 = vpop.f32.mrf.mxu0
        %v2089 = vadd.f32 0.0, %v2088
        %v2090 = vpop.f32.mrf.mxu0
        %2091 = vdwg.mxu0
        %2092 = vrot.lane.b32.xlu0 %v1583, 104
        %v2093 = vpop.permute.xlu0 %2092
        %2094 = vrot.lane.b32.xlu0 %v1583, 72
        %v2095 = vpop.permute.xlu0 %2094
        %v2096 = vsel %vm1594, %v2093, 0
        %v2098 = vsel %vm1594, %v2095, 0
        %2100 = vmatprep.subr.mxu0 0.0
        %2101 = vmatpush1.xpose.msra.mxu0 0.0
        %2102 = vmatprep.subr.mxu0 0.0
        %2103 = vmatpush1.xpose.msra.mxu0 0.0
        %2104 = vmatprep.subr.mxu0 0.0
        %2105 = vmatpush1.xpose.msra.mxu0 0.0
        %2106 = vmatprep.subr.mxu0 0.0
        %2107 = vmatpush1.xpose.msra.mxu0 0.0
        %2108 = vmatprep.subr.mxu0 0.0
        %2109 = vmatpush1.xpose.msra.mxu0 0.0
        %2110 = vmatprep.subr.mxu0 0.0
        %2111 = vmatpush1.xpose.msra.mxu0 0.0
        %2112 = vmatprep.subr.mxu0 0.0
        %2113 = vmatpush1.xpose.msra.mxu0 0.0
        %2114 = vmatprep.subr.mxu0 0.0
        %2115 = vmatpush1.xpose.msra.mxu0 0.0
        %2116 = vmatprep.subr.mxu0 0.0
        %2117 = vmatpush1.xpose.msra.mxu0 0.0
        %2118 = vmatprep.subr.mxu0 0.0
        %2119 = vmatpush1.xpose.msra.mxu0 0.0
        %2120 = vmatprep.subr.mxu0 0.0
        %2121 = vmatpush1.xpose.msra.mxu0 0.0
        %2122 = vmatprep.subr.mxu0 0.0
        %2123 = vmatpush1.xpose.msra.mxu0 0.0
        %2124 = vmatprep.subr.mxu0 0.0
        %2125 = vmatpush1.xpose.msra.mxu0 0.0
        %2126 = vmatprep.subr.mxu0 0.0
        %2127 = vmatpush1.xpose.msra.mxu0 0.0
        %2128 = vmatprep.subr.mxu0 0.0
        %2129 = vmatpush1.xpose.msra.mxu0 0.0
        %2130 = vmatprep.subr.mxu0 0.0
        %2131 = vmatpush1.xpose.msra.mxu0 %v2098
        %2132 = vmatprep.subr.mxu0 0.0
        %2133 = vmatpush2.xpose.msra.mxu0 0.0
        %2134 = vmatprep.subr.mxu0 0.0
        %2135 = vmatpush2.xpose.msra.mxu0 0.0
        %2136 = vmatprep.subr.mxu0 0.0
        %2137 = vmatpush2.xpose.msra.mxu0 0.0
        %2138 = vmatprep.subr.mxu0 0.0
        %2139 = vmatpush2.xpose.msra.mxu0 0.0
        %2140 = vmatprep.subr.mxu0 0.0
        %2141 = vmatpush2.xpose.msra.mxu0 0.0
        %2142 = vmatprep.subr.mxu0 0.0
        %2143 = vmatpush2.xpose.msra.mxu0 0.0
        %2144 = vmatprep.subr.mxu0 0.0
        %2145 = vmatpush2.xpose.msra.mxu0 0.0
        %2146 = vmatprep.subr.mxu0 0.0
        %2147 = vmatpush2.xpose.msra.mxu0 0.0
        %2148 = vmatprep.subr.mxu0 0.0
        %2149 = vmatpush2.xpose.msra.mxu0 0.0
        %2150 = vmatprep.subr.mxu0 0.0
        %2151 = vmatpush2.xpose.msra.mxu0 0.0
        %2152 = vmatprep.subr.mxu0 0.0
        %2153 = vmatpush2.xpose.msra.mxu0 0.0
        %2154 = vmatprep.subr.mxu0 0.0
        %2155 = vmatpush2.xpose.msra.mxu0 0.0
        %2156 = vmatprep.subr.mxu0 0.0
        %2157 = vmatpush2.xpose.msra.mxu0 0.0
        %2158 = vmatprep.subr.mxu0 0.0
        %2159 = vmatpush2.xpose.msra.mxu0 0.0
        %2160 = vmatprep.subr.mxu0 0.0
        %2161 = vmatpush2.xpose.msra.mxu0 0.0
        %2162 = vmatprep.subr.mxu0 0.0
        %2163 = vmatpush2.xpose.msra.mxu0 0.0
        %2164 = vmatprep.mubr.f32.mxu0 0.0
        %2165 = vmatmul.mubr.f32.gmra.mxu0 %v2096
        %v2166 = vpop.f32.mrf.mxu0
        %v2167 = vadd.f32 0.0, %v2166
        %v2168 = vpop.f32.mrf.mxu0
        %2169 = vdwg.mxu0
        %v2170 = vmul.f32 %v2167, 0.35355338
        %v2171 = vadd.f32 %v2170, %v1492
        %v2172 = vsel %vm1594, %v2171, -inf
        %2173 = vmax.xlane.f32.xlu0 %v2172
        %v2174 = vpop.xlane.xlu0 %2173
        %v2175 = vsub.f32 %v2171, %v2174
        %v2176 = vmul.f32 %v2175, 1.442695
        %v2177 = vpow.pop %v2176
        %v2178 = vsel %vm1594, %v2177, 0.0
        %2179 = vadd.xlane.f32.xlu0 %v2178
        %v2180 = vpop.xlane.xlu0 %2179
        %v2181 = vrcp.pop %v2180
        %v2182 = vmul.f32 %v2177, %v2181
        %2183 = vrot.lane.b32.xlu0 %v1583, 40
        %v2184 = vpop.permute.xlu0 %2183
        %v2187 = vsel %vm1594, %v2182, 0
        %2189 = vmatprep.subr.mxu0 0.0
        %2190 = vmatpush1.msra.mxu0 0.0
        %2191 = vmatprep.subr.mxu0 0.0
        %2192 = vmatpush1.msra.mxu0 0.0
        %2193 = vmatprep.subr.mxu0 0.0
        %2194 = vmatpush1.msra.mxu0 0.0
        %2195 = vmatprep.subr.mxu0 0.0
        %2196 = vmatpush1.msra.mxu0 0.0
        %2197 = vmatprep.subr.mxu0 0.0
        %2198 = vmatpush1.msra.mxu0 0.0
        %2199 = vmatprep.subr.mxu0 0.0
        %2200 = vmatpush1.msra.mxu0 0.0
        %2201 = vmatprep.subr.mxu0 0.0
        %2202 = vmatpush1.msra.mxu0 0.0
        %2203 = vmatprep.subr.mxu0 0.0
        %2204 = vmatpush1.msra.mxu0 0.0
        %2205 = vmatprep.subr.mxu0 0.0
        %2206 = vmatpush1.msra.mxu0 0.0
        %2207 = vmatprep.subr.mxu0 0.0
        %2208 = vmatpush1.msra.mxu0 0.0
        %2209 = vmatprep.subr.mxu0 0.0
        %2210 = vmatpush1.msra.mxu0 0.0
        %2211 = vmatprep.subr.mxu0 0.0
        %2212 = vmatpush1.msra.mxu0 0.0
        %2213 = vmatprep.subr.mxu0 0.0
        %2214 = vmatpush1.msra.mxu0 0.0
        %2215 = vmatprep.subr.mxu0 0.0
        %2216 = vmatpush1.msra.mxu0 0.0
        %2217 = vmatprep.subr.mxu0 0.0
        %2218 = vmatpush1.msra.mxu0 0.0
        %2219 = vmatprep.subr.mxu0 0.0
        %2220 = vmatpush1.msra.mxu0 %v2184
        %2221 = vmatprep.subr.mxu0 0.0
        %2222 = vmatpush2.msra.mxu0 0.0
        %2223 = vmatprep.subr.mxu0 0.0
        %2224 = vmatpush2.msra.mxu0 0.0
        %2225 = vmatprep.subr.mxu0 0.0
        %2226 = vmatpush2.msra.mxu0 0.0
        %2227 = vmatprep.subr.mxu0 0.0
        %2228 = vmatpush2.msra.mxu0 0.0
        %2229 = vmatprep.subr.mxu0 0.0
        %2230 = vmatpush2.msra.mxu0 0.0
        %2231 = vmatprep.subr.mxu0 0.0
        %2232 = vmatpush2.msra.mxu0 0.0
        %2233 = vmatprep.subr.mxu0 0.0
        %2234 = vmatpush2.msra.mxu0 0.0
        %2235 = vmatprep.subr.mxu0 0.0
        %2236 = vmatpush2.msra.mxu0 0.0
        %2237 = vmatprep.subr.mxu0 0.0
        %2238 = vmatpush2.msra.mxu0 0.0
        %2239 = vmatprep.subr.mxu0 0.0
        %2240 = vmatpush2.msra.mxu0 0.0
        %2241 = vmatprep.subr.mxu0 0.0
        %2242 = vmatpush2.msra.mxu0 0.0
        %2243 = vmatprep.subr.mxu0 0.0
        %2244 = vmatpush2.msra.mxu0 0.0
        %2245 = vmatprep.subr.mxu0 0.0
        %2246 = vmatpush2.msra.mxu0 0.0
        %2247 = vmatprep.subr.mxu0 0.0
        %2248 = vmatpush2.msra.mxu0 0.0
        %2249 = vmatprep.subr.mxu0 0.0
        %2250 = vmatpush2.msra.mxu0 0.0
        %2251 = vmatprep.subr.mxu0 0.0
        %2252 = vmatpush2.msra.mxu0 0.0
        %2253 = vmatprep.mubr.f32.mxu0 0.0
        %2254 = vmatmul.mubr.f32.gmra.mxu0 %v2187
        %v2255 = vpop.f32.mrf.mxu0
        %v2256 = vadd.f32 0.0, %v2255
        %v2257 = vpop.f32.mrf.mxu0
        %2258 = vdwg.mxu0
        %2260 = vrot.lane.b32.xlu0 %v1922, 8
        %v2261 = vpop.permute.xlu0 %2260
        %2264 = vrot.lane.b32.xlu0 %v2089, 16
        %v2265 = vpop.permute.xlu0 %2264
        %2268 = vrot.lane.b32.xlu0 %v2256, 24
        %v2269 = vpop.permute.xlu0 %2268
        %v2271 = vsel %vm1594, %v1755, %v2261
        %vm2272 = vcmask 130048
        %v2273 = vsel %vm2272, %v2271, %v2265
        %v2274 = vsel %vm1317, %v2273, %v2269
        %v2276 = vlaneseq
        %v2277 = vshrl.u32 %v2276, 7
        %v2278 = vsub.s32 0, %v2277
        %v2279 = vrot.slane %v1590, %v2278
        %v2282 = vsel %vm1512, %v2274, 0
        %2284 = vmatprep.subr.mxu0 0.0
        %2285 = vmatpush1.msra.mxu0 0.0
        %2286 = vmatprep.subr.mxu0 0.0
        %2287 = vmatpush1.msra.mxu0 0.0
        %2288 = vmatprep.subr.mxu0 0.0
        %2289 = vmatpush1.msra.mxu0 0.0
        %2290 = vmatprep.subr.mxu0 0.0
        %2291 = vmatpush1.msra.mxu0 0.0
        %2292 = vmatprep.subr.mxu0 0.0
        %2293 = vmatpush1.msra.mxu0 0.0
        %2294 = vmatprep.subr.mxu0 0.0
        %2295 = vmatpush1.msra.mxu0 0.0
        %2296 = vmatprep.subr.mxu0 0.0
        %2297 = vmatpush1.msra.mxu0 0.0
        %2298 = vmatprep.subr.mxu0 0.0
        %2299 = vmatpush1.msra.mxu0 0.0
        %2300 = vmatprep.subr.mxu0 0.0
        %2301 = vmatpush1.msra.mxu0 0.0
        %2302 = vmatprep.subr.mxu0 0.0
        %2303 = vmatpush1.msra.mxu0 0.0
        %2304 = vmatprep.subr.mxu0 0.0
        %2305 = vmatpush1.msra.mxu0 0.0
        %2306 = vmatprep.subr.mxu0 0.0
        %2307 = vmatpush1.msra.mxu0 0.0
        %2308 = vmatprep.subr.mxu0 0.0
        %2309 = vmatpush1.msra.mxu0 %v1589
        %2310 = vmatprep.subr.mxu0 0.0
        %2311 = vmatpush1.msra.mxu0 %v1588
        %2312 = vmatprep.subr.mxu0 0.0
        %2313 = vmatpush1.msra.mxu0 %v1587
        %2314 = vmatprep.subr.mxu0 0.0
        %2315 = vmatpush1.msra.mxu0 %v1586
        %2316 = vmatprep.subr.mxu0 0.0
        %2317 = vmatpush2.msra.mxu0 0.0
        %2318 = vmatprep.subr.mxu0 0.0
        %2319 = vmatpush2.msra.mxu0 0.0
        %2320 = vmatprep.subr.mxu0 0.0
        %2321 = vmatpush2.msra.mxu0 0.0
        %2322 = vmatprep.subr.mxu0 0.0
        %2323 = vmatpush2.msra.mxu0 0.0
        %2324 = vmatprep.subr.mxu0 0.0
        %2325 = vmatpush2.msra.mxu0 0.0
        %2326 = vmatprep.subr.mxu0 0.0
        %2327 = vmatpush2.msra.mxu0 0.0
        %2328 = vmatprep.subr.mxu0 0.0
        %2329 = vmatpush2.msra.mxu0 0.0
        %2330 = vmatprep.subr.mxu0 0.0
        %2331 = vmatpush2.msra.mxu0 0.0
        %2332 = vmatprep.subr.mxu0 0.0
        %2333 = vmatpush2.msra.mxu0 0.0
        %2334 = vmatprep.subr.mxu0 0.0
        %2335 = vmatpush2.msra.mxu0 0.0
        %2336 = vmatprep.subr.mxu0 0.0
        %2337 = vmatpush2.msra.mxu0 0.0
        %2338 = vmatprep.subr.mxu0 0.0
        %2339 = vmatpush2.msra.mxu0 0.0
        %2340 = vmatprep.subr.mxu0 0.0
        %2341 = vmatpush2.msra.mxu0 0.0
        %2342 = vmatprep.subr.mxu0 0.0
        %2343 = vmatpush2.msra.mxu0 0.0
        %2344 = vmatprep.subr.mxu0 0.0
        %2345 = vmatpush2.msra.mxu0 0.0
        %2346 = vmatprep.subr.mxu0 0.0
        %2347 = vmatpush2.msra.mxu0 0.0
        %2348 = vmatprep.mubr.f32.mxu0 0.0
        %2349 = vmatmul.mubr.f32.gmra.mxu0 %v2282
        %v2350 = vpop.f32.mrf.mxu0
        %v2351 = vadd.f32 %v2279, %v2350
        %v2352 = vpop.f32.mrf.mxu0
        %2353 = vdwg.mxu0
        %v2354 = vadd.f32 %v2351, %v1388
        %v2355 = vld [vmem:[#allocation22] sm:$0x1]
        %v2356 = vld [vmem:[#allocation23] sm:$0x1]
        %v2357 = vsel %vm1512, %v2354, 0.0
        %2358 = vadd.xlane.f32.xlu0 %v2357
        %v2359 = vpop.xlane.xlu0 %2358
        %v2360 = vrcp.pop 32.0
        %v2361 = vmul.f32 %v2359, %v2360
        %v2362 = vsub.f32 %v2354, %v2361
        %v2363 = vmul.f32 %v2362, %v2362
        %v2364 = vsel %vm1512, %v2363, 0.0
        %2365 = vadd.xlane.f32.xlu0 %v2364
        %v2366 = vpop.xlane.xlu0 %2365
        %v2367 = vmul.f32 %v2366, %v2360
        %v2368 = vadd.f32 %v2367, 1e-05
        %v2369 = vrsqrt.pop %v2368
        %v2370 = vmul.f32 %v2362, %v2369
        %v2372 = vlaneseq
        %v2373 = vshrl.u32 %v2372, 7
        %v2374 = vsub.s32 0, %v2373
        %v2375 = vrot.slane %v2355, %v2374
        %v2377 = vmul.f32 %v2370, %v2375
        %v2379 = vlaneseq
        %v2380 = vshrl.u32 %v2379, 7
        %v2381 = vsub.s32 0, %v2380
        %v2382 = vrot.slane %v2356, %v2381
        %v2384 = vadd.f32 %v2377, %v2382
        %v2385 = vld [vmem:[%s27] sm:$0xff]
        %v2386 = vld [vmem:[%s27 + $0x8] sm:$0xff]
        %v2387 = vld [vmem:[%s27 + $0x10] sm:$0xff]
        %v2388 = vld [vmem:[%s27 + $0x18] sm:$0xff]
        %v2389 = vld [vmem:[#allocation11] sm:$0x1]
        %v2391 = vlaneseq
        %v2392 = vshrl.u32 %v2391, 7
        %v2393 = vsub.s32 0, %v2392
        %v2394 = vrot.slane %v2389, %v2393
        %v2397 = vsel %vm1512, %v2384, 0
        %2399 = vmatprep.subr.mxu0 0.0
        %2400 = vmatpush1.msra.mxu0 0.0
        %2401 = vmatprep.subr.mxu0 0.0
        %2402 = vmatpush1.msra.mxu0 0.0
        %2403 = vmatprep.subr.mxu0 0.0
        %2404 = vmatpush1.msra.mxu0 0.0
        %2405 = vmatprep.subr.mxu0 0.0
        %2406 = vmatpush1.msra.mxu0 0.0
        %2407 = vmatprep.subr.mxu0 0.0
        %2408 = vmatpush1.msra.mxu0 0.0
        %2409 = vmatprep.subr.mxu0 0.0
        %2410 = vmatpush1.msra.mxu0 0.0
        %2411 = vmatprep.subr.mxu0 0.0
        %2412 = vmatpush1.msra.mxu0 0.0
        %2413 = vmatprep.subr.mxu0 0.0
        %2414 = vmatpush1.msra.mxu0 0.0
        %2415 = vmatprep.subr.mxu0 0.0
        %2416 = vmatpush1.msra.mxu0 0.0
        %2417 = vmatprep.subr.mxu0 0.0
        %2418 = vmatpush1.msra.mxu0 0.0
        %2419 = vmatprep.subr.mxu0 0.0
        %2420 = vmatpush1.msra.mxu0 0.0
        %2421 = vmatprep.subr.mxu0 0.0
        %2422 = vmatpush1.msra.mxu0 0.0
        %2423 = vmatprep.subr.mxu0 0.0
        %2424 = vmatpush1.msra.mxu0 %v2388
        %2425 = vmatprep.subr.mxu0 0.0
        %2426 = vmatpush1.msra.mxu0 %v2387
        %2427 = vmatprep.subr.mxu0 0.0
        %2428 = vmatpush1.msra.mxu0 %v2386
        %2429 = vmatprep.subr.mxu0 0.0
        %2430 = vmatpush1.msra.mxu0 %v2385
        %2431 = vmatprep.subr.mxu0 0.0
        %2432 = vmatpush2.msra.mxu0 0.0
        %2433 = vmatprep.subr.mxu0 0.0
        %2434 = vmatpush2.msra.mxu0 0.0
        %2435 = vmatprep.subr.mxu0 0.0
        %2436 = vmatpush2.msra.mxu0 0.0
        %2437 = vmatprep.subr.mxu0 0.0
        %2438 = vmatpush2.msra.mxu0 0.0
        %2439 = vmatprep.subr.mxu0 0.0
        %2440 = vmatpush2.msra.mxu0 0.0
        %2441 = vmatprep.subr.mxu0 0.0
        %2442 = vmatpush2.msra.mxu0 0.0
        %2443 = vmatprep.subr.mxu0 0.0
        %2444 = vmatpush2.msra.mxu0 0.0
        %2445 = vmatprep.subr.mxu0 0.0
        %2446 = vmatpush2.msra.mxu0 0.0
        %2447 = vmatprep.subr.mxu0 0.0
        %2448 = vmatpush2.msra.mxu0 0.0
        %2449 = vmatprep.subr.mxu0 0.0
        %2450 = vmatpush2.msra.mxu0 0.0
        %2451 = vmatprep.subr.mxu0 0.0
        %2452 = vmatpush2.msra.mxu0 0.0
        %2453 = vmatprep.subr.mxu0 0.0
        %2454 = vmatpush2.msra.mxu0 0.0
        %2455 = vmatprep.subr.mxu0 0.0
        %2456 = vmatpush2.msra.mxu0 0.0
        %2457 = vmatprep.subr.mxu0 0.0
        %2458 = vmatpush2.msra.mxu0 0.0
        %2459 = vmatprep.subr.mxu0 0.0
        %2460 = vmatpush2.msra.mxu0 0.0
        %2461 = vmatprep.subr.mxu0 0.0
        %2462 = vmatpush2.msra.mxu0 0.0
        %2463 = vmatprep.mubr.f32.mxu0 0.0
        %2464 = vmatmul.mubr.f32.gmra.mxu0 %v2397
        %v2465 = vpop.f32.mrf.mxu0
        %v2466 = vadd.f32 %v2394, %v2465
        %v2467 = vpop.f32.mrf.mxu0
        %2468 = vdwg.mxu0
        %v2469 = vld [vmem:[%s31] sm:$0xff]
        %v2470 = vld [vmem:[%s31 + $0x8] sm:$0xff]
        %v2471 = vld [vmem:[%s31 + $0x10] sm:$0xff]
        %v2472 = vld [vmem:[%s31 + $0x18] sm:$0xff]
        %v2473 = vld [vmem:[#allocation13] sm:$0x1]
        %v2475 = vlaneseq
        %v2476 = vshrl.u32 %v2475, 7
        %v2477 = vsub.s32 0, %v2476
        %v2478 = vrot.slane %v2473, %v2477
        %v2481 = vsel %vm1512, %v1479, 0
        %v2484 = vsel %vm1512, %v1484, 0
        %2486 = vmatprep.subr.mxu0 0.0
        %2487 = vmatpush1.msra.mxu0 0.0
        %2488 = vmatprep.subr.mxu0 0.0
        %2489 = vmatpush1.msra.mxu0 0.0
        %2490 = vmatprep.subr.mxu0 0.0
        %2491 = vmatpush1.msra.mxu0 0.0
        %2492 = vmatprep.subr.mxu0 0.0
        %2493 = vmatpush1.msra.mxu0 0.0
        %2494 = vmatprep.subr.mxu0 0.0
        %2495 = vmatpush1.msra.mxu0 0.0
        %2496 = vmatprep.subr.mxu0 0.0
        %2497 = vmatpush1.msra.mxu0 0.0
        %2498 = vmatprep.subr.mxu0 0.0
        %2499 = vmatpush1.msra.mxu0 0.0
        %2500 = vmatprep.subr.mxu0 0.0
        %2501 = vmatpush1.msra.mxu0 0.0
        %2502 = vmatprep.subr.mxu0 0.0
        %2503 = vmatpush1.msra.mxu0 0.0
        %2504 = vmatprep.subr.mxu0 0.0
        %2505 = vmatpush1.msra.mxu0 0.0
        %2506 = vmatprep.subr.mxu0 0.0
        %2507 = vmatpush1.msra.mxu0 0.0
        %2508 = vmatprep.subr.mxu0 0.0
        %2509 = vmatpush1.msra.mxu0 0.0
        %2510 = vmatprep.subr.mxu0 0.0
        %2511 = vmatpush1.msra.mxu0 %v2472
        %2512 = vmatprep.subr.mxu0 0.0
        %2513 = vmatpush1.msra.mxu0 %v2471
        %2514 = vmatprep.subr.mxu0 0.0
        %2515 = vmatpush1.msra.mxu0 %v2470
        %2516 = vmatprep.subr.mxu0 0.0
        %2517 = vmatpush1.msra.mxu0 %v2469
        %2518 = vmatprep.subr.mxu0 0.0
        %2519 = vmatpush2.msra.mxu0 0.0
        %2520 = vmatprep.subr.mxu0 0.0
        %2521 = vmatpush2.msra.mxu0 0.0
        %2522 = vmatprep.subr.mxu0 0.0
        %2523 = vmatpush2.msra.mxu0 0.0
        %2524 = vmatprep.subr.mxu0 0.0
        %2525 = vmatpush2.msra.mxu0 0.0
        %2526 = vmatprep.subr.mxu0 0.0
        %2527 = vmatpush2.msra.mxu0 0.0
        %2528 = vmatprep.subr.mxu0 0.0
        %2529 = vmatpush2.msra.mxu0 0.0
        %2530 = vmatprep.subr.mxu0 0.0
        %2531 = vmatpush2.msra.mxu0 0.0
        %2532 = vmatprep.subr.mxu0 0.0
        %2533 = vmatpush2.msra.mxu0 0.0
        %2534 = vmatprep.subr.mxu0 0.0
        %2535 = vmatpush2.msra.mxu0 0.0
        %2536 = vmatprep.subr.mxu0 0.0
        %2537 = vmatpush2.msra.mxu0 0.0
        %2538 = vmatprep.subr.mxu0 0.0
        %2539 = vmatpush2.msra.mxu0 0.0
        %2540 = vmatprep.subr.mxu0 0.0
        %2541 = vmatpush2.msra.mxu0 0.0
        %2542 = vmatprep.subr.mxu0 0.0
        %2543 = vmatpush2.msra.mxu0 0.0
        %2544 = vmatprep.subr.mxu0 0.0
        %2545 = vmatpush2.msra.mxu0 0.0
        %2546 = vmatprep.subr.mxu0 0.0
        %2547 = vmatpush2.msra.mxu0 0.0
        %2548 = vmatprep.subr.mxu0 0.0
        %2549 = vmatpush2.msra.mxu0 0.0
        %2550 = vmatprep.mubr.f32.mxu0 0.0
        %2551 = vmatmul.mubr.f32.gmra.mxu0 %v2481
        %v2552 = vpop.f32.mrf.mxu0
        %v2553 = vadd.f32 %v2478, %v2552
        %v2554 = vpop.f32.mrf.mxu0
        %2555 = vmatprep.mubr.f32.mxu0 0.0
        %2556 = vmatmul.mubr.f32.gmra.mxu0 %v2484
        %v2557 = vpop.f32.mrf.mxu0
        %v2558 = vadd.f32 %v2478, %v2557
        %v2559 = vpop.f32.mrf.mxu0
        %2560 = vdwg.mxu0
        %v2561 = vld [vmem:[#allocation14] sm:$0xff]
        %v2562 = vld [vmem:[#allocation14 + $0x8] sm:$0xff]
        %v2563 = vld [vmem:[#allocation14 + $0x10] sm:$0xff]
        %v2564 = vld [vmem:[#allocation14 + $0x18] sm:$0xff]
        %v2565 = vld [vmem:[#allocation16] sm:$0x1]
        %v2567 = vsel %vm1594, %v2466, 0
        %v2570 = vsel %vm1594, %v2553, 0
        %v2573 = vsel %vm1594, %v2558, 0
        %2575 = vmatprep.subr.mxu0 0.0
        %2576 = vmatpush1.xpose.msra.mxu0 0.0
        %2577 = vmatprep.subr.mxu0 0.0
        %2578 = vmatpush1.xpose.msra.mxu0 0.0
        %2579 = vmatprep.subr.mxu0 0.0
        %2580 = vmatpush1.xpose.msra.mxu0 0.0
        %2581 = vmatprep.subr.mxu0 0.0
        %2582 = vmatpush1.xpose.msra.mxu0 0.0
        %2583 = vmatprep.subr.mxu0 0.0
        %2584 = vmatpush1.xpose.msra.mxu0 0.0
        %2585 = vmatprep.subr.mxu0 0.0
        %2586 = vmatpush1.xpose.msra.mxu0 0.0
        %2587 = vmatprep.subr.mxu0 0.0
        %2588 = vmatpush1.xpose.msra.mxu0 0.0
        %2589 = vmatprep.subr.mxu0 0.0
        %2590 = vmatpush1.xpose.msra.mxu0 0.0
        %2591 = vmatprep.subr.mxu0 0.0
        %2592 = vmatpush1.xpose.msra.mxu0 0.0
        %2593 = vmatprep.subr.mxu0 0.0
        %2594 = vmatpush1.xpose.msra.mxu0 0.0
        %2595 = vmatprep.subr.mxu0 0.0
        %2596 = vmatpush1.xpose.msra.mxu0 0.0
        %2597 = vmatprep.subr.mxu0 0.0
        %2598 = vmatpush1.xpose.msra.mxu0 0.0
        %2599 = vmatprep.subr.mxu0 0.0
        %2600 = vmatpush1.xpose.msra.mxu0 0.0
        %2601 = vmatprep.subr.mxu0 0.0
        %2602 = vmatpush1.xpose.msra.mxu0 0.0
        %2603 = vmatprep.subr.mxu0 0.0
        %2604 = vmatpush1.xpose.msra.mxu0 %v2573
        %2605 = vmatprep.subr.mxu0 0.0
        %2606 = vmatpush1.xpose.msra.mxu0 %v2570
        %2607 = vmatprep.subr.mxu0 0.0
        %2608 = vmatpush2.xpose.msra.mxu0 0.0
        %2609 = vmatprep.subr.mxu0 0.0
        %2610 = vmatpush2.xpose.msra.mxu0 0.0
        %2611 = vmatprep.subr.mxu0 0.0
        %2612 = vmatpush2.xpose.msra.mxu0 0.0
        %2613 = vmatprep.subr.mxu0 0.0
        %2614 = vmatpush2.xpose.msra.mxu0 0.0
        %2615 = vmatprep.subr.mxu0 0.0
        %2616 = vmatpush2.xpose.msra.mxu0 0.0
        %2617 = vmatprep.subr.mxu0 0.0
        %2618 = vmatpush2.xpose.msra.mxu0 0.0
        %2619 = vmatprep.subr.mxu0 0.0
        %2620 = vmatpush2.xpose.msra.mxu0 0.0
        %2621 = vmatprep.subr.mxu0 0.0
        %2622 = vmatpush2.xpose.msra.mxu0 0.0
        %2623 = vmatprep.subr.mxu0 0.0
        %2624 = vmatpush2.xpose.msra.mxu0 0.0
        %2625 = vmatprep.subr.mxu0 0.0
        %2626 = vmatpush2.xpose.msra.mxu0 0.0
        %2627 = vmatprep.subr.mxu0 0.0
        %2628 = vmatpush2.xpose.msra.mxu0 0.0
        %2629 = vmatprep.subr.mxu0 0.0
        %2630 = vmatpush2.xpose.msra.mxu0 0.0
        %2631 = vmatprep.subr.mxu0 0.0
        %2632 = vmatpush2.xpose.msra.mxu0 0.0
        %2633 = vmatprep.subr.mxu0 0.0
        %2634 = vmatpush2.xpose.msra.mxu0 0.0
        %2635 = vmatprep.subr.mxu0 0.0
        %2636 = vmatpush2.xpose.msra.mxu0 0.0
        %2637 = vmatprep.subr.mxu0 0.0
        %2638 = vmatpush2.xpose.msra.mxu0 0.0
        %2639 = vmatprep.mubr.f32.mxu0 0.0
        %2640 = vmatmul.mubr.f32.gmra.mxu0 %v2567
        %v2641 = vpop.f32.mrf.mxu0
        %v2642 = vadd.f32 0.0, %v2641
        %v2643 = vpop.f32.mrf.mxu0
        %2644 = vdwg.mxu0
        %v2645 = vmul.f32 %v2642, 0.35355338
        %v2646 = vadd.f32 %v2645, %v1499
        %vm2647 = vcmask 97280
        %v2648 = vsel %vm2647, %v2646, -inf
        %2649 = vmax.xlane.f32.xlu0 %v2648
        %v2650 = vpop.xlane.xlu0 %2649
        %v2651 = vsub.f32 %v2646, %v2650
        %v2652 = vmul.f32 %v2651, 1.442695
        %v2653 = vpow.pop %v2652
        %v2654 = vsel %vm2647, %v2653, 0.0
        %2655 = vadd.xlane.f32.xlu0 %v2654
        %v2656 = vpop.xlane.xlu0 %2655
        %v2657 = vrcp.pop %v2656
        %v2658 = vmul.f32 %v2653, %v2657
        %2659 = vrot.lane.b32.xlu0 %v2553, 96
        %v2660 = vpop.permute.xlu0 %2659
        %2661 = vrot.lane.b32.xlu0 %v2558, 96
        %v2662 = vpop.permute.xlu0 %2661
        %v2665 = vsel %vm2647, %v2658, 0
        %vm2667 = vcmask 1043456
        %v2668 = vsel %vm2667, %v2662, 0
        %2670 = vmatprep.subr.mxu0 0.0
        %2671 = vmatpush1.msra.mxu0 0.0
        %2672 = vmatprep.subr.mxu0 0.0
        %2673 = vmatpush1.msra.mxu0 0.0
        %2674 = vmatprep.subr.mxu0 0.0
        %2675 = vmatpush1.msra.mxu0 0.0
        %2676 = vmatprep.subr.mxu0 0.0
        %2677 = vmatpush1.msra.mxu0 0.0
        %2678 = vmatprep.subr.mxu0 0.0
        %2679 = vmatpush1.msra.mxu0 0.0
        %2680 = vmatprep.subr.mxu0 0.0
        %2681 = vmatpush1.msra.mxu0 0.0
        %2682 = vmatprep.subr.mxu0 0.0
        %2683 = vmatpush1.msra.mxu0 0.0
        %2684 = vmatprep.subr.mxu0 0.0
        %2685 = vmatpush1.msra.mxu0 0.0
        %2686 = vmatprep.subr.mxu0 0.0
        %2687 = vmatpush1.msra.mxu0 0.0
        %2688 = vmatprep.subr.mxu0 0.0
        %2689 = vmatpush1.msra.mxu0 0.0
        %2690 = vmatprep.subr.mxu0 0.0
        %2691 = vmatpush1.msra.mxu0 0.0
        %2692 = vmatprep.subr.mxu0 0.0
        %2693 = vmatpush1.msra.mxu0 0.0
        %2694 = vmatprep.subr.mxu0 0.0
        %2695 = vmatpush1.msra.mxu0 0.0
        %2696 = vmatprep.subr.mxu0 0.0
        %2697 = vmatpush1.msra.mxu0 0.0
        %2698 = vmatprep.subr.mxu0 0.0
        %2699 = vmatpush1.msra.mxu0 %v2668
        %2700 = vmatprep.subr.mxu0 0.0
        %2701 = vmatpush1.msra.mxu0 %v2660
        %2702 = vmatprep.subr.mxu0 0.0
        %2703 = vmatpush2.msra.mxu0 0.0
        %2704 = vmatprep.subr.mxu0 0.0
        %2705 = vmatpush2.msra.mxu0 0.0
        %2706 = vmatprep.subr.mxu0 0.0
        %2707 = vmatpush2.msra.mxu0 0.0
        %2708 = vmatprep.subr.mxu0 0.0
        %2709 = vmatpush2.msra.mxu0 0.0
        %2710 = vmatprep.subr.mxu0 0.0
        %2711 = vmatpush2.msra.mxu0 0.0
        %2712 = vmatprep.subr.mxu0 0.0
        %2713 = vmatpush2.msra.mxu0 0.0
        %2714 = vmatprep.subr.mxu0 0.0
        %2715 = vmatpush2.msra.mxu0 0.0
        %2716 = vmatprep.subr.mxu0 0.0
        %2717 = vmatpush2.msra.mxu0 0.0
        %2718 = vmatprep.subr.mxu0 0.0
        %2719 = vmatpush2.msra.mxu0 0.0
        %2720 = vmatprep.subr.mxu0 0.0
        %2721 = vmatpush2.msra.mxu0 0.0
        %2722 = vmatprep.subr.mxu0 0.0
        %2723 = vmatpush2.msra.mxu0 0.0
        %2724 = vmatprep.subr.mxu0 0.0
        %2725 = vmatpush2.msra.mxu0 0.0
        %2726 = vmatprep.subr.mxu0 0.0
        %2727 = vmatpush2.msra.mxu0 0.0
        %2728 = vmatprep.subr.mxu0 0.0
        %2729 = vmatpush2.msra.mxu0 0.0
        %2730 = vmatprep.subr.mxu0 0.0
        %2731 = vmatpush2.msra.mxu0 0.0
        %2732 = vmatprep.subr.mxu0 0.0
        %2733 = vmatpush2.msra.mxu0 0.0
        %2734 = vmatprep.mubr.f32.mxu0 0.0
        %2735 = vmatmul.mubr.f32.gmra.mxu0 %v2665
        %v2736 = vpop.f32.mrf.mxu0
        %v2737 = vadd.f32 0.0, %v2736
        %v2738 = vpop.f32.mrf.mxu0
        %2739 = vdwg.mxu0
        %2740 = vrot.lane.b32.xlu0 %v2466, 120
        %v2741 = vpop.permute.xlu0 %2740
        %2742 = vrot.lane.b32.xlu0 %v2553, 120
        %v2743 = vpop.permute.xlu0 %2742
        %2744 = vrot.lane.b32.xlu0 %v2558, 120
        %v2745 = vpop.permute.xlu0 %2744
        %v2746 = vsel %vm1594, %v2741, 0
        %v2748 = vsel %vm1594, %v2743, 0
        %v2750 = vsel %vm1594, %v2745, 0
        %2752 = vmatprep.subr.mxu0 0.0
        %2753 = vmatpush1.xpose.msra.mxu0 0.0
        %2754 = vmatprep.subr.mxu0 0.0
        %2755 = vmatpush1.xpose.msra.mxu0 0.0
        %2756 = vmatprep.subr.mxu0 0.0
        %2757 = vmatpush1.xpose.msra.mxu0 0.0
        %2758 = vmatprep.subr.mxu0 0.0
        %2759 = vmatpush1.xpose.msra.mxu0 0.0
        %2760 = vmatprep.subr.mxu0 0.0
        %2761 = vmatpush1.xpose.msra.mxu0 0.0
        %2762 = vmatprep.subr.mxu0 0.0
        %2763 = vmatpush1.xpose.msra.mxu0 0.0
        %2764 = vmatprep.subr.mxu0 0.0
        %2765 = vmatpush1.xpose.msra.mxu0 0.0
        %2766 = vmatprep.subr.mxu0 0.0
        %2767 = vmatpush1.xpose.msra.mxu0 0.0
        %2768 = vmatprep.subr.mxu0 0.0
        %2769 = vmatpush1.xpose.msra.mxu0 0.0
        %2770 = vmatprep.subr.mxu0 0.0
        %2771 = vmatpush1.xpose.msra.mxu0 0.0
        %2772 = vmatprep.subr.mxu0 0.0
        %2773 = vmatpush1.xpose.msra.mxu0 0.0
        %2774 = vmatprep.subr.mxu0 0.0
        %2775 = vmatpush1.xpose.msra.mxu0 0.0
        %2776 = vmatprep.subr.mxu0 0.0
        %2777 = vmatpush1.xpose.msra.mxu0 0.0
        %2778 = vmatprep.subr.mxu0 0.0
        %2779 = vmatpush1.xpose.msra.mxu0 0.0
        %2780 = vmatprep.subr.mxu0 0.0
        %2781 = vmatpush1.xpose.msra.mxu0 %v2750
        %2782 = vmatprep.subr.mxu0 0.0
        %2783 = vmatpush1.xpose.msra.mxu0 %v2748
        %2784 = vmatprep.subr.mxu0 0.0
        %2785 = vmatpush2.xpose.msra.mxu0 0.0
        %2786 = vmatprep.subr.mxu0 0.0
        %2787 = vmatpush2.xpose.msra.mxu0 0.0
        %2788 = vmatprep.subr.mxu0 0.0
        %2789 = vmatpush2.xpose.msra.mxu0 0.0
        %2790 = vmatprep.subr.mxu0 0.0
        %2791 = vmatpush2.xpose.msra.mxu0 0.0
        %2792 = vmatprep.subr.mxu0 0.0
        %2793 = vmatpush2.xpose.msra.mxu0 0.0
        %2794 = vmatprep.subr.mxu0 0.0
        %2795 = vmatpush2.xpose.msra.mxu0 0.0
        %2796 = vmatprep.subr.mxu0 0.0
        %2797 = vmatpush2.xpose.msra.mxu0 0.0
        %2798 = vmatprep.subr.mxu0 0.0
        %2799 = vmatpush2.xpose.msra.mxu0 0.0
        %2800 = vmatprep.subr.mxu0 0.0
        %2801 = vmatpush2.xpose.msra.mxu0 0.0
        %2802 = vmatprep.subr.mxu0 0.0
        %2803 = vmatpush2.xpose.msra.mxu0 0.0
        %2804 = vmatprep.subr.mxu0 0.0
        %2805 = vmatpush2.xpose.msra.mxu0 0.0
        %2806 = vmatprep.subr.mxu0 0.0
        %2807 = vmatpush2.xpose.msra.mxu0 0.0
        %2808 = vmatprep.subr.mxu0 0.0
        %2809 = vmatpush2.xpose.msra.mxu0 0.0
        %2810 = vmatprep.subr.mxu0 0.0
        %2811 = vmatpush2.xpose.msra.mxu0 0.0
        %2812 = vmatprep.subr.mxu0 0.0
        %2813 = vmatpush2.xpose.msra.mxu0 0.0
        %2814 = vmatprep.subr.mxu0 0.0
        %2815 = vmatpush2.xpose.msra.mxu0 0.0
        %2816 = vmatprep.mubr.f32.mxu0 0.0
        %2817 = vmatmul.mubr.f32.gmra.mxu0 %v2746
        %v2818 = vpop.f32.mrf.mxu0
        %v2819 = vadd.f32 0.0, %v2818
        %v2820 = vpop.f32.mrf.mxu0
        %2821 = vdwg.mxu0
        %v2822 = vmul.f32 %v2819, 0.35355338
        %v2823 = vadd.f32 %v2822, %v1499
        %v2824 = vsel %vm2647, %v2823, -inf
        %2825 = vmax.xlane.f32.xlu0 %v2824
        %v2826 = vpop.xlane.xlu0 %2825
        %v2827 = vsub.f32 %v2823, %v2826
        %v2828 = vmul.f32 %v2827, 1.442695
        %v2829 = vpow.pop %v2828
        %v2830 = vsel %vm2647, %v2829, 0.0
        %2831 = vadd.xlane.f32.xlu0 %v2830
        %v2832 = vpop.xlane.xlu0 %2831
        %v2833 = vrcp.pop %v2832
        %v2834 = vmul.f32 %v2829, %v2833
        %2835 = vrot.lane.b32.xlu0 %v2553, 88
        %v2836 = vpop.permute.xlu0 %2835
        %2837 = vrot.lane.b32.xlu0 %v2558, 88
        %v2838 = vpop.permute.xlu0 %2837
        %v2841 = vsel %vm2647, %v2834, 0
        %v2843 = vsel %vm2667, %v2838, 0
        %2845 = vmatprep.subr.mxu0 0.0
        %2846 = vmatpush1.msra.mxu0 0.0
        %2847 = vmatprep.subr.mxu0 0.0
        %2848 = vmatpush1.msra.mxu0 0.0
        %2849 = vmatprep.subr.mxu0 0.0
        %2850 = vmatpush1.msra.mxu0 0.0
        %2851 = vmatprep.subr.mxu0 0.0
        %2852 = vmatpush1.msra.mxu0 0.0
        %2853 = vmatprep.subr.mxu0 0.0
        %2854 = vmatpush1.msra.mxu0 0.0
        %2855 = vmatprep.subr.mxu0 0.0
        %2856 = vmatpush1.msra.mxu0 0.0
        %2857 = vmatprep.subr.mxu0 0.0
        %2858 = vmatpush1.msra.mxu0 0.0
        %2859 = vmatprep.subr.mxu0 0.0
        %2860 = vmatpush1.msra.mxu0 0.0
        %2861 = vmatprep.subr.mxu0 0.0
        %2862 = vmatpush1.msra.mxu0 0.0
        %2863 = vmatprep.subr.mxu0 0.0
        %2864 = vmatpush1.msra.mxu0 0.0
        %2865 = vmatprep.subr.mxu0 0.0
        %2866 = vmatpush1.msra.mxu0 0.0
        %2867 = vmatprep.subr.mxu0 0.0
        %2868 = vmatpush1.msra.mxu0 0.0
        %2869 = vmatprep.subr.mxu0 0.0
        %2870 = vmatpush1.msra.mxu0 0.0
        %2871 = vmatprep.subr.mxu0 0.0
        %2872 = vmatpush1.msra.mxu0 0.0
        %2873 = vmatprep.subr.mxu0 0.0
        %2874 = vmatpush1.msra.mxu0 %v2843
        %2875 = vmatprep.subr.mxu0 0.0
        %2876 = vmatpush1.msra.mxu0 %v2836
        %2877 = vmatprep.subr.mxu0 0.0
        %2878 = vmatpush2.msra.mxu0 0.0
        %2879 = vmatprep.subr.mxu0 0.0
        %2880 = vmatpush2.msra.mxu0 0.0
        %2881 = vmatprep.subr.mxu0 0.0
        %2882 = vmatpush2.msra.mxu0 0.0
        %2883 = vmatprep.subr.mxu0 0.0
        %2884 = vmatpush2.msra.mxu0 0.0
        %2885 = vmatprep.subr.mxu0 0.0
        %2886 = vmatpush2.msra.mxu0 0.0
        %2887 = vmatprep.subr.mxu0 0.0
        %2888 = vmatpush2.msra.mxu0 0.0
        %2889 = vmatprep.subr.mxu0 0.0
        %2890 = vmatpush2.msra.mxu0 0.0
        %2891 = vmatprep.subr.mxu0 0.0
        %2892 = vmatpush2.msra.mxu0 0.0
        %2893 = vmatprep.subr.mxu0 0.0
        %2894 = vmatpush2.msra.mxu0 0.0
        %2895 = vmatprep.subr.mxu0 0.0
        %2896 = vmatpush2.msra.mxu0 0.0
        %2897 = vmatprep.subr.mxu0 0.0
        %2898 = vmatpush2.msra.mxu0 0.0
        %2899 = vmatprep.subr.mxu0 0.0
        %2900 = vmatpush2.msra.mxu0 0.0
        %2901 = vmatprep.subr.mxu0 0.0
        %2902 = vmatpush2.msra.mxu0 0.0
        %2903 = vmatprep.subr.mxu0 0.0
        %2904 = vmatpush2.msra.mxu0 0.0
        %2905 = vmatprep.subr.mxu0 0.0
        %2906 = vmatpush2.msra.mxu0 0.0
        %2907 = vmatprep.subr.mxu0 0.0
        %2908 = vmatpush2.msra.mxu0 0.0
        %2909 = vmatprep.mubr.f32.mxu0 0.0
        %2910 = vmatmul.mubr.f32.gmra.mxu0 %v2841
        %v2911 = vpop.f32.mrf.mxu0
        %v2912 = vadd.f32 0.0, %v2911
        %v2913 = vpop.f32.mrf.mxu0
        %2914 = vdwg.mxu0
        %2915 = vrot.lane.b32.xlu0 %v2466, 112
        %v2916 = vpop.permute.xlu0 %2915
        %2917 = vrot.lane.b32.xlu0 %v2553, 112
        %v2918 = vpop.permute.xlu0 %2917
        %2919 = vrot.lane.b32.xlu0 %v2558, 112
        %v2920 = vpop.permute.xlu0 %2919
        %v2921 = vsel %vm1594, %v2916, 0
        %v2923 = vsel %vm1594, %v2918, 0
        %v2925 = vsel %vm1594, %v2920, 0
        %2927 = vmatprep.subr.mxu0 0.0
        %2928 = vmatpush1.xpose.msra.mxu0 0.0
        %2929 = vmatprep.subr.mxu0 0.0
        %2930 = vmatpush1.xpose.msra.mxu0 0.0
        %2931 = vmatprep.subr.mxu0 0.0
        %2932 = vmatpush1.xpose.msra.mxu0 0.0
        %2933 = vmatprep.subr.mxu0 0.0
        %2934 = vmatpush1.xpose.msra.mxu0 0.0
        %2935 = vmatprep.subr.mxu0 0.0
        %2936 = vmatpush1.xpose.msra.mxu0 0.0
        %2937 = vmatprep.subr.mxu0 0.0
        %2938 = vmatpush1.xpose.msra.mxu0 0.0
        %2939 = vmatprep.subr.mxu0 0.0
        %2940 = vmatpush1.xpose.msra.mxu0 0.0
        %2941 = vmatprep.subr.mxu0 0.0
        %2942 = vmatpush1.xpose.msra.mxu0 0.0
        %2943 = vmatprep.subr.mxu0 0.0
        %2944 = vmatpush1.xpose.msra.mxu0 0.0
        %2945 = vmatprep.subr.mxu0 0.0
        %2946 = vmatpush1.xpose.msra.mxu0 0.0
        %2947 = vmatprep.subr.mxu0 0.0
        %2948 = vmatpush1.xpose.msra.mxu0 0.0
        %2949 = vmatprep.subr.mxu0 0.0
        %2950 = vmatpush1.xpose.msra.mxu0 0.0
        %2951 = vmatprep.subr.mxu0 0.0
        %2952 = vmatpush1.xpose.msra.mxu0 0.0
        %2953 = vmatprep.subr.mxu0 0.0
        %2954 = vmatpush1.xpose.msra.mxu0 0.0
        %2955 = vmatprep.subr.mxu0 0.0
        %2956 = vmatpush1.xpose.msra.mxu0 %v2925
        %2957 = vmatprep.subr.mxu0 0.0
        %2958 = vmatpush1.xpose.msra.mxu0 %v2923
        %2959 = vmatprep.subr.mxu0 0.0
        %2960 = vmatpush2.xpose.msra.mxu0 0.0
        %2961 = vmatprep.subr.mxu0 0.0
        %2962 = vmatpush2.xpose.msra.mxu0 0.0
        %2963 = vmatprep.subr.mxu0 0.0
        %2964 = vmatpush2.xpose.msra.mxu0 0.0
        %2965 = vmatprep.subr.mxu0 0.0
        %2966 = vmatpush2.xpose.msra.mxu0 0.0
        %2967 = vmatprep.subr.mxu0 0.0
        %2968 = vmatpush2.xpose.msra.mxu0 0.0
        %2969 = vmatprep.subr.mxu0 0.0
        %2970 = vmatpush2.xpose.msra.mxu0 0.0
        %2971 = vmatprep.subr.mxu0 0.0
        %2972 = vmatpush2.xpose.msra.mxu0 0.0
        %2973 = vmatprep.subr.mxu0 0.0
        %2974 = vmatpush2.xpose.msra.mxu0 0.0
        %2975 = vmatprep.subr.mxu0 0.0
        %2976 = vmatpush2.xpose.msra.mxu0 0.0
        %2977 = vmatprep.subr.mxu0 0.0
        %2978 = vmatpush2.xpose.msra.mxu0 0.0
        %2979 = vmatprep.subr.mxu0 0.0
        %2980 = vmatpush2.xpose.msra.mxu0 0.0
        %2981 = vmatprep.subr.mxu0 0.0
        %2982 = vmatpush2.xpose.msra.mxu0 0.0
        %2983 = vmatprep.subr.mxu0 0.0
        %2984 = vmatpush2.xpose.msra.mxu0 0.0
        %2985 = vmatprep.subr.mxu0 0.0
        %2986 = vmatpush2.xpose.msra.mxu0 0.0
        %2987 = vmatprep.subr.mxu0 0.0
        %2988 = vmatpush2.xpose.msra.mxu0 0.0
        %2989 = vmatprep.subr.mxu0 0.0
        %2990 = vmatpush2.xpose.msra.mxu0 0.0
        %2991 = vmatprep.mubr.f32.mxu0 0.0
        %2992 = vmatmul.mubr.f32.gmra.mxu0 %v2921
        %v2993 = vpop.f32.mrf.mxu0
        %v2994 = vadd.f32 0.0, %v2993
        %v2995 = vpop.f32.mrf.mxu0
        %2996 = vdwg.mxu0
        %v2997 = vmul.f32 %v2994, 0.35355338
        %v2998 = vadd.f32 %v2997, %v1499
        %v2999 = vsel %vm2647, %v2998, -inf
        %3000 = vmax.xlane.f32.xlu0 %v2999
        %v3001 = vpop.xlane.xlu0 %3000
        %v3002 = vsub.f32 %v2998, %v3001
        %v3003 = vmul.f32 %v3002, 1.442695
        %v3004 = vpow.pop %v3003
        %v3005 = vsel %vm2647, %v3004, 0.0
        %3006 = vadd.xlane.f32.xlu0 %v3005
        %v3007 = vpop.xlane.xlu0 %3006
        %v3008 = vrcp.pop %v3007
        %v3009 = vmul.f32 %v3004, %v3008
        %3010 = vrot.lane.b32.xlu0 %v2553, 80
        %v3011 = vpop.permute.xlu0 %3010
        %3012 = vrot.lane.b32.xlu0 %v2558, 80
        %v3013 = vpop.permute.xlu0 %3012
        %v3016 = vsel %vm2647, %v3009, 0
        %v3018 = vsel %vm2667, %v3013, 0
        %3020 = vmatprep.subr.mxu0 0.0
        %3021 = vmatpush1.msra.mxu0 0.0
        %3022 = vmatprep.subr.mxu0 0.0
        %3023 = vmatpush1.msra.mxu0 0.0
        %3024 = vmatprep.subr.mxu0 0.0
        %3025 = vmatpush1.msra.mxu0 0.0
        %3026 = vmatprep.subr.mxu0 0.0
        %3027 = vmatpush1.msra.mxu0 0.0
        %3028 = vmatprep.subr.mxu0 0.0
        %3029 = vmatpush1.msra.mxu0 0.0
        %3030 = vmatprep.subr.mxu0 0.0
        %3031 = vmatpush1.msra.mxu0 0.0
        %3032 = vmatprep.subr.mxu0 0.0
        %3033 = vmatpush1.msra.mxu0 0.0
        %3034 = vmatprep.subr.mxu0 0.0
        %3035 = vmatpush1.msra.mxu0 0.0
        %3036 = vmatprep.subr.mxu0 0.0
        %3037 = vmatpush1.msra.mxu0 0.0
        %3038 = vmatprep.subr.mxu0 0.0
        %3039 = vmatpush1.msra.mxu0 0.0
        %3040 = vmatprep.subr.mxu0 0.0
        %3041 = vmatpush1.msra.mxu0 0.0
        %3042 = vmatprep.subr.mxu0 0.0
        %3043 = vmatpush1.msra.mxu0 0.0
        %3044 = vmatprep.subr.mxu0 0.0
        %3045 = vmatpush1.msra.mxu0 0.0
        %3046 = vmatprep.subr.mxu0 0.0
        %3047 = vmatpush1.msra.mxu0 0.0
        %3048 = vmatprep.subr.mxu0 0.0
        %3049 = vmatpush1.msra.mxu0 %v3018
        %3050 = vmatprep.subr.mxu0 0.0
        %3051 = vmatpush1.msra.mxu0 %v3011
        %3052 = vmatprep.subr.mxu0 0.0
        %3053 = vmatpush2.msra.mxu0 0.0
        %3054 = vmatprep.subr.mxu0 0.0
        %3055 = vmatpush2.msra.mxu0 0.0
        %3056 = vmatprep.subr.mxu0 0.0
        %3057 = vmatpush2.msra.mxu0 0.0
        %3058 = vmatprep.subr.mxu0 0.0
        %3059 = vmatpush2.msra.mxu0 0.0
        %3060 = vmatprep.subr.mxu0 0.0
        %3061 = vmatpush2.msra.mxu0 0.0
        %3062 = vmatprep.subr.mxu0 0.0
        %3063 = vmatpush2.msra.mxu0 0.0
        %3064 = vmatprep.subr.mxu0 0.0
        %3065 = vmatpush2.msra.mxu0 0.0
        %3066 = vmatprep.subr.mxu0 0.0
        %3067 = vmatpush2.msra.mxu0 0.0
        %3068 = vmatprep.subr.mxu0 0.0
        %3069 = vmatpush2.msra.mxu0 0.0
        %3070 = vmatprep.subr.mxu0 0.0
        %3071 = vmatpush2.msra.mxu0 0.0
        %3072 = vmatprep.subr.mxu0 0.0
        %3073 = vmatpush2.msra.mxu0 0.0
        %3074 = vmatprep.subr.mxu0 0.0
        %3075 = vmatpush2.msra.mxu0 0.0
        %3076 = vmatprep.subr.mxu0 0.0
        %3077 = vmatpush2.msra.mxu0 0.0
        %3078 = vmatprep.subr.mxu0 0.0
        %3079 = vmatpush2.msra.mxu0 0.0
        %3080 = vmatprep.subr.mxu0 0.0
        %3081 = vmatpush2.msra.mxu0 0.0
        %3082 = vmatprep.subr.mxu0 0.0
        %3083 = vmatpush2.msra.mxu0 0.0
        %3084 = vmatprep.mubr.f32.mxu0 0.0
        %3085 = vmatmul.mubr.f32.gmra.mxu0 %v3016
        %v3086 = vpop.f32.mrf.mxu0
        %v3087 = vadd.f32 0.0, %v3086
        %v3088 = vpop.f32.mrf.mxu0
        %3089 = vdwg.mxu0
        %3090 = vrot.lane.b32.xlu0 %v2466, 104
        %v3091 = vpop.permute.xlu0 %3090
        %3092 = vrot.lane.b32.xlu0 %v2553, 104
        %v3093 = vpop.permute.xlu0 %3092
        %3094 = vrot.lane.b32.xlu0 %v2558, 104
        %v3095 = vpop.permute.xlu0 %3094
        %v3096 = vsel %vm1594, %v3091, 0
        %v3098 = vsel %vm1594, %v3093, 0
        %v3100 = vsel %vm1594, %v3095, 0
        %3102 = vmatprep.subr.mxu0 0.0
        %3103 = vmatpush1.xpose.msra.mxu0 0.0
        %3104 = vmatprep.subr.mxu0 0.0
        %3105 = vmatpush1.xpose.msra.mxu0 0.0
        %3106 = vmatprep.subr.mxu0 0.0
        %3107 = vmatpush1.xpose.msra.mxu0 0.0
        %3108 = vmatprep.subr.mxu0 0.0
        %3109 = vmatpush1.xpose.msra.mxu0 0.0
        %3110 = vmatprep.subr.mxu0 0.0
        %3111 = vmatpush1.xpose.msra.mxu0 0.0
        %3112 = vmatprep.subr.mxu0 0.0
        %3113 = vmatpush1.xpose.msra.mxu0 0.0
        %3114 = vmatprep.subr.mxu0 0.0
        %3115 = vmatpush1.xpose.msra.mxu0 0.0
        %3116 = vmatprep.subr.mxu0 0.0
        %3117 = vmatpush1.xpose.msra.mxu0 0.0
        %3118 = vmatprep.subr.mxu0 0.0
        %3119 = vmatpush1.xpose.msra.mxu0 0.0
        %3120 = vmatprep.subr.mxu0 0.0
        %3121 = vmatpush1.xpose.msra.mxu0 0.0
        %3122 = vmatprep.subr.mxu0 0.0
        %3123 = vmatpush1.xpose.msra.mxu0 0.0
        %3124 = vmatprep.subr.mxu0 0.0
        %3125 = vmatpush1.xpose.msra.mxu0 0.0
        %3126 = vmatprep.subr.mxu0 0.0
        %3127 = vmatpush1.xpose.msra.mxu0 0.0
        %3128 = vmatprep.subr.mxu0 0.0
        %3129 = vmatpush1.xpose.msra.mxu0 0.0
        %3130 = vmatprep.subr.mxu0 0.0
        %3131 = vmatpush1.xpose.msra.mxu0 %v3100
        %3132 = vmatprep.subr.mxu0 0.0
        %3133 = vmatpush1.xpose.msra.mxu0 %v3098
        %3134 = vmatprep.subr.mxu0 0.0
        %3135 = vmatpush2.xpose.msra.mxu0 0.0
        %3136 = vmatprep.subr.mxu0 0.0
        %3137 = vmatpush2.xpose.msra.mxu0 0.0
        %3138 = vmatprep.subr.mxu0 0.0
        %3139 = vmatpush2.xpose.msra.mxu0 0.0
        %3140 = vmatprep.subr.mxu0 0.0
        %3141 = vmatpush2.xpose.msra.mxu0 0.0
        %3142 = vmatprep.subr.mxu0 0.0
        %3143 = vmatpush2.xpose.msra.mxu0 0.0
        %3144 = vmatprep.subr.mxu0 0.0
        %3145 = vmatpush2.xpose.msra.mxu0 0.0
        %3146 = vmatprep.subr.mxu0 0.0
        %3147 = vmatpush2.xpose.msra.mxu0 0.0
        %3148 = vmatprep.subr.mxu0 0.0
        %3149 = vmatpush2.xpose.msra.mxu0 0.0
        %3150 = vmatprep.subr.mxu0 0.0
        %3151 = vmatpush2.xpose.msra.mxu0 0.0
        %3152 = vmatprep.subr.mxu0 0.0
        %3153 = vmatpush2.xpose.msra.mxu0 0.0
        %3154 = vmatprep.subr.mxu0 0.0
        %3155 = vmatpush2.xpose.msra.mxu0 0.0
        %3156 = vmatprep.subr.mxu0 0.0
        %3157 = vmatpush2.xpose.msra.mxu0 0.0
        %3158 = vmatprep.subr.mxu0 0.0
        %3159 = vmatpush2.xpose.msra.mxu0 0.0
        %3160 = vmatprep.subr.mxu0 0.0
        %3161 = vmatpush2.xpose.msra.mxu0 0.0
        %3162 = vmatprep.subr.mxu0 0.0
        %3163 = vmatpush2.xpose.msra.mxu0 0.0
        %3164 = vmatprep.subr.mxu0 0.0
        %3165 = vmatpush2.xpose.msra.mxu0 0.0
        %3166 = vmatprep.mubr.f32.mxu0 0.0
        %3167 = vmatmul.mubr.f32.gmra.mxu0 %v3096
        %v3168 = vpop.f32.mrf.mxu0
        %v3169 = vadd.f32 0.0, %v3168
        %v3170 = vpop.f32.mrf.mxu0
        %3171 = vdwg.mxu0
        %v3172 = vmul.f32 %v3169, 0.35355338
        %v3173 = vadd.f32 %v3172, %v1499
        %v3174 = vsel %vm2647, %v3173, -inf
        %3175 = vmax.xlane.f32.xlu0 %v3174
        %v3176 = vpop.xlane.xlu0 %3175
        %v3177 = vsub.f32 %v3173, %v3176
        %v3178 = vmul.f32 %v3177, 1.442695
        %v3179 = vpow.pop %v3178
        %v3180 = vsel %vm2647, %v3179, 0.0
        %3181 = vadd.xlane.f32.xlu0 %v3180
        %v3182 = vpop.xlane.xlu0 %3181
        %v3183 = vrcp.pop %v3182
        %v3184 = vmul.f32 %v3179, %v3183
        %3185 = vrot.lane.b32.xlu0 %v2553, 72
        %v3186 = vpop.permute.xlu0 %3185
        %3187 = vrot.lane.b32.xlu0 %v2558, 72
        %v3188 = vpop.permute.xlu0 %3187
        %v3191 = vsel %vm2647, %v3184, 0
        %v3193 = vsel %vm2667, %v3188, 0
        %3195 = vmatprep.subr.mxu0 0.0
        %3196 = vmatpush1.msra.mxu0 0.0
        %3197 = vmatprep.subr.mxu0 0.0
        %3198 = vmatpush1.msra.mxu0 0.0
        %3199 = vmatprep.subr.mxu0 0.0
        %3200 = vmatpush1.msra.mxu0 0.0
        %3201 = vmatprep.subr.mxu0 0.0
        %3202 = vmatpush1.msra.mxu0 0.0
        %3203 = vmatprep.subr.mxu0 0.0
        %3204 = vmatpush1.msra.mxu0 0.0
        %3205 = vmatprep.subr.mxu0 0.0
        %3206 = vmatpush1.msra.mxu0 0.0
        %3207 = vmatprep.subr.mxu0 0.0
        %3208 = vmatpush1.msra.mxu0 0.0
        %3209 = vmatprep.subr.mxu0 0.0
        %3210 = vmatpush1.msra.mxu0 0.0
        %3211 = vmatprep.subr.mxu0 0.0
        %3212 = vmatpush1.msra.mxu0 0.0
        %3213 = vmatprep.subr.mxu0 0.0
        %3214 = vmatpush1.msra.mxu0 0.0
        %3215 = vmatprep.subr.mxu0 0.0
        %3216 = vmatpush1.msra.mxu0 0.0
        %3217 = vmatprep.subr.mxu0 0.0
        %3218 = vmatpush1.msra.mxu0 0.0
        %3219 = vmatprep.subr.mxu0 0.0
        %3220 = vmatpush1.msra.mxu0 0.0
        %3221 = vmatprep.subr.mxu0 0.0
        %3222 = vmatpush1.msra.mxu0 0.0
        %3223 = vmatprep.subr.mxu0 0.0
        %3224 = vmatpush1.msra.mxu0 %v3193
        %3225 = vmatprep.subr.mxu0 0.0
        %3226 = vmatpush1.msra.mxu0 %v3186
        %3227 = vmatprep.subr.mxu0 0.0
        %3228 = vmatpush2.msra.mxu0 0.0
        %3229 = vmatprep.subr.mxu0 0.0
        %3230 = vmatpush2.msra.mxu0 0.0
        %3231 = vmatprep.subr.mxu0 0.0
        %3232 = vmatpush2.msra.mxu0 0.0
        %3233 = vmatprep.subr.mxu0 0.0
        %3234 = vmatpush2.msra.mxu0 0.0
        %3235 = vmatprep.subr.mxu0 0.0
        %3236 = vmatpush2.msra.mxu0 0.0
        %3237 = vmatprep.subr.mxu0 0.0
        %3238 = vmatpush2.msra.mxu0 0.0
        %3239 = vmatprep.subr.mxu0 0.0
        %3240 = vmatpush2.msra.mxu0 0.0
        %3241 = vmatprep.subr.mxu0 0.0
        %3242 = vmatpush2.msra.mxu0 0.0
        %3243 = vmatprep.subr.mxu0 0.0
        %3244 = vmatpush2.msra.mxu0 0.0
        %3245 = vmatprep.subr.mxu0 0.0
        %3246 = vmatpush2.msra.mxu0 0.0
        %3247 = vmatprep.subr.mxu0 0.0
        %3248 = vmatpush2.msra.mxu0 0.0
        %3249 = vmatprep.subr.mxu0 0.0
        %3250 = vmatpush2.msra.mxu0 0.0
        %3251 = vmatprep.subr.mxu0 0.0
        %3252 = vmatpush2.msra.mxu0 0.0
        %3253 = vmatprep.subr.mxu0 0.0
        %3254 = vmatpush2.msra.mxu0 0.0
        %3255 = vmatprep.subr.mxu0 0.0
        %3256 = vmatpush2.msra.mxu0 0.0
        %3257 = vmatprep.subr.mxu0 0.0
        %3258 = vmatpush2.msra.mxu0 0.0
        %3259 = vmatprep.mubr.f32.mxu0 0.0
        %3260 = vmatmul.mubr.f32.gmra.mxu0 %v3191
        %v3261 = vpop.f32.mrf.mxu0
        %v3262 = vadd.f32 0.0, %v3261
        %v3263 = vpop.f32.mrf.mxu0
        %3264 = vdwg.mxu0
        %3266 = vrot.lane.b32.xlu0 %v2912, 8
        %v3267 = vpop.permute.xlu0 %3266
        %3270 = vrot.lane.b32.xlu0 %v3087, 16
        %v3271 = vpop.permute.xlu0 %3270
        %3274 = vrot.lane.b32.xlu0 %v3262, 24
        %v3275 = vpop.permute.xlu0 %3274
        %v3277 = vsel %vm1594, %v2737, %v3267
        %v3278 = vsel %vm2272, %v3277, %v3271
        %v3279 = vsel %vm1317, %v3278, %v3275
        %v3281 = vlaneseq
        %v3282 = vshrl.u32 %v3281, 7
        %v3283 = vsub.s32 0, %v3282
        %v3284 = vrot.slane %v2565, %v3283
        %v3287 = vsel %vm1512, %v3279, 0
        %3289 = vmatprep.subr.mxu0 0.0
        %3290 = vmatpush1.msra.mxu0 0.0
        %3291 = vmatprep.subr.mxu0 0.0
        %3292 = vmatpush1.msra.mxu0 0.0
        %3293 = vmatprep.subr.mxu0 0.0
        %3294 = vmatpush1.msra.mxu0 0.0
        %3295 = vmatprep.subr.mxu0 0.0
        %3296 = vmatpush1.msra.mxu0 0.0
        %3297 = vmatprep.subr.mxu0 0.0
        %3298 = vmatpush1.msra.mxu0 0.0
        %3299 = vmatprep.subr.mxu0 0.0
        %3300 = vmatpush1.msra.mxu0 0.0
        %3301 = vmatprep.subr.mxu0 0.0
        %3302 = vmatpush1.msra.mxu0 0.0
        %3303 = vmatprep.subr.mxu0 0.0
        %3304 = vmatpush1.msra.mxu0 0.0
        %3305 = vmatprep.subr.mxu0 0.0
        %3306 = vmatpush1.msra.mxu0 0.0
        %3307 = vmatprep.subr.mxu0 0.0
        %3308 = vmatpush1.msra.mxu0 0.0
        %3309 = vmatprep.subr.mxu0 0.0
        %3310 = vmatpush1.msra.mxu0 0.0
        %3311 = vmatprep.subr.mxu0 0.0
        %3312 = vmatpush1.msra.mxu0 0.0
        %3313 = vmatprep.subr.mxu0 0.0
        %3314 = vmatpush1.msra.mxu0 %v2564
        %3315 = vmatprep.subr.mxu0 0.0
        %3316 = vmatpush1.msra.mxu0 %v2563
        %3317 = vmatprep.subr.mxu0 0.0
        %3318 = vmatpush1.msra.mxu0 %v2562
        %3319 = vmatprep.subr.mxu0 0.0
        %3320 = vmatpush1.msra.mxu0 %v2561
        %3321 = vmatprep.subr.mxu0 0.0
        %3322 = vmatpush2.msra.mxu0 0.0
        %3323 = vmatprep.subr.mxu0 0.0
        %3324 = vmatpush2.msra.mxu0 0.0
        %3325 = vmatprep.subr.mxu0 0.0
        %3326 = vmatpush2.msra.mxu0 0.0
        %3327 = vmatprep.subr.mxu0 0.0
        %3328 = vmatpush2.msra.mxu0 0.0
        %3329 = vmatprep.subr.mxu0 0.0
        %3330 = vmatpush2.msra.mxu0 0.0
        %3331 = vmatprep.subr.mxu0 0.0
        %3332 = vmatpush2.msra.mxu0 0.0
        %3333 = vmatprep.subr.mxu0 0.0
        %3334 = vmatpush2.msra.mxu0 0.0
        %3335 = vmatprep.subr.mxu0 0.0
        %3336 = vmatpush2.msra.mxu0 0.0
        %3337 = vmatprep.subr.mxu0 0.0
        %3338 = vmatpush2.msra.mxu0 0.0
        %3339 = vmatprep.subr.mxu0 0.0
        %3340 = vmatpush2.msra.mxu0 0.0
        %3341 = vmatprep.subr.mxu0 0.0
        %3342 = vmatpush2.msra.mxu0 0.0
        %3343 = vmatprep.subr.mxu0 0.0
        %3344 = vmatpush2.msra.mxu0 0.0
        %3345 = vmatprep.subr.mxu0 0.0
        %3346 = vmatpush2.msra.mxu0 0.0
        %3347 = vmatprep.subr.mxu0 0.0
        %3348 = vmatpush2.msra.mxu0 0.0
        %3349 = vmatprep.subr.mxu0 0.0
        %3350 = vmatpush2.msra.mxu0 0.0
        %3351 = vmatprep.subr.mxu0 0.0
        %3352 = vmatpush2.msra.mxu0 0.0
        %3353 = vmatprep.mubr.f32.mxu0 0.0
        %3354 = vmatmul.mubr.f32.gmra.mxu0 %v3287
        %v3355 = vpop.f32.mrf.mxu0
        %v3356 = vadd.f32 %v3284, %v3355
        %v3357 = vpop.f32.mrf.mxu0
        %3358 = vdwg.mxu0
        %v3359 = vadd.f32 %v3356, %v2384
        %v3360 = vld [vmem:[#allocation25] sm:$0x1]
        %v3361 = vld [vmem:[#allocation26] sm:$0x1]
        %v3362 = vsel %vm1512, %v3359, 0.0
        %3363 = vadd.xlane.f32.xlu0 %v3362
        %v3364 = vpop.xlane.xlu0 %3363
        %v3365 = vmul.f32 %v3364, %v2360
        %v3366 = vsub.f32 %v3359, %v3365
        %v3367 = vmul.f32 %v3366, %v3366
        %v3368 = vsel %vm1512, %v3367, 0.0
        %3369 = vadd.xlane.f32.xlu0 %v3368
        %v3370 = vpop.xlane.xlu0 %3369
        %v3371 = vmul.f32 %v3370, %v2360
        %v3372 = vadd.f32 %v3371, 1e-05
        %v3373 = vrsqrt.pop %v3372
        %v3374 = vmul.f32 %v3366, %v3373
        %v3376 = vlaneseq
        %v3377 = vshrl.u32 %v3376, 7
        %v3378 = vsub.s32 0, %v3377
        %v3379 = vrot.slane %v3360, %v3378
        %v3381 = vmul.f32 %v3374, %v3379
        %v3383 = vlaneseq
        %v3384 = vshrl.u32 %v3383, 7
        %v3385 = vsub.s32 0, %v3384
        %v3386 = vrot.slane %v3361, %v3385
        %v3388 = vadd.f32 %v3381, %v3386
        %v3389 = vld [vmem:[#allocation17] sm:$0xff]
        %v3390 = vld [vmem:[#allocation17 + $0x8] sm:$0xff]
        %v3391 = vld [vmem:[#allocation17 + $0x10] sm:$0xff]
        %v3392 = vld [vmem:[#allocation17 + $0x18] sm:$0xff]
        %v3393 = vld [vmem:[#allocation19] sm:$0x1]
        %v3395 = vlaneseq
        %v3396 = vshrl.u32 %v3395, 7
        %v3397 = vsub.s32 0, %v3396
        %v3398 = vrot.slane %v3393, %v3397
        %v3401 = vsel %vm1512, %v3388, 0
        %3403 = vmatprep.subr.mxu0 0.0
        %3404 = vmatpush1.msra.mxu0 0.0
        %3405 = vmatprep.subr.mxu0 0.0
        %3406 = vmatpush1.msra.mxu0 0.0
        %3407 = vmatprep.subr.mxu0 0.0
        %3408 = vmatpush1.msra.mxu0 0.0
        %3409 = vmatprep.subr.mxu0 0.0
        %3410 = vmatpush1.msra.mxu0 0.0
        %3411 = vmatprep.subr.mxu0 0.0
        %3412 = vmatpush1.msra.mxu0 0.0
        %3413 = vmatprep.subr.mxu0 0.0
        %3414 = vmatpush1.msra.mxu0 0.0
        %3415 = vmatprep.subr.mxu0 0.0
        %3416 = vmatpush1.msra.mxu0 0.0
        %3417 = vmatprep.subr.mxu0 0.0
        %3418 = vmatpush1.msra.mxu0 0.0
        %3419 = vmatprep.subr.mxu0 0.0
        %3420 = vmatpush1.msra.mxu0 0.0
        %3421 = vmatprep.subr.mxu0 0.0
        %3422 = vmatpush1.msra.mxu0 0.0
        %3423 = vmatprep.subr.mxu0 0.0
        %3424 = vmatpush1.msra.mxu0 0.0
        %3425 = vmatprep.subr.mxu0 0.0
        %3426 = vmatpush1.msra.mxu0 0.0
        %3427 = vmatprep.subr.mxu0 0.0
        %3428 = vmatpush1.msra.mxu0 %v3392
        %3429 = vmatprep.subr.mxu0 0.0
        %3430 = vmatpush1.msra.mxu0 %v3391
        %3431 = vmatprep.subr.mxu0 0.0
        %3432 = vmatpush1.msra.mxu0 %v3390
        %3433 = vmatprep.subr.mxu0 0.0
        %3434 = vmatpush1.msra.mxu0 %v3389
        %3435 = vmatprep.subr.mxu0 0.0
        %3436 = vmatpush2.msra.mxu0 0.0
        %3437 = vmatprep.subr.mxu0 0.0
        %3438 = vmatpush2.msra.mxu0 0.0
        %3439 = vmatprep.subr.mxu0 0.0
        %3440 = vmatpush2.msra.mxu0 0.0
        %3441 = vmatprep.subr.mxu0 0.0
        %3442 = vmatpush2.msra.mxu0 0.0
        %3443 = vmatprep.subr.mxu0 0.0
        %3444 = vmatpush2.msra.mxu0 0.0
        %3445 = vmatprep.subr.mxu0 0.0
        %3446 = vmatpush2.msra.mxu0 0.0
        %3447 = vmatprep.subr.mxu0 0.0
        %3448 = vmatpush2.msra.mxu0 0.0
        %3449 = vmatprep.subr.mxu0 0.0
        %3450 = vmatpush2.msra.mxu0 0.0
        %3451 = vmatprep.subr.mxu0 0.0
        %3452 = vmatpush2.msra.mxu0 0.0
        %3453 = vmatprep.subr.mxu0 0.0
        %3454 = vmatpush2.msra.mxu0 0.0
        %3455 = vmatprep.subr.mxu0 0.0
        %3456 = vmatpush2.msra.mxu0 0.0
        %3457 = vmatprep.subr.mxu0 0.0
        %3458 = vmatpush2.msra.mxu0 0.0
        %3459 = vmatprep.subr.mxu0 0.0
        %3460 = vmatpush2.msra.mxu0 0.0
        %3461 = vmatprep.subr.mxu0 0.0
        %3462 = vmatpush2.msra.mxu0 0.0
        %3463 = vmatprep.subr.mxu0 0.0
        %3464 = vmatpush2.msra.mxu0 0.0
        %3465 = vmatprep.subr.mxu0 0.0
        %3466 = vmatpush2.msra.mxu0 0.0
        %3467 = vmatprep.mubr.f32.mxu0 0.0
        %3468 = vmatmul.mubr.f32.gmra.mxu0 %v3401
        %v3469 = vpop.f32.mrf.mxu0
        %v3470 = vadd.f32 %v3398, %v3469
        %v3471 = vpop.f32.mrf.mxu0
        %3472 = vdwg.mxu0
        %v3473 = vmax.f32 %v3470, 0.0
        %v3474 = vld [vmem:[%s43] sm:$0xff]
        %v3475 = vld [vmem:[%s43 + $0x8] sm:$0xff]
        %v3476 = vld [vmem:[%s43 + $0x10] sm:$0xff]
        %v3477 = vld [vmem:[%s43 + $0x18] sm:$0xff]
        %v3478 = vld [vmem:[%s43 + $0x20] sm:$0xff]
        %v3479 = vld [vmem:[%s43 + $0x28] sm:$0xff]
        %v3480 = vld [vmem:[%s43 + $0x30] sm:$0xff]
        %v3481 = vld [vmem:[%s43 + $0x38] sm:$0xff]
        %v3482 = vld [vmem:[#allocation20] sm:$0x1]
        %v3484 = vlaneseq
        %v3485 = vshrl.u32 %v3484, 7
        %v3486 = vsub.s32 0, %v3485
        %v3487 = vrot.slane %v3482, %v3486
        %vm3489 = vcmask 523264
        %v3491 = vsel %vm3489, %v3473, 0
        %3493 = vmatprep.subr.mxu0 0.0
        %3494 = vmatpush1.msra.mxu0 0.0
        %3495 = vmatprep.subr.mxu0 0.0
        %3496 = vmatpush1.msra.mxu0 0.0
        %3497 = vmatprep.subr.mxu0 0.0
        %3498 = vmatpush1.msra.mxu0 0.0
        %3499 = vmatprep.subr.mxu0 0.0
        %3500 = vmatpush1.msra.mxu0 0.0
        %3501 = vmatprep.subr.mxu0 0.0
        %3502 = vmatpush1.msra.mxu0 0.0
        %3503 = vmatprep.subr.mxu0 0.0
        %3504 = vmatpush1.msra.mxu0 0.0
        %3505 = vmatprep.subr.mxu0 0.0
        %3506 = vmatpush1.msra.mxu0 0.0
        %3507 = vmatprep.subr.mxu0 0.0
        %3508 = vmatpush1.msra.mxu0 0.0
        %3509 = vmatprep.subr.mxu0 0.0
        %3510 = vmatpush1.msra.mxu0 %v3481
        %3511 = vmatprep.subr.mxu0 0.0
        %3512 = vmatpush1.msra.mxu0 %v3480
        %3513 = vmatprep.subr.mxu0 0.0
        %3514 = vmatpush1.msra.mxu0 %v3479
        %3515 = vmatprep.subr.mxu0 0.0
        %3516 = vmatpush1.msra.mxu0 %v3478
        %3517 = vmatprep.subr.mxu0 0.0
        %3518 = vmatpush1.msra.mxu0 %v3477
        %3519 = vmatprep.subr.mxu0 0.0
        %3520 = vmatpush1.msra.mxu0 %v3476
        %3521 = vmatprep.subr.mxu0 0.0
        %3522 = vmatpush1.msra.mxu0 %v3475
        %3523 = vmatprep.subr.mxu0 0.0
        %3524 = vmatpush1.msra.mxu0 %v3474
        %3525 = vmatprep.subr.mxu0 0.0
        %3526 = vmatpush2.msra.mxu0 0.0
        %3527 = vmatprep.subr.mxu0 0.0
        %3528 = vmatpush2.msra.mxu0 0.0
        %3529 = vmatprep.subr.mxu0 0.0
        %3530 = vmatpush2.msra.mxu0 0.0
        %3531 = vmatprep.subr.mxu0 0.0
        %3532 = vmatpush2.msra.mxu0 0.0
        %3533 = vmatprep.subr.mxu0 0.0
        %3534 = vmatpush2.msra.mxu0 0.0
        %3535 = vmatprep.subr.mxu0 0.0
        %3536 = vmatpush2.msra.mxu0 0.0
        %3537 = vmatprep.subr.mxu0 0.0
        %3538 = vmatpush2.msra.mxu0 0.0
        %3539 = vmatprep.subr.mxu0 0.0
        %3540 = vmatpush2.msra.mxu0 0.0
        %3541 = vmatprep.subr.mxu0 0.0
        %3542 = vmatpush2.msra.mxu0 0.0
        %3543 = vmatprep.subr.mxu0 0.0
        %3544 = vmatpush2.msra.mxu0 0.0
        %3545 = vmatprep.subr.mxu0 0.0
        %3546 = vmatpush2.msra.mxu0 0.0
        %3547 = vmatprep.subr.mxu0 0.0
        %3548 = vmatpush2.msra.mxu0 0.0
        %3549 = vmatprep.subr.mxu0 0.0
        %3550 = vmatpush2.msra.mxu0 0.0
        %3551 = vmatprep.subr.mxu0 0.0
        %3552 = vmatpush2.msra.mxu0 0.0
        %3553 = vmatprep.subr.mxu0 0.0
        %3554 = vmatpush2.msra.mxu0 0.0
        %3555 = vmatprep.subr.mxu0 0.0
        %3556 = vmatpush2.msra.mxu0 0.0
        %3557 = vmatprep.mubr.f32.mxu0 0.0
        %3558 = vmatmul.mubr.f32.gmra.mxu0 %v3491
        %v3559 = vpop.f32.mrf.mxu0
        %v3560 = vadd.f32 %v3487, %v3559
        %v3561 = vpop.f32.mrf.mxu0
        %3562 = vdwg.mxu0
        %v3563 = vadd.f32 %v3560, %v3388
        %v3564 = vld [vmem:[#allocation28] sm:$0x1]
        %v3565 = vld [vmem:[#allocation29] sm:$0x1]
        %v3566 = vsel %vm1512, %v3563, 0.0
        %3567 = vadd.xlane.f32.xlu0 %v3566
        %v3568 = vpop.xlane.xlu0 %3567
        %v3569 = vmul.f32 %v3568, %v2360
        %v3570 = vsub.f32 %v3563, %v3569
        %v3571 = vmul.f32 %v3570, %v3570
        %v3572 = vsel %vm1512, %v3571, 0.0
        %3573 = vadd.xlane.f32.xlu0 %v3572
        %v3574 = vpop.xlane.xlu0 %3573
        %v3575 = vmul.f32 %v3574, %v2360
        %v3576 = vadd.f32 %v3575, 1e-05
        %v3577 = vrsqrt.pop %v3576
        %v3578 = vmul.f32 %v3570, %v3577
        %v3580 = vlaneseq
        %v3581 = vshrl.u32 %v3580, 7
        %v3582 = vsub.s32 0, %v3581
        %v3583 = vrot.slane %v3564, %v3582
        %v3585 = vmul.f32 %v3578, %v3583
        %v3587 = vlaneseq
        %v3588 = vshrl.u32 %v3587, 7
        %v3589 = vsub.s32 0, %v3588
        %v3590 = vrot.slane %v3565, %v3589
        %v3592 = vadd.f32 %v3585, %v3590
        %s3593 = scalar_lea.vmem %s19, 32
        %v3594 = vld [vmem:[%s3593] sm:$0xff]
        %v3595 = vld [vmem:[%s3593 + $0x8] sm:$0xff]
        %v3596 = vld [vmem:[%s3593 + $0x10] sm:$0xff]
        %v3597 = vld [vmem:[%s3593 + $0x18] sm:$0xff]
        %s3598 = scalar_lea.vmem [#allocation8], 1
        %v3599 = vld [vmem:[%s3598] sm:$0x1]
        %v3601 = vlaneseq
        %v3602 = vshrl.u32 %v3601, 7
        %v3603 = vsub.s32 0, %v3602
        %v3604 = vrot.slane %v3599, %v3603
        %v3607 = vsel %vm1512, %v3592, 0
        %3609 = vmatprep.subr.mxu0 0.0
        %3610 = vmatpush1.msra.mxu0 0.0
        %3611 = vmatprep.subr.mxu0 0.0
        %3612 = vmatpush1.msra.mxu0 0.0
        %3613 = vmatprep.subr.mxu0 0.0
        %3614 = vmatpush1.msra.mxu0 0.0
        %3615 = vmatprep.subr.mxu0 0.0
        %3616 = vmatpush1.msra.mxu0 0.0
        %3617 = vmatprep.subr.mxu0 0.0
        %3618 = vmatpush1.msra.mxu0 0.0
        %3619 = vmatprep.subr.mxu0 0.0
        %3620 = vmatpush1.msra.mxu0 0.0
        %3621 = vmatprep.subr.mxu0 0.0
        %3622 = vmatpush1.msra.mxu0 0.0
        %3623 = vmatprep.subr.mxu0 0.0
        %3624 = vmatpush1.msra.mxu0 0.0
        %3625 = vmatprep.subr.mxu0 0.0
        %3626 = vmatpush1.msra.mxu0 0.0
        %3627 = vmatprep.subr.mxu0 0.0
        %3628 = vmatpush1.msra.mxu0 0.0
        %3629 = vmatprep.subr.mxu0 0.0
        %3630 = vmatpush1.msra.mxu0 0.0
        %3631 = vmatprep.subr.mxu0 0.0
        %3632 = vmatpush1.msra.mxu0 0.0
        %3633 = vmatprep.subr.mxu0 0.0
        %3634 = vmatpush1.msra.mxu0 %v3597
        %3635 = vmatprep.subr.mxu0 0.0
        %3636 = vmatpush1.msra.mxu0 %v3596
        %3637 = vmatprep.subr.mxu0 0.0
        %3638 = vmatpush1.msra.mxu0 %v3595
        %3639 = vmatprep.subr.mxu0 0.0
        %3640 = vmatpush1.msra.mxu0 %v3594
        %3641 = vmatprep.subr.mxu0 0.0
        %3642 = vmatpush2.msra.mxu0 0.0
        %3643 = vmatprep.subr.mxu0 0.0
        %3644 = vmatpush2.msra.mxu0 0.0
        %3645 = vmatprep.subr.mxu0 0.0
        %3646 = vmatpush2.msra.mxu0 0.0
        %3647 = vmatprep.subr.mxu0 0.0
        %3648 = vmatpush2.msra.mxu0 0.0
        %3649 = vmatprep.subr.mxu0 0.0
        %3650 = vmatpush2.msra.mxu0 0.0
        %3651 = vmatprep.subr.mxu0 0.0
        %3652 = vmatpush2.msra.mxu0 0.0
        %3653 = vmatprep.subr.mxu0 0.0
        %3654 = vmatpush2.msra.mxu0 0.0
        %3655 = vmatprep.subr.mxu0 0.0
        %3656 = vmatpush2.msra.mxu0 0.0
        %3657 = vmatprep.subr.mxu0 0.0
        %3658 = vmatpush2.msra.mxu0 0.0
        %3659 = vmatprep.subr.mxu0 0.0
        %3660 = vmatpush2.msra.mxu0 0.0
        %3661 = vmatprep.subr.mxu0 0.0
        %3662 = vmatpush2.msra.mxu0 0.0
        %3663 = vmatprep.subr.mxu0 0.0
        %3664 = vmatpush2.msra.mxu0 0.0
        %3665 = vmatprep.subr.mxu0 0.0
        %3666 = vmatpush2.msra.mxu0 0.0
        %3667 = vmatprep.subr.mxu0 0.0
        %3668 = vmatpush2.msra.mxu0 0.0
        %3669 = vmatprep.subr.mxu0 0.0
        %3670 = vmatpush2.msra.mxu0 0.0
        %3671 = vmatprep.subr.mxu0 0.0
        %3672 = vmatpush2.msra.mxu0 0.0
        %3673 = vmatprep.mubr.f32.mxu0 0.0
        %3674 = vmatmul.mubr.f32.gmra.mxu0 %v3607
        %v3675 = vpop.f32.mrf.mxu0
        %v3676 = vadd.f32 %v3604, %v3675
        %v3677 = vpop.f32.mrf.mxu0
        %3678 = vdwg.mxu0
        %s3679 = scalar_lea.vmem %s23, 32
        %v3680 = vld [vmem:[%s3679] sm:$0xff]
        %v3681 = vld [vmem:[%s3679 + $0x8] sm:$0xff]
        %v3682 = vld [vmem:[%s3679 + $0x10] sm:$0xff]
        %v3683 = vld [vmem:[%s3679 + $0x18] sm:$0xff]
        %s3684 = scalar_lea.vmem [#allocation10], 1
        %v3685 = vld [vmem:[%s3684] sm:$0x1]
        %3687 = vrot.lane.b32.xlu0 %v3676, 96
        %v3688 = vpop.permute.xlu0 %3687
        %v3689 = vsel %vm1594, %v3676, 0
        %v3691 = vsel %vm1594, %v3688, 0
        %3693 = vmatprep.subr.mxu0 0.0
        %3694 = vmatpush1.xpose.msra.mxu0 0.0
        %3695 = vmatprep.subr.mxu0 0.0
        %3696 = vmatpush1.xpose.msra.mxu0 0.0
        %3697 = vmatprep.subr.mxu0 0.0
        %3698 = vmatpush1.xpose.msra.mxu0 0.0
        %3699 = vmatprep.subr.mxu0 0.0
        %3700 = vmatpush1.xpose.msra.mxu0 0.0
        %3701 = vmatprep.subr.mxu0 0.0
        %3702 = vmatpush1.xpose.msra.mxu0 0.0
        %3703 = vmatprep.subr.mxu0 0.0
        %3704 = vmatpush1.xpose.msra.mxu0 0.0
        %3705 = vmatprep.subr.mxu0 0.0
        %3706 = vmatpush1.xpose.msra.mxu0 0.0
        %3707 = vmatprep.subr.mxu0 0.0
        %3708 = vmatpush1.xpose.msra.mxu0 0.0
        %3709 = vmatprep.subr.mxu0 0.0
        %3710 = vmatpush1.xpose.msra.mxu0 0.0
        %3711 = vmatprep.subr.mxu0 0.0
        %3712 = vmatpush1.xpose.msra.mxu0 0.0
        %3713 = vmatprep.subr.mxu0 0.0
        %3714 = vmatpush1.xpose.msra.mxu0 0.0
        %3715 = vmatprep.subr.mxu0 0.0
        %3716 = vmatpush1.xpose.msra.mxu0 0.0
        %3717 = vmatprep.subr.mxu0 0.0
        %3718 = vmatpush1.xpose.msra.mxu0 0.0
        %3719 = vmatprep.subr.mxu0 0.0
        %3720 = vmatpush1.xpose.msra.mxu0 0.0
        %3721 = vmatprep.subr.mxu0 0.0
        %3722 = vmatpush1.xpose.msra.mxu0 0.0
        %3723 = vmatprep.subr.mxu0 0.0
        %3724 = vmatpush1.xpose.msra.mxu0 %v3691
        %3725 = vmatprep.subr.mxu0 0.0
        %3726 = vmatpush2.xpose.msra.mxu0 0.0
        %3727 = vmatprep.subr.mxu0 0.0
        %3728 = vmatpush2.xpose.msra.mxu0 0.0
        %3729 = vmatprep.subr.mxu0 0.0
        %3730 = vmatpush2.xpose.msra.mxu0 0.0
        %3731 = vmatprep.subr.mxu0 0.0
        %3732 = vmatpush2.xpose.msra.mxu0 0.0
        %3733 = vmatprep.subr.mxu0 0.0
        %3734 = vmatpush2.xpose.msra.mxu0 0.0
        %3735 = vmatprep.subr.mxu0 0.0
        %3736 = vmatpush2.xpose.msra.mxu0 0.0
        %3737 = vmatprep.subr.mxu0 0.0
        %3738 = vmatpush2.xpose.msra.mxu0 0.0
        %3739 = vmatprep.subr.mxu0 0.0
        %3740 = vmatpush2.xpose.msra.mxu0 0.0
        %3741 = vmatprep.subr.mxu0 0.0
        %3742 = vmatpush2.xpose.msra.mxu0 0.0
        %3743 = vmatprep.subr.mxu0 0.0
        %3744 = vmatpush2.xpose.msra.mxu0 0.0
        %3745 = vmatprep.subr.mxu0 0.0
        %3746 = vmatpush2.xpose.msra.mxu0 0.0
        %3747 = vmatprep.subr.mxu0 0.0
        %3748 = vmatpush2.xpose.msra.mxu0 0.0
        %3749 = vmatprep.subr.mxu0 0.0
        %3750 = vmatpush2.xpose.msra.mxu0 0.0
        %3751 = vmatprep.subr.mxu0 0.0
        %3752 = vmatpush2.xpose.msra.mxu0 0.0
        %3753 = vmatprep.subr.mxu0 0.0
        %3754 = vmatpush2.xpose.msra.mxu0 0.0
        %3755 = vmatprep.subr.mxu0 0.0
        %3756 = vmatpush2.xpose.msra.mxu0 0.0
        %3757 = vmatprep.mubr.f32.mxu0 0.0
        %3758 = vmatmul.mubr.f32.gmra.mxu0 %v3689
        %v3759 = vpop.f32.mrf.mxu0
        %v3760 = vadd.f32 0.0, %v3759
        %v3761 = vpop.f32.mrf.mxu0
        %3762 = vdwg.mxu0
        %v3763 = vmul.f32 %v3760, 0.35355338
        %v3764 = vadd.f32 %v3763, %v1492
        %v3765 = vsel %vm1594, %v3764, -inf
        %3766 = vmax.xlane.f32.xlu0 %v3765
        %v3767 = vpop.xlane.xlu0 %3766
        %v3768 = vsub.f32 %v3764, %v3767
        %v3769 = vmul.f32 %v3768, 1.442695
        %v3770 = vpow.pop %v3769
        %v3771 = vsel %vm1594, %v3770, 0.0
        %3772 = vadd.xlane.f32.xlu0 %v3771
        %v3773 = vpop.xlane.xlu0 %3772
        %v3774 = vrcp.pop %v3773
        %v3775 = vmul.f32 %v3770, %v3774
        %3776 = vrot.lane.b32.xlu0 %v3676, 64
        %v3777 = vpop.permute.xlu0 %3776
        %v3780 = vsel %vm1594, %v3775, 0
        %3782 = vmatprep.subr.mxu0 0.0
        %3783 = vmatpush1.msra.mxu0 0.0
        %3784 = vmatprep.subr.mxu0 0.0
        %3785 = vmatpush1.msra.mxu0 0.0
        %3786 = vmatprep.subr.mxu0 0.0
        %3787 = vmatpush1.msra.mxu0 0.0
        %3788 = vmatprep.subr.mxu0 0.0
        %3789 = vmatpush1.msra.mxu0 0.0
        %3790 = vmatprep.subr.mxu0 0.0
        %3791 = vmatpush1.msra.mxu0 0.0
        %3792 = vmatprep.subr.mxu0 0.0
        %3793 = vmatpush1.msra.mxu0 0.0
        %3794 = vmatprep.subr.mxu0 0.0
        %3795 = vmatpush1.msra.mxu0 0.0
        %3796 = vmatprep.subr.mxu0 0.0
        %3797 = vmatpush1.msra.mxu0 0.0
        %3798 = vmatprep.subr.mxu0 0.0
        %3799 = vmatpush1.msra.mxu0 0.0
        %3800 = vmatprep.subr.mxu0 0.0
        %3801 = vmatpush1.msra.mxu0 0.0
        %3802 = vmatprep.subr.mxu0 0.0
        %3803 = vmatpush1.msra.mxu0 0.0
        %3804 = vmatprep.subr.mxu0 0.0
        %3805 = vmatpush1.msra.mxu0 0.0
        %3806 = vmatprep.subr.mxu0 0.0
        %3807 = vmatpush1.msra.mxu0 0.0
        %3808 = vmatprep.subr.mxu0 0.0
        %3809 = vmatpush1.msra.mxu0 0.0
        %3810 = vmatprep.subr.mxu0 0.0
        %3811 = vmatpush1.msra.mxu0 0.0
        %3812 = vmatprep.subr.mxu0 0.0
        %3813 = vmatpush1.msra.mxu0 %v3777
        %3814 = vmatprep.subr.mxu0 0.0
        %3815 = vmatpush2.msra.mxu0 0.0
        %3816 = vmatprep.subr.mxu0 0.0
        %3817 = vmatpush2.msra.mxu0 0.0
        %3818 = vmatprep.subr.mxu0 0.0
        %3819 = vmatpush2.msra.mxu0 0.0
        %3820 = vmatprep.subr.mxu0 0.0
        %3821 = vmatpush2.msra.mxu0 0.0
        %3822 = vmatprep.subr.mxu0 0.0
        %3823 = vmatpush2.msra.mxu0 0.0
        %3824 = vmatprep.subr.mxu0 0.0
        %3825 = vmatpush2.msra.mxu0 0.0
        %3826 = vmatprep.subr.mxu0 0.0
        %3827 = vmatpush2.msra.mxu0 0.0
        %3828 = vmatprep.subr.mxu0 0.0
        %3829 = vmatpush2.msra.mxu0 0.0
        %3830 = vmatprep.subr.mxu0 0.0
        %3831 = vmatpush2.msra.mxu0 0.0
        %3832 = vmatprep.subr.mxu0 0.0
        %3833 = vmatpush2.msra.mxu0 0.0
        %3834 = vmatprep.subr.mxu0 0.0
        %3835 = vmatpush2.msra.mxu0 0.0
        %3836 = vmatprep.subr.mxu0 0.0
        %3837 = vmatpush2.msra.mxu0 0.0
        %3838 = vmatprep.subr.mxu0 0.0
        %3839 = vmatpush2.msra.mxu0 0.0
        %3840 = vmatprep.subr.mxu0 0.0
        %3841 = vmatpush2.msra.mxu0 0.0
        %3842 = vmatprep.subr.mxu0 0.0
        %3843 = vmatpush2.msra.mxu0 0.0
        %3844 = vmatprep.subr.mxu0 0.0
        %3845 = vmatpush2.msra.mxu0 0.0
        %3846 = vmatprep.mubr.f32.mxu0 0.0
        %3847 = vmatmul.mubr.f32.gmra.mxu0 %v3780
        %v3848 = vpop.f32.mrf.mxu0
        %v3849 = vadd.f32 0.0, %v3848
        %v3850 = vpop.f32.mrf.mxu0
        %3851 = vdwg.mxu0
        %3852 = vrot.lane.b32.xlu0 %v3676, 120
        %v3853 = vpop.permute.xlu0 %3852
        %3854 = vrot.lane.b32.xlu0 %v3676, 88
        %v3855 = vpop.permute.xlu0 %3854
        %v3856 = vsel %vm1594, %v3853, 0
        %v3858 = vsel %vm1594, %v3855, 0
        %3860 = vmatprep.subr.mxu0 0.0
        %3861 = vmatpush1.xpose.msra.mxu0 0.0
        %3862 = vmatprep.subr.mxu0 0.0
        %3863 = vmatpush1.xpose.msra.mxu0 0.0
        %3864 = vmatprep.subr.mxu0 0.0
        %3865 = vmatpush1.xpose.msra.mxu0 0.0
        %3866 = vmatprep.subr.mxu0 0.0
        %3867 = vmatpush1.xpose.msra.mxu0 0.0
        %3868 = vmatprep.subr.mxu0 0.0
        %3869 = vmatpush1.xpose.msra.mxu0 0.0
        %3870 = vmatprep.subr.mxu0 0.0
        %3871 = vmatpush1.xpose.msra.mxu0 0.0
        %3872 = vmatprep.subr.mxu0 0.0
        %3873 = vmatpush1.xpose.msra.mxu0 0.0
        %3874 = vmatprep.subr.mxu0 0.0
        %3875 = vmatpush1.xpose.msra.mxu0 0.0
        %3876 = vmatprep.subr.mxu0 0.0
        %3877 = vmatpush1.xpose.msra.mxu0 0.0
        %3878 = vmatprep.subr.mxu0 0.0
        %3879 = vmatpush1.xpose.msra.mxu0 0.0
        %3880 = vmatprep.subr.mxu0 0.0
        %3881 = vmatpush1.xpose.msra.mxu0 0.0
        %3882 = vmatprep.subr.mxu0 0.0
        %3883 = vmatpush1.xpose.msra.mxu0 0.0
        %3884 = vmatprep.subr.mxu0 0.0
        %3885 = vmatpush1.xpose.msra.mxu0 0.0
        %3886 = vmatprep.subr.mxu0 0.0
        %3887 = vmatpush1.xpose.msra.mxu0 0.0
        %3888 = vmatprep.subr.mxu0 0.0
        %3889 = vmatpush1.xpose.msra.mxu0 0.0
        %3890 = vmatprep.subr.mxu0 0.0
        %3891 = vmatpush1.xpose.msra.mxu0 %v3858
        %3892 = vmatprep.subr.mxu0 0.0
        %3893 = vmatpush2.xpose.msra.mxu0 0.0
        %3894 = vmatprep.subr.mxu0 0.0
        %3895 = vmatpush2.xpose.msra.mxu0 0.0
        %3896 = vmatprep.subr.mxu0 0.0
        %3897 = vmatpush2.xpose.msra.mxu0 0.0
        %3898 = vmatprep.subr.mxu0 0.0
        %3899 = vmatpush2.xpose.msra.mxu0 0.0
        %3900 = vmatprep.subr.mxu0 0.0
        %3901 = vmatpush2.xpose.msra.mxu0 0.0
        %3902 = vmatprep.subr.mxu0 0.0
        %3903 = vmatpush2.xpose.msra.mxu0 0.0
        %3904 = vmatprep.subr.mxu0 0.0
        %3905 = vmatpush2.xpose.msra.mxu0 0.0
        %3906 = vmatprep.subr.mxu0 0.0
        %3907 = vmatpush2.xpose.msra.mxu0 0.0
        %3908 = vmatprep.subr.mxu0 0.0
        %3909 = vmatpush2.xpose.msra.mxu0 0.0
        %3910 = vmatprep.subr.mxu0 0.0
        %3911 = vmatpush2.xpose.msra.mxu0 0.0
        %3912 = vmatprep.subr.mxu0 0.0
        %3913 = vmatpush2.xpose.msra.mxu0 0.0
        %3914 = vmatprep.subr.mxu0 0.0
        %3915 = vmatpush2.xpose.msra.mxu0 0.0
        %3916 = vmatprep.subr.mxu0 0.0
        %3917 = vmatpush2.xpose.msra.mxu0 0.0
        %3918 = vmatprep.subr.mxu0 0.0
        %3919 = vmatpush2.xpose.msra.mxu0 0.0
        %3920 = vmatprep.subr.mxu0 0.0
        %3921 = vmatpush2.xpose.msra.mxu0 0.0
        %3922 = vmatprep.subr.mxu0 0.0
        %3923 = vmatpush2.xpose.msra.mxu0 0.0
        %3924 = vmatprep.mubr.f32.mxu0 0.0
        %3925 = vmatmul.mubr.f32.gmra.mxu0 %v3856
        %v3926 = vpop.f32.mrf.mxu0
        %v3927 = vadd.f32 0.0, %v3926
        %v3928 = vpop.f32.mrf.mxu0
        %3929 = vdwg.mxu0
        %v3930 = vmul.f32 %v3927, 0.35355338
        %v3931 = vadd.f32 %v3930, %v1492
        %v3932 = vsel %vm1594, %v3931, -inf
        %3933 = vmax.xlane.f32.xlu0 %v3932
        %v3934 = vpop.xlane.xlu0 %3933
        %v3935 = vsub.f32 %v3931, %v3934
        %v3936 = vmul.f32 %v3935, 1.442695
        %v3937 = vpow.pop %v3936
        %v3938 = vsel %vm1594, %v3937, 0.0
        %3939 = vadd.xlane.f32.xlu0 %v3938
        %v3940 = vpop.xlane.xlu0 %3939
        %v3941 = vrcp.pop %v3940
        %v3942 = vmul.f32 %v3937, %v3941
        %3943 = vrot.lane.b32.xlu0 %v3676, 56
        %v3944 = vpop.permute.xlu0 %3943
        %v3947 = vsel %vm1594, %v3942, 0
        %3949 = vmatprep.subr.mxu0 0.0
        %3950 = vmatpush1.msra.mxu0 0.0
        %3951 = vmatprep.subr.mxu0 0.0
        %3952 = vmatpush1.msra.mxu0 0.0
        %3953 = vmatprep.subr.mxu0 0.0
        %3954 = vmatpush1.msra.mxu0 0.0
        %3955 = vmatprep.subr.mxu0 0.0
        %3956 = vmatpush1.msra.mxu0 0.0
        %3957 = vmatprep.subr.mxu0 0.0
        %3958 = vmatpush1.msra.mxu0 0.0
        %3959 = vmatprep.subr.mxu0 0.0
        %3960 = vmatpush1.msra.mxu0 0.0
        %3961 = vmatprep.subr.mxu0 0.0
        %3962 = vmatpush1.msra.mxu0 0.0
        %3963 = vmatprep.subr.mxu0 0.0
        %3964 = vmatpush1.msra.mxu0 0.0
        %3965 = vmatprep.subr.mxu0 0.0
        %3966 = vmatpush1.msra.mxu0 0.0
        %3967 = vmatprep.subr.mxu0 0.0
        %3968 = vmatpush1.msra.mxu0 0.0
        %3969 = vmatprep.subr.mxu0 0.0
        %3970 = vmatpush1.msra.mxu0 0.0
        %3971 = vmatprep.subr.mxu0 0.0
        %3972 = vmatpush1.msra.mxu0 0.0
        %3973 = vmatprep.subr.mxu0 0.0
        %3974 = vmatpush1.msra.mxu0 0.0
        %3975 = vmatprep.subr.mxu0 0.0
        %3976 = vmatpush1.msra.mxu0 0.0
        %3977 = vmatprep.subr.mxu0 0.0
        %3978 = vmatpush1.msra.mxu0 0.0
        %3979 = vmatprep.subr.mxu0 0.0
        %3980 = vmatpush1.msra.mxu0 %v3944
        %3981 = vmatprep.subr.mxu0 0.0
        %3982 = vmatpush2.msra.mxu0 0.0
        %3983 = vmatprep.subr.mxu0 0.0
        %3984 = vmatpush2.msra.mxu0 0.0
        %3985 = vmatprep.subr.mxu0 0.0
        %3986 = vmatpush2.msra.mxu0 0.0
        %3987 = vmatprep.subr.mxu0 0.0
        %3988 = vmatpush2.msra.mxu0 0.0
        %3989 = vmatprep.subr.mxu0 0.0
        %3990 = vmatpush2.msra.mxu0 0.0
        %3991 = vmatprep.subr.mxu0 0.0
        %3992 = vmatpush2.msra.mxu0 0.0
        %3993 = vmatprep.subr.mxu0 0.0
        %3994 = vmatpush2.msra.mxu0 0.0
        %3995 = vmatprep.subr.mxu0 0.0
        %3996 = vmatpush2.msra.mxu0 0.0
        %3997 = vmatprep.subr.mxu0 0.0
        %3998 = vmatpush2.msra.mxu0 0.0
        %3999 = vmatprep.subr.mxu0 0.0
        %4000 = vmatpush2.msra.mxu0 0.0
        %4001 = vmatprep.subr.mxu0 0.0
        %4002 = vmatpush2.msra.mxu0 0.0
        %4003 = vmatprep.subr.mxu0 0.0
        %4004 = vmatpush2.msra.mxu0 0.0
        %4005 = vmatprep.subr.mxu0 0.0
        %4006 = vmatpush2.msra.mxu0 0.0
        %4007 = vmatprep.subr.mxu0 0.0
        %4008 = vmatpush2.msra.mxu0 0.0
        %4009 = vmatprep.subr.mxu0 0.0
        %4010 = vmatpush2.msra.mxu0 0.0
        %4011 = vmatprep.subr.mxu0 0.0
        %4012 = vmatpush2.msra.mxu0 0.0
        %4013 = vmatprep.mubr.f32.mxu0 0.0
        %4014 = vmatmul.mubr.f32.gmra.mxu0 %v3947
        %v4015 = vpop.f32.mrf.mxu0
        %v4016 = vadd.f32 0.0, %v4015
        %v4017 = vpop.f32.mrf.mxu0
        %4018 = vdwg.mxu0
        %4019 = vrot.lane.b32.xlu0 %v3676, 112
        %v4020 = vpop.permute.xlu0 %4019
        %4021 = vrot.lane.b32.xlu0 %v3676, 80
        %v4022 = vpop.permute.xlu0 %4021
        %v4023 = vsel %vm1594, %v4020, 0
        %v4025 = vsel %vm1594, %v4022, 0
        %4027 = vmatprep.subr.mxu0 0.0
        %4028 = vmatpush1.xpose.msra.mxu0 0.0
        %4029 = vmatprep.subr.mxu0 0.0
        %4030 = vmatpush1.xpose.msra.mxu0 0.0
        %4031 = vmatprep.subr.mxu0 0.0
        %4032 = vmatpush1.xpose.msra.mxu0 0.0
        %4033 = vmatprep.subr.mxu0 0.0
        %4034 = vmatpush1.xpose.msra.mxu0 0.0
        %4035 = vmatprep.subr.mxu0 0.0
        %4036 = vmatpush1.xpose.msra.mxu0 0.0
        %4037 = vmatprep.subr.mxu0 0.0
        %4038 = vmatpush1.xpose.msra.mxu0 0.0
        %4039 = vmatprep.subr.mxu0 0.0
        %4040 = vmatpush1.xpose.msra.mxu0 0.0
        %4041 = vmatprep.subr.mxu0 0.0
        %4042 = vmatpush1.xpose.msra.mxu0 0.0
        %4043 = vmatprep.subr.mxu0 0.0
        %4044 = vmatpush1.xpose.msra.mxu0 0.0
        %4045 = vmatprep.subr.mxu0 0.0
        %4046 = vmatpush1.xpose.msra.mxu0 0.0
        %4047 = vmatprep.subr.mxu0 0.0
        %4048 = vmatpush1.xpose.msra.mxu0 0.0
        %4049 = vmatprep.subr.mxu0 0.0
        %4050 = vmatpush1.xpose.msra.mxu0 0.0
        %4051 = vmatprep.subr.mxu0 0.0
        %4052 = vmatpush1.xpose.msra.mxu0 0.0
        %4053 = vmatprep.subr.mxu0 0.0
        %4054 = vmatpush1.xpose.msra.mxu0 0.0
        %4055 = vmatprep.subr.mxu0 0.0
        %4056 = vmatpush1.xpose.msra.mxu0 0.0
        %4057 = vmatprep.subr.mxu0 0.0
        %4058 = vmatpush1.xpose.msra.mxu0 %v4025
        %4059 = vmatprep.subr.mxu0 0.0
        %4060 = vmatpush2.xpose.msra.mxu0 0.0
        %4061 = vmatprep.subr.mxu0 0.0
        %4062 = vmatpush2.xpose.msra.mxu0 0.0
        %4063 = vmatprep.subr.mxu0 0.0
        %4064 = vmatpush2.xpose.msra.mxu0 0.0
        %4065 = vmatprep.subr.mxu0 0.0
        %4066 = vmatpush2.xpose.msra.mxu0 0.0
        %4067 = vmatprep.subr.mxu0 0.0
        %4068 = vmatpush2.xpose.msra.mxu0 0.0
        %4069 = vmatprep.subr.mxu0 0.0
        %4070 = vmatpush2.xpose.msra.mxu0 0.0
        %4071 = vmatprep.subr.mxu0 0.0
        %4072 = vmatpush2.xpose.msra.mxu0 0.0
        %4073 = vmatprep.subr.mxu0 0.0
        %4074 = vmatpush2.xpose.msra.mxu0 0.0
        %4075 = vmatprep.subr.mxu0 0.0
        %4076 = vmatpush2.xpose.msra.mxu0 0.0
        %4077 = vmatprep.subr.mxu0 0.0
        %4078 = vmatpush2.xpose.msra.mxu0 0.0
        %4079 = vmatprep.subr.mxu0 0.0
        %4080 = vmatpush2.xpose.msra.mxu0 0.0
        %4081 = vmatprep.subr.mxu0 0.0
        %4082 = vmatpush2.xpose.msra.mxu0 0.0
        %4083 = vmatprep.subr.mxu0 0.0
        %4084 = vmatpush2.xpose.msra.mxu0 0.0
        %4085 = vmatprep.subr.mxu0 0.0
        %4086 = vmatpush2.xpose.msra.mxu0 0.0
        %4087 = vmatprep.subr.mxu0 0.0
        %4088 = vmatpush2.xpose.msra.mxu0 0.0
        %4089 = vmatprep.subr.mxu0 0.0
        %4090 = vmatpush2.xpose.msra.mxu0 0.0
        %4091 = vmatprep.mubr.f32.mxu0 0.0
        %4092 = vmatmul.mubr.f32.gmra.mxu0 %v4023
        %v4093 = vpop.f32.mrf.mxu0
        %v4094 = vadd.f32 0.0, %v4093
        %v4095 = vpop.f32.mrf.mxu0
        %4096 = vdwg.mxu0
        %v4097 = vmul.f32 %v4094, 0.35355338
        %v4098 = vadd.f32 %v4097, %v1492
        %v4099 = vsel %vm1594, %v4098, -inf
        %4100 = vmax.xlane.f32.xlu0 %v4099
        %v4101 = vpop.xlane.xlu0 %4100
        %v4102 = vsub.f32 %v4098, %v4101
        %v4103 = vmul.f32 %v4102, 1.442695
        %v4104 = vpow.pop %v4103
        %v4105 = vsel %vm1594, %v4104, 0.0
        %4106 = vadd.xlane.f32.xlu0 %v4105
        %v4107 = vpop.xlane.xlu0 %4106
        %v4108 = vrcp.pop %v4107
        %v4109 = vmul.f32 %v4104, %v4108
        %4110 = vrot.lane.b32.xlu0 %v3676, 48
        %v4111 = vpop.permute.xlu0 %4110
        %v4114 = vsel %vm1594, %v4109, 0
        %4116 = vmatprep.subr.mxu0 0.0
        %4117 = vmatpush1.msra.mxu0 0.0
        %4118 = vmatprep.subr.mxu0 0.0
        %4119 = vmatpush1.msra.mxu0 0.0
        %4120 = vmatprep.subr.mxu0 0.0
        %4121 = vmatpush1.msra.mxu0 0.0
        %4122 = vmatprep.subr.mxu0 0.0
        %4123 = vmatpush1.msra.mxu0 0.0
        %4124 = vmatprep.subr.mxu0 0.0
        %4125 = vmatpush1.msra.mxu0 0.0
        %4126 = vmatprep.subr.mxu0 0.0
        %4127 = vmatpush1.msra.mxu0 0.0
        %4128 = vmatprep.subr.mxu0 0.0
        %4129 = vmatpush1.msra.mxu0 0.0
        %4130 = vmatprep.subr.mxu0 0.0
        %4131 = vmatpush1.msra.mxu0 0.0
        %4132 = vmatprep.subr.mxu0 0.0
        %4133 = vmatpush1.msra.mxu0 0.0
        %4134 = vmatprep.subr.mxu0 0.0
        %4135 = vmatpush1.msra.mxu0 0.0
        %4136 = vmatprep.subr.mxu0 0.0
        %4137 = vmatpush1.msra.mxu0 0.0
        %4138 = vmatprep.subr.mxu0 0.0
        %4139 = vmatpush1.msra.mxu0 0.0
        %4140 = vmatprep.subr.mxu0 0.0
        %4141 = vmatpush1.msra.mxu0 0.0
        %4142 = vmatprep.subr.mxu0 0.0
        %4143 = vmatpush1.msra.mxu0 0.0
        %4144 = vmatprep.subr.mxu0 0.0
        %4145 = vmatpush1.msra.mxu0 0.0
        %4146 = vmatprep.subr.mxu0 0.0
        %4147 = vmatpush1.msra.mxu0 %v4111
        %4148 = vmatprep.subr.mxu0 0.0
        %4149 = vmatpush2.msra.mxu0 0.0
        %4150 = vmatprep.subr.mxu0 0.0
        %4151 = vmatpush2.msra.mxu0 0.0
        %4152 = vmatprep.subr.mxu0 0.0
        %4153 = vmatpush2.msra.mxu0 0.0
        %4154 = vmatprep.subr.mxu0 0.0
        %4155 = vmatpush2.msra.mxu0 0.0
        %4156 = vmatprep.subr.mxu0 0.0
        %4157 = vmatpush2.msra.mxu0 0.0
        %4158 = vmatprep.subr.mxu0 0.0
        %4159 = vmatpush2.msra.mxu0 0.0
        %4160 = vmatprep.subr.mxu0 0.0
        %4161 = vmatpush2.msra.mxu0 0.0
        %4162 = vmatprep.subr.mxu0 0.0
        %4163 = vmatpush2.msra.mxu0 0.0
        %4164 = vmatprep.subr.mxu0 0.0
        %4165 = vmatpush2.msra.mxu0 0.0
        %4166 = vmatprep.subr.mxu0 0.0
        %4167 = vmatpush2.msra.mxu0 0.0
        %4168 = vmatprep.subr.mxu0 0.0
        %4169 = vmatpush2.msra.mxu0 0.0
        %4170 = vmatprep.subr.mxu0 0.0
        %4171 = vmatpush2.msra.mxu0 0.0
        %4172 = vmatprep.subr.mxu0 0.0
        %4173 = vmatpush2.msra.mxu0 0.0
        %4174 = vmatprep.subr.mxu0 0.0
        %4175 = vmatpush2.msra.mxu0 0.0
        %4176 = vmatprep.subr.mxu0 0.0
        %4177 = vmatpush2.msra.mxu0 0.0
        %4178 = vmatprep.subr.mxu0 0.0
        %4179 = vmatpush2.msra.mxu0 0.0
        %4180 = vmatprep.mubr.f32.mxu0 0.0
        %4181 = vmatmul.mubr.f32.gmra.mxu0 %v4114
        %v4182 = vpop.f32.mrf.mxu0
        %v4183 = vadd.f32 0.0, %v4182
        %v4184 = vpop.f32.mrf.mxu0
        %4185 = vdwg.mxu0
        %4186 = vrot.lane.b32.xlu0 %v3676, 104
        %v4187 = vpop.permute.xlu0 %4186
        %4188 = vrot.lane.b32.xlu0 %v3676, 72
        %v4189 = vpop.permute.xlu0 %4188
        %v4190 = vsel %vm1594, %v4187, 0
        %v4192 = vsel %vm1594, %v4189, 0
        %4194 = vmatprep.subr.mxu0 0.0
        %4195 = vmatpush1.xpose.msra.mxu0 0.0
        %4196 = vmatprep.subr.mxu0 0.0
        %4197 = vmatpush1.xpose.msra.mxu0 0.0
        %4198 = vmatprep.subr.mxu0 0.0
        %4199 = vmatpush1.xpose.msra.mxu0 0.0
        %4200 = vmatprep.subr.mxu0 0.0
        %4201 = vmatpush1.xpose.msra.mxu0 0.0
        %4202 = vmatprep.subr.mxu0 0.0
        %4203 = vmatpush1.xpose.msra.mxu0 0.0
        %4204 = vmatprep.subr.mxu0 0.0
        %4205 = vmatpush1.xpose.msra.mxu0 0.0
        %4206 = vmatprep.subr.mxu0 0.0
        %4207 = vmatpush1.xpose.msra.mxu0 0.0
        %4208 = vmatprep.subr.mxu0 0.0
        %4209 = vmatpush1.xpose.msra.mxu0 0.0
        %4210 = vmatprep.subr.mxu0 0.0
        %4211 = vmatpush1.xpose.msra.mxu0 0.0
        %4212 = vmatprep.subr.mxu0 0.0
        %4213 = vmatpush1.xpose.msra.mxu0 0.0
        %4214 = vmatprep.subr.mxu0 0.0
        %4215 = vmatpush1.xpose.msra.mxu0 0.0
        %4216 = vmatprep.subr.mxu0 0.0
        %4217 = vmatpush1.xpose.msra.mxu0 0.0
        %4218 = vmatprep.subr.mxu0 0.0
        %4219 = vmatpush1.xpose.msra.mxu0 0.0
        %4220 = vmatprep.subr.mxu0 0.0
        %4221 = vmatpush1.xpose.msra.mxu0 0.0
        %4222 = vmatprep.subr.mxu0 0.0
        %4223 = vmatpush1.xpose.msra.mxu0 0.0
        %4224 = vmatprep.subr.mxu0 0.0
        %4225 = vmatpush1.xpose.msra.mxu0 %v4192
        %4226 = vmatprep.subr.mxu0 0.0
        %4227 = vmatpush2.xpose.msra.mxu0 0.0
        %4228 = vmatprep.subr.mxu0 0.0
        %4229 = vmatpush2.xpose.msra.mxu0 0.0
        %4230 = vmatprep.subr.mxu0 0.0
        %4231 = vmatpush2.xpose.msra.mxu0 0.0
        %4232 = vmatprep.subr.mxu0 0.0
        %4233 = vmatpush2.xpose.msra.mxu0 0.0
        %4234 = vmatprep.subr.mxu0 0.0
        %4235 = vmatpush2.xpose.msra.mxu0 0.0
        %4236 = vmatprep.subr.mxu0 0.0
        %4237 = vmatpush2.xpose.msra.mxu0 0.0
        %4238 = vmatprep.subr.mxu0 0.0
        %4239 = vmatpush2.xpose.msra.mxu0 0.0
        %4240 = vmatprep.subr.mxu0 0.0
        %4241 = vmatpush2.xpose.msra.mxu0 0.0
        %4242 = vmatprep.subr.mxu0 0.0
        %4243 = vmatpush2.xpose.msra.mxu0 0.0
        %4244 = vmatprep.subr.mxu0 0.0
        %4245 = vmatpush2.xpose.msra.mxu0 0.0
        %4246 = vmatprep.subr.mxu0 0.0
        %4247 = vmatpush2.xpose.msra.mxu0 0.0
        %4248 = vmatprep.subr.mxu0 0.0
        %4249 = vmatpush2.xpose.msra.mxu0 0.0
        %4250 = vmatprep.subr.mxu0 0.0
        %4251 = vmatpush2.xpose.msra.mxu0 0.0
        %4252 = vmatprep.subr.mxu0 0.0
        %4253 = vmatpush2.xpose.msra.mxu0 0.0
        %4254 = vmatprep.subr.mxu0 0.0
        %4255 = vmatpush2.xpose.msra.mxu0 0.0
        %4256 = vmatprep.subr.mxu0 0.0
        %4257 = vmatpush2.xpose.msra.mxu0 0.0
        %4258 = vmatprep.mubr.f32.mxu0 0.0
        %4259 = vmatmul.mubr.f32.gmra.mxu0 %v4190
        %v4260 = vpop.f32.mrf.mxu0
        %v4261 = vadd.f32 0.0, %v4260
        %v4262 = vpop.f32.mrf.mxu0
        %4263 = vdwg.mxu0
        %v4264 = vmul.f32 %v4261, 0.35355338
        %v4265 = vadd.f32 %v4264, %v1492
        %v4266 = vsel %vm1594, %v4265, -inf
        %4267 = vmax.xlane.f32.xlu0 %v4266
        %v4268 = vpop.xlane.xlu0 %4267
        %v4269 = vsub.f32 %v4265, %v4268
        %v4270 = vmul.f32 %v4269, 1.442695
        %v4271 = vpow.pop %v4270
        %v4272 = vsel %vm1594, %v4271, 0.0
        %4273 = vadd.xlane.f32.xlu0 %v4272
        %v4274 = vpop.xlane.xlu0 %4273
        %v4275 = vrcp.pop %v4274
        %v4276 = vmul.f32 %v4271, %v4275
        %4277 = vrot.lane.b32.xlu0 %v3676, 40
        %v4278 = vpop.permute.xlu0 %4277
        %v4281 = vsel %vm1594, %v4276, 0
        %4283 = vmatprep.subr.mxu0 0.0
        %4284 = vmatpush1.msra.mxu0 0.0
        %4285 = vmatprep.subr.mxu0 0.0
        %4286 = vmatpush1.msra.mxu0 0.0
        %4287 = vmatprep.subr.mxu0 0.0
        %4288 = vmatpush1.msra.mxu0 0.0
        %4289 = vmatprep.subr.mxu0 0.0
        %4290 = vmatpush1.msra.mxu0 0.0
        %4291 = vmatprep.subr.mxu0 0.0
        %4292 = vmatpush1.msra.mxu0 0.0
        %4293 = vmatprep.subr.mxu0 0.0
        %4294 = vmatpush1.msra.mxu0 0.0
        %4295 = vmatprep.subr.mxu0 0.0
        %4296 = vmatpush1.msra.mxu0 0.0
        %4297 = vmatprep.subr.mxu0 0.0
        %4298 = vmatpush1.msra.mxu0 0.0
        %4299 = vmatprep.subr.mxu0 0.0
        %4300 = vmatpush1.msra.mxu0 0.0
        %4301 = vmatprep.subr.mxu0 0.0
        %4302 = vmatpush1.msra.mxu0 0.0
        %4303 = vmatprep.subr.mxu0 0.0
        %4304 = vmatpush1.msra.mxu0 0.0
        %4305 = vmatprep.subr.mxu0 0.0
        %4306 = vmatpush1.msra.mxu0 0.0
        %4307 = vmatprep.subr.mxu0 0.0
        %4308 = vmatpush1.msra.mxu0 0.0
        %4309 = vmatprep.subr.mxu0 0.0
        %4310 = vmatpush1.msra.mxu0 0.0
        %4311 = vmatprep.subr.mxu0 0.0
        %4312 = vmatpush1.msra.mxu0 0.0
        %4313 = vmatprep.subr.mxu0 0.0
        %4314 = vmatpush1.msra.mxu0 %v4278
        %4315 = vmatprep.subr.mxu0 0.0
        %4316 = vmatpush2.msra.mxu0 0.0
        %4317 = vmatprep.subr.mxu0 0.0
        %4318 = vmatpush2.msra.mxu0 0.0
        %4319 = vmatprep.subr.mxu0 0.0
        %4320 = vmatpush2.msra.mxu0 0.0
        %4321 = vmatprep.subr.mxu0 0.0
        %4322 = vmatpush2.msra.mxu0 0.0
        %4323 = vmatprep.subr.mxu0 0.0
        %4324 = vmatpush2.msra.mxu0 0.0
        %4325 = vmatprep.subr.mxu0 0.0
        %4326 = vmatpush2.msra.mxu0 0.0
        %4327 = vmatprep.subr.mxu0 0.0
        %4328 = vmatpush2.msra.mxu0 0.0
        %4329 = vmatprep.subr.mxu0 0.0
        %4330 = vmatpush2.msra.mxu0 0.0
        %4331 = vmatprep.subr.mxu0 0.0
        %4332 = vmatpush2.msra.mxu0 0.0
        %4333 = vmatprep.subr.mxu0 0.0
        %4334 = vmatpush2.msra.mxu0 0.0
        %4335 = vmatprep.subr.mxu0 0.0
        %4336 = vmatpush2.msra.mxu0 0.0
        %4337 = vmatprep.subr.mxu0 0.0
        %4338 = vmatpush2.msra.mxu0 0.0
        %4339 = vmatprep.subr.mxu0 0.0
        %4340 = vmatpush2.msra.mxu0 0.0
        %4341 = vmatprep.subr.mxu0 0.0
        %4342 = vmatpush2.msra.mxu0 0.0
        %4343 = vmatprep.subr.mxu0 0.0
        %4344 = vmatpush2.msra.mxu0 0.0
        %4345 = vmatprep.subr.mxu0 0.0
        %4346 = vmatpush2.msra.mxu0 0.0
        %4347 = vmatprep.mubr.f32.mxu0 0.0
        %4348 = vmatmul.mubr.f32.gmra.mxu0 %v4281
        %v4349 = vpop.f32.mrf.mxu0
        %v4350 = vadd.f32 0.0, %v4349
        %v4351 = vpop.f32.mrf.mxu0
        %4352 = vdwg.mxu0
        %4354 = vrot.lane.b32.xlu0 %v4016, 8
        %v4355 = vpop.permute.xlu0 %4354
        %4358 = vrot.lane.b32.xlu0 %v4183, 16
        %v4359 = vpop.permute.xlu0 %4358
        %4362 = vrot.lane.b32.xlu0 %v4350, 24
        %v4363 = vpop.permute.xlu0 %4362
        %v4365 = vsel %vm1594, %v3849, %v4355
        %v4366 = vsel %vm2272, %v4365, %v4359
        %v4367 = vsel %vm1317, %v4366, %v4363
        %v4369 = vlaneseq
        %v4370 = vshrl.u32 %v4369, 7
        %v4371 = vsub.s32 0, %v4370
        %v4372 = vrot.slane %v3685, %v4371
        %v4375 = vsel %vm1512, %v4367, 0
        %4377 = vmatprep.subr.mxu0 0.0
        %4378 = vmatpush1.msra.mxu0 0.0
        %4379 = vmatprep.subr.mxu0 0.0
        %4380 = vmatpush1.msra.mxu0 0.0
        %4381 = vmatprep.subr.mxu0 0.0
        %4382 = vmatpush1.msra.mxu0 0.0
        %4383 = vmatprep.subr.mxu0 0.0
        %4384 = vmatpush1.msra.mxu0 0.0
        %4385 = vmatprep.subr.mxu0 0.0
        %4386 = vmatpush1.msra.mxu0 0.0
        %4387 = vmatprep.subr.mxu0 0.0
        %4388 = vmatpush1.msra.mxu0 0.0
        %4389 = vmatprep.subr.mxu0 0.0
        %4390 = vmatpush1.msra.mxu0 0.0
        %4391 = vmatprep.subr.mxu0 0.0
        %4392 = vmatpush1.msra.mxu0 0.0
        %4393 = vmatprep.subr.mxu0 0.0
        %4394 = vmatpush1.msra.mxu0 0.0
        %4395 = vmatprep.subr.mxu0 0.0
        %4396 = vmatpush1.msra.mxu0 0.0
        %4397 = vmatprep.subr.mxu0 0.0
        %4398 = vmatpush1.msra.mxu0 0.0
        %4399 = vmatprep.subr.mxu0 0.0
        %4400 = vmatpush1.msra.mxu0 0.0
        %4401 = vmatprep.subr.mxu0 0.0
        %4402 = vmatpush1.msra.mxu0 %v3683
        %4403 = vmatprep.subr.mxu0 0.0
        %4404 = vmatpush1.msra.mxu0 %v3682
        %4405 = vmatprep.subr.mxu0 0.0
        %4406 = vmatpush1.msra.mxu0 %v3681
        %4407 = vmatprep.subr.mxu0 0.0
        %4408 = vmatpush1.msra.mxu0 %v3680
        %4409 = vmatprep.subr.mxu0 0.0
        %4410 = vmatpush2.msra.mxu0 0.0
        %4411 = vmatprep.subr.mxu0 0.0
        %4412 = vmatpush2.msra.mxu0 0.0
        %4413 = vmatprep.subr.mxu0 0.0
        %4414 = vmatpush2.msra.mxu0 0.0
        %4415 = vmatprep.subr.mxu0 0.0
        %4416 = vmatpush2.msra.mxu0 0.0
        %4417 = vmatprep.subr.mxu0 0.0
        %4418 = vmatpush2.msra.mxu0 0.0
        %4419 = vmatprep.subr.mxu0 0.0
        %4420 = vmatpush2.msra.mxu0 0.0
        %4421 = vmatprep.subr.mxu0 0.0
        %4422 = vmatpush2.msra.mxu0 0.0
        %4423 = vmatprep.subr.mxu0 0.0
        %4424 = vmatpush2.msra.mxu0 0.0
        %4425 = vmatprep.subr.mxu0 0.0
        %4426 = vmatpush2.msra.mxu0 0.0
        %4427 = vmatprep.subr.mxu0 0.0
        %4428 = vmatpush2.msra.mxu0 0.0
        %4429 = vmatprep.subr.mxu0 0.0
        %4430 = vmatpush2.msra.mxu0 0.0
        %4431 = vmatprep.subr.mxu0 0.0
        %4432 = vmatpush2.msra.mxu0 0.0
        %4433 = vmatprep.subr.mxu0 0.0
        %4434 = vmatpush2.msra.mxu0 0.0
        %4435 = vmatprep.subr.mxu0 0.0
        %4436 = vmatpush2.msra.mxu0 0.0
        %4437 = vmatprep.subr.mxu0 0.0
        %4438 = vmatpush2.msra.mxu0 0.0
        %4439 = vmatprep.subr.mxu0 0.0
        %4440 = vmatpush2.msra.mxu0 0.0
        %4441 = vmatprep.mubr.f32.mxu0 0.0
        %4442 = vmatmul.mubr.f32.gmra.mxu0 %v4375
        %v4443 = vpop.f32.mrf.mxu0
        %v4444 = vadd.f32 %v4372, %v4443
        %v4445 = vpop.f32.mrf.mxu0
        %4446 = vdwg.mxu0
        %v4447 = vadd.f32 %v4444, %v3592
        %s4448 = scalar_lea.vmem [#allocation22], 1
        %v4449 = vld [vmem:[%s4448] sm:$0x1]
        %s4450 = scalar_lea.vmem [#allocation23], 1
        %v4451 = vld [vmem:[%s4450] sm:$0x1]
        %v4452 = vsel %vm1512, %v4447, 0.0
        %4453 = vadd.xlane.f32.xlu0 %v4452
        %v4454 = vpop.xlane.xlu0 %4453
        %v4455 = vmul.f32 %v4454, %v2360
        %v4456 = vsub.f32 %v4447, %v4455
        %v4457 = vmul.f32 %v4456, %v4456
        %v4458 = vsel %vm1512, %v4457, 0.0
        %4459 = vadd.xlane.f32.xlu0 %v4458
        %v4460 = vpop.xlane.xlu0 %4459
        %v4461 = vmul.f32 %v4460, %v2360
        %v4462 = vadd.f32 %v4461, 1e-05
        %v4463 = vrsqrt.pop %v4462
        %v4464 = vmul.f32 %v4456, %v4463
        %v4466 = vlaneseq
        %v4467 = vshrl.u32 %v4466, 7
        %v4468 = vsub.s32 0, %v4467
        %v4469 = vrot.slane %v4449, %v4468
        %v4471 = vmul.f32 %v4464, %v4469
        %v4473 = vlaneseq
        %v4474 = vshrl.u32 %v4473, 7
        %v4475 = vsub.s32 0, %v4474
        %v4476 = vrot.slane %v4451, %v4475
        %v4478 = vadd.f32 %v4471, %v4476
        %s4479 = scalar_lea.vmem %s27, 32
        %v4480 = vld [vmem:[%s4479] sm:$0xff]
        %v4481 = vld [vmem:[%s4479 + $0x8] sm:$0xff]
        %v4482 = vld [vmem:[%s4479 + $0x10] sm:$0xff]
        %v4483 = vld [vmem:[%s4479 + $0x18] sm:$0xff]
        %s4484 = scalar_lea.vmem [#allocation11], 1
        %v4485 = vld [vmem:[%s4484] sm:$0x1]
        %v4487 = vlaneseq
        %v4488 = vshrl.u32 %v4487, 7
        %v4489 = vsub.s32 0, %v4488
        %v4490 = vrot.slane %v4485, %v4489
        %v4493 = vsel %vm1512, %v4478, 0
        %4495 = vmatprep.subr.mxu0 0.0
        %4496 = vmatpush1.msra.mxu0 0.0
        %4497 = vmatprep.subr.mxu0 0.0
        %4498 = vmatpush1.msra.mxu0 0.0
        %4499 = vmatprep.subr.mxu0 0.0
        %4500 = vmatpush1.msra.mxu0 0.0
        %4501 = vmatprep.subr.mxu0 0.0
        %4502 = vmatpush1.msra.mxu0 0.0
        %4503 = vmatprep.subr.mxu0 0.0
        %4504 = vmatpush1.msra.mxu0 0.0
        %4505 = vmatprep.subr.mxu0 0.0
        %4506 = vmatpush1.msra.mxu0 0.0
        %4507 = vmatprep.subr.mxu0 0.0
        %4508 = vmatpush1.msra.mxu0 0.0
        %4509 = vmatprep.subr.mxu0 0.0
        %4510 = vmatpush1.msra.mxu0 0.0
        %4511 = vmatprep.subr.mxu0 0.0
        %4512 = vmatpush1.msra.mxu0 0.0
        %4513 = vmatprep.subr.mxu0 0.0
        %4514 = vmatpush1.msra.mxu0 0.0
        %4515 = vmatprep.subr.mxu0 0.0
        %4516 = vmatpush1.msra.mxu0 0.0
        %4517 = vmatprep.subr.mxu0 0.0
        %4518 = vmatpush1.msra.mxu0 0.0
        %4519 = vmatprep.subr.mxu0 0.0
        %4520 = vmatpush1.msra.mxu0 %v4483
        %4521 = vmatprep.subr.mxu0 0.0
        %4522 = vmatpush1.msra.mxu0 %v4482
        %4523 = vmatprep.subr.mxu0 0.0
        %4524 = vmatpush1.msra.mxu0 %v4481
        %4525 = vmatprep.subr.mxu0 0.0
        %4526 = vmatpush1.msra.mxu0 %v4480
        %4527 = vmatprep.subr.mxu0 0.0
        %4528 = vmatpush2.msra.mxu0 0.0
        %4529 = vmatprep.subr.mxu0 0.0
        %4530 = vmatpush2.msra.mxu0 0.0
        %4531 = vmatprep.subr.mxu0 0.0
        %4532 = vmatpush2.msra.mxu0 0.0
        %4533 = vmatprep.subr.mxu0 0.0
        %4534 = vmatpush2.msra.mxu0 0.0
        %4535 = vmatprep.subr.mxu0 0.0
        %4536 = vmatpush2.msra.mxu0 0.0
        %4537 = vmatprep.subr.mxu0 0.0
        %4538 = vmatpush2.msra.mxu0 0.0
        %4539 = vmatprep.subr.mxu0 0.0
        %4540 = vmatpush2.msra.mxu0 0.0
        %4541 = vmatprep.subr.mxu0 0.0
        %4542 = vmatpush2.msra.mxu0 0.0
        %4543 = vmatprep.subr.mxu0 0.0
        %4544 = vmatpush2.msra.mxu0 0.0
        %4545 = vmatprep.subr.mxu0 0.0
        %4546 = vmatpush2.msra.mxu0 0.0
        %4547 = vmatprep.subr.mxu0 0.0
        %4548 = vmatpush2.msra.mxu0 0.0
        %4549 = vmatprep.subr.mxu0 0.0
        %4550 = vmatpush2.msra.mxu0 0.0
        %4551 = vmatprep.subr.mxu0 0.0
        %4552 = vmatpush2.msra.mxu0 0.0
        %4553 = vmatprep.subr.mxu0 0.0
        %4554 = vmatpush2.msra.mxu0 0.0
        %4555 = vmatprep.subr.mxu0 0.0
        %4556 = vmatpush2.msra.mxu0 0.0
        %4557 = vmatprep.subr.mxu0 0.0
        %4558 = vmatpush2.msra.mxu0 0.0
        %4559 = vmatprep.mubr.f32.mxu0 0.0
        %4560 = vmatmul.mubr.f32.gmra.mxu0 %v4493
        %v4561 = vpop.f32.mrf.mxu0
        %v4562 = vadd.f32 %v4490, %v4561
        %v4563 = vpop.f32.mrf.mxu0
        %4564 = vdwg.mxu0
        %s4565 = scalar_lea.vmem %s31, 32
        %v4566 = vld [vmem:[%s4565] sm:$0xff]
        %v4567 = vld [vmem:[%s4565 + $0x8] sm:$0xff]
        %v4568 = vld [vmem:[%s4565 + $0x10] sm:$0xff]
        %v4569 = vld [vmem:[%s4565 + $0x18] sm:$0xff]
        %s4570 = scalar_lea.vmem [#allocation13], 1
        %v4571 = vld [vmem:[%s4570] sm:$0x1]
        %v4573 = vlaneseq
        %v4574 = vshrl.u32 %v4573, 7
        %v4575 = vsub.s32 0, %v4574
        %v4576 = vrot.slane %v4571, %v4575
        %4578 = vmatprep.subr.mxu0 0.0
        %4579 = vmatpush1.msra.mxu0 0.0
        %4580 = vmatprep.subr.mxu0 0.0
        %4581 = vmatpush1.msra.mxu0 0.0
        %4582 = vmatprep.subr.mxu0 0.0
        %4583 = vmatpush1.msra.mxu0 0.0
        %4584 = vmatprep.subr.mxu0 0.0
        %4585 = vmatpush1.msra.mxu0 0.0
        %4586 = vmatprep.subr.mxu0 0.0
        %4587 = vmatpush1.msra.mxu0 0.0
        %4588 = vmatprep.subr.mxu0 0.0
        %4589 = vmatpush1.msra.mxu0 0.0
        %4590 = vmatprep.subr.mxu0 0.0
        %4591 = vmatpush1.msra.mxu0 0.0
        %4592 = vmatprep.subr.mxu0 0.0
        %4593 = vmatpush1.msra.mxu0 0.0
        %4594 = vmatprep.subr.mxu0 0.0
        %4595 = vmatpush1.msra.mxu0 0.0
        %4596 = vmatprep.subr.mxu0 0.0
        %4597 = vmatpush1.msra.mxu0 0.0
        %4598 = vmatprep.subr.mxu0 0.0
        %4599 = vmatpush1.msra.mxu0 0.0
        %4600 = vmatprep.subr.mxu0 0.0
        %4601 = vmatpush1.msra.mxu0 0.0
        %4602 = vmatprep.subr.mxu0 0.0
        %4603 = vmatpush1.msra.mxu0 %v4569
        %4604 = vmatprep.subr.mxu0 0.0
        %4605 = vmatpush1.msra.mxu0 %v4568
        %4606 = vmatprep.subr.mxu0 0.0
        %4607 = vmatpush1.msra.mxu0 %v4567
        %4608 = vmatprep.subr.mxu0 0.0
        %4609 = vmatpush1.msra.mxu0 %v4566
        %4610 = vmatprep.subr.mxu0 0.0
        %4611 = vmatpush2.msra.mxu0 0.0
        %4612 = vmatprep.subr.mxu0 0.0
        %4613 = vmatpush2.msra.mxu0 0.0
        %4614 = vmatprep.subr.mxu0 0.0
        %4615 = vmatpush2.msra.mxu0 0.0
        %4616 = vmatprep.subr.mxu0 0.0
        %4617 = vmatpush2.msra.mxu0 0.0
        %4618 = vmatprep.subr.mxu0 0.0
        %4619 = vmatpush2.msra.mxu0 0.0
        %4620 = vmatprep.subr.mxu0 0.0
        %4621 = vmatpush2.msra.mxu0 0.0
        %4622 = vmatprep.subr.mxu0 0.0
        %4623 = vmatpush2.msra.mxu0 0.0
        %4624 = vmatprep.subr.mxu0 0.0
        %4625 = vmatpush2.msra.mxu0 0.0
        %4626 = vmatprep.subr.mxu0 0.0
        %4627 = vmatpush2.msra.mxu0 0.0
        %4628 = vmatprep.subr.mxu0 0.0
        %4629 = vmatpush2.msra.mxu0 0.0
        %4630 = vmatprep.subr.mxu0 0.0
        %4631 = vmatpush2.msra.mxu0 0.0
        %4632 = vmatprep.subr.mxu0 0.0
        %4633 = vmatpush2.msra.mxu0 0.0
        %4634 = vmatprep.subr.mxu0 0.0
        %4635 = vmatpush2.msra.mxu0 0.0
        %4636 = vmatprep.subr.mxu0 0.0
        %4637 = vmatpush2.msra.mxu0 0.0
        %4638 = vmatprep.subr.mxu0 0.0
        %4639 = vmatpush2.msra.mxu0 0.0
        %4640 = vmatprep.subr.mxu0 0.0
        %4641 = vmatpush2.msra.mxu0 0.0
        %4642 = vmatprep.mubr.f32.mxu0 0.0
        %4643 = vmatmul.mubr.f32.gmra.mxu0 %v2481
        %v4644 = vpop.f32.mrf.mxu0
        %v4645 = vadd.f32 %v4576, %v4644
        %v4646 = vpop.f32.mrf.mxu0
        %4647 = vmatprep.mubr.f32.mxu0 0.0
        %4648 = vmatmul.mubr.f32.gmra.mxu0 %v2484
        %v4649 = vpop.f32.mrf.mxu0
        %v4650 = vadd.f32 %v4576, %v4649
        %v4651 = vpop.f32.mrf.mxu0
        %4652 = vdwg.mxu0
        %s4653 = scalar_lea.vmem [#allocation14], 32
        %v4654 = vld [vmem:[%s4653] sm:$0xff]
        %v4655 = vld [vmem:[%s4653 + $0x8] sm:$0xff]
        %v4656 = vld [vmem:[%s4653 + $0x10] sm:$0xff]
        %v4657 = vld [vmem:[%s4653 + $0x18] sm:$0xff]
        %s4658 = scalar_lea.vmem [#allocation16], 1
        %v4659 = vld [vmem:[%s4658] sm:$0x1]
        %v4661 = vsel %vm1594, %v4562, 0
        %v4664 = vsel %vm1594, %v4645, 0
        %v4667 = vsel %vm1594, %v4650, 0
        %4669 = vmatprep.subr.mxu0 0.0
        %4670 = vmatpush1.xpose.msra.mxu0 0.0
        %4671 = vmatprep.subr.mxu0 0.0
        %4672 = vmatpush1.xpose.msra.mxu0 0.0
        %4673 = vmatprep.subr.mxu0 0.0
        %4674 = vmatpush1.xpose.msra.mxu0 0.0
        %4675 = vmatprep.subr.mxu0 0.0
        %4676 = vmatpush1.xpose.msra.mxu0 0.0
        %4677 = vmatprep.subr.mxu0 0.0
        %4678 = vmatpush1.xpose.msra.mxu0 0.0
        %4679 = vmatprep.subr.mxu0 0.0
        %4680 = vmatpush1.xpose.msra.mxu0 0.0
        %4681 = vmatprep.subr.mxu0 0.0
        %4682 = vmatpush1.xpose.msra.mxu0 0.0
        %4683 = vmatprep.subr.mxu0 0.0
        %4684 = vmatpush1.xpose.msra.mxu0 0.0
        %4685 = vmatprep.subr.mxu0 0.0
        %4686 = vmatpush1.xpose.msra.mxu0 0.0
        %4687 = vmatprep.subr.mxu0 0.0
        %4688 = vmatpush1.xpose.msra.mxu0 0.0
        %4689 = vmatprep.subr.mxu0 0.0
        %4690 = vmatpush1.xpose.msra.mxu0 0.0
        %4691 = vmatprep.subr.mxu0 0.0
        %4692 = vmatpush1.xpose.msra.mxu0 0.0
        %4693 = vmatprep.subr.mxu0 0.0
        %4694 = vmatpush1.xpose.msra.mxu0 0.0
        %4695 = vmatprep.subr.mxu0 0.0
        %4696 = vmatpush1.xpose.msra.mxu0 0.0
        %4697 = vmatprep.subr.mxu0 0.0
        %4698 = vmatpush1.xpose.msra.mxu0 %v4667
        %4699 = vmatprep.subr.mxu0 0.0
        %4700 = vmatpush1.xpose.msra.mxu0 %v4664
        %4701 = vmatprep.subr.mxu0 0.0
        %4702 = vmatpush2.xpose.msra.mxu0 0.0
        %4703 = vmatprep.subr.mxu0 0.0
        %4704 = vmatpush2.xpose.msra.mxu0 0.0
        %4705 = vmatprep.subr.mxu0 0.0
        %4706 = vmatpush2.xpose.msra.mxu0 0.0
        %4707 = vmatprep.subr.mxu0 0.0
        %4708 = vmatpush2.xpose.msra.mxu0 0.0
        %4709 = vmatprep.subr.mxu0 0.0
        %4710 = vmatpush2.xpose.msra.mxu0 0.0
        %4711 = vmatprep.subr.mxu0 0.0
        %4712 = vmatpush2.xpose.msra.mxu0 0.0
        %4713 = vmatprep.subr.mxu0 0.0
        %4714 = vmatpush2.xpose.msra.mxu0 0.0
        %4715 = vmatprep.subr.mxu0 0.0
        %4716 = vmatpush2.xpose.msra.mxu0 0.0
        %4717 = vmatprep.subr.mxu0 0.0
        %4718 = vmatpush2.xpose.msra.mxu0 0.0
        %4719 = vmatprep.subr.mxu0 0.0
        %4720 = vmatpush2.xpose.msra.mxu0 0.0
        %4721 = vmatprep.subr.mxu0 0.0
        %4722 = vmatpush2.xpose.msra.mxu0 0.0
        %4723 = vmatprep.subr.mxu0 0.0
        %4724 = vmatpush2.xpose.msra.mxu0 0.0
        %4725 = vmatprep.subr.mxu0 0.0
        %4726 = vmatpush2.xpose.msra.mxu0 0.0
        %4727 = vmatprep.subr.mxu0 0.0
        %4728 = vmatpush2.xpose.msra.mxu0 0.0
        %4729 = vmatprep.subr.mxu0 0.0
        %4730 = vmatpush2.xpose.msra.mxu0 0.0
        %4731 = vmatprep.subr.mxu0 0.0
        %4732 = vmatpush2.xpose.msra.mxu0 0.0
        %4733 = vmatprep.mubr.f32.mxu0 0.0
        %4734 = vmatmul.mubr.f32.gmra.mxu0 %v4661
        %v4735 = vpop.f32.mrf.mxu0
        %v4736 = vadd.f32 0.0, %v4735
        %v4737 = vpop.f32.mrf.mxu0
        %4738 = vdwg.mxu0
        %v4739 = vmul.f32 %v4736, 0.35355338
        %v4740 = vadd.f32 %v4739, %v1499
        %v4741 = vsel %vm2647, %v4740, -inf
        %4742 = vmax.xlane.f32.xlu0 %v4741
        %v4743 = vpop.xlane.xlu0 %4742
        %v4744 = vsub.f32 %v4740, %v4743
        %v4745 = vmul.f32 %v4744, 1.442695
        %v4746 = vpow.pop %v4745
        %v4747 = vsel %vm2647, %v4746, 0.0
        %4748 = vadd.xlane.f32.xlu0 %v4747
        %v4749 = vpop.xlane.xlu0 %4748
        %v4750 = vrcp.pop %v4749
        %v4751 = vmul.f32 %v4746, %v4750
        %4752 = vrot.lane.b32.xlu0 %v4645, 96
        %v4753 = vpop.permute.xlu0 %4752
        %4754 = vrot.lane.b32.xlu0 %v4650, 96
        %v4755 = vpop.permute.xlu0 %4754
        %v4758 = vsel %vm2647, %v4751, 0
        %v4760 = vsel %vm2667, %v4755, 0
        %4762 = vmatprep.subr.mxu0 0.0
        %4763 = vmatpush1.msra.mxu0 0.0
        %4764 = vmatprep.subr.mxu0 0.0
        %4765 = vmatpush1.msra.mxu0 0.0
        %4766 = vmatprep.subr.mxu0 0.0
        %4767 = vmatpush1.msra.mxu0 0.0
        %4768 = vmatprep.subr.mxu0 0.0
        %4769 = vmatpush1.msra.mxu0 0.0
        %4770 = vmatprep.subr.mxu0 0.0
        %4771 = vmatpush1.msra.mxu0 0.0
        %4772 = vmatprep.subr.mxu0 0.0
        %4773 = vmatpush1.msra.mxu0 0.0
        %4774 = vmatprep.subr.mxu0 0.0
        %4775 = vmatpush1.msra.mxu0 0.0
        %4776 = vmatprep.subr.mxu0 0.0
        %4777 = vmatpush1.msra.mxu0 0.0
        %4778 = vmatprep.subr.mxu0 0.0
        %4779 = vmatpush1.msra.mxu0 0.0
        %4780 = vmatprep.subr.mxu0 0.0
        %4781 = vmatpush1.msra.mxu0 0.0
        %4782 = vmatprep.subr.mxu0 0.0
        %4783 = vmatpush1.msra.mxu0 0.0
        %4784 = vmatprep.subr.mxu0 0.0
        %4785 = vmatpush1.msra.mxu0 0.0
        %4786 = vmatprep.subr.mxu0 0.0
        %4787 = vmatpush1.msra.mxu0 0.0
        %4788 = vmatprep.subr.mxu0 0.0
        %4789 = vmatpush1.msra.mxu0 0.0
        %4790 = vmatprep.subr.mxu0 0.0
        %4791 = vmatpush1.msra.mxu0 %v4760
        %4792 = vmatprep.subr.mxu0 0.0
        %4793 = vmatpush1.msra.mxu0 %v4753
        %4794 = vmatprep.subr.mxu0 0.0
        %4795 = vmatpush2.msra.mxu0 0.0
        %4796 = vmatprep.subr.mxu0 0.0
        %4797 = vmatpush2.msra.mxu0 0.0
        %4798 = vmatprep.subr.mxu0 0.0
        %4799 = vmatpush2.msra.mxu0 0.0
        %4800 = vmatprep.subr.mxu0 0.0
        %4801 = vmatpush2.msra.mxu0 0.0
        %4802 = vmatprep.subr.mxu0 0.0
        %4803 = vmatpush2.msra.mxu0 0.0
        %4804 = vmatprep.subr.mxu0 0.0
        %4805 = vmatpush2.msra.mxu0 0.0
        %4806 = vmatprep.subr.mxu0 0.0
        %4807 = vmatpush2.msra.mxu0 0.0
        %4808 = vmatprep.subr.mxu0 0.0
        %4809 = vmatpush2.msra.mxu0 0.0
        %4810 = vmatprep.subr.mxu0 0.0
        %4811 = vmatpush2.msra.mxu0 0.0
        %4812 = vmatprep.subr.mxu0 0.0
        %4813 = vmatpush2.msra.mxu0 0.0
        %4814 = vmatprep.subr.mxu0 0.0
        %4815 = vmatpush2.msra.mxu0 0.0
        %4816 = vmatprep.subr.mxu0 0.0
        %4817 = vmatpush2.msra.mxu0 0.0
        %4818 = vmatprep.subr.mxu0 0.0
        %4819 = vmatpush2.msra.mxu0 0.0
        %4820 = vmatprep.subr.mxu0 0.0
        %4821 = vmatpush2.msra.mxu0 0.0
        %4822 = vmatprep.subr.mxu0 0.0
        %4823 = vmatpush2.msra.mxu0 0.0
        %4824 = vmatprep.subr.mxu0 0.0
        %4825 = vmatpush2.msra.mxu0 0.0
        %4826 = vmatprep.mubr.f32.mxu0 0.0
        %4827 = vmatmul.mubr.f32.gmra.mxu0 %v4758
        %v4828 = vpop.f32.mrf.mxu0
        %v4829 = vadd.f32 0.0, %v4828
        %v4830 = vpop.f32.mrf.mxu0
        %4831 = vdwg.mxu0
        %4832 = vrot.lane.b32.xlu0 %v4562, 120
        %v4833 = vpop.permute.xlu0 %4832
        %4834 = vrot.lane.b32.xlu0 %v4645, 120
        %v4835 = vpop.permute.xlu0 %4834
        %4836 = vrot.lane.b32.xlu0 %v4650, 120
        %v4837 = vpop.permute.xlu0 %4836
        %v4838 = vsel %vm1594, %v4833, 0
        %v4840 = vsel %vm1594, %v4835, 0
        %v4842 = vsel %vm1594, %v4837, 0
        %4844 = vmatprep.subr.mxu0 0.0
        %4845 = vmatpush1.xpose.msra.mxu0 0.0
        %4846 = vmatprep.subr.mxu0 0.0
        %4847 = vmatpush1.xpose.msra.mxu0 0.0
        %4848 = vmatprep.subr.mxu0 0.0
        %4849 = vmatpush1.xpose.msra.mxu0 0.0
        %4850 = vmatprep.subr.mxu0 0.0
        %4851 = vmatpush1.xpose.msra.mxu0 0.0
        %4852 = vmatprep.subr.mxu0 0.0
        %4853 = vmatpush1.xpose.msra.mxu0 0.0
        %4854 = vmatprep.subr.mxu0 0.0
        %4855 = vmatpush1.xpose.msra.mxu0 0.0
        %4856 = vmatprep.subr.mxu0 0.0
        %4857 = vmatpush1.xpose.msra.mxu0 0.0
        %4858 = vmatprep.subr.mxu0 0.0
        %4859 = vmatpush1.xpose.msra.mxu0 0.0
        %4860 = vmatprep.subr.mxu0 0.0
        %4861 = vmatpush1.xpose.msra.mxu0 0.0
        %4862 = vmatprep.subr.mxu0 0.0
        %4863 = vmatpush1.xpose.msra.mxu0 0.0
        %4864 = vmatprep.subr.mxu0 0.0
        %4865 = vmatpush1.xpose.msra.mxu0 0.0
        %4866 = vmatprep.subr.mxu0 0.0
        %4867 = vmatpush1.xpose.msra.mxu0 0.0
        %4868 = vmatprep.subr.mxu0 0.0
        %4869 = vmatpush1.xpose.msra.mxu0 0.0
        %4870 = vmatprep.subr.mxu0 0.0
        %4871 = vmatpush1.xpose.msra.mxu0 0.0
        %4872 = vmatprep.subr.mxu0 0.0
        %4873 = vmatpush1.xpose.msra.mxu0 %v4842
        %4874 = vmatprep.subr.mxu0 0.0
        %4875 = vmatpush1.xpose.msra.mxu0 %v4840
        %4876 = vmatprep.subr.mxu0 0.0
        %4877 = vmatpush2.xpose.msra.mxu0 0.0
        %4878 = vmatprep.subr.mxu0 0.0
        %4879 = vmatpush2.xpose.msra.mxu0 0.0
        %4880 = vmatprep.subr.mxu0 0.0
        %4881 = vmatpush2.xpose.msra.mxu0 0.0
        %4882 = vmatprep.subr.mxu0 0.0
        %4883 = vmatpush2.xpose.msra.mxu0 0.0
        %4884 = vmatprep.subr.mxu0 0.0
        %4885 = vmatpush2.xpose.msra.mxu0 0.0
        %4886 = vmatprep.subr.mxu0 0.0
        %4887 = vmatpush2.xpose.msra.mxu0 0.0
        %4888 = vmatprep.subr.mxu0 0.0
        %4889 = vmatpush2.xpose.msra.mxu0 0.0
        %4890 = vmatprep.subr.mxu0 0.0
        %4891 = vmatpush2.xpose.msra.mxu0 0.0
        %4892 = vmatprep.subr.mxu0 0.0
        %4893 = vmatpush2.xpose.msra.mxu0 0.0
        %4894 = vmatprep.subr.mxu0 0.0
        %4895 = vmatpush2.xpose.msra.mxu0 0.0
        %4896 = vmatprep.subr.mxu0 0.0
        %4897 = vmatpush2.xpose.msra.mxu0 0.0
        %4898 = vmatprep.subr.mxu0 0.0
        %4899 = vmatpush2.xpose.msra.mxu0 0.0
        %4900 = vmatprep.subr.mxu0 0.0
        %4901 = vmatpush2.xpose.msra.mxu0 0.0
        %4902 = vmatprep.subr.mxu0 0.0
        %4903 = vmatpush2.xpose.msra.mxu0 0.0
        %4904 = vmatprep.subr.mxu0 0.0
        %4905 = vmatpush2.xpose.msra.mxu0 0.0
        %4906 = vmatprep.subr.mxu0 0.0
        %4907 = vmatpush2.xpose.msra.mxu0 0.0
        %4908 = vmatprep.mubr.f32.mxu0 0.0
        %4909 = vmatmul.mubr.f32.gmra.mxu0 %v4838
        %v4910 = vpop.f32.mrf.mxu0
        %v4911 = vadd.f32 0.0, %v4910
        %v4912 = vpop.f32.mrf.mxu0
        %4913 = vdwg.mxu0
        %v4914 = vmul.f32 %v4911, 0.35355338
        %v4915 = vadd.f32 %v4914, %v1499
        %v4916 = vsel %vm2647, %v4915, -inf
        %4917 = vmax.xlane.f32.xlu0 %v4916
        %v4918 = vpop.xlane.xlu0 %4917
        %v4919 = vsub.f32 %v4915, %v4918
        %v4920 = vmul.f32 %v4919, 1.442695
        %v4921 = vpow.pop %v4920
        %v4922 = vsel %vm2647, %v4921, 0.0
        %4923 = vadd.xlane.f32.xlu0 %v4922
        %v4924 = vpop.xlane.xlu0 %4923
        %v4925 = vrcp.pop %v4924
        %v4926 = vmul.f32 %v4921, %v4925
        %4927 = vrot.lane.b32.xlu0 %v4645, 88
        %v4928 = vpop.permute.xlu0 %4927
        %4929 = vrot.lane.b32.xlu0 %v4650, 88
        %v4930 = vpop.permute.xlu0 %4929
        %v4933 = vsel %vm2647, %v4926, 0
        %v4935 = vsel %vm2667, %v4930, 0
        %4937 = vmatprep.subr.mxu0 0.0
        %4938 = vmatpush1.msra.mxu0 0.0
        %4939 = vmatprep.subr.mxu0 0.0
        %4940 = vmatpush1.msra.mxu0 0.0
        %4941 = vmatprep.subr.mxu0 0.0
        %4942 = vmatpush1.msra.mxu0 0.0
        %4943 = vmatprep.subr.mxu0 0.0
        %4944 = vmatpush1.msra.mxu0 0.0
        %4945 = vmatprep.subr.mxu0 0.0
        %4946 = vmatpush1.msra.mxu0 0.0
        %4947 = vmatprep.subr.mxu0 0.0
        %4948 = vmatpush1.msra.mxu0 0.0
        %4949 = vmatprep.subr.mxu0 0.0
        %4950 = vmatpush1.msra.mxu0 0.0
        %4951 = vmatprep.subr.mxu0 0.0
        %4952 = vmatpush1.msra.mxu0 0.0
        %4953 = vmatprep.subr.mxu0 0.0
        %4954 = vmatpush1.msra.mxu0 0.0
        %4955 = vmatprep.subr.mxu0 0.0
        %4956 = vmatpush1.msra.mxu0 0.0
        %4957 = vmatprep.subr.mxu0 0.0
        %4958 = vmatpush1.msra.mxu0 0.0
        %4959 = vmatprep.subr.mxu0 0.0
        %4960 = vmatpush1.msra.mxu0 0.0
        %4961 = vmatprep.subr.mxu0 0.0
        %4962 = vmatpush1.msra.mxu0 0.0
        %4963 = vmatprep.subr.mxu0 0.0
        %4964 = vmatpush1.msra.mxu0 0.0
        %4965 = vmatprep.subr.mxu0 0.0
        %4966 = vmatpush1.msra.mxu0 %v4935
        %4967 = vmatprep.subr.mxu0 0.0
        %4968 = vmatpush1.msra.mxu0 %v4928
        %4969 = vmatprep.subr.mxu0 0.0
        %4970 = vmatpush2.msra.mxu0 0.0
        %4971 = vmatprep.subr.mxu0 0.0
        %4972 = vmatpush2.msra.mxu0 0.0
        %4973 = vmatprep.subr.mxu0 0.0
        %4974 = vmatpush2.msra.mxu0 0.0
        %4975 = vmatprep.subr.mxu0 0.0
        %4976 = vmatpush2.msra.mxu0 0.0
        %4977 = vmatprep.subr.mxu0 0.0
        %4978 = vmatpush2.msra.mxu0 0.0
        %4979 = vmatprep.subr.mxu0 0.0
        %4980 = vmatpush2.msra.mxu0 0.0
        %4981 = vmatprep.subr.mxu0 0.0
        %4982 = vmatpush2.msra.mxu0 0.0
        %4983 = vmatprep.subr.mxu0 0.0
        %4984 = vmatpush2.msra.mxu0 0.0
        %4985 = vmatprep.subr.mxu0 0.0
        %4986 = vmatpush2.msra.mxu0 0.0
        %4987 = vmatprep.subr.mxu0 0.0
        %4988 = vmatpush2.msra.mxu0 0.0
        %4989 = vmatprep.subr.mxu0 0.0
        %4990 = vmatpush2.msra.mxu0 0.0
        %4991 = vmatprep.subr.mxu0 0.0
        %4992 = vmatpush2.msra.mxu0 0.0
        %4993 = vmatprep.subr.mxu0 0.0
        %4994 = vmatpush2.msra.mxu0 0.0
        %4995 = vmatprep.subr.mxu0 0.0
        %4996 = vmatpush2.msra.mxu0 0.0
        %4997 = vmatprep.subr.mxu0 0.0
        %4998 = vmatpush2.msra.mxu0 0.0
        %4999 = vmatprep.subr.mxu0 0.0
        %5000 = vmatpush2.msra.mxu0 0.0
        %5001 = vmatprep.mubr.f32.mxu0 0.0
        %5002 = vmatmul.mubr.f32.gmra.mxu0 %v4933
        %v5003 = vpop.f32.mrf.mxu0
        %v5004 = vadd.f32 0.0, %v5003
        %v5005 = vpop.f32.mrf.mxu0
        %5006 = vdwg.mxu0
        %5007 = vrot.lane.b32.xlu0 %v4562, 112
        %v5008 = vpop.permute.xlu0 %5007
        %5009 = vrot.lane.b32.xlu0 %v4645, 112
        %v5010 = vpop.permute.xlu0 %5009
        %5011 = vrot.lane.b32.xlu0 %v4650, 112
        %v5012 = vpop.permute.xlu0 %5011
        %v5013 = vsel %vm1594, %v5008, 0
        %v5015 = vsel %vm1594, %v5010, 0
        %v5017 = vsel %vm1594, %v5012, 0
        %5019 = vmatprep.subr.mxu0 0.0
        %5020 = vmatpush1.xpose.msra.mxu0 0.0
        %5021 = vmatprep.subr.mxu0 0.0
        %5022 = vmatpush1.xpose.msra.mxu0 0.0
        %5023 = vmatprep.subr.mxu0 0.0
        %5024 = vmatpush1.xpose.msra.mxu0 0.0
        %5025 = vmatprep.subr.mxu0 0.0
        %5026 = vmatpush1.xpose.msra.mxu0 0.0
        %5027 = vmatprep.subr.mxu0 0.0
        %5028 = vmatpush1.xpose.msra.mxu0 0.0
        %5029 = vmatprep.subr.mxu0 0.0
        %5030 = vmatpush1.xpose.msra.mxu0 0.0
        %5031 = vmatprep.subr.mxu0 0.0
        %5032 = vmatpush1.xpose.msra.mxu0 0.0
        %5033 = vmatprep.subr.mxu0 0.0
        %5034 = vmatpush1.xpose.msra.mxu0 0.0
        %5035 = vmatprep.subr.mxu0 0.0
        %5036 = vmatpush1.xpose.msra.mxu0 0.0
        %5037 = vmatprep.subr.mxu0 0.0
        %5038 = vmatpush1.xpose.msra.mxu0 0.0
        %5039 = vmatprep.subr.mxu0 0.0
        %5040 = vmatpush1.xpose.msra.mxu0 0.0
        %5041 = vmatprep.subr.mxu0 0.0
        %5042 = vmatpush1.xpose.msra.mxu0 0.0
        %5043 = vmatprep.subr.mxu0 0.0
        %5044 = vmatpush1.xpose.msra.mxu0 0.0
        %5045 = vmatprep.subr.mxu0 0.0
        %5046 = vmatpush1.xpose.msra.mxu0 0.0
        %5047 = vmatprep.subr.mxu0 0.0
        %5048 = vmatpush1.xpose.msra.mxu0 %v5017
        %5049 = vmatprep.subr.mxu0 0.0
        %5050 = vmatpush1.xpose.msra.mxu0 %v5015
        %5051 = vmatprep.subr.mxu0 0.0
        %5052 = vmatpush2.xpose.msra.mxu0 0.0
        %5053 = vmatprep.subr.mxu0 0.0
        %5054 = vmatpush2.xpose.msra.mxu0 0.0
        %5055 = vmatprep.subr.mxu0 0.0
        %5056 = vmatpush2.xpose.msra.mxu0 0.0
        %5057 = vmatprep.subr.mxu0 0.0
        %5058 = vmatpush2.xpose.msra.mxu0 0.0
        %5059 = vmatprep.subr.mxu0 0.0
        %5060 = vmatpush2.xpose.msra.mxu0 0.0
        %5061 = vmatprep.subr.mxu0 0.0
        %5062 = vmatpush2.xpose.msra.mxu0 0.0
        %5063 = vmatprep.subr.mxu0 0.0
        %5064 = vmatpush2.xpose.msra.mxu0 0.0
        %5065 = vmatprep.subr.mxu0 0.0
        %5066 = vmatpush2.xpose.msra.mxu0 0.0
        %5067 = vmatprep.subr.mxu0 0.0
        %5068 = vmatpush2.xpose.msra.mxu0 0.0
        %5069 = vmatprep.subr.mxu0 0.0
        %5070 = vmatpush2.xpose.msra.mxu0 0.0
        %5071 = vmatprep.subr.mxu0 0.0
        %5072 = vmatpush2.xpose.msra.mxu0 0.0
        %5073 = vmatprep.subr.mxu0 0.0
        %5074 = vmatpush2.xpose.msra.mxu0 0.0
        %5075 = vmatprep.subr.mxu0 0.0
        %5076 = vmatpush2.xpose.msra.mxu0 0.0
        %5077 = vmatprep.subr.mxu0 0.0
        %5078 = vmatpush2.xpose.msra.mxu0 0.0
        %5079 = vmatprep.subr.mxu0 0.0
        %5080 = vmatpush2.xpose.msra.mxu0 0.0
        %5081 = vmatprep.subr.mxu0 0.0
        %5082 = vmatpush2.xpose.msra.mxu0 0.0
        %5083 = vmatprep.mubr.f32.mxu0 0.0
        %5084 = vmatmul.mubr.f32.gmra.mxu0 %v5013
        %v5085 = vpop.f32.mrf.mxu0
        %v5086 = vadd.f32 0.0, %v5085
        %v5087 = vpop.f32.mrf.mxu0
        %5088 = vdwg.mxu0
        %v5089 = vmul.f32 %v5086, 0.35355338
        %v5090 = vadd.f32 %v5089, %v1499
        %v5091 = vsel %vm2647, %v5090, -inf
        %5092 = vmax.xlane.f32.xlu0 %v5091
        %v5093 = vpop.xlane.xlu0 %5092
        %v5094 = vsub.f32 %v5090, %v5093
        %v5095 = vmul.f32 %v5094, 1.442695
        %v5096 = vpow.pop %v5095
        %v5097 = vsel %vm2647, %v5096, 0.0
        %5098 = vadd.xlane.f32.xlu0 %v5097
        %v5099 = vpop.xlane.xlu0 %5098
        %v5100 = vrcp.pop %v5099
        %v5101 = vmul.f32 %v5096, %v5100
        %5102 = vrot.lane.b32.xlu0 %v4645, 80
        %v5103 = vpop.permute.xlu0 %5102
        %5104 = vrot.lane.b32.xlu0 %v4650, 80
        %v5105 = vpop.permute.xlu0 %5104
        %v5108 = vsel %vm2647, %v5101, 0
        %v5110 = vsel %vm2667, %v5105, 0
        %5112 = vmatprep.subr.mxu0 0.0
        %5113 = vmatpush1.msra.mxu0 0.0
        %5114 = vmatprep.subr.mxu0 0.0
        %5115 = vmatpush1.msra.mxu0 0.0
        %5116 = vmatprep.subr.mxu0 0.0
        %5117 = vmatpush1.msra.mxu0 0.0
        %5118 = vmatprep.subr.mxu0 0.0
        %5119 = vmatpush1.msra.mxu0 0.0
        %5120 = vmatprep.subr.mxu0 0.0
        %5121 = vmatpush1.msra.mxu0 0.0
        %5122 = vmatprep.subr.mxu0 0.0
        %5123 = vmatpush1.msra.mxu0 0.0
        %5124 = vmatprep.subr.mxu0 0.0
        %5125 = vmatpush1.msra.mxu0 0.0
        %5126 = vmatprep.subr.mxu0 0.0
        %5127 = vmatpush1.msra.mxu0 0.0
        %5128 = vmatprep.subr.mxu0 0.0
        %5129 = vmatpush1.msra.mxu0 0.0
        %5130 = vmatprep.subr.mxu0 0.0
        %5131 = vmatpush1.msra.mxu0 0.0
        %5132 = vmatprep.subr.mxu0 0.0
        %5133 = vmatpush1.msra.mxu0 0.0
        %5134 = vmatprep.subr.mxu0 0.0
        %5135 = vmatpush1.msra.mxu0 0.0
        %5136 = vmatprep.subr.mxu0 0.0
        %5137 = vmatpush1.msra.mxu0 0.0
        %5138 = vmatprep.subr.mxu0 0.0
        %5139 = vmatpush1.msra.mxu0 0.0
        %5140 = vmatprep.subr.mxu0 0.0
        %5141 = vmatpush1.msra.mxu0 %v5110
        %5142 = vmatprep.subr.mxu0 0.0
        %5143 = vmatpush1.msra.mxu0 %v5103
        %5144 = vmatprep.subr.mxu0 0.0
        %5145 = vmatpush2.msra.mxu0 0.0
        %5146 = vmatprep.subr.mxu0 0.0
        %5147 = vmatpush2.msra.mxu0 0.0
        %5148 = vmatprep.subr.mxu0 0.0
        %5149 = vmatpush2.msra.mxu0 0.0
        %5150 = vmatprep.subr.mxu0 0.0
        %5151 = vmatpush2.msra.mxu0 0.0
        %5152 = vmatprep.subr.mxu0 0.0
        %5153 = vmatpush2.msra.mxu0 0.0
        %5154 = vmatprep.subr.mxu0 0.0
        %5155 = vmatpush2.msra.mxu0 0.0
        %5156 = vmatprep.subr.mxu0 0.0
        %5157 = vmatpush2.msra.mxu0 0.0
        %5158 = vmatprep.subr.mxu0 0.0
        %5159 = vmatpush2.msra.mxu0 0.0
        %5160 = vmatprep.subr.mxu0 0.0
        %5161 = vmatpush2.msra.mxu0 0.0
        %5162 = vmatprep.subr.mxu0 0.0
        %5163 = vmatpush2.msra.mxu0 0.0
        %5164 = vmatprep.subr.mxu0 0.0
        %5165 = vmatpush2.msra.mxu0 0.0
        %5166 = vmatprep.subr.mxu0 0.0
        %5167 = vmatpush2.msra.mxu0 0.0
        %5168 = vmatprep.subr.mxu0 0.0
        %5169 = vmatpush2.msra.mxu0 0.0
        %5170 = vmatprep.subr.mxu0 0.0
        %5171 = vmatpush2.msra.mxu0 0.0
        %5172 = vmatprep.subr.mxu0 0.0
        %5173 = vmatpush2.msra.mxu0 0.0
        %5174 = vmatprep.subr.mxu0 0.0
        %5175 = vmatpush2.msra.mxu0 0.0
        %5176 = vmatprep.mubr.f32.mxu0 0.0
        %5177 = vmatmul.mubr.f32.gmra.mxu0 %v5108
        %v5178 = vpop.f32.mrf.mxu0
        %v5179 = vadd.f32 0.0, %v5178
        %v5180 = vpop.f32.mrf.mxu0
        %5181 = vdwg.mxu0
        %5182 = vrot.lane.b32.xlu0 %v4562, 104
        %v5183 = vpop.permute.xlu0 %5182
        %5184 = vrot.lane.b32.xlu0 %v4645, 104
        %v5185 = vpop.permute.xlu0 %5184
        %5186 = vrot.lane.b32.xlu0 %v4650, 104
        %v5187 = vpop.permute.xlu0 %5186
        %v5188 = vsel %vm1594, %v5183, 0
        %v5190 = vsel %vm1594, %v5185, 0
        %v5192 = vsel %vm1594, %v5187, 0
        %5194 = vmatprep.subr.mxu0 0.0
        %5195 = vmatpush1.xpose.msra.mxu0 0.0
        %5196 = vmatprep.subr.mxu0 0.0
        %5197 = vmatpush1.xpose.msra.mxu0 0.0
        %5198 = vmatprep.subr.mxu0 0.0
        %5199 = vmatpush1.xpose.msra.mxu0 0.0
        %5200 = vmatprep.subr.mxu0 0.0
        %5201 = vmatpush1.xpose.msra.mxu0 0.0
        %5202 = vmatprep.subr.mxu0 0.0
        %5203 = vmatpush1.xpose.msra.mxu0 0.0
        %5204 = vmatprep.subr.mxu0 0.0
        %5205 = vmatpush1.xpose.msra.mxu0 0.0
        %5206 = vmatprep.subr.mxu0 0.0
        %5207 = vmatpush1.xpose.msra.mxu0 0.0
        %5208 = vmatprep.subr.mxu0 0.0
        %5209 = vmatpush1.xpose.msra.mxu0 0.0
        %5210 = vmatprep.subr.mxu0 0.0
        %5211 = vmatpush1.xpose.msra.mxu0 0.0
        %5212 = vmatprep.subr.mxu0 0.0
        %5213 = vmatpush1.xpose.msra.mxu0 0.0
        %5214 = vmatprep.subr.mxu0 0.0
        %5215 = vmatpush1.xpose.msra.mxu0 0.0
        %5216 = vmatprep.subr.mxu0 0.0
        %5217 = vmatpush1.xpose.msra.mxu0 0.0
        %5218 = vmatprep.subr.mxu0 0.0
        %5219 = vmatpush1.xpose.msra.mxu0 0.0
        %5220 = vmatprep.subr.mxu0 0.0
        %5221 = vmatpush1.xpose.msra.mxu0 0.0
        %5222 = vmatprep.subr.mxu0 0.0
        %5223 = vmatpush1.xpose.msra.mxu0 %v5192
        %5224 = vmatprep.subr.mxu0 0.0
        %5225 = vmatpush1.xpose.msra.mxu0 %v5190
        %5226 = vmatprep.subr.mxu0 0.0
        %5227 = vmatpush2.xpose.msra.mxu0 0.0
        %5228 = vmatprep.subr.mxu0 0.0
        %5229 = vmatpush2.xpose.msra.mxu0 0.0
        %5230 = vmatprep.subr.mxu0 0.0
        %5231 = vmatpush2.xpose.msra.mxu0 0.0
        %5232 = vmatprep.subr.mxu0 0.0
        %5233 = vmatpush2.xpose.msra.mxu0 0.0
        %5234 = vmatprep.subr.mxu0 0.0
        %5235 = vmatpush2.xpose.msra.mxu0 0.0
        %5236 = vmatprep.subr.mxu0 0.0
        %5237 = vmatpush2.xpose.msra.mxu0 0.0
        %5238 = vmatprep.subr.mxu0 0.0
        %5239 = vmatpush2.xpose.msra.mxu0 0.0
        %5240 = vmatprep.subr.mxu0 0.0
        %5241 = vmatpush2.xpose.msra.mxu0 0.0
        %5242 = vmatprep.subr.mxu0 0.0
        %5243 = vmatpush2.xpose.msra.mxu0 0.0
        %5244 = vmatprep.subr.mxu0 0.0
        %5245 = vmatpush2.xpose.msra.mxu0 0.0
        %5246 = vmatprep.subr.mxu0 0.0
        %5247 = vmatpush2.xpose.msra.mxu0 0.0
        %5248 = vmatprep.subr.mxu0 0.0
        %5249 = vmatpush2.xpose.msra.mxu0 0.0
        %5250 = vmatprep.subr.mxu0 0.0
        %5251 = vmatpush2.xpose.msra.mxu0 0.0
        %5252 = vmatprep.subr.mxu0 0.0
        %5253 = vmatpush2.xpose.msra.mxu0 0.0
        %5254 = vmatprep.subr.mxu0 0.0
        %5255 = vmatpush2.xpose.msra.mxu0 0.0
        %5256 = vmatprep.subr.mxu0 0.0
        %5257 = vmatpush2.xpose.msra.mxu0 0.0
        %5258 = vmatprep.mubr.f32.mxu0 0.0
        %5259 = vmatmul.mubr.f32.gmra.mxu0 %v5188
        %v5260 = vpop.f32.mrf.mxu0
        %v5261 = vadd.f32 0.0, %v5260
        %v5262 = vpop.f32.mrf.mxu0
        %5263 = vdwg.mxu0
        %v5264 = vmul.f32 %v5261, 0.35355338
        %v5265 = vadd.f32 %v5264, %v1499
        %v5266 = vsel %vm2647, %v5265, -inf
        %5267 = vmax.xlane.f32.xlu0 %v5266
        %v5268 = vpop.xlane.xlu0 %5267
        %v5269 = vsub.f32 %v5265, %v5268
        %v5270 = vmul.f32 %v5269, 1.442695
        %v5271 = vpow.pop %v5270
        %v5272 = vsel %vm2647, %v5271, 0.0
        %5273 = vadd.xlane.f32.xlu0 %v5272
        %v5274 = vpop.xlane.xlu0 %5273
        %v5275 = vrcp.pop %v5274
        %v5276 = vmul.f32 %v5271, %v5275
        %5277 = vrot.lane.b32.xlu0 %v4645, 72
        %v5278 = vpop.permute.xlu0 %5277
        %5279 = vrot.lane.b32.xlu0 %v4650, 72
        %v5280 = vpop.permute.xlu0 %5279
        %v5283 = vsel %vm2647, %v5276, 0
        %v5285 = vsel %vm2667, %v5280, 0
        %5287 = vmatprep.subr.mxu0 0.0
        %5288 = vmatpush1.msra.mxu0 0.0
        %5289 = vmatprep.subr.mxu0 0.0
        %5290 = vmatpush1.msra.mxu0 0.0
        %5291 = vmatprep.subr.mxu0 0.0
        %5292 = vmatpush1.msra.mxu0 0.0
        %5293 = vmatprep.subr.mxu0 0.0
        %5294 = vmatpush1.msra.mxu0 0.0
        %5295 = vmatprep.subr.mxu0 0.0
        %5296 = vmatpush1.msra.mxu0 0.0
        %5297 = vmatprep.subr.mxu0 0.0
        %5298 = vmatpush1.msra.mxu0 0.0
        %5299 = vmatprep.subr.mxu0 0.0
        %5300 = vmatpush1.msra.mxu0 0.0
        %5301 = vmatprep.subr.mxu0 0.0
        %5302 = vmatpush1.msra.mxu0 0.0
        %5303 = vmatprep.subr.mxu0 0.0
        %5304 = vmatpush1.msra.mxu0 0.0
        %5305 = vmatprep.subr.mxu0 0.0
        %5306 = vmatpush1.msra.mxu0 0.0
        %5307 = vmatprep.subr.mxu0 0.0
        %5308 = vmatpush1.msra.mxu0 0.0
        %5309 = vmatprep.subr.mxu0 0.0
        %5310 = vmatpush1.msra.mxu0 0.0
        %5311 = vmatprep.subr.mxu0 0.0
        %5312 = vmatpush1.msra.mxu0 0.0
        %5313 = vmatprep.subr.mxu0 0.0
        %5314 = vmatpush1.msra.mxu0 0.0
        %5315 = vmatprep.subr.mxu0 0.0
        %5316 = vmatpush1.msra.mxu0 %v5285
        %5317 = vmatprep.subr.mxu0 0.0
        %5318 = vmatpush1.msra.mxu0 %v5278
        %5319 = vmatprep.subr.mxu0 0.0
        %5320 = vmatpush2.msra.mxu0 0.0
        %5321 = vmatprep.subr.mxu0 0.0
        %5322 = vmatpush2.msra.mxu0 0.0
        %5323 = vmatprep.subr.mxu0 0.0
        %5324 = vmatpush2.msra.mxu0 0.0
        %5325 = vmatprep.subr.mxu0 0.0
        %5326 = vmatpush2.msra.mxu0 0.0
        %5327 = vmatprep.subr.mxu0 0.0
        %5328 = vmatpush2.msra.mxu0 0.0
        %5329 = vmatprep.subr.mxu0 0.0
        %5330 = vmatpush2.msra.mxu0 0.0
        %5331 = vmatprep.subr.mxu0 0.0
        %5332 = vmatpush2.msra.mxu0 0.0
        %5333 = vmatprep.subr.mxu0 0.0
        %5334 = vmatpush2.msra.mxu0 0.0
        %5335 = vmatprep.subr.mxu0 0.0
        %5336 = vmatpush2.msra.mxu0 0.0
        %5337 = vmatprep.subr.mxu0 0.0
        %5338 = vmatpush2.msra.mxu0 0.0
        %5339 = vmatprep.subr.mxu0 0.0
        %5340 = vmatpush2.msra.mxu0 0.0
        %5341 = vmatprep.subr.mxu0 0.0
        %5342 = vmatpush2.msra.mxu0 0.0
        %5343 = vmatprep.subr.mxu0 0.0
        %5344 = vmatpush2.msra.mxu0 0.0
        %5345 = vmatprep.subr.mxu0 0.0
        %5346 = vmatpush2.msra.mxu0 0.0
        %5347 = vmatprep.subr.mxu0 0.0
        %5348 = vmatpush2.msra.mxu0 0.0
        %5349 = vmatprep.subr.mxu0 0.0
        %5350 = vmatpush2.msra.mxu0 0.0
        %5351 = vmatprep.mubr.f32.mxu0 0.0
        %5352 = vmatmul.mubr.f32.gmra.mxu0 %v5283
        %v5353 = vpop.f32.mrf.mxu0
        %v5354 = vadd.f32 0.0, %v5353
        %v5355 = vpop.f32.mrf.mxu0
        %5356 = vdwg.mxu0
        %5358 = vrot.lane.b32.xlu0 %v5004, 8
        %v5359 = vpop.permute.xlu0 %5358
        %5362 = vrot.lane.b32.xlu0 %v5179, 16
        %v5363 = vpop.permute.xlu0 %5362
        %5366 = vrot.lane.b32.xlu0 %v5354, 24
        %v5367 = vpop.permute.xlu0 %5366
        %v5369 = vsel %vm1594, %v4829, %v5359
        %v5370 = vsel %vm2272, %v5369, %v5363
        %v5371 = vsel %vm1317, %v5370, %v5367
        %v5373 = vlaneseq
        %v5374 = vshrl.u32 %v5373, 7
        %v5375 = vsub.s32 0, %v5374
        %v5376 = vrot.slane %v4659, %v5375
        %v5379 = vsel %vm1512, %v5371, 0
        %5381 = vmatprep.subr.mxu0 0.0
        %5382 = vmatpush1.msra.mxu0 0.0
        %5383 = vmatprep.subr.mxu0 0.0
        %5384 = vmatpush1.msra.mxu0 0.0
        %5385 = vmatprep.subr.mxu0 0.0
        %5386 = vmatpush1.msra.mxu0 0.0
        %5387 = vmatprep.subr.mxu0 0.0
        %5388 = vmatpush1.msra.mxu0 0.0
        %5389 = vmatprep.subr.mxu0 0.0
        %5390 = vmatpush1.msra.mxu0 0.0
        %5391 = vmatprep.subr.mxu0 0.0
        %5392 = vmatpush1.msra.mxu0 0.0
        %5393 = vmatprep.subr.mxu0 0.0
        %5394 = vmatpush1.msra.mxu0 0.0
        %5395 = vmatprep.subr.mxu0 0.0
        %5396 = vmatpush1.msra.mxu0 0.0
        %5397 = vmatprep.subr.mxu0 0.0
        %5398 = vmatpush1.msra.mxu0 0.0
        %5399 = vmatprep.subr.mxu0 0.0
        %5400 = vmatpush1.msra.mxu0 0.0
        %5401 = vmatprep.subr.mxu0 0.0
        %5402 = vmatpush1.msra.mxu0 0.0
        %5403 = vmatprep.subr.mxu0 0.0
        %5404 = vmatpush1.msra.mxu0 0.0
        %5405 = vmatprep.subr.mxu0 0.0
        %5406 = vmatpush1.msra.mxu0 %v4657
        %5407 = vmatprep.subr.mxu0 0.0
        %5408 = vmatpush1.msra.mxu0 %v4656
        %5409 = vmatprep.subr.mxu0 0.0
        %5410 = vmatpush1.msra.mxu0 %v4655
        %5411 = vmatprep.subr.mxu0 0.0
        %5412 = vmatpush1.msra.mxu0 %v4654
        %5413 = vmatprep.subr.mxu0 0.0
        %5414 = vmatpush2.msra.mxu0 0.0
        %5415 = vmatprep.subr.mxu0 0.0
        %5416 = vmatpush2.msra.mxu0 0.0
        %5417 = vmatprep.subr.mxu0 0.0
        %5418 = vmatpush2.msra.mxu0 0.0
        %5419 = vmatprep.subr.mxu0 0.0
        %5420 = vmatpush2.msra.mxu0 0.0
        %5421 = vmatprep.subr.mxu0 0.0
        %5422 = vmatpush2.msra.mxu0 0.0
        %5423 = vmatprep.subr.mxu0 0.0
        %5424 = vmatpush2.msra.mxu0 0.0
        %5425 = vmatprep.subr.mxu0 0.0
        %5426 = vmatpush2.msra.mxu0 0.0
        %5427 = vmatprep.subr.mxu0 0.0
        %5428 = vmatpush2.msra.mxu0 0.0
        %5429 = vmatprep.subr.mxu0 0.0
        %5430 = vmatpush2.msra.mxu0 0.0
        %5431 = vmatprep.subr.mxu0 0.0
        %5432 = vmatpush2.msra.mxu0 0.0
        %5433 = vmatprep.subr.mxu0 0.0
        %5434 = vmatpush2.msra.mxu0 0.0
        %5435 = vmatprep.subr.mxu0 0.0
        %5436 = vmatpush2.msra.mxu0 0.0
        %5437 = vmatprep.subr.mxu0 0.0
        %5438 = vmatpush2.msra.mxu0 0.0
        %5439 = vmatprep.subr.mxu0 0.0
        %5440 = vmatpush2.msra.mxu0 0.0
        %5441 = vmatprep.subr.mxu0 0.0
        %5442 = vmatpush2.msra.mxu0 0.0
        %5443 = vmatprep.subr.mxu0 0.0
        %5444 = vmatpush2.msra.mxu0 0.0
        %5445 = vmatprep.mubr.f32.mxu0 0.0
        %5446 = vmatmul.mubr.f32.gmra.mxu0 %v5379
        %v5447 = vpop.f32.mrf.mxu0
        %v5448 = vadd.f32 %v5376, %v5447
        %v5449 = vpop.f32.mrf.mxu0
        %5450 = vdwg.mxu0
        %v5451 = vadd.f32 %v5448, %v4478
        %s5452 = scalar_lea.vmem [#allocation25], 1
        %v5453 = vld [vmem:[%s5452] sm:$0x1]
        %s5454 = scalar_lea.vmem [#allocation26], 1
        %v5455 = vld [vmem:[%s5454] sm:$0x1]
        %v5456 = vsel %vm1512, %v5451, 0.0
        %5457 = vadd.xlane.f32.xlu0 %v5456
        %v5458 = vpop.xlane.xlu0 %5457
        %v5459 = vmul.f32 %v5458, %v2360
        %v5460 = vsub.f32 %v5451, %v5459
        %v5461 = vmul.f32 %v5460, %v5460
        %v5462 = vsel %vm1512, %v5461, 0.0
        %5463 = vadd.xlane.f32.xlu0 %v5462
        %v5464 = vpop.xlane.xlu0 %5463
        %v5465 = vmul.f32 %v5464, %v2360
        %v5466 = vadd.f32 %v5465, 1e-05
        %v5467 = vrsqrt.pop %v5466
        %v5468 = vmul.f32 %v5460, %v5467
        %v5470 = vlaneseq
        %v5471 = vshrl.u32 %v5470, 7
        %v5472 = vsub.s32 0, %v5471
        %v5473 = vrot.slane %v5453, %v5472
        %v5475 = vmul.f32 %v5468, %v5473
        %v5477 = vlaneseq
        %v5478 = vshrl.u32 %v5477, 7
        %v5479 = vsub.s32 0, %v5478
        %v5480 = vrot.slane %v5455, %v5479
        %v5482 = vadd.f32 %v5475, %v5480
        %s5483 = scalar_lea.vmem [#allocation17], 32
        %v5484 = vld [vmem:[%s5483] sm:$0xff]
        %v5485 = vld [vmem:[%s5483 + $0x8] sm:$0xff]
        %v5486 = vld [vmem:[%s5483 + $0x10] sm:$0xff]
        %v5487 = vld [vmem:[%s5483 + $0x18] sm:$0xff]
        %s5488 = scalar_lea.vmem [#allocation19], 1
        %v5489 = vld [vmem:[%s5488] sm:$0x1]
        %v5491 = vlaneseq
        %v5492 = vshrl.u32 %v5491, 7
        %v5493 = vsub.s32 0, %v5492
        %v5494 = vrot.slane %v5489, %v5493
        %v5497 = vsel %vm1512, %v5482, 0
        %5499 = vmatprep.subr.mxu0 0.0
        %5500 = vmatpush1.msra.mxu0 0.0
        %5501 = vmatprep.subr.mxu0 0.0
        %5502 = vmatpush1.msra.mxu0 0.0
        %5503 = vmatprep.subr.mxu0 0.0
        %5504 = vmatpush1.msra.mxu0 0.0
        %5505 = vmatprep.subr.mxu0 0.0
        %5506 = vmatpush1.msra.mxu0 0.0
        %5507 = vmatprep.subr.mxu0 0.0
        %5508 = vmatpush1.msra.mxu0 0.0
        %5509 = vmatprep.subr.mxu0 0.0
        %5510 = vmatpush1.msra.mxu0 0.0
        %5511 = vmatprep.subr.mxu0 0.0
        %5512 = vmatpush1.msra.mxu0 0.0
        %5513 = vmatprep.subr.mxu0 0.0
        %5514 = vmatpush1.msra.mxu0 0.0
        %5515 = vmatprep.subr.mxu0 0.0
        %5516 = vmatpush1.msra.mxu0 0.0
        %5517 = vmatprep.subr.mxu0 0.0
        %5518 = vmatpush1.msra.mxu0 0.0
        %5519 = vmatprep.subr.mxu0 0.0
        %5520 = vmatpush1.msra.mxu0 0.0
        %5521 = vmatprep.subr.mxu0 0.0
        %5522 = vmatpush1.msra.mxu0 0.0
        %5523 = vmatprep.subr.mxu0 0.0
        %5524 = vmatpush1.msra.mxu0 %v5487
        %5525 = vmatprep.subr.mxu0 0.0
        %5526 = vmatpush1.msra.mxu0 %v5486
        %5527 = vmatprep.subr.mxu0 0.0
        %5528 = vmatpush1.msra.mxu0 %v5485
        %5529 = vmatprep.subr.mxu0 0.0
        %5530 = vmatpush1.msra.mxu0 %v5484
        %5531 = vmatprep.subr.mxu0 0.0
        %5532 = vmatpush2.msra.mxu0 0.0
        %5533 = vmatprep.subr.mxu0 0.0
        %5534 = vmatpush2.msra.mxu0 0.0
        %5535 = vmatprep.subr.mxu0 0.0
        %5536 = vmatpush2.msra.mxu0 0.0
        %5537 = vmatprep.subr.mxu0 0.0
        %5538 = vmatpush2.msra.mxu0 0.0
        %5539 = vmatprep.subr.mxu0 0.0
        %5540 = vmatpush2.msra.mxu0 0.0
        %5541 = vmatprep.subr.mxu0 0.0
        %5542 = vmatpush2.msra.mxu0 0.0
        %5543 = vmatprep.subr.mxu0 0.0
        %5544 = vmatpush2.msra.mxu0 0.0
        %5545 = vmatprep.subr.mxu0 0.0
        %5546 = vmatpush2.msra.mxu0 0.0
        %5547 = vmatprep.subr.mxu0 0.0
        %5548 = vmatpush2.msra.mxu0 0.0
        %5549 = vmatprep.subr.mxu0 0.0
        %5550 = vmatpush2.msra.mxu0 0.0
        %5551 = vmatprep.subr.mxu0 0.0
        %5552 = vmatpush2.msra.mxu0 0.0
        %5553 = vmatprep.subr.mxu0 0.0
        %5554 = vmatpush2.msra.mxu0 0.0
        %5555 = vmatprep.subr.mxu0 0.0
        %5556 = vmatpush2.msra.mxu0 0.0
        %5557 = vmatprep.subr.mxu0 0.0
        %5558 = vmatpush2.msra.mxu0 0.0
        %5559 = vmatprep.subr.mxu0 0.0
        %5560 = vmatpush2.msra.mxu0 0.0
        %5561 = vmatprep.subr.mxu0 0.0
        %5562 = vmatpush2.msra.mxu0 0.0
        %5563 = vmatprep.mubr.f32.mxu0 0.0
        %5564 = vmatmul.mubr.f32.gmra.mxu0 %v5497
        %v5565 = vpop.f32.mrf.mxu0
        %v5566 = vadd.f32 %v5494, %v5565
        %v5567 = vpop.f32.mrf.mxu0
        %5568 = vdwg.mxu0
        %v5569 = vmax.f32 %v5566, 0.0
        %s5570 = scalar_lea.vmem %s43, 64
        %v5571 = vld [vmem:[%s5570] sm:$0xff]
        %v5572 = vld [vmem:[%s5570 + $0x8] sm:$0xff]
        %v5573 = vld [vmem:[%s5570 + $0x10] sm:$0xff]
        %v5574 = vld [vmem:[%s5570 + $0x18] sm:$0xff]
        %v5575 = vld [vmem:[%s5570 + $0x20] sm:$0xff]
        %v5576 = vld [vmem:[%s5570 + $0x28] sm:$0xff]
        %v5577 = vld [vmem:[%s5570 + $0x30] sm:$0xff]
        %v5578 = vld [vmem:[%s5570 + $0x38] sm:$0xff]
        %s5579 = scalar_lea.vmem [#allocation20], 1
        %v5580 = vld [vmem:[%s5579] sm:$0x1]
        %v5582 = vlaneseq
        %v5583 = vshrl.u32 %v5582, 7
        %v5584 = vsub.s32 0, %v5583
        %v5585 = vrot.slane %v5580, %v5584
        %v5588 = vsel %vm3489, %v5569, 0
        %5590 = vmatprep.subr.mxu0 0.0
        %5591 = vmatpush1.msra.mxu0 0.0
        %5592 = vmatprep.subr.mxu0 0.0
        %5593 = vmatpush1.msra.mxu0 0.0
        %5594 = vmatprep.subr.mxu0 0.0
        %5595 = vmatpush1.msra.mxu0 0.0
        %5596 = vmatprep.subr.mxu0 0.0
        %5597 = vmatpush1.msra.mxu0 0.0
        %5598 = vmatprep.subr.mxu0 0.0
        %5599 = vmatpush1.msra.mxu0 0.0
        %5600 = vmatprep.subr.mxu0 0.0
        %5601 = vmatpush1.msra.mxu0 0.0
        %5602 = vmatprep.subr.mxu0 0.0
        %5603 = vmatpush1.msra.mxu0 0.0
        %5604 = vmatprep.subr.mxu0 0.0
        %5605 = vmatpush1.msra.mxu0 0.0
        %5606 = vmatprep.subr.mxu0 0.0
        %5607 = vmatpush1.msra.mxu0 %v5578
        %5608 = vmatprep.subr.mxu0 0.0
        %5609 = vmatpush1.msra.mxu0 %v5577
        %5610 = vmatprep.subr.mxu0 0.0
        %5611 = vmatpush1.msra.mxu0 %v5576
        %5612 = vmatprep.subr.mxu0 0.0
        %5613 = vmatpush1.msra.mxu0 %v5575
        %5614 = vmatprep.subr.mxu0 0.0
        %5615 = vmatpush1.msra.mxu0 %v5574
        %5616 = vmatprep.subr.mxu0 0.0
        %5617 = vmatpush1.msra.mxu0 %v5573
        %5618 = vmatprep.subr.mxu0 0.0
        %5619 = vmatpush1.msra.mxu0 %v5572
        %5620 = vmatprep.subr.mxu0 0.0
        %5621 = vmatpush1.msra.mxu0 %v5571
        %5622 = vmatprep.subr.mxu0 0.0
        %5623 = vmatpush2.msra.mxu0 0.0
        %5624 = vmatprep.subr.mxu0 0.0
        %5625 = vmatpush2.msra.mxu0 0.0
        %5626 = vmatprep.subr.mxu0 0.0
        %5627 = vmatpush2.msra.mxu0 0.0
        %5628 = vmatprep.subr.mxu0 0.0
        %5629 = vmatpush2.msra.mxu0 0.0
        %5630 = vmatprep.subr.mxu0 0.0
        %5631 = vmatpush2.msra.mxu0 0.0
        %5632 = vmatprep.subr.mxu0 0.0
        %5633 = vmatpush2.msra.mxu0 0.0
        %5634 = vmatprep.subr.mxu0 0.0
        %5635 = vmatpush2.msra.mxu0 0.0
        %5636 = vmatprep.subr.mxu0 0.0
        %5637 = vmatpush2.msra.mxu0 0.0
        %5638 = vmatprep.subr.mxu0 0.0
        %5639 = vmatpush2.msra.mxu0 0.0
        %5640 = vmatprep.subr.mxu0 0.0
        %5641 = vmatpush2.msra.mxu0 0.0
        %5642 = vmatprep.subr.mxu0 0.0
        %5643 = vmatpush2.msra.mxu0 0.0
        %5644 = vmatprep.subr.mxu0 0.0
        %5645 = vmatpush2.msra.mxu0 0.0
        %5646 = vmatprep.subr.mxu0 0.0
        %5647 = vmatpush2.msra.mxu0 0.0
        %5648 = vmatprep.subr.mxu0 0.0
        %5649 = vmatpush2.msra.mxu0 0.0
        %5650 = vmatprep.subr.mxu0 0.0
        %5651 = vmatpush2.msra.mxu0 0.0
        %5652 = vmatprep.subr.mxu0 0.0
        %5653 = vmatpush2.msra.mxu0 0.0
        %5654 = vmatprep.mubr.f32.mxu0 0.0
        %5655 = vmatmul.mubr.f32.gmra.mxu0 %v5588
        %v5656 = vpop.f32.mrf.mxu0
        %v5657 = vadd.f32 %v5585, %v5656
        %v5658 = vpop.f32.mrf.mxu0
        %5659 = vdwg.mxu0
        %v5660 = vadd.f32 %v5657, %v5482
        %s5661 = scalar_lea.vmem [#allocation28], 1
        %v5662 = vld [vmem:[%s5661] sm:$0x1]
        %s5663 = scalar_lea.vmem [#allocation29], 1
        %v5664 = vld [vmem:[%s5663] sm:$0x1]
        %v5665 = vsel %vm1512, %v5660, 0.0
        %5666 = vadd.xlane.f32.xlu0 %v5665
        %v5667 = vpop.xlane.xlu0 %5666
        %v5668 = vmul.f32 %v5667, %v2360
        %v5669 = vsub.f32 %v5660, %v5668
        %v5670 = vmul.f32 %v5669, %v5669
        %v5671 = vsel %vm1512, %v5670, 0.0
        %5672 = vadd.xlane.f32.xlu0 %v5671
        %v5673 = vpop.xlane.xlu0 %5672
        %v5674 = vmul.f32 %v5673, %v2360
        %v5675 = vadd.f32 %v5674, 1e-05
        %v5676 = vrsqrt.pop %v5675
        %v5677 = vmul.f32 %v5669, %v5676
        %v5679 = vlaneseq
        %v5680 = vshrl.u32 %v5679, 7
        %v5681 = vsub.s32 0, %v5680
        %v5682 = vrot.slane %v5662, %v5681
        %v5684 = vmul.f32 %v5677, %v5682
        %v5686 = vlaneseq
        %v5687 = vshrl.u32 %v5686, 7
        %v5688 = vsub.s32 0, %v5687
        %v5689 = vrot.slane %v5664, %v5688
        %v5691 = vadd.f32 %v5684, %v5689
        %v5692 = vld [vmem:[#allocation31] sm:$0x1]
        %v5693 = vld [vmem:[#allocation32] sm:$0x1]
        %v5694 = vsel %vm1512, %v5691, 0.0
        %5695 = vadd.xlane.f32.xlu0 %v5694
        %v5696 = vpop.xlane.xlu0 %5695
        %v5697 = vmul.f32 %v5696, %v2360
        %v5698 = vsub.f32 %v5691, %v5697
        %v5699 = vmul.f32 %v5698, %v5698
        %v5700 = vsel %vm1512, %v5699, 0.0
        %5701 = vadd.xlane.f32.xlu0 %v5700
        %v5702 = vpop.xlane.xlu0 %5701
        %v5703 = vmul.f32 %v5702, %v2360
        %v5704 = vadd.f32 %v5703, 1e-05
        %v5705 = vrsqrt.pop %v5704
        %v5706 = vmul.f32 %v5698, %v5705
        %v5708 = vlaneseq
        %v5709 = vshrl.u32 %v5708, 7
        %v5710 = vsub.s32 0, %v5709
        %v5711 = vrot.slane %v5692, %v5710
        %v5713 = vmul.f32 %v5706, %v5711
        %v5715 = vlaneseq
        %v5716 = vshrl.u32 %v5715, 7
        %v5717 = vsub.s32 0, %v5716
        %v5718 = vrot.slane %v5693, %v5717
        %v5720 = vadd.f32 %v5713, %v5718
        %v5721 = vld [vmem:[%s1305] sm:$0x1]
        %v5723 = vsel %vm2647, %v5721, 0
        %v5725 = vsel %vm2667, %v1484, 0
        %5727 = vmatprep.subr.mxu0 0.0
        %5728 = vmatpush1.msra.mxu0 0.0
        %5729 = vmatprep.subr.mxu0 0.0
        %5730 = vmatpush1.msra.mxu0 0.0
        %5731 = vmatprep.subr.mxu0 0.0
        %5732 = vmatpush1.msra.mxu0 0.0
        %5733 = vmatprep.subr.mxu0 0.0
        %5734 = vmatpush1.msra.mxu0 0.0
        %5735 = vmatprep.subr.mxu0 0.0
        %5736 = vmatpush1.msra.mxu0 0.0
        %5737 = vmatprep.subr.mxu0 0.0
        %5738 = vmatpush1.msra.mxu0 0.0
        %5739 = vmatprep.subr.mxu0 0.0
        %5740 = vmatpush1.msra.mxu0 0.0
        %5741 = vmatprep.subr.mxu0 0.0
        %5742 = vmatpush1.msra.mxu0 0.0
        %5743 = vmatprep.subr.mxu0 0.0
        %5744 = vmatpush1.msra.mxu0 0.0
        %5745 = vmatprep.subr.mxu0 0.0
        %5746 = vmatpush1.msra.mxu0 0.0
        %5747 = vmatprep.subr.mxu0 0.0
        %5748 = vmatpush1.msra.mxu0 0.0
        %5749 = vmatprep.subr.mxu0 0.0
        %5750 = vmatpush1.msra.mxu0 0.0
        %5751 = vmatprep.subr.mxu0 0.0
        %5752 = vmatpush1.msra.mxu0 0.0
        %5753 = vmatprep.subr.mxu0 0.0
        %5754 = vmatpush1.msra.mxu0 0.0
        %5755 = vmatprep.subr.mxu0 0.0
        %5756 = vmatpush1.msra.mxu0 %v5725
        %5757 = vmatprep.subr.mxu0 0.0
        %5758 = vmatpush1.msra.mxu0 %v1479
        %5759 = vmatprep.subr.mxu0 0.0
        %5760 = vmatpush2.msra.mxu0 0.0
        %5761 = vmatprep.subr.mxu0 0.0
        %5762 = vmatpush2.msra.mxu0 0.0
        %5763 = vmatprep.subr.mxu0 0.0
        %5764 = vmatpush2.msra.mxu0 0.0
        %5765 = vmatprep.subr.mxu0 0.0
        %5766 = vmatpush2.msra.mxu0 0.0
        %5767 = vmatprep.subr.mxu0 0.0
        %5768 = vmatpush2.msra.mxu0 0.0
        %5769 = vmatprep.subr.mxu0 0.0
        %5770 = vmatpush2.msra.mxu0 0.0
        %5771 = vmatprep.subr.mxu0 0.0
        %5772 = vmatpush2.msra.mxu0 0.0
        %5773 = vmatprep.subr.mxu0 0.0
        %5774 = vmatpush2.msra.mxu0 0.0
        %5775 = vmatprep.subr.mxu0 0.0
        %5776 = vmatpush2.msra.mxu0 0.0
        %5777 = vmatprep.subr.mxu0 0.0
        %5778 = vmatpush2.msra.mxu0 0.0
        %5779 = vmatprep.subr.mxu0 0.0
        %5780 = vmatpush2.msra.mxu0 0.0
        %5781 = vmatprep.subr.mxu0 0.0
        %5782 = vmatpush2.msra.mxu0 0.0
        %5783 = vmatprep.subr.mxu0 0.0
        %5784 = vmatpush2.msra.mxu0 0.0
        %5785 = vmatprep.subr.mxu0 0.0
        %5786 = vmatpush2.msra.mxu0 0.0
        %5787 = vmatprep.subr.mxu0 0.0
        %5788 = vmatpush2.msra.mxu0 0.0
        %5789 = vmatprep.subr.mxu0 0.0
        %5790 = vmatpush2.msra.mxu0 0.0
        %5791 = vmatprep.mubr.f32.mxu0 0.0
        %5792 = vmatmul.mubr.f32.gmra.mxu0 %v5723
        %v5793 = vpop.f32.mrf.mxu0
        %v5794 = vadd.f32 0.0, %v5793
        %v5795 = vpop.f32.mrf.mxu0
        %5796 = vdwg.mxu0
        %v5797 = vlaneseq
        %v5798 = vshrl.u32 %v5797, 7
        %v5799 = vsub.s32 0, %v5798
        %v5800 = vrot.slane %v5794, %v5799
        %5802 = vrot.lane.b32.xlu0 %v5720, 32
        %v5803 = vpop.permute.xlu0 %5802
        %v5805 = vsel %vm1512, %v5800, %v5803
        %5806 = vst.msk [vmem:[%s1291] sm:$0xff] %vm3489, %v5805
        %s5807 = sand.u32 %s774, 1
        %s5808 = scalar_lea.sflag [#allocation4], %s5807
        %s5809 = sand.u32 %s774, 1
        %s5810 = smul.addr %s5809, 8
        %s5811 = scalar_lea.vmem [#allocation34], %s5810
        // Predicated region
        $region225: #{modal_fuser_forward.1} parent=143 // pred_check
          %p5812 = pneg %p784
        $region226: #{modal_fuser_forward.1} parent=143 // pred_check_branch
          %5814 = sbr.rel (%p5812) target = $region228
        $region227: #{modal_fuser_forward.1} parent=143 // pred_region
          %s5816 = ssub.s32 128, 128
          %5817 = vsyncadd %s5808, %s5816
          %s5818 = smul.addr %s90, 128
          %s5819 = scalar_lea.hbm %s63, %s5818
          %s5821 = sshll.u32 %s5811, 4
          %s5822 = int_to_ptr.vmem [resolvable:$true] %s5821
          %5824 = dma.vmem_to_hbm [thread:$0]  %s5822, 128, %s5819, %s5808
        $region228: #{modal_fuser_forward.1} parent=143 // pred_fallthru
          _
      $region144: #{modal_fuser_forward.1} parent=5 // pred_fallthru
        _
      %p5825 = scmp.le.s32.totalorder 2, %s85
      // Predicated region
      $region229: #{modal_fuser_forward.1} parent=5 // pred_check
        %p5826 = pneg %p5825
      $region230: #{modal_fuser_forward.1} parent=5 // pred_check_branch
        %5828 = sbr.rel (%p5826) target = $region232
      $region231: #{modal_fuser_forward.1} parent=5 // pred_region
        %s5829 = ssub.s32 %s85, 2
        // Predicated region
        $region233: #{modal_fuser_forward.1} parent=231 // pred_check
          %p5830 = pneg %p790
        $region234: #{modal_fuser_forward.1} parent=231 // pred_check_branch
          %5832 = sbr.rel (%p5830) target = $region236
        $region235: #{modal_fuser_forward.1} parent=231 // pred_region
          %s5833 = sand.u32 %s775, 1
          %s5834 = scalar_lea.sflag [#allocation4], %s5833
          %s5835 = sand.u32 %s775, 1
          %s5836 = smul.addr %s5835, 8
          %s5837 = scalar_lea.vmem [#allocation34], %s5836
          %5838 = dma.done %s5834, 128
        $region236: #{modal_fuser_forward.1} parent=231 // pred_fallthru
          _
      $region232: #{modal_fuser_forward.1} parent=5 // pred_fallthru
        _
    $region6: #{modal_fuser_forward.1} parent=1 // loop_footer
      %s89 = sadd.s32 1, %s85
    $region7: #{modal_fuser_forward.1} parent=1 // loop_footer_branch
      %84 = sbr.rel target = $region3
    $region8: #{modal_fuser_forward.1} parent=1 // loop_exit
      _
    %5839 = vsyncpa [#allocation3], 1
    %s5840 = scalar_lea.sflag [#allocation3], 1
    %5841 = vsyncpa %s5840, 1
    %5842 = vsyncpa [#allocation6], 1
    %5843 = vsyncpa [#allocation9], 1
    %5844 = vsyncpa [#allocation12], 1
    %5845 = vsyncpa [#allocation15], 1
    %5846 = vsyncpa [#allocation18], 1
    %5847 = vsyncpa [#allocation21], 1
    %5848 = vsyncpa [#allocation24], 1
    %5849 = vsyncpa [#allocation27], 1
    %5850 = vsyncpa [#allocation30], 1
    %5851 = vsyncpa [#allocation33], 1
    %5852 = vsyncpa [#allocation4], 1
    %s5853 = scalar_lea.sflag [#allocation4], 1
    %5854 = vsyncpa %s5853, 1

</llo_original>
